<compile_context>
chip_gen: v7x
topology: tpu7x:2x2x1
jax: 0.10.0
libtpu: 0.0.40
codegen_flags: <defaults>
</compile_context>

<pallas_src>
import functools

import jax
import jax.numpy as jnp
from jax import lax
from jax.experimental import pallas as pl
from jax.experimental.pallas import tpu as pltpu


# ----------------------------------------------------------------------------
# Shared epilogue: [+bias] -> [BatchNorm (batch stats)] -> [LeakyReLU]
# ----------------------------------------------------------------------------
def _epilogue(y, b_ref, g_ref, beta_ref, *, use_bias, use_bn, use_act, eps, alpha):
    if use_bias:
        y = y + b_ref[...]
    if use_bn:
        # BatchNorm2d training-mode forward: per-channel (column) stats over all
        # rows (rows = batch * spatial), biased variance, eps=0.8. Correct under
        # N tiling because channels are independent and full M is resident.
        mean = jnp.mean(y, axis=0, keepdims=True)
        var = jnp.mean(jnp.square(y - mean), axis=0, keepdims=True)
        y = (y - mean) * lax.rsqrt(var + eps) * g_ref[...] + beta_ref[...]
    if use_act:
        y = jnp.where(y >= 0.0, y, alpha * y)          # LeakyReLU(0.2)
    return y


# ----------------------------------------------------------------------------
# Kernel A: single K block  (grid = (N_tiles,), no scratch, no reduction axis)
# ----------------------------------------------------------------------------
def _kernel_single_k(x_ref, w_ref, *rest, use_bias, use_bn, use_act, eps, alpha):
    idx = 0
    b_ref = g_ref = beta_ref = None
    if use_bias:
        b_ref = rest[idx]; idx += 1
    if use_bn:
        g_ref, beta_ref = rest[idx], rest[idx + 1]; idx += 2
    o_ref = rest[idx]

    # bf16 x bf16 -> f32 on the MXU, full K in one shot.
    y = jnp.dot(x_ref[...], w_ref[...], preferred_element_type=jnp.float32)
    y = _epilogue(y, b_ref, g_ref, beta_ref, use_bias=use_bias, use_bn=use_bn,
                  use_act=use_act, eps=eps, alpha=alpha)
    o_ref[...] = y.astype(o_ref.dtype)


# ----------------------------------------------------------------------------
# Kernel B: K-tiled fallback  (grid = (N_tiles, K_tiles), f32 VMEM accumulator)
# ----------------------------------------------------------------------------
def _kernel_k_tiled(x_ref, w_ref, *rest, use_bias, use_bn, use_act, eps, alpha):
    idx = 0
    b_ref = g_ref = beta_ref = None
    if use_bias:
        b_ref = rest[idx]; idx += 1
    if use_bn:
        g_ref, beta_ref = rest[idx], rest[idx + 1]; idx += 2
    o_ref, acc_ref = rest[idx], rest[idx + 1]

    k = pl.program_id(1)

    @pl.when(k == 0)
    def _():
        acc_ref[...] = jnp.zeros_like(acc_ref)

    acc_ref[...] += jnp.dot(x_ref[...], w_ref[...],
                            preferred_element_type=jnp.float32)

    @pl.when(k == pl.num_programs(1) - 1)
    def _():
        y = _epilogue(acc_ref[...], b_ref, g_ref, beta_ref, use_bias=use_bias,
                      use_bn=use_bn, use_act=use_act, eps=eps, alpha=alpha)
        o_ref[...] = y.astype(o_ref.dtype)


# ----------------------------------------------------------------------------
# Adaptive tile selection (prefer a single K block; keep per-step VMEM bounded)
# ----------------------------------------------------------------------------
_VMEM_BUDGET = 12 * 1024 * 1024   # per-step working set incl. 2x double-buffer


def _fits(M, tk, tn, k_tiled):
    x_b = M * tk * 2           # bf16 input tile
    w_b = tk * tn * 2          # bf16 weight tile
    o_b = M * tn * 4           # output tile (<= f32)
    acc = M * tn * 4 if k_tiled else 0
    return 2 * (x_b + w_b + o_b) + acc <= _VMEM_BUDGET


def _pick_tiles(M, K, N):
    # 1) Prefer full K (no scratch accumulation) with the widest N tile that fits.
    for tn in (N, 512, 256, 128):
        if tn <= N and N % tn == 0 and _fits(M, K, tn, k_tiled=False):
            return K, tn
    # 2) Fall back to a K-reduction grid axis.
    for tk in (2048, 1024, 512, 256, 128):
        if tk <= K and K % tk == 0:
            for tn in (min(N, 512), 256, 128):
                if tn <= N and N % tn == 0 and _fits(M, tk, tn, k_tiled=True):
                    return tk, tn
    return K, N   # last resort: single block


# ----------------------------------------------------------------------------
# Fused layer wrapper:  y = act(bn(x @ w + bias));  x:(M,K), w:(K,N) bf16
# ----------------------------------------------------------------------------
def fused_layer(x, w, bias=None, gamma=None, beta=None, *, use_bn, use_act,
                out_dtype, eps=0.8, alpha=0.2):
    M, K = x.shape
    N = w.shape[1]
    tk, tn = _pick_tiles(M, K, N)
    use_bias = bias is not None
    single_k = (tk == K)

    inputs = [x.astype(jnp.bfloat16), w.astype(jnp.bfloat16)]
    vecs = []
    if use_bias:
        vecs.append(bias.reshape(1, N).astype(jnp.float32))
    if use_bn:
        vecs += [gamma.reshape(1, N).astype(jnp.float32),
                 beta.reshape(1, N).astype(jnp.float32)]

    kw = dict(use_bias=use_bias, use_bn=use_bn, use_act=use_act,
              eps=float(eps), alpha=float(alpha))

    if single_k:
        kernel = functools.partial(_kernel_single_k, **kw)
        grid = (N // tn,)
        in_specs = ([pl.BlockSpec((M, K), lambda j: (0, 0)),
                     pl.BlockSpec((K, tn), lambda j: (0, j))]
                    + [pl.BlockSpec((1, tn), lambda j: (0, j))] * len(vecs))
        out_specs = pl.BlockSpec((M, tn), lambda j: (0, j))
        scratch_shapes = []
        dims = ("parallel",)
    else:
        kernel = functools.partial(_kernel_k_tiled, **kw)
        grid = (N // tn, K // tk)
        in_specs = ([pl.BlockSpec((M, tk), lambda j, k: (0, k)),
                     pl.BlockSpec((tk, tn), lambda j, k: (k, j))]
                    + [pl.BlockSpec((1, tn), lambda j, k: (0, j))] * len(vecs))
        out_specs = pl.BlockSpec((M, tn), lambda j, k: (0, j))
        scratch_shapes = [pltpu.VMEM((M, tn), jnp.float32)]
        dims = ("parallel", "arbitrary")

    return pl.pallas_call(
        kernel,
        out_shape=jax.ShapeDtypeStruct((M, N), out_dtype),
        grid_spec=pltpu.PrefetchScalarGridSpec(
            num_scalar_prefetch=0,
            grid=grid,
            in_specs=in_specs,
            out_specs=out_specs,
            scratch_shapes=scratch_shapes),
        compiler_params=pltpu.CompilerParams(
            dimension_semantics=dims,
            vmem_limit_bytes=32 * 1024 * 1024),
    )(*inputs, *vecs)


# ----------------------------------------------------------------------------
# XLA glue: NHWC im2col for 4x4 / stride 2 / padding 1 convolutions
# ----------------------------------------------------------------------------
def im2col_nhwc(x, kh=4, kw=4, stride=2, pad=1):
    """x: (N, H, W, C) -> patches (N*OH*OW, kh*kw*C)  [K order: (i, j, c)]."""
    n, h, w, c = x.shape
    xp = jnp.pad(x, ((0, 0), (pad, pad), (pad, pad), (0, 0)))
    oh = (h + 2 * pad - kh) // stride + 1
    ow = (w + 2 * pad - kw) // stride + 1
    taps = [xp[:, i:i + stride * oh:stride, j:j + stride * ow:stride, :]
            for i in range(kh) for j in range(kw)]
    patches = jnp.concatenate(taps, axis=-1)      # (N, OH, OW, kh*kw*C)
    return patches.reshape(n * oh * ow, kh * kw * c), oh, ow


# ----------------------------------------------------------------------------
# Parameters (deterministic, synthetic) — stored in kernel-ready layout
# ----------------------------------------------------------------------------
def init_params(key, img_channels, img_size, latent_dim):
    chans = [img_channels, 64, 128, 256, 512]
    keys = iter(jax.random.split(key, 32))
    convs = []
    for i in range(4):
        cin, cout = chans[i], chans[i + 1]
        w = 0.05 * jax.random.normal(next(keys), (cout, cin, 4, 4), jnp.float32)
        layer = {
            # PyTorch (Cout,Cin,KH,KW) -> (KH,KW,Cin,Cout) -> (16*Cin, Cout):
            # matches the tap-major / channel-inner K order of im2col_nhwc.
            "w2d": jnp.transpose(w, (2, 3, 1, 0)).reshape(16 * cin, cout)
                      .astype(jnp.bfloat16),
        }
        if i == 0:
            layer["b"] = 0.05 * jax.random.normal(next(keys), (cout,), jnp.float32)
        else:
            # Conv bias on BN layers is cancelled by the BN mean subtraction ->
            # skipped entirely (forward output is identical).
            layer["gamma"] = 1.0 + 0.1 * jax.random.normal(next(keys), (cout,),
                                                           jnp.float32)
            layer["beta"] = 0.1 * jax.random.normal(next(keys), (cout,), jnp.float32)
        convs.append(layer)

    ds = img_size // 2 ** 4
    in_features = 512 * ds * ds
    fc_w = 0.05 * jax.random.normal(next(keys), (latent_dim, in_features), jnp.float32)
    fc_b = 0.05 * jax.random.normal(next(keys), (latent_dim,), jnp.float32)
    # PyTorch flattens NCHW (channel-major); our activations are NHWC — permute
    # the FC weight columns once, then pad outputs to a lane-dense 128 multiple.
    fc_w = fc_w.reshape(latent_dim, 512, ds, ds).transpose(0, 2, 3, 1)
    fc_w = fc_w.reshape(latent_dim, in_features)
    lat_pad = 128 * pl.cdiv(latent_dim, 128)
    fc_w_pad = jnp.zeros((in_features, lat_pad), jnp.float32)
    fc_w_pad = fc_w_pad.at[:, :latent_dim].set(fc_w.T)
    fc_b_pad = jnp.zeros((lat_pad,), jnp.float32).at[:latent_dim].set(fc_b)
    return {"convs": convs,
            "fc_w": fc_w_pad.astype(jnp.bfloat16),
            "fc_b": fc_b_pad}


# ----------------------------------------------------------------------------
# Encoder forward
# ----------------------------------------------------------------------------
def encoder_forward(img, params, *, latent_dim):
    # Single NCHW -> NHWC transpose of the raw input; everything downstream
    # stays NHWC / bf16 so no per-layer layout transposes touch HBM.
    x = jnp.transpose(img, (0, 2, 3, 1)).astype(jnp.bfloat16)
    n = x.shape[0]
    for li, layer in enumerate(params["convs"]):
        patches, oh, ow = im2col_nhwc(x)                       # (M, 16*Cin)
        y = fused_layer(patches, layer["w2d"],
                        bias=layer.get("b"),
                        gamma=layer.get("gamma"), beta=layer.get("beta"),
                        use_bn=(li > 0), use_act=True,
                        out_dtype=jnp.bfloat16)                # (M, Cout)
        x = y.reshape(n, oh, ow, -1)
    flat = x.reshape(n, -1)          # NHWC flatten (FC weights permuted to match)
    latent_padded = fused_layer(flat, params["fc_w"], bias=params["fc_b"],
                                use_bn=False, use_act=False,
                                out_dtype=jnp.float32)
    return latent_padded[:, :latent_dim]


if __name__ == "__main__":
    img_channels, img_size, latent_dim, batch = 4, 16, 32, 2

    key = jax.random.PRNGKey(0)
    k_img, k_params = jax.random.split(key)
    img = jax.random.normal(k_img, (batch, img_channels, img_size, img_size),
                            jnp.float32)
    params = init_params(k_params, img_channels, img_size, latent_dim)

    forward = jax.jit(functools.partial(encoder_forward, latent_dim=latent_dim))
    latent = forward(img, params)
    jax.block_until_ready(latent)
    assert latent.shape == (batch, latent_dim)
    assert latent.dtype == jnp.float32
    print("KERNEL_OK")
</pallas_src>

<mosaic_0001>
module attributes {stable_mosaic.version = 11 : i64} {
  func.func @_kernel_single_k(%arg0: i32, %arg1: memref<128x64xbf16, #tpu.memory_space<vmem>>, %arg2: memref<64x64xbf16, #tpu.memory_space<vmem>>, %arg3: memref<1x64xf32, #tpu.memory_space<vmem>>, %arg4: memref<128x64xbf16, #tpu.memory_space<vmem>>) attributes {dimension_semantics = [#tpu.dimension_semantics<parallel>], iteration_bounds = array<i64: 1>, scalar_prefetch = 0 : i64, scratch_operands = 0 : i64, tpu.core_type = #tpu.core_type<tc>, window_params = [{pipeline_mode = #tpu.pipeline_mode<synchronous>, transform_indices = @transform_0, window_bounds = array<i64: 128, 64>}, {transform_indices = @transform_1, window_bounds = array<i64: 64, 64>}, {transform_indices = @transform_2, window_bounds = array<i64: 1, 64>}, {transform_indices = @transform_3, window_bounds = array<i64: 128, 64>}]} {
    %c0 = arith.constant 0 : index
    %c0_0 = arith.constant 0 : index
    %0 = vector.load %arg1[%c0, %c0_0] : memref<128x64xbf16, #tpu.memory_space<vmem>>, vector<128x64xbf16>
    %c0_1 = arith.constant 0 : index
    %c0_2 = arith.constant 0 : index
    %1 = vector.load %arg2[%c0_1, %c0_2] : memref<64x64xbf16, #tpu.memory_space<vmem>>, vector<64x64xbf16>
    %cst = arith.constant dense<0.000000e+00> : vector<128x64xf32>
    %2 = tpu.matmul %0, %1, %cst {dimension_numbers = #tpu.dot_dimension_numbers<[1], [0], [0], [1], [0, 0, 1, 1], [], []>} : vector<128x64xbf16>, vector<64x64xbf16>, vector<128x64xf32> -> vector<128x64xf32>
    %c0_3 = arith.constant 0 : index
    %c0_4 = arith.constant 0 : index
    %3 = vector.load %arg3[%c0_3, %c0_4] : memref<1x64xf32, #tpu.memory_space<vmem>>, vector<1x64xf32>
    %4 = vector.broadcast %3 : vector<1x64xf32> to vector<128x64xf32>
    %5 = arith.addf %2, %4 : vector<128x64xf32>
    %cst_5 = arith.constant 0.000000e+00 : f32
    %6 = vector.broadcast %cst_5 : f32 to vector<128x64xf32>
    %7 = arith.cmpf oge, %5, %6 : vector<128x64xf32>
    %cst_6 = arith.constant 2.000000e-01 : f32
    %8 = vector.broadcast %cst_6 : f32 to vector<128x64xf32>
    %9 = arith.mulf %8, %5 : vector<128x64xf32>
    %10 = arith.select %7, %5, %9 : vector<128x64xi1>, vector<128x64xf32>
    %11 = arith.truncf %10 : vector<128x64xf32> to vector<128x64xbf16>
    %c0_7 = arith.constant 0 : index
    %c0_8 = arith.constant 0 : index
    %12 = vector.load %arg4[%c0_7, %c0_8] : memref<128x64xbf16, #tpu.memory_space<vmem>>, vector<128x64xbf16>
    tpu.vector_store %arg4[%c0_7, %c0_8], %11 {strides = array<i32>} : memref<128x64xbf16, #tpu.memory_space<vmem>>, vector<128x64xbf16>,
    return
  }
  func.func @transform_0(%arg0: i32) -> (i32, i32) {
    %c0_i32 = arith.constant 0 : i32
    %c0_i32_0 = arith.constant 0 : i32
    %c0_i32_1 = arith.constant 0 : i32
    return %c0_i32, %c0_i32_0 : i32, i32
  }
  func.func @transform_1(%arg0: i32) -> (i32, i32) {
    %c0_i32 = arith.constant 0 : i32
    %c0_i32_0 = arith.constant 0 : i32
    return %c0_i32, %arg0 : i32, i32
  }
  func.func @transform_2(%arg0: i32) -> (i32, i32) {
    %c0_i32 = arith.constant 0 : i32
    %c0_i32_0 = arith.constant 0 : i32
    return %c0_i32, %arg0 : i32, i32
  }
  func.func @transform_3(%arg0: i32) -> (i32, i32) {
    %c0_i32 = arith.constant 0 : i32
    %c0_i32_0 = arith.constant 0 : i32
    return %c0_i32, %arg0 : i32, i32
  }
}

module attributes {stable_mosaic.version = 11 : i64} {
  func.func @_kernel_single_k(%arg0: i32, %arg1: memref<32x1024xbf16, #tpu.memory_space<vmem>>, %arg2: memref<1024x128xbf16, #tpu.memory_space<vmem>>, %arg3: memref<1x128xf32, #tpu.memory_space<vmem>>, %arg4: memref<1x128xf32, #tpu.memory_space<vmem>>, %arg5: memref<32x128xbf16, #tpu.memory_space<vmem>>) attributes {dimension_semantics = [#tpu.dimension_semantics<parallel>], iteration_bounds = array<i64: 1>, scalar_prefetch = 0 : i64, scratch_operands = 0 : i64, tpu.core_type = #tpu.core_type<tc>, window_params = [{pipeline_mode = #tpu.pipeline_mode<synchronous>, transform_indices = @transform_0, window_bounds = array<i64: 32, 1024>}, {transform_indices = @transform_1, window_bounds = array<i64: 1024, 128>}, {transform_indices = @transform_2, window_bounds = array<i64: 1, 128>}, {transform_indices = @transform_3, window_bounds = array<i64: 1, 128>}, {transform_indices = @transform_4, window_bounds = array<i64: 32, 128>}]} {
    %c0 = arith.constant 0 : index
    %c0_0 = arith.constant 0 : index
    %0 = vector.load %arg1[%c0, %c0_0] : memref<32x1024xbf16, #tpu.memory_space<vmem>>, vector<32x1024xbf16>
    %c0_1 = arith.constant 0 : index
    %c0_2 = arith.constant 0 : index
    %1 = vector.load %arg2[%c0_1, %c0_2] : memref<1024x128xbf16, #tpu.memory_space<vmem>>, vector<1024x128xbf16>
    %cst = arith.constant dense<0.000000e+00> : vector<32x128xf32>
    %2 = tpu.matmul %0, %1, %cst {dimension_numbers = #tpu.dot_dimension_numbers<[1], [0], [0], [1], [0, 0, 1, 1], [], []>} : vector<32x1024xbf16>, vector<1024x128xbf16>, vector<32x128xf32> -> vector<32x128xf32>
    %cst_3 = arith.constant dense<0.000000e+00> : vector<128xf32>
    %3 = vector.multi_reduction <add>, %2, %cst_3 [0] : vector<32x128xf32> to vector<128xf32>
    %4 = vector.shape_cast %3 : vector<128xf32> to vector<1x128xf32>
    %cst_4 = arith.constant 3.200000e+01 : f32
    %5 = vector.broadcast %cst_4 : f32 to vector<1x128xf32>
    %6 = arith.divf %4, %5 : vector<1x128xf32>
    %7 = vector.broadcast %6 : vector<1x128xf32> to vector<32x128xf32>
    %8 = arith.subf %2, %7 : vector<32x128xf32>
    %9 = arith.mulf %8, %8 : vector<32x128xf32>
    %cst_5 = arith.constant dense<0.000000e+00> : vector<128xf32>
    %10 = vector.multi_reduction <add>, %9, %cst_5 [0] : vector<32x128xf32> to vector<128xf32>
    %11 = vector.shape_cast %10 : vector<128xf32> to vector<1x128xf32>
    %cst_6 = arith.constant 3.200000e+01 : f32
    %12 = vector.broadcast %cst_6 : f32 to vector<1x128xf32>
    %13 = arith.divf %11, %12 : vector<1x128xf32>
    %14 = vector.broadcast %6 : vector<1x128xf32> to vector<32x128xf32>
    %15 = arith.subf %2, %14 : vector<32x128xf32>
    %cst_7 = arith.constant 8.000000e-01 : f32
    %16 = vector.broadcast %cst_7 : f32 to vector<1x128xf32>
    %17 = arith.addf %13, %16 : vector<1x128xf32>
    %18 = math.rsqrt %17 : vector<1x128xf32>
    %19 = vector.broadcast %18 : vector<1x128xf32> to vector<32x128xf32>
    %20 = arith.mulf %15, %19 : vector<32x128xf32>
    %c0_8 = arith.constant 0 : index
    %c0_9 = arith.constant 0 : index
    %21 = vector.load %arg3[%c0_8, %c0_9] : memref<1x128xf32, #tpu.memory_space<vmem>>, vector<1x128xf32>
    %22 = vector.broadcast %21 : vector<1x128xf32> to vector<32x128xf32>
    %23 = arith.mulf %20, %22 : vector<32x128xf32>
    %c0_10 = arith.constant 0 : index
    %c0_11 = arith.constant 0 : index
    %24 = vector.load %arg4[%c0_10, %c0_11] : memref<1x128xf32, #tpu.memory_space<vmem>>, vector<1x128xf32>
    %25 = vector.broadcast %24 : vector<1x128xf32> to vector<32x128xf32>
    %26 = arith.addf %23, %25 : vector<32x128xf32>
    %cst_12 = arith.constant 0.000000e+00 : f32
    %27 = vector.broadcast %cst_12 : f32 to vector<32x128xf32>
    %28 = arith.cmpf oge, %26, %27 : vector<32x128xf32>
    %cst_13 = arith.constant 2.000000e-01 : f32
    %29 = vector.broadcast %cst_13 : f32 to vector<32x128xf32>
    %30 = arith.mulf %29, %26 : vector<32x128xf32>
    %31 = arith.select %28, %26, %30 : vector<32x128xi1>, vector<32x128xf32>
    %32 = arith.truncf %31 : vector<32x128xf32> to vector<32x128xbf16>
    %c0_14 = arith.constant 0 : index
    %c0_15 = arith.constant 0 : index
    %33 = vector.load %arg5[%c0_14, %c0_15] : memref<32x128xbf16, #tpu.memory_space<vmem>>, vector<32x128xbf16>
    tpu.vector_store %arg5[%c0_14, %c0_15], %32 {strides = array<i32>} : memref<32x128xbf16, #tpu.memory_space<vmem>>, vector<32x128xbf16>,
    return
  }
  func.func @transform_0(%arg0: i32) -> (i32, i32) {
    %c0_i32 = arith.constant 0 : i32
    %c0_i32_0 = arith.constant 0 : i32
    %c0_i32_1 = arith.constant 0 : i32
    return %c0_i32, %c0_i32_0 : i32, i32
  }
  func.func @transform_1(%arg0: i32) -> (i32, i32) {
    %c0_i32 = arith.constant 0 : i32
    %c0_i32_0 = arith.constant 0 : i32
    return %c0_i32, %arg0 : i32, i32
  }
  func.func @transform_2(%arg0: i32) -> (i32, i32) {
    %c0_i32 = arith.constant 0 : i32
    %c0_i32_0 = arith.constant 0 : i32
    return %c0_i32, %arg0 : i32, i32
  }
  func.func @transform_3(%arg0: i32) -> (i32, i32) {
    %c0_i32 = arith.constant 0 : i32
    %c0_i32_0 = arith.constant 0 : i32
    return %c0_i32, %arg0 : i32, i32
  }
  func.func @transform_4(%arg0: i32) -> (i32, i32) {
    %c0_i32 = arith.constant 0 : i32
    %c0_i32_0 = arith.constant 0 : i32
    return %c0_i32, %arg0 : i32, i32
  }
}

module attributes {stable_mosaic.version = 11 : i64} {
  func.func @_kernel_single_k(%arg0: i32, %arg1: memref<8x2048xbf16, #tpu.memory_space<vmem>>, %arg2: memref<2048x256xbf16, #tpu.memory_space<vmem>>, %arg3: memref<1x256xf32, #tpu.memory_space<vmem>>, %arg4: memref<1x256xf32, #tpu.memory_space<vmem>>, %arg5: memref<8x256xbf16, #tpu.memory_space<vmem>>) attributes {dimension_semantics = [#tpu.dimension_semantics<parallel>], iteration_bounds = array<i64: 1>, scalar_prefetch = 0 : i64, scratch_operands = 0 : i64, tpu.core_type = #tpu.core_type<tc>, window_params = [{pipeline_mode = #tpu.pipeline_mode<synchronous>, transform_indices = @transform_0, window_bounds = array<i64: 8, 2048>}, {transform_indices = @transform_1, window_bounds = array<i64: 2048, 256>}, {transform_indices = @transform_2, window_bounds = array<i64: 1, 256>}, {transform_indices = @transform_3, window_bounds = array<i64: 1, 256>}, {transform_indices = @transform_4, window_bounds = array<i64: 8, 256>}]} {
    %c0 = arith.constant 0 : index
    %c0_0 = arith.constant 0 : index
    %0 = vector.load %arg1[%c0, %c0_0] : memref<8x2048xbf16, #tpu.memory_space<vmem>>, vector<8x2048xbf16>
    %c0_1 = arith.constant 0 : index
    %c0_2 = arith.constant 0 : index
    %1 = vector.load %arg2[%c0_1, %c0_2] : memref<2048x256xbf16, #tpu.memory_space<vmem>>, vector<2048x256xbf16>
    %cst = arith.constant dense<0.000000e+00> : vector<8x256xf32>
    %2 = tpu.matmul %0, %1, %cst {dimension_numbers = #tpu.dot_dimension_numbers<[1], [0], [0], [1], [0, 0, 1, 1], [], []>} : vector<8x2048xbf16>, vector<2048x256xbf16>, vector<8x256xf32> -> vector<8x256xf32>
    %cst_3 = arith.constant dense<0.000000e+00> : vector<256xf32>
    %3 = vector.multi_reduction <add>, %2, %cst_3 [0] : vector<8x256xf32> to vector<256xf32>
    %4 = vector.shape_cast %3 : vector<256xf32> to vector<1x256xf32>
    %cst_4 = arith.constant 8.000000e+00 : f32
    %5 = vector.broadcast %cst_4 : f32 to vector<1x256xf32>
    %6 = arith.divf %4, %5 : vector<1x256xf32>
    %7 = vector.broadcast %6 : vector<1x256xf32> to vector<8x256xf32>
    %8 = arith.subf %2, %7 : vector<8x256xf32>
    %9 = arith.mulf %8, %8 : vector<8x256xf32>
    %cst_5 = arith.constant dense<0.000000e+00> : vector<256xf32>
    %10 = vector.multi_reduction <add>, %9, %cst_5 [0] : vector<8x256xf32> to vector<256xf32>
    %11 = vector.shape_cast %10 : vector<256xf32> to vector<1x256xf32>
    %cst_6 = arith.constant 8.000000e+00 : f32
    %12 = vector.broadcast %cst_6 : f32 to vector<1x256xf32>
    %13 = arith.divf %11, %12 : vector<1x256xf32>
    %14 = vector.broadcast %6 : vector<1x256xf32> to vector<8x256xf32>
    %15 = arith.subf %2, %14 : vector<8x256xf32>
    %cst_7 = arith.constant 8.000000e-01 : f32
    %16 = vector.broadcast %cst_7 : f32 to vector<1x256xf32>
    %17 = arith.addf %13, %16 : vector<1x256xf32>
    %18 = math.rsqrt %17 : vector<1x256xf32>
    %19 = vector.broadcast %18 : vector<1x256xf32> to vector<8x256xf32>
    %20 = arith.mulf %15, %19 : vector<8x256xf32>
    %c0_8 = arith.constant 0 : index
    %c0_9 = arith.constant 0 : index
    %21 = vector.load %arg3[%c0_8, %c0_9] : memref<1x256xf32, #tpu.memory_space<vmem>>, vector<1x256xf32>
    %22 = vector.broadcast %21 : vector<1x256xf32> to vector<8x256xf32>
    %23 = arith.mulf %20, %22 : vector<8x256xf32>
    %c0_10 = arith.constant 0 : index
    %c0_11 = arith.constant 0 : index
    %24 = vector.load %arg4[%c0_10, %c0_11] : memref<1x256xf32, #tpu.memory_space<vmem>>, vector<1x256xf32>
    %25 = vector.broadcast %24 : vector<1x256xf32> to vector<8x256xf32>
    %26 = arith.addf %23, %25 : vector<8x256xf32>
    %cst_12 = arith.constant 0.000000e+00 : f32
    %27 = vector.broadcast %cst_12 : f32 to vector<8x256xf32>
    %28 = arith.cmpf oge, %26, %27 : vector<8x256xf32>
    %cst_13 = arith.constant 2.000000e-01 : f32
    %29 = vector.broadcast %cst_13 : f32 to vector<8x256xf32>
    %30 = arith.mulf %29, %26 : vector<8x256xf32>
    %31 = arith.select %28, %26, %30 : vector<8x256xi1>, vector<8x256xf32>
    %32 = arith.truncf %31 : vector<8x256xf32> to vector<8x256xbf16>
    %c0_14 = arith.constant 0 : index
    %c0_15 = arith.constant 0 : index
    %33 = vector.load %arg5[%c0_14, %c0_15] : memref<8x256xbf16, #tpu.memory_space<vmem>>, vector<8x256xbf16>
    tpu.vector_store %arg5[%c0_14, %c0_15], %32 {strides = array<i32>} : memref<8x256xbf16, #tpu.memory_space<vmem>>, vector<8x256xbf16>,
    return
  }
  func.func @transform_0(%arg0: i32) -> (i32, i32) {
    %c0_i32 = arith.constant 0 : i32
    %c0_i32_0 = arith.constant 0 : i32
    %c0_i32_1 = arith.constant 0 : i32
    return %c0_i32, %c0_i32_0 : i32, i32
  }
  func.func @transform_1(%arg0: i32) -> (i32, i32) {
    %c0_i32 = arith.constant 0 : i32
    %c0_i32_0 = arith.constant 0 : i32
    return %c0_i32, %arg0 : i32, i32
  }
  func.func @transform_2(%arg0: i32) -> (i32, i32) {
    %c0_i32 = arith.constant 0 : i32
    %c0_i32_0 = arith.constant 0 : i32
    return %c0_i32, %arg0 : i32, i32
  }
  func.func @transform_3(%arg0: i32) -> (i32, i32) {
    %c0_i32 = arith.constant 0 : i32
    %c0_i32_0 = arith.constant 0 : i32
    return %c0_i32, %arg0 : i32, i32
  }
  func.func @transform_4(%arg0: i32) -> (i32, i32) {
    %c0_i32 = arith.constant 0 : i32
    %c0_i32_0 = arith.constant 0 : i32
    return %c0_i32, %arg0 : i32, i32
  }
}

module attributes {stable_mosaic.version = 11 : i64} {
  func.func @_kernel_single_k(%arg0: i32, %arg1: memref<2x512xbf16, #tpu.memory_space<vmem>>, %arg2: memref<512x128xbf16, #tpu.memory_space<vmem>>, %arg3: memref<1x128xf32, #tpu.memory_space<vmem>>, %arg4: memref<2x128xf32, #tpu.memory_space<vmem>>) attributes {dimension_semantics = [#tpu.dimension_semantics<parallel>], iteration_bounds = array<i64: 1>, scalar_prefetch = 0 : i64, scratch_operands = 0 : i64, tpu.core_type = #tpu.core_type<tc>, window_params = [{pipeline_mode = #tpu.pipeline_mode<synchronous>, transform_indices = @transform_0, window_bounds = array<i64: 2, 512>}, {transform_indices = @transform_1, window_bounds = array<i64: 512, 128>}, {transform_indices = @transform_2, window_bounds = array<i64: 1, 128>}, {transform_indices = @transform_3, window_bounds = array<i64: 2, 128>}]} {
    %c0 = arith.constant 0 : index
    %c0_0 = arith.constant 0 : index
    %0 = vector.load %arg1[%c0, %c0_0] : memref<2x512xbf16, #tpu.memory_space<vmem>>, vector<2x512xbf16>
    %c0_1 = arith.constant 0 : index
    %c0_2 = arith.constant 0 : index
    %1 = vector.load %arg2[%c0_1, %c0_2] : memref<512x128xbf16, #tpu.memory_space<vmem>>, vector<512x128xbf16>
    %cst = arith.constant dense<0.000000e+00> : vector<2x128xf32>
    %2 = tpu.matmul %0, %1, %cst {dimension_numbers = #tpu.dot_dimension_numbers<[1], [0], [0], [1], [0, 0, 1, 1], [], []>} : vector<2x512xbf16>, vector<512x128xbf16>, vector<2x128xf32> -> vector<2x128xf32>
    %c0_3 = arith.constant 0 : index
    %c0_4 = arith.constant 0 : index
    %3 = vector.load %arg3[%c0_3, %c0_4] : memref<1x128xf32, #tpu.memory_space<vmem>>, vector<1x128xf32>
    %4 = vector.broadcast %3 : vector<1x128xf32> to vector<2x128xf32>
    %5 = arith.addf %2, %4 : vector<2x128xf32>
    %c0_5 = arith.constant 0 : index
    %c0_6 = arith.constant 0 : index
    %6 = vector.load %arg4[%c0_5, %c0_6] : memref<2x128xf32, #tpu.memory_space<vmem>>, vector<2x128xf32>
    tpu.vector_store %arg4[%c0_5, %c0_6], %5 {strides = array<i32>} : memref<2x128xf32, #tpu.memory_space<vmem>>, vector<2x128xf32>,
    return
  }
  func.func @transform_0(%arg0: i32) -> (i32, i32) {
    %c0_i32 = arith.constant 0 : i32
    %c0_i32_0 = arith.constant 0 : i32
    %c0_i32_1 = arith.constant 0 : i32
    return %c0_i32, %c0_i32_0 : i32, i32
  }
  func.func @transform_1(%arg0: i32) -> (i32, i32) {
    %c0_i32 = arith.constant 0 : i32
    %c0_i32_0 = arith.constant 0 : i32
    return %c0_i32, %arg0 : i32, i32
  }
  func.func @transform_2(%arg0: i32) -> (i32, i32) {
    %c0_i32 = arith.constant 0 : i32
    %c0_i32_0 = arith.constant 0 : i32
    return %c0_i32, %arg0 : i32, i32
  }
  func.func @transform_3(%arg0: i32) -> (i32, i32) {
    %c0_i32 = arith.constant 0 : i32
    %c0_i32_0 = arith.constant 0 : i32
    return %c0_i32, %arg0 : i32, i32
  }
}

module attributes {stable_mosaic.version = 11 : i64} {
  func.func @_kernel_single_k(%arg0: i32, %arg1: memref<2x4096xbf16, #tpu.memory_space<vmem>>, %arg2: memref<4096x512xbf16, #tpu.memory_space<vmem>>, %arg3: memref<1x512xf32, #tpu.memory_space<vmem>>, %arg4: memref<1x512xf32, #tpu.memory_space<vmem>>, %arg5: memref<2x512xbf16, #tpu.memory_space<vmem>>) attributes {dimension_semantics = [#tpu.dimension_semantics<parallel>], iteration_bounds = array<i64: 1>, scalar_prefetch = 0 : i64, scratch_operands = 0 : i64, tpu.core_type = #tpu.core_type<tc>, window_params = [{pipeline_mode = #tpu.pipeline_mode<synchronous>, transform_indices = @transform_0, window_bounds = array<i64: 2, 4096>}, {transform_indices = @transform_1, window_bounds = array<i64: 4096, 512>}, {transform_indices = @transform_2, window_bounds = array<i64: 1, 512>}, {transform_indices = @transform_3, window_bounds = array<i64: 1, 512>}, {transform_indices = @transform_4, window_bounds = array<i64: 2, 512>}]} {
    %c0 = arith.constant 0 : index
    %c0_0 = arith.constant 0 : index
    %0 = vector.load %arg1[%c0, %c0_0] : memref<2x4096xbf16, #tpu.memory_space<vmem>>, vector<2x4096xbf16>
    %c0_1 = arith.constant 0 : index
    %c0_2 = arith.constant 0 : index
    %1 = vector.load %arg2[%c0_1, %c0_2] : memref<4096x512xbf16, #tpu.memory_space<vmem>>, vector<4096x512xbf16>
    %cst = arith.constant dense<0.000000e+00> : vector<2x512xf32>
    %2 = tpu.matmul %0, %1, %cst {dimension_numbers = #tpu.dot_dimension_numbers<[1], [0], [0], [1], [0, 0, 1, 1], [], []>} : vector<2x4096xbf16>, vector<4096x512xbf16>, vector<2x512xf32> -> vector<2x512xf32>
    %cst_3 = arith.constant dense<0.000000e+00> : vector<512xf32>
    %3 = vector.multi_reduction <add>, %2, %cst_3 [0] : vector<2x512xf32> to vector<512xf32>
    %4 = vector.shape_cast %3 : vector<512xf32> to vector<1x512xf32>
    %cst_4 = arith.constant 2.000000e+00 : f32
    %5 = vector.broadcast %cst_4 : f32 to vector<1x512xf32>
    %6 = arith.divf %4, %5 : vector<1x512xf32>
    %7 = vector.broadcast %6 : vector<1x512xf32> to vector<2x512xf32>
    %8 = arith.subf %2, %7 : vector<2x512xf32>
    %9 = arith.mulf %8, %8 : vector<2x512xf32>
    %cst_5 = arith.constant dense<0.000000e+00> : vector<512xf32>
    %10 = vector.multi_reduction <add>, %9, %cst_5 [0] : vector<2x512xf32> to vector<512xf32>
    %11 = vector.shape_cast %10 : vector<512xf32> to vector<1x512xf32>
    %cst_6 = arith.constant 2.000000e+00 : f32
    %12 = vector.broadcast %cst_6 : f32 to vector<1x512xf32>
    %13 = arith.divf %11, %12 : vector<1x512xf32>
    %14 = vector.broadcast %6 : vector<1x512xf32> to vector<2x512xf32>
    %15 = arith.subf %2, %14 : vector<2x512xf32>
    %cst_7 = arith.constant 8.000000e-01 : f32
    %16 = vector.broadcast %cst_7 : f32 to vector<1x512xf32>
    %17 = arith.addf %13, %16 : vector<1x512xf32>
    %18 = math.rsqrt %17 : vector<1x512xf32>
    %19 = vector.broadcast %18 : vector<1x512xf32> to vector<2x512xf32>
    %20 = arith.mulf %15, %19 : vector<2x512xf32>
    %c0_8 = arith.constant 0 : index
    %c0_9 = arith.constant 0 : index
    %21 = vector.load %arg3[%c0_8, %c0_9] : memref<1x512xf32, #tpu.memory_space<vmem>>, vector<1x512xf32>
    %22 = vector.broadcast %21 : vector<1x512xf32> to vector<2x512xf32>
    %23 = arith.mulf %20, %22 : vector<2x512xf32>
    %c0_10 = arith.constant 0 : index
    %c0_11 = arith.constant 0 : index
    %24 = vector.load %arg4[%c0_10, %c0_11] : memref<1x512xf32, #tpu.memory_space<vmem>>, vector<1x512xf32>
    %25 = vector.broadcast %24 : vector<1x512xf32> to vector<2x512xf32>
    %26 = arith.addf %23, %25 : vector<2x512xf32>
    %cst_12 = arith.constant 0.000000e+00 : f32
    %27 = vector.broadcast %cst_12 : f32 to vector<2x512xf32>
    %28 = arith.cmpf oge, %26, %27 : vector<2x512xf32>
    %cst_13 = arith.constant 2.000000e-01 : f32
    %29 = vector.broadcast %cst_13 : f32 to vector<2x512xf32>
    %30 = arith.mulf %29, %26 : vector<2x512xf32>
    %31 = arith.select %28, %26, %30 : vector<2x512xi1>, vector<2x512xf32>
    %32 = arith.truncf %31 : vector<2x512xf32> to vector<2x512xbf16>
    %c0_14 = arith.constant 0 : index
    %c0_15 = arith.constant 0 : index
    %33 = vector.load %arg5[%c0_14, %c0_15] : memref<2x512xbf16, #tpu.memory_space<vmem>>, vector<2x512xbf16>
    tpu.vector_store %arg5[%c0_14, %c0_15], %32 {strides = array<i32>} : memref<2x512xbf16, #tpu.memory_space<vmem>>, vector<2x512xbf16>,
    return
  }
  func.func @transform_0(%arg0: i32) -> (i32, i32) {
    %c0_i32 = arith.constant 0 : i32
    %c0_i32_0 = arith.constant 0 : i32
    %c0_i32_1 = arith.constant 0 : i32
    return %c0_i32, %c0_i32_0 : i32, i32
  }
  func.func @transform_1(%arg0: i32) -> (i32, i32) {
    %c0_i32 = arith.constant 0 : i32
    %c0_i32_0 = arith.constant 0 : i32
    return %c0_i32, %arg0 : i32, i32
  }
  func.func @transform_2(%arg0: i32) -> (i32, i32) {
    %c0_i32 = arith.constant 0 : i32
    %c0_i32_0 = arith.constant 0 : i32
    return %c0_i32, %arg0 : i32, i32
  }
  func.func @transform_3(%arg0: i32) -> (i32, i32) {
    %c0_i32 = arith.constant 0 : i32
    %c0_i32_0 = arith.constant 0 : i32
    return %c0_i32, %arg0 : i32, i32
  }
  func.func @transform_4(%arg0: i32) -> (i32, i32) {
    %c0_i32 = arith.constant 0 : i32
    %c0_i32_0 = arith.constant 0 : i32
    return %c0_i32, %arg0 : i32, i32
  }
}

</mosaic_0001>

<llo_original>
// kernel: encoder_forward.5
$region0: #{encoder_forward.5}
  #allocation0 [shape = 'u32[]', space=smem, size = 0x4, offset = 0x4, fixed_abs, tag = 'smem constant byte address 0x4 - core index']
  #allocation1 [shape = 'u32[144,128]{1,0:T(1,128)}', space=vmem, size = 0x12000, scoped, tag = 'internal scratch']
  %s0 = inlined_call_operand.vmem [shape: bf16[128,64], index: 0, kind: input, shape index: {}]
  %s1 = inlined_call_operand.hbm [shape: bf16[64,64], index: 1, kind: input, shape index: {}]
  %s2 = inlined_call_operand.hbm [shape: f32[1,64], index: 2, kind: input, shape index: {}]
  %s3 = inlined_call_operand.vmem [shape: bf16[128,64], index: 3, kind: output, shape index: {}]
  %s4 = sld [smem:[#allocation0]]
  $region30: #{encoder_forward.5} parent=0
    _
  %s6 = ssub.s32 1, %s4
  %s7 = scalar_select 0, %s6, %s4
  $region1: #{encoder_forward.5} parent=0
    #allocation2 [shape = 'u8[16384]{0}', space=vmem, size = 0x4000, scoped, tag = 'input window, operand 1, single buffered']
    #allocation3 [shape = 's32[1]{0}', space=sflag, size = 0x4, scoped, tag = 'scoped memory for encoder_forward.5']
    #allocation4 [shape = 'u8[512]{0}', space=vmem, size = 0x400, scoped, tag = 'input window, operand 2, single buffered']
    #allocation5 [shape = 's32[1]{0}', space=sflag, size = 0x4, scoped, tag = 'scoped memory for encoder_forward.5']
    %8 = vsyncpa [#allocation3], 0
    %9 = vsyncpa [#allocation5], 0
    // Predicated region
    $region2: #{encoder_forward.5} parent=1 // pred_check
      _
    $region3: #{encoder_forward.5} parent=1 // pred_check_branch
      %11 = sbr.rel (0) target = $region5
    $region4: #{encoder_forward.5} parent=1 // pred_region
      _
    $region5: #{encoder_forward.5} parent=1 // pred_fallthru
      _
    // Predicated region
    $region6: #{encoder_forward.5} parent=1 // pred_check
      _
    $region7: #{encoder_forward.5} parent=1 // pred_check_branch
      %13 = sbr.rel (0) target = $region9
    $region8: #{encoder_forward.5} parent=1 // pred_region
      %s15 = ssub.s32 512, 512
      %16 = vsyncadd [#allocation3], %s15
      %s17 = sshll.u32 [#allocation2], 4
      %s18 = int_to_ptr.vmem [resolvable:$true] %s17
      %23 = dma.hbm_to_vmem [thread:$0]  %s1, 512, %s18, [#allocation3], 64, 64, 4
    $region9: #{encoder_forward.5} parent=1 // pred_fallthru
      _
    // Predicated region
    $region10: #{encoder_forward.5} parent=1 // pred_check
      _
    $region11: #{encoder_forward.5} parent=1 // pred_check_branch
      %25 = sbr.rel (0) target = $region13
    $region12: #{encoder_forward.5} parent=1 // pred_region
      %s27 = ssub.s32 16, 16
      %28 = vsyncadd [#allocation5], %s27
      %s30 = sshll.u32 [#allocation4], 4
      %s31 = int_to_ptr.vmem [resolvable:$true] %s30
      %33 = dma.hbm_to_vmem [thread:$0]  %s2, 16, %s31, [#allocation5]
    $region13: #{encoder_forward.5} parent=1 // pred_fallthru
      _
    // Predicated region
    $region14: #{encoder_forward.5} parent=1 // pred_check
      _
    $region15: #{encoder_forward.5} parent=1 // pred_check_branch
      %35 = sbr.rel (0) target = $region17
    $region16: #{encoder_forward.5} parent=1 // pred_region
      %36 = dma.done [#allocation3], 512
    $region17: #{encoder_forward.5} parent=1 // pred_fallthru
      _
    // Predicated region
    $region18: #{encoder_forward.5} parent=1 // pred_check
      _
    $region19: #{encoder_forward.5} parent=1 // pred_check_branch
      %38 = sbr.rel (0) target = $region21
    $region20: #{encoder_forward.5} parent=1 // pred_region
      %39 = dma.done [#allocation5], 16
    $region21: #{encoder_forward.5} parent=1 // pred_fallthru
      _
    %v41 = vld [vmem:[%s0] sm:$0xf]
    %v42 = vld [vmem:[%s0 + $0x4] sm:$0xf]
    %v43 = vld [vmem:[%s0 + $0x8] sm:$0xf]
    %v44 = vld [vmem:[%s0 + $0xc] sm:$0xf]
    %v45 = vld [vmem:[%s0 + $0x10] sm:$0xf]
    %v46 = vld [vmem:[%s0 + $0x14] sm:$0xf]
    %v47 = vld [vmem:[%s0 + $0x18] sm:$0xf]
    %v48 = vld [vmem:[%s0 + $0x1c] sm:$0xf]
    %v49 = vld [vmem:[%s0 + $0x20] sm:$0xf]
    %v50 = vld [vmem:[%s0 + $0x24] sm:$0xf]
    %v51 = vld [vmem:[%s0 + $0x28] sm:$0xf]
    %v52 = vld [vmem:[%s0 + $0x2c] sm:$0xf]
    %v53 = vld [vmem:[%s0 + $0x30] sm:$0xf]
    %v54 = vld [vmem:[%s0 + $0x34] sm:$0xf]
    %v55 = vld [vmem:[%s0 + $0x38] sm:$0xf]
    %v56 = vld [vmem:[%s0 + $0x3c] sm:$0xf]
    %v57 = vld [vmem:[#allocation2] sm:$0xf]
    %v58 = vld [vmem:[#allocation2 + $0x4] sm:$0xf]
    %v59 = vld [vmem:[#allocation2 + $0x8] sm:$0xf]
    %v60 = vld [vmem:[#allocation2 + $0xc] sm:$0xf]
    %v61 = vld [vmem:[#allocation2 + $0x10] sm:$0xf]
    %v62 = vld [vmem:[#allocation2 + $0x14] sm:$0xf]
    %v63 = vld [vmem:[#allocation2 + $0x18] sm:$0xf]
    %v64 = vld [vmem:[#allocation2 + $0x1c] sm:$0xf]
    %v65 = vld [vmem:[#allocation4] sm:$0x1]
    %v67 = vlaneseq
    %v68 = vshrl.u32 %v67, 7
    %v69 = vsub.s32 0, %v68
    %v70 = vrot.slane %v65, %v69
    %v88 = vunpack.c.l.b16 %v41
    %v89 = vunpack.c.l.b16 %v42
    %v90 = vunpack.c.l.b16 %v43
    %v91 = vunpack.c.l.b16 %v44
    %v92 = vunpack.c.l.b16 %v45
    %v93 = vunpack.c.l.b16 %v46
    %v94 = vunpack.c.l.b16 %v47
    %v95 = vunpack.c.l.b16 %v48
    %v96 = vunpack.c.l.b16 %v49
    %v97 = vunpack.c.l.b16 %v50
    %v98 = vunpack.c.l.b16 %v51
    %v99 = vunpack.c.l.b16 %v52
    %v100 = vunpack.c.l.b16 %v53
    %v101 = vunpack.c.l.b16 %v54
    %v102 = vunpack.c.l.b16 %v55
    %v103 = vunpack.c.l.b16 %v56
    %v104 = vpack.c.b16 %v89, %v88
    %v105 = vpack.c.b16 %v91, %v90
    %v106 = vpack.c.b16 %v93, %v92
    %v107 = vpack.c.b16 %v95, %v94
    %v108 = vpack.c.b16 %v97, %v96
    %v109 = vpack.c.b16 %v99, %v98
    %v110 = vpack.c.b16 %v101, %v100
    %v111 = vpack.c.b16 %v103, %v102
    %v120 = vunpack.c.l.b16 %v57
    %v121 = vunpack.c.l.b16 %v58
    %v122 = vunpack.c.l.b16 %v59
    %v123 = vunpack.c.l.b16 %v60
    %v124 = vunpack.c.l.b16 %v61
    %v125 = vunpack.c.l.b16 %v62
    %v126 = vunpack.c.l.b16 %v63
    %v127 = vunpack.c.l.b16 %v64
    %v128 = vpack.c.b16 %v121, %v120
    %v129 = vpack.c.b16 %v123, %v122
    %v130 = vpack.c.b16 %v125, %v124
    %v131 = vpack.c.b16 %v127, %v126
    %vm136 = vcmask 523264
    %v138 = vsel %vm136, %v104, 0
    %v141 = vsel %vm136, %v105, 0
    %v144 = vsel %vm136, %v106, 0
    %v147 = vsel %vm136, %v107, 0
    %v150 = vsel %vm136, %v108, 0
    %v153 = vsel %vm136, %v109, 0
    %v156 = vsel %vm136, %v110, 0
    %v159 = vsel %vm136, %v111, 0
    %161 = vmatprep.subr.bf16.mxu0 0
    %162 = vmatpush1.bf16.msra.mxu0 %v128
    %163 = vmatprep.subr.bf16.mxu0 0
    %164 = vmatpush1.bf16.msra.mxu0 %v129
    %165 = vmatprep.subr.bf16.mxu0 0
    %166 = vmatpush1.bf16.msra.mxu0 %v130
    %167 = vmatprep.subr.bf16.mxu0 0
    %168 = vmatpush1.bf16.msra.mxu0 %v131
    %169 = vmatprep.subr.bf16.mxu0 0
    %170 = vmatpush1.bf16.msra.mxu0 0
    %171 = vmatprep.subr.bf16.mxu0 0
    %172 = vmatpush1.bf16.msra.mxu0 0
    %173 = vmatprep.subr.bf16.mxu0 0
    %174 = vmatpush1.bf16.msra.mxu0 0
    %175 = vmatprep.subr.bf16.mxu0 0
    %176 = vmatpush1.bf16.msra.mxu0 0
    %177 = vmatprep.subr.bf16.mxu0 0
    %178 = vmatpush1.bf16.msra.mxu0 0
    %179 = vmatprep.subr.bf16.mxu0 0
    %180 = vmatpush1.bf16.msra.mxu0 0
    %181 = vmatprep.subr.bf16.mxu0 0
    %182 = vmatpush1.bf16.msra.mxu0 0
    %183 = vmatprep.subr.bf16.mxu0 0
    %184 = vmatpush1.bf16.msra.mxu0 0
    %185 = vmatprep.subr.bf16.mxu0 0
    %186 = vmatpush1.bf16.msra.mxu0 0
    %187 = vmatprep.subr.bf16.mxu0 0
    %188 = vmatpush1.bf16.msra.mxu0 0
    %189 = vmatprep.subr.bf16.mxu0 0
    %190 = vmatpush1.bf16.msra.mxu0 0
    %191 = vmatprep.subr.bf16.mxu0 0
    %192 = vmatpush1.bf16.msra.mxu0 0
    %193 = vmatprep.mubr.bf16.mxu0 0
    %194 = vmatmul.mubr.bf16.gmra.mrb[0].mxu0 %v138
    %v195 = vpop.f32.mrb[0].mxu0
    %v196 = vadd.f32 %v70, %v195
    %v197 = vpop.f32.mrb[0].mxu0
    %v198 = vpop.f32.mrb[0].mxu0
    %v199 = vadd.f32 %v70, %v198
    %v200 = vpop.f32.mrb[0].mxu0
    %201 = vmatprep.mubr.bf16.mxu0 0
    %202 = vmatmul.mubr.bf16.gmra.mrb[0].mxu0 %v141
    %v203 = vpop.f32.mrb[0].mxu0
    %v204 = vadd.f32 %v70, %v203
    %v205 = vpop.f32.mrb[0].mxu0
    %v206 = vpop.f32.mrb[0].mxu0
    %v207 = vadd.f32 %v70, %v206
    %v208 = vpop.f32.mrb[0].mxu0
    %209 = vmatprep.mubr.bf16.mxu0 0
    %210 = vmatmul.mubr.bf16.gmra.mrb[0].mxu0 %v144
    %v211 = vpop.f32.mrb[0].mxu0
    %v212 = vadd.f32 %v70, %v211
    %v213 = vpop.f32.mrb[0].mxu0
    %v214 = vpop.f32.mrb[0].mxu0
    %v215 = vadd.f32 %v70, %v214
    %v216 = vpop.f32.mrb[0].mxu0
    %217 = vmatprep.mubr.bf16.mxu0 0
    %218 = vmatmul.mubr.bf16.gmra.mrb[0].mxu0 %v147
    %v219 = vpop.f32.mrb[0].mxu0
    %v220 = vadd.f32 %v70, %v219
    %v221 = vpop.f32.mrb[0].mxu0
    %v222 = vpop.f32.mrb[0].mxu0
    %v223 = vadd.f32 %v70, %v222
    %v224 = vpop.f32.mrb[0].mxu0
    %225 = vmatprep.mubr.bf16.mxu0 0
    %226 = vmatmul.mubr.bf16.gmra.mrb[0].mxu0 %v150
    %v227 = vpop.f32.mrb[0].mxu0
    %v228 = vadd.f32 %v70, %v227
    %v229 = vpop.f32.mrb[0].mxu0
    %v230 = vpop.f32.mrb[0].mxu0
    %v231 = vadd.f32 %v70, %v230
    %v232 = vpop.f32.mrb[0].mxu0
    %233 = vmatprep.mubr.bf16.mxu0 0
    %234 = vmatmul.mubr.bf16.gmra.mrb[0].mxu0 %v153
    %v235 = vpop.f32.mrb[0].mxu0
    %v236 = vadd.f32 %v70, %v235
    %v237 = vpop.f32.mrb[0].mxu0
    %v238 = vpop.f32.mrb[0].mxu0
    %v239 = vadd.f32 %v70, %v238
    %v240 = vpop.f32.mrb[0].mxu0
    %241 = vmatprep.mubr.bf16.mxu0 0
    %242 = vmatmul.mubr.bf16.gmra.mrb[0].mxu0 %v156
    %v243 = vpop.f32.mrb[0].mxu0
    %v244 = vadd.f32 %v70, %v243
    %v245 = vpop.f32.mrb[0].mxu0
    %v246 = vpop.f32.mrb[0].mxu0
    %v247 = vadd.f32 %v70, %v246
    %v248 = vpop.f32.mrb[0].mxu0
    %249 = vmatprep.mubr.bf16.mxu0 0
    %250 = vmatmul.mubr.bf16.gmra.mrb[0].mxu0 %v159
    %v251 = vpop.f32.mrb[0].mxu0
    %v252 = vadd.f32 %v70, %v251
    %v253 = vpop.f32.mrb[0].mxu0
    %v254 = vpop.f32.mrb[0].mxu0
    %v255 = vadd.f32 %v70, %v254
    %v256 = vpop.f32.mrb[0].mxu0
    %257 = vdwg.mxu0
    %vm258 = vcmp.ge.f32.partialorder %v196, 0.0
    %vm259 = vcmp.ge.f32.partialorder %v199, 0.0
    %vm260 = vcmp.ge.f32.partialorder %v204, 0.0
    %vm261 = vcmp.ge.f32.partialorder %v207, 0.0
    %vm262 = vcmp.ge.f32.partialorder %v212, 0.0
    %vm263 = vcmp.ge.f32.partialorder %v215, 0.0
    %vm264 = vcmp.ge.f32.partialorder %v220, 0.0
    %vm265 = vcmp.ge.f32.partialorder %v223, 0.0
    %vm266 = vcmp.ge.f32.partialorder %v228, 0.0
    %vm267 = vcmp.ge.f32.partialorder %v231, 0.0
    %vm268 = vcmp.ge.f32.partialorder %v236, 0.0
    %vm269 = vcmp.ge.f32.partialorder %v239, 0.0
    %vm270 = vcmp.ge.f32.partialorder %v244, 0.0
    %vm271 = vcmp.ge.f32.partialorder %v247, 0.0
    %vm272 = vcmp.ge.f32.partialorder %v252, 0.0
    %vm273 = vcmp.ge.f32.partialorder %v255, 0.0
    %v274 = vmul.f32 %v196, 0.2
    %v275 = vmul.f32 %v199, 0.2
    %v276 = vmul.f32 %v204, 0.2
    %v277 = vmul.f32 %v207, 0.2
    %v278 = vmul.f32 %v212, 0.2
    %v279 = vmul.f32 %v215, 0.2
    %v280 = vmul.f32 %v220, 0.2
    %v281 = vmul.f32 %v223, 0.2
    %v282 = vmul.f32 %v228, 0.2
    %v283 = vmul.f32 %v231, 0.2
    %v284 = vmul.f32 %v236, 0.2
    %v285 = vmul.f32 %v239, 0.2
    %v286 = vmul.f32 %v244, 0.2
    %v287 = vmul.f32 %v247, 0.2
    %v288 = vmul.f32 %v252, 0.2
    %v289 = vmul.f32 %v255, 0.2
    %v290 = vsel %vm258, %v196, %v274
    %v291 = vsel %vm259, %v199, %v275
    %v292 = vsel %vm260, %v204, %v276
    %v293 = vsel %vm261, %v207, %v277
    %v294 = vsel %vm262, %v212, %v278
    %v295 = vsel %vm263, %v215, %v279
    %v296 = vsel %vm264, %v220, %v280
    %v297 = vsel %vm265, %v223, %v281
    %v298 = vsel %vm266, %v228, %v282
    %v299 = vsel %vm267, %v231, %v283
    %v300 = vsel %vm268, %v236, %v284
    %v301 = vsel %vm269, %v239, %v285
    %v302 = vsel %vm270, %v244, %v286
    %v303 = vsel %vm271, %v247, %v287
    %v304 = vsel %vm272, %v252, %v288
    %v305 = vsel %vm273, %v255, %v289
    %v306 = vpack.c.bf16 %v291, %v290
    %v307 = vpack.c.bf16 %v293, %v292
    %v308 = vpack.c.bf16 %v295, %v294
    %v309 = vpack.c.bf16 %v297, %v296
    %v310 = vpack.c.bf16 %v299, %v298
    %v311 = vpack.c.bf16 %v301, %v300
    %v312 = vpack.c.bf16 %v303, %v302
    %v313 = vpack.c.bf16 %v305, %v304
    %v322 = vunpack.c.l.b16 %v306
    %v323 = vunpack.c.h.b16 %v306
    %v324 = vunpack.c.l.b16 %v307
    %v325 = vunpack.c.h.b16 %v307
    %v326 = vunpack.c.l.b16 %v308
    %v327 = vunpack.c.h.b16 %v308
    %v328 = vunpack.c.l.b16 %v309
    %v329 = vunpack.c.h.b16 %v309
    %v330 = vunpack.c.l.b16 %v310
    %v331 = vunpack.c.h.b16 %v310
    %v332 = vunpack.c.l.b16 %v311
    %v333 = vunpack.c.h.b16 %v311
    %v334 = vunpack.c.l.b16 %v312
    %v335 = vunpack.c.h.b16 %v312
    %v336 = vunpack.c.l.b16 %v313
    %v337 = vunpack.c.h.b16 %v313
    %v338 = vpack.c.b16 %v322, %v322
    %v339 = vpack.c.b16 %v323, %v323
    %v340 = vpack.c.b16 %v324, %v324
    %v341 = vpack.c.b16 %v325, %v325
    %v342 = vpack.c.b16 %v326, %v326
    %v343 = vpack.c.b16 %v327, %v327
    %v344 = vpack.c.b16 %v328, %v328
    %v345 = vpack.c.b16 %v329, %v329
    %v346 = vpack.c.b16 %v330, %v330
    %v347 = vpack.c.b16 %v331, %v331
    %v348 = vpack.c.b16 %v332, %v332
    %v349 = vpack.c.b16 %v333, %v333
    %v350 = vpack.c.b16 %v334, %v334
    %v351 = vpack.c.b16 %v335, %v335
    %v352 = vpack.c.b16 %v336, %v336
    %v353 = vpack.c.b16 %v337, %v337
    %vm370 = vcmask 519168
    %371 = vst.msk [vmem:[%s3] sm:$0xf] %vm370, %v338
    %372 = vst.msk [vmem:[%s3 + $0x4] sm:$0xf] %vm370, %v339
    %373 = vst.msk [vmem:[%s3 + $0x8] sm:$0xf] %vm370, %v340
    %374 = vst.msk [vmem:[%s3 + $0xc] sm:$0xf] %vm370, %v341
    %375 = vst.msk [vmem:[%s3 + $0x10] sm:$0xf] %vm370, %v342
    %376 = vst.msk [vmem:[%s3 + $0x14] sm:$0xf] %vm370, %v343
    %377 = vst.msk [vmem:[%s3 + $0x18] sm:$0xf] %vm370, %v344
    %378 = vst.msk [vmem:[%s3 + $0x1c] sm:$0xf] %vm370, %v345
    %379 = vst.msk [vmem:[%s3 + $0x20] sm:$0xf] %vm370, %v346
    %380 = vst.msk [vmem:[%s3 + $0x24] sm:$0xf] %vm370, %v347
    %381 = vst.msk [vmem:[%s3 + $0x28] sm:$0xf] %vm370, %v348
    %382 = vst.msk [vmem:[%s3 + $0x2c] sm:$0xf] %vm370, %v349
    %383 = vst.msk [vmem:[%s3 + $0x30] sm:$0xf] %vm370, %v350
    %384 = vst.msk [vmem:[%s3 + $0x34] sm:$0xf] %vm370, %v351
    %385 = vst.msk [vmem:[%s3 + $0x38] sm:$0xf] %vm370, %v352
    %386 = vst.msk [vmem:[%s3 + $0x3c] sm:$0xf] %vm370, %v353
    // Predicated region
    $region22: #{encoder_forward.5} parent=1 // pred_check
      _
    $region23: #{encoder_forward.5} parent=1 // pred_check_branch
      %388 = sbr.rel (0) target = $region25
    $region24: #{encoder_forward.5} parent=1 // pred_region
      _
    $region25: #{encoder_forward.5} parent=1 // pred_fallthru
      _
    // Predicated region
    $region26: #{encoder_forward.5} parent=1 // pred_check
      _
    $region27: #{encoder_forward.5} parent=1 // pred_check_branch
      %390 = sbr.rel (0) target = $region29
    $region28: #{encoder_forward.5} parent=1 // pred_region
      _
    $region29: #{encoder_forward.5} parent=1 // pred_fallthru
      _
    %391 = vsyncpa [#allocation3], 1
    %392 = vsyncpa [#allocation5], 1

// kernel: encoder_forward.6
$region0: #{encoder_forward.6}
  #allocation0 [shape = 'u32[]', space=smem, size = 0x4, offset = 0x4, fixed_abs, tag = 'smem constant byte address 0x4 - core index']
  #allocation1 [shape = 'u32[144,128]{1,0:T(1,128)}', space=vmem, size = 0x12000, scoped, tag = 'internal scratch']
  %s0 = inlined_call_operand.vmem [shape: bf16[32,1024], index: 0, kind: input, shape index: {}]
  %s1 = inlined_call_operand.hbm [shape: bf16[1024,128], index: 1, kind: input, shape index: {}]
  %s2 = inlined_call_operand.hbm [shape: f32[1,128], index: 2, kind: input, shape index: {}]
  %s3 = inlined_call_operand.hbm [shape: f32[1,128], index: 3, kind: input, shape index: {}]
  %s4 = inlined_call_operand.vmem [shape: bf16[32,128], index: 4, kind: output, shape index: {}]
  %s5 = sld [smem:[#allocation0]]
  $region38: #{encoder_forward.6} parent=0
    _
  %s7 = ssub.s32 1, %s5
  %s8 = scalar_select 0, %s7, %s5
  $region1: #{encoder_forward.6} parent=0
    #allocation2 [shape = 'u8[262144]{0}', space=vmem, size = 0x40000, scoped, tag = 'input window, operand 1, single buffered']
    #allocation3 [shape = 's32[1]{0}', space=sflag, size = 0x4, scoped, tag = 'scoped memory for encoder_forward.6']
    #allocation4 [shape = 'u8[512]{0}', space=vmem, size = 0x400, scoped, tag = 'input window, operand 2, single buffered']
    #allocation5 [shape = 's32[1]{0}', space=sflag, size = 0x4, scoped, tag = 'scoped memory for encoder_forward.6']
    #allocation6 [shape = 'u8[512]{0}', space=vmem, size = 0x400, scoped, tag = 'input window, operand 3, single buffered']
    %9 = vsyncpa [#allocation3], 0
    %10 = vsyncpa [#allocation5], 0
    // Predicated region
    $region2: #{encoder_forward.6} parent=1 // pred_check
      _
    $region3: #{encoder_forward.6} parent=1 // pred_check_branch
      %12 = sbr.rel (0) target = $region5
    $region4: #{encoder_forward.6} parent=1 // pred_region
      _
    $region5: #{encoder_forward.6} parent=1 // pred_fallthru
      _
    // Predicated region
    $region6: #{encoder_forward.6} parent=1 // pred_check
      _
    $region7: #{encoder_forward.6} parent=1 // pred_check_branch
      %14 = sbr.rel (0) target = $region9
    $region8: #{encoder_forward.6} parent=1 // pred_region
      %s16 = ssub.s32 8192, 8192
      %17 = vsyncadd [#allocation3], %s16
      %s18 = sshll.u32 [#allocation2], 4
      %s19 = int_to_ptr.vmem [resolvable:$true] %s18
      %24 = dma.hbm_to_vmem [thread:$0]  %s1, 8192, %s19, [#allocation3], 64, 64, 4
    $region9: #{encoder_forward.6} parent=1 // pred_fallthru
      _
    // Predicated region
    $region10: #{encoder_forward.6} parent=1 // pred_check
      _
    $region11: #{encoder_forward.6} parent=1 // pred_check_branch
      %26 = sbr.rel (0) target = $region13
    $region12: #{encoder_forward.6} parent=1 // pred_region
      %s28 = ssub.s32 16, 16
      %29 = vsyncadd [#allocation5], %s28
      %s31 = sshll.u32 [#allocation4], 4
      %s32 = int_to_ptr.vmem [resolvable:$true] %s31
      %34 = dma.hbm_to_vmem [thread:$0]  %s2, 16, %s32, [#allocation5]
    $region13: #{encoder_forward.6} parent=1 // pred_fallthru
      _
    // Predicated region
    $region14: #{encoder_forward.6} parent=1 // pred_check
      _
    $region15: #{encoder_forward.6} parent=1 // pred_check_branch
      %36 = sbr.rel (0) target = $region17
    $region16: #{encoder_forward.6} parent=1 // pred_region
      %s38 = ssub.s32 16, 16
      %39 = vsyncadd [#allocation5], %s38
      %s41 = sshll.u32 [#allocation6], 4
      %s42 = int_to_ptr.vmem [resolvable:$true] %s41
      %44 = dma.hbm_to_vmem [thread:$0]  %s3, 16, %s42, [#allocation5]
    $region17: #{encoder_forward.6} parent=1 // pred_fallthru
      _
    // Predicated region
    $region18: #{encoder_forward.6} parent=1 // pred_check
      _
    $region19: #{encoder_forward.6} parent=1 // pred_check_branch
      %46 = sbr.rel (0) target = $region21
    $region20: #{encoder_forward.6} parent=1 // pred_region
      %47 = dma.done [#allocation3], 8192
    $region21: #{encoder_forward.6} parent=1 // pred_fallthru
      _
    // Predicated region
    $region22: #{encoder_forward.6} parent=1 // pred_check
      _
    $region23: #{encoder_forward.6} parent=1 // pred_check_branch
      %49 = sbr.rel (0) target = $region25
    $region24: #{encoder_forward.6} parent=1 // pred_region
      %50 = dma.done [#allocation5], 16
    $region25: #{encoder_forward.6} parent=1 // pred_fallthru
      _
    // Predicated region
    $region26: #{encoder_forward.6} parent=1 // pred_check
      _
    $region27: #{encoder_forward.6} parent=1 // pred_check_branch
      %52 = sbr.rel (0) target = $region29
    $region28: #{encoder_forward.6} parent=1 // pred_region
      %53 = dma.done [#allocation5], 16
    $region29: #{encoder_forward.6} parent=1 // pred_fallthru
      _
    %v55 = vld [vmem:[%s0] sm:$0xff]
    %v56 = vld [vmem:[%s0 + $0x8] sm:$0xff]
    %v57 = vld [vmem:[%s0 + $0x10] sm:$0xff]
    %v58 = vld [vmem:[%s0 + $0x18] sm:$0xff]
    %v59 = vld [vmem:[%s0 + $0x20] sm:$0xff]
    %v60 = vld [vmem:[%s0 + $0x28] sm:$0xff]
    %v61 = vld [vmem:[%s0 + $0x30] sm:$0xff]
    %v62 = vld [vmem:[%s0 + $0x38] sm:$0xff]
    %v63 = vld [vmem:[%s0 + $0x40] sm:$0xff]
    %v64 = vld [vmem:[%s0 + $0x48] sm:$0xff]
    %v65 = vld [vmem:[%s0 + $0x50] sm:$0xff]
    %v66 = vld [vmem:[%s0 + $0x58] sm:$0xff]
    %v67 = vld [vmem:[%s0 + $0x60] sm:$0xff]
    %v68 = vld [vmem:[%s0 + $0x68] sm:$0xff]
    %v69 = vld [vmem:[%s0 + $0x70] sm:$0xff]
    %v70 = vld [vmem:[%s0 + $0x78] sm:$0xff]
    %v71 = vld [vmem:[#allocation2] sm:$0xf]
    %v72 = vld [vmem:[#allocation2 + $0x4] sm:$0xf]
    %v73 = vld [vmem:[#allocation2 + $0x8] sm:$0xf]
    %v74 = vld [vmem:[#allocation2 + $0xc] sm:$0xf]
    %v75 = vld [vmem:[#allocation2 + $0x10] sm:$0xf]
    %v76 = vld [vmem:[#allocation2 + $0x14] sm:$0xf]
    %v77 = vld [vmem:[#allocation2 + $0x18] sm:$0xf]
    %v78 = vld [vmem:[#allocation2 + $0x1c] sm:$0xf]
    %v79 = vld [vmem:[#allocation2 + $0x20] sm:$0xf]
    %v80 = vld [vmem:[#allocation2 + $0x24] sm:$0xf]
    %v81 = vld [vmem:[#allocation2 + $0x28] sm:$0xf]
    %v82 = vld [vmem:[#allocation2 + $0x2c] sm:$0xf]
    %v83 = vld [vmem:[#allocation2 + $0x30] sm:$0xf]
    %v84 = vld [vmem:[#allocation2 + $0x34] sm:$0xf]
    %v85 = vld [vmem:[#allocation2 + $0x38] sm:$0xf]
    %v86 = vld [vmem:[#allocation2 + $0x3c] sm:$0xf]
    %v87 = vld [vmem:[#allocation2 + $0x40] sm:$0xf]
    %v88 = vld [vmem:[#allocation2 + $0x44] sm:$0xf]
    %v89 = vld [vmem:[#allocation2 + $0x48] sm:$0xf]
    %v90 = vld [vmem:[#allocation2 + $0x4c] sm:$0xf]
    %v91 = vld [vmem:[#allocation2 + $0x50] sm:$0xf]
    %v92 = vld [vmem:[#allocation2 + $0x54] sm:$0xf]
    %v93 = vld [vmem:[#allocation2 + $0x58] sm:$0xf]
    %v94 = vld [vmem:[#allocation2 + $0x5c] sm:$0xf]
    %v95 = vld [vmem:[#allocation2 + $0x60] sm:$0xf]
    %v96 = vld [vmem:[#allocation2 + $0x64] sm:$0xf]
    %v97 = vld [vmem:[#allocation2 + $0x68] sm:$0xf]
    %v98 = vld [vmem:[#allocation2 + $0x6c] sm:$0xf]
    %v99 = vld [vmem:[#allocation2 + $0x70] sm:$0xf]
    %v100 = vld [vmem:[#allocation2 + $0x74] sm:$0xf]
    %v101 = vld [vmem:[#allocation2 + $0x78] sm:$0xf]
    %v102 = vld [vmem:[#allocation2 + $0x7c] sm:$0xf]
    %v103 = vld [vmem:[#allocation2 + $0x80] sm:$0xf]
    %v104 = vld [vmem:[#allocation2 + $0x84] sm:$0xf]
    %v105 = vld [vmem:[#allocation2 + $0x88] sm:$0xf]
    %v106 = vld [vmem:[#allocation2 + $0x8c] sm:$0xf]
    %v107 = vld [vmem:[#allocation2 + $0x90] sm:$0xf]
    %v108 = vld [vmem:[#allocation2 + $0x94] sm:$0xf]
    %v109 = vld [vmem:[#allocation2 + $0x98] sm:$0xf]
    %v110 = vld [vmem:[#allocation2 + $0x9c] sm:$0xf]
    %v111 = vld [vmem:[#allocation2 + $0xa0] sm:$0xf]
    %v112 = vld [vmem:[#allocation2 + $0xa4] sm:$0xf]
    %v113 = vld [vmem:[#allocation2 + $0xa8] sm:$0xf]
    %v114 = vld [vmem:[#allocation2 + $0xac] sm:$0xf]
    %v115 = vld [vmem:[#allocation2 + $0xb0] sm:$0xf]
    %v116 = vld [vmem:[#allocation2 + $0xb4] sm:$0xf]
    %v117 = vld [vmem:[#allocation2 + $0xb8] sm:$0xf]
    %v118 = vld [vmem:[#allocation2 + $0xbc] sm:$0xf]
    %v119 = vld [vmem:[#allocation2 + $0xc0] sm:$0xf]
    %v120 = vld [vmem:[#allocation2 + $0xc4] sm:$0xf]
    %v121 = vld [vmem:[#allocation2 + $0xc8] sm:$0xf]
    %v122 = vld [vmem:[#allocation2 + $0xcc] sm:$0xf]
    %v123 = vld [vmem:[#allocation2 + $0xd0] sm:$0xf]
    %v124 = vld [vmem:[#allocation2 + $0xd4] sm:$0xf]
    %v125 = vld [vmem:[#allocation2 + $0xd8] sm:$0xf]
    %v126 = vld [vmem:[#allocation2 + $0xdc] sm:$0xf]
    %v127 = vld [vmem:[#allocation2 + $0xe0] sm:$0xf]
    %v128 = vld [vmem:[#allocation2 + $0xe4] sm:$0xf]
    %v129 = vld [vmem:[#allocation2 + $0xe8] sm:$0xf]
    %v130 = vld [vmem:[#allocation2 + $0xec] sm:$0xf]
    %v131 = vld [vmem:[#allocation2 + $0xf0] sm:$0xf]
    %v132 = vld [vmem:[#allocation2 + $0xf4] sm:$0xf]
    %v133 = vld [vmem:[#allocation2 + $0xf8] sm:$0xf]
    %v134 = vld [vmem:[#allocation2 + $0xfc] sm:$0xf]
    %v135 = vld [vmem:[#allocation2 + $0x100] sm:$0xf]
    %v136 = vld [vmem:[#allocation2 + $0x104] sm:$0xf]
    %v137 = vld [vmem:[#allocation2 + $0x108] sm:$0xf]
    %v138 = vld [vmem:[#allocation2 + $0x10c] sm:$0xf]
    %v139 = vld [vmem:[#allocation2 + $0x110] sm:$0xf]
    %v140 = vld [vmem:[#allocation2 + $0x114] sm:$0xf]
    %v141 = vld [vmem:[#allocation2 + $0x118] sm:$0xf]
    %v142 = vld [vmem:[#allocation2 + $0x11c] sm:$0xf]
    %v143 = vld [vmem:[#allocation2 + $0x120] sm:$0xf]
    %v144 = vld [vmem:[#allocation2 + $0x124] sm:$0xf]
    %v145 = vld [vmem:[#allocation2 + $0x128] sm:$0xf]
    %v146 = vld [vmem:[#allocation2 + $0x12c] sm:$0xf]
    %v147 = vld [vmem:[#allocation2 + $0x130] sm:$0xf]
    %v148 = vld [vmem:[#allocation2 + $0x134] sm:$0xf]
    %v149 = vld [vmem:[#allocation2 + $0x138] sm:$0xf]
    %v150 = vld [vmem:[#allocation2 + $0x13c] sm:$0xf]
    %v151 = vld [vmem:[#allocation2 + $0x140] sm:$0xf]
    %v152 = vld [vmem:[#allocation2 + $0x144] sm:$0xf]
    %v153 = vld [vmem:[#allocation2 + $0x148] sm:$0xf]
    %v154 = vld [vmem:[#allocation2 + $0x14c] sm:$0xf]
    %v155 = vld [vmem:[#allocation2 + $0x150] sm:$0xf]
    %v156 = vld [vmem:[#allocation2 + $0x154] sm:$0xf]
    %v157 = vld [vmem:[#allocation2 + $0x158] sm:$0xf]
    %v158 = vld [vmem:[#allocation2 + $0x15c] sm:$0xf]
    %v159 = vld [vmem:[#allocation2 + $0x160] sm:$0xf]
    %v160 = vld [vmem:[#allocation2 + $0x164] sm:$0xf]
    %v161 = vld [vmem:[#allocation2 + $0x168] sm:$0xf]
    %v162 = vld [vmem:[#allocation2 + $0x16c] sm:$0xf]
    %v163 = vld [vmem:[#allocation2 + $0x170] sm:$0xf]
    %v164 = vld [vmem:[#allocation2 + $0x174] sm:$0xf]
    %v165 = vld [vmem:[#allocation2 + $0x178] sm:$0xf]
    %v166 = vld [vmem:[#allocation2 + $0x17c] sm:$0xf]
    %v167 = vld [vmem:[#allocation2 + $0x180] sm:$0xf]
    %v168 = vld [vmem:[#allocation2 + $0x184] sm:$0xf]
    %v169 = vld [vmem:[#allocation2 + $0x188] sm:$0xf]
    %v170 = vld [vmem:[#allocation2 + $0x18c] sm:$0xf]
    %v171 = vld [vmem:[#allocation2 + $0x190] sm:$0xf]
    %v172 = vld [vmem:[#allocation2 + $0x194] sm:$0xf]
    %v173 = vld [vmem:[#allocation2 + $0x198] sm:$0xf]
    %v174 = vld [vmem:[#allocation2 + $0x19c] sm:$0xf]
    %v175 = vld [vmem:[#allocation2 + $0x1a0] sm:$0xf]
    %v176 = vld [vmem:[#allocation2 + $0x1a4] sm:$0xf]
    %v177 = vld [vmem:[#allocation2 + $0x1a8] sm:$0xf]
    %v178 = vld [vmem:[#allocation2 + $0x1ac] sm:$0xf]
    %v179 = vld [vmem:[#allocation2 + $0x1b0] sm:$0xf]
    %v180 = vld [vmem:[#allocation2 + $0x1b4] sm:$0xf]
    %v181 = vld [vmem:[#allocation2 + $0x1b8] sm:$0xf]
    %v182 = vld [vmem:[#allocation2 + $0x1bc] sm:$0xf]
    %v183 = vld [vmem:[#allocation2 + $0x1c0] sm:$0xf]
    %v184 = vld [vmem:[#allocation2 + $0x1c4] sm:$0xf]
    %v185 = vld [vmem:[#allocation2 + $0x1c8] sm:$0xf]
    %v186 = vld [vmem:[#allocation2 + $0x1cc] sm:$0xf]
    %v187 = vld [vmem:[#allocation2 + $0x1d0] sm:$0xf]
    %v188 = vld [vmem:[#allocation2 + $0x1d4] sm:$0xf]
    %v189 = vld [vmem:[#allocation2 + $0x1d8] sm:$0xf]
    %v190 = vld [vmem:[#allocation2 + $0x1dc] sm:$0xf]
    %v191 = vld [vmem:[#allocation2 + $0x1e0] sm:$0xf]
    %v192 = vld [vmem:[#allocation2 + $0x1e4] sm:$0xf]
    %v193 = vld [vmem:[#allocation2 + $0x1e8] sm:$0xf]
    %v194 = vld [vmem:[#allocation2 + $0x1ec] sm:$0xf]
    %v195 = vld [vmem:[#allocation2 + $0x1f0] sm:$0xf]
    %v196 = vld [vmem:[#allocation2 + $0x1f4] sm:$0xf]
    %v197 = vld [vmem:[#allocation2 + $0x1f8] sm:$0xf]
    %v198 = vld [vmem:[#allocation2 + $0x1fc] sm:$0xf]
    %v215 = vunpack.c.l.b16 %v55
    %v216 = vunpack.c.h.b16 %v55
    %v217 = vunpack.c.l.b16 %v56
    %v218 = vunpack.c.h.b16 %v56
    %v219 = vunpack.c.l.b16 %v57
    %v220 = vunpack.c.h.b16 %v57
    %v221 = vunpack.c.l.b16 %v58
    %v222 = vunpack.c.h.b16 %v58
    %v223 = vunpack.c.l.b16 %v59
    %v224 = vunpack.c.h.b16 %v59
    %v225 = vunpack.c.l.b16 %v60
    %v226 = vunpack.c.h.b16 %v60
    %v227 = vunpack.c.l.b16 %v61
    %v228 = vunpack.c.h.b16 %v61
    %v229 = vunpack.c.l.b16 %v62
    %v230 = vunpack.c.h.b16 %v62
    %v231 = vunpack.c.l.b16 %v63
    %v232 = vunpack.c.h.b16 %v63
    %v233 = vunpack.c.l.b16 %v64
    %v234 = vunpack.c.h.b16 %v64
    %v235 = vunpack.c.l.b16 %v65
    %v236 = vunpack.c.h.b16 %v65
    %v237 = vunpack.c.l.b16 %v66
    %v238 = vunpack.c.h.b16 %v66
    %v239 = vunpack.c.l.b16 %v67
    %v240 = vunpack.c.h.b16 %v67
    %v241 = vunpack.c.l.b16 %v68
    %v242 = vunpack.c.h.b16 %v68
    %v243 = vunpack.c.l.b16 %v69
    %v244 = vunpack.c.h.b16 %v69
    %v245 = vunpack.c.l.b16 %v70
    %v246 = vunpack.c.h.b16 %v70
    %v247 = vpack.c.b16 %v223, %v215
    %v248 = vpack.c.b16 %v224, %v216
    %v249 = vpack.c.b16 %v225, %v217
    %v250 = vpack.c.b16 %v226, %v218
    %v251 = vpack.c.b16 %v227, %v219
    %v252 = vpack.c.b16 %v228, %v220
    %v253 = vpack.c.b16 %v229, %v221
    %v254 = vpack.c.b16 %v230, %v222
    %v255 = vpack.c.b16 %v239, %v231
    %v256 = vpack.c.b16 %v240, %v232
    %v257 = vpack.c.b16 %v241, %v233
    %v258 = vpack.c.b16 %v242, %v234
    %v259 = vpack.c.b16 %v243, %v235
    %v260 = vpack.c.b16 %v244, %v236
    %v261 = vpack.c.b16 %v245, %v237
    %v262 = vpack.c.b16 %v246, %v238
    %v407 = vunpack.c.l.b16 %v71
    %v408 = vunpack.c.l.b16 %v72
    %v409 = vunpack.c.l.b16 %v73
    %v410 = vunpack.c.l.b16 %v74
    %v411 = vunpack.c.l.b16 %v75
    %v412 = vunpack.c.l.b16 %v76
    %v413 = vunpack.c.l.b16 %v77
    %v414 = vunpack.c.l.b16 %v78
    %v415 = vunpack.c.l.b16 %v79
    %v416 = vunpack.c.l.b16 %v80
    %v417 = vunpack.c.l.b16 %v81
    %v418 = vunpack.c.l.b16 %v82
    %v419 = vunpack.c.l.b16 %v83
    %v420 = vunpack.c.l.b16 %v84
    %v421 = vunpack.c.l.b16 %v85
    %v422 = vunpack.c.l.b16 %v86
    %v423 = vunpack.c.l.b16 %v87
    %v424 = vunpack.c.l.b16 %v88
    %v425 = vunpack.c.l.b16 %v89
    %v426 = vunpack.c.l.b16 %v90
    %v427 = vunpack.c.l.b16 %v91
    %v428 = vunpack.c.l.b16 %v92
    %v429 = vunpack.c.l.b16 %v93
    %v430 = vunpack.c.l.b16 %v94
    %v431 = vunpack.c.l.b16 %v95
    %v432 = vunpack.c.l.b16 %v96
    %v433 = vunpack.c.l.b16 %v97
    %v434 = vunpack.c.l.b16 %v98
    %v435 = vunpack.c.l.b16 %v99
    %v436 = vunpack.c.l.b16 %v100
    %v437 = vunpack.c.l.b16 %v101
    %v438 = vunpack.c.l.b16 %v102
    %v439 = vunpack.c.l.b16 %v103
    %v440 = vunpack.c.l.b16 %v104
    %v441 = vunpack.c.l.b16 %v105
    %v442 = vunpack.c.l.b16 %v106
    %v443 = vunpack.c.l.b16 %v107
    %v444 = vunpack.c.l.b16 %v108
    %v445 = vunpack.c.l.b16 %v109
    %v446 = vunpack.c.l.b16 %v110
    %v447 = vunpack.c.l.b16 %v111
    %v448 = vunpack.c.l.b16 %v112
    %v449 = vunpack.c.l.b16 %v113
    %v450 = vunpack.c.l.b16 %v114
    %v451 = vunpack.c.l.b16 %v115
    %v452 = vunpack.c.l.b16 %v116
    %v453 = vunpack.c.l.b16 %v117
    %v454 = vunpack.c.l.b16 %v118
    %v455 = vunpack.c.l.b16 %v119
    %v456 = vunpack.c.l.b16 %v120
    %v457 = vunpack.c.l.b16 %v121
    %v458 = vunpack.c.l.b16 %v122
    %v459 = vunpack.c.l.b16 %v123
    %v460 = vunpack.c.l.b16 %v124
    %v461 = vunpack.c.l.b16 %v125
    %v462 = vunpack.c.l.b16 %v126
    %v463 = vunpack.c.l.b16 %v127
    %v464 = vunpack.c.l.b16 %v128
    %v465 = vunpack.c.l.b16 %v129
    %v466 = vunpack.c.l.b16 %v130
    %v467 = vunpack.c.l.b16 %v131
    %v468 = vunpack.c.l.b16 %v132
    %v469 = vunpack.c.l.b16 %v133
    %v470 = vunpack.c.l.b16 %v134
    %v471 = vunpack.c.l.b16 %v135
    %v472 = vunpack.c.l.b16 %v136
    %v473 = vunpack.c.l.b16 %v137
    %v474 = vunpack.c.l.b16 %v138
    %v475 = vunpack.c.l.b16 %v139
    %v476 = vunpack.c.l.b16 %v140
    %v477 = vunpack.c.l.b16 %v141
    %v478 = vunpack.c.l.b16 %v142
    %v479 = vunpack.c.l.b16 %v143
    %v480 = vunpack.c.l.b16 %v144
    %v481 = vunpack.c.l.b16 %v145
    %v482 = vunpack.c.l.b16 %v146
    %v483 = vunpack.c.l.b16 %v147
    %v484 = vunpack.c.l.b16 %v148
    %v485 = vunpack.c.l.b16 %v149
    %v486 = vunpack.c.l.b16 %v150
    %v487 = vunpack.c.l.b16 %v151
    %v488 = vunpack.c.l.b16 %v152
    %v489 = vunpack.c.l.b16 %v153
    %v490 = vunpack.c.l.b16 %v154
    %v491 = vunpack.c.l.b16 %v155
    %v492 = vunpack.c.l.b16 %v156
    %v493 = vunpack.c.l.b16 %v157
    %v494 = vunpack.c.l.b16 %v158
    %v495 = vunpack.c.l.b16 %v159
    %v496 = vunpack.c.l.b16 %v160
    %v497 = vunpack.c.l.b16 %v161
    %v498 = vunpack.c.l.b16 %v162
    %v499 = vunpack.c.l.b16 %v163
    %v500 = vunpack.c.l.b16 %v164
    %v501 = vunpack.c.l.b16 %v165
    %v502 = vunpack.c.l.b16 %v166
    %v503 = vunpack.c.l.b16 %v167
    %v504 = vunpack.c.l.b16 %v168
    %v505 = vunpack.c.l.b16 %v169
    %v506 = vunpack.c.l.b16 %v170
    %v507 = vunpack.c.l.b16 %v171
    %v508 = vunpack.c.l.b16 %v172
    %v509 = vunpack.c.l.b16 %v173
    %v510 = vunpack.c.l.b16 %v174
    %v511 = vunpack.c.l.b16 %v175
    %v512 = vunpack.c.l.b16 %v176
    %v513 = vunpack.c.l.b16 %v177
    %v514 = vunpack.c.l.b16 %v178
    %v515 = vunpack.c.l.b16 %v179
    %v516 = vunpack.c.l.b16 %v180
    %v517 = vunpack.c.l.b16 %v181
    %v518 = vunpack.c.l.b16 %v182
    %v519 = vunpack.c.l.b16 %v183
    %v520 = vunpack.c.l.b16 %v184
    %v521 = vunpack.c.l.b16 %v185
    %v522 = vunpack.c.l.b16 %v186
    %v523 = vunpack.c.l.b16 %v187
    %v524 = vunpack.c.l.b16 %v188
    %v525 = vunpack.c.l.b16 %v189
    %v526 = vunpack.c.l.b16 %v190
    %v527 = vunpack.c.l.b16 %v191
    %v528 = vunpack.c.l.b16 %v192
    %v529 = vunpack.c.l.b16 %v193
    %v530 = vunpack.c.l.b16 %v194
    %v531 = vunpack.c.l.b16 %v195
    %v532 = vunpack.c.l.b16 %v196
    %v533 = vunpack.c.l.b16 %v197
    %v534 = vunpack.c.l.b16 %v198
    %v535 = vpack.c.b16 %v408, %v407
    %v536 = vpack.c.b16 %v410, %v409
    %v537 = vpack.c.b16 %v412, %v411
    %v538 = vpack.c.b16 %v414, %v413
    %v539 = vpack.c.b16 %v416, %v415
    %v540 = vpack.c.b16 %v418, %v417
    %v541 = vpack.c.b16 %v420, %v419
    %v542 = vpack.c.b16 %v422, %v421
    %v543 = vpack.c.b16 %v424, %v423
    %v544 = vpack.c.b16 %v426, %v425
    %v545 = vpack.c.b16 %v428, %v427
    %v546 = vpack.c.b16 %v430, %v429
    %v547 = vpack.c.b16 %v432, %v431
    %v548 = vpack.c.b16 %v434, %v433
    %v549 = vpack.c.b16 %v436, %v435
    %v550 = vpack.c.b16 %v438, %v437
    %v551 = vpack.c.b16 %v440, %v439
    %v552 = vpack.c.b16 %v442, %v441
    %v553 = vpack.c.b16 %v444, %v443
    %v554 = vpack.c.b16 %v446, %v445
    %v555 = vpack.c.b16 %v448, %v447
    %v556 = vpack.c.b16 %v450, %v449
    %v557 = vpack.c.b16 %v452, %v451
    %v558 = vpack.c.b16 %v454, %v453
    %v559 = vpack.c.b16 %v456, %v455
    %v560 = vpack.c.b16 %v458, %v457
    %v561 = vpack.c.b16 %v460, %v459
    %v562 = vpack.c.b16 %v462, %v461
    %v563 = vpack.c.b16 %v464, %v463
    %v564 = vpack.c.b16 %v466, %v465
    %v565 = vpack.c.b16 %v468, %v467
    %v566 = vpack.c.b16 %v470, %v469
    %v567 = vpack.c.b16 %v472, %v471
    %v568 = vpack.c.b16 %v474, %v473
    %v569 = vpack.c.b16 %v476, %v475
    %v570 = vpack.c.b16 %v478, %v477
    %v571 = vpack.c.b16 %v480, %v479
    %v572 = vpack.c.b16 %v482, %v481
    %v573 = vpack.c.b16 %v484, %v483
    %v574 = vpack.c.b16 %v486, %v485
    %v575 = vpack.c.b16 %v488, %v487
    %v576 = vpack.c.b16 %v490, %v489
    %v577 = vpack.c.b16 %v492, %v491
    %v578 = vpack.c.b16 %v494, %v493
    %v579 = vpack.c.b16 %v496, %v495
    %v580 = vpack.c.b16 %v498, %v497
    %v581 = vpack.c.b16 %v500, %v499
    %v582 = vpack.c.b16 %v502, %v501
    %v583 = vpack.c.b16 %v504, %v503
    %v584 = vpack.c.b16 %v506, %v505
    %v585 = vpack.c.b16 %v508, %v507
    %v586 = vpack.c.b16 %v510, %v509
    %v587 = vpack.c.b16 %v512, %v511
    %v588 = vpack.c.b16 %v514, %v513
    %v589 = vpack.c.b16 %v516, %v515
    %v590 = vpack.c.b16 %v518, %v517
    %v591 = vpack.c.b16 %v520, %v519
    %v592 = vpack.c.b16 %v522, %v521
    %v593 = vpack.c.b16 %v524, %v523
    %v594 = vpack.c.b16 %v526, %v525
    %v595 = vpack.c.b16 %v528, %v527
    %v596 = vpack.c.b16 %v530, %v529
    %v597 = vpack.c.b16 %v532, %v531
    %v598 = vpack.c.b16 %v534, %v533
    %663 = vmatprep.subr.bf16.mxu0 0
    %664 = vmatpush1.bf16.msra.mxu0 %v535
    %665 = vmatprep.subr.bf16.mxu0 0
    %666 = vmatpush1.bf16.msra.mxu0 %v536
    %667 = vmatprep.subr.bf16.mxu0 0
    %668 = vmatpush1.bf16.msra.mxu0 %v537
    %669 = vmatprep.subr.bf16.mxu0 0
    %670 = vmatpush1.bf16.msra.mxu0 %v538
    %671 = vmatprep.subr.bf16.mxu0 0
    %672 = vmatpush1.bf16.msra.mxu0 %v539
    %673 = vmatprep.subr.bf16.mxu0 0
    %674 = vmatpush1.bf16.msra.mxu0 %v540
    %675 = vmatprep.subr.bf16.mxu0 0
    %676 = vmatpush1.bf16.msra.mxu0 %v541
    %677 = vmatprep.subr.bf16.mxu0 0
    %678 = vmatpush1.bf16.msra.mxu0 %v542
    %679 = vmatprep.subr.bf16.mxu0 0
    %680 = vmatpush1.bf16.msra.mxu0 %v543
    %681 = vmatprep.subr.bf16.mxu0 0
    %682 = vmatpush1.bf16.msra.mxu0 %v544
    %683 = vmatprep.subr.bf16.mxu0 0
    %684 = vmatpush1.bf16.msra.mxu0 %v545
    %685 = vmatprep.subr.bf16.mxu0 0
    %686 = vmatpush1.bf16.msra.mxu0 %v546
    %687 = vmatprep.subr.bf16.mxu0 0
    %688 = vmatpush1.bf16.msra.mxu0 %v547
    %689 = vmatprep.subr.bf16.mxu0 0
    %690 = vmatpush1.bf16.msra.mxu0 %v548
    %691 = vmatprep.subr.bf16.mxu0 0
    %692 = vmatpush1.bf16.msra.mxu0 %v549
    %693 = vmatprep.subr.bf16.mxu0 0
    %694 = vmatpush1.bf16.msra.mxu0 %v550
    %695 = vmatprep.mubr.bf16.mxu0 %v248
    %696 = vmatmul.mubr.bf16.gmra.mrb[0].mxu0 %v247
    %v697 = vpop.f32.mrb[0].mxu0
    %v698 = vadd.f32 0.0, %v697
    %v699 = vpop.f32.mrb[0].mxu0
    %v700 = vpop.f32.mrb[0].mxu0
    %v701 = vadd.f32 0.0, %v700
    %v702 = vpop.f32.mrb[0].mxu0
    %703 = vmatprep.mubr.bf16.mxu0 %v256
    %704 = vmatmul.mubr.bf16.gmra.mrb[0].mxu0 %v255
    %v705 = vpop.f32.mrb[0].mxu0
    %v706 = vadd.f32 0.0, %v705
    %v707 = vpop.f32.mrb[0].mxu0
    %v708 = vpop.f32.mrb[0].mxu0
    %v709 = vadd.f32 0.0, %v708
    %v710 = vpop.f32.mrb[0].mxu0
    %711 = vdwg.mxu0
    %712 = vmatprep.subr.bf16.mxu0 0
    %713 = vmatpush1.bf16.msra.mxu0 %v551
    %714 = vmatprep.subr.bf16.mxu0 0
    %715 = vmatpush1.bf16.msra.mxu0 %v552
    %716 = vmatprep.subr.bf16.mxu0 0
    %717 = vmatpush1.bf16.msra.mxu0 %v553
    %718 = vmatprep.subr.bf16.mxu0 0
    %719 = vmatpush1.bf16.msra.mxu0 %v554
    %720 = vmatprep.subr.bf16.mxu0 0
    %721 = vmatpush1.bf16.msra.mxu0 %v555
    %722 = vmatprep.subr.bf16.mxu0 0
    %723 = vmatpush1.bf16.msra.mxu0 %v556
    %724 = vmatprep.subr.bf16.mxu0 0
    %725 = vmatpush1.bf16.msra.mxu0 %v557
    %726 = vmatprep.subr.bf16.mxu0 0
    %727 = vmatpush1.bf16.msra.mxu0 %v558
    %728 = vmatprep.subr.bf16.mxu0 0
    %729 = vmatpush1.bf16.msra.mxu0 %v559
    %730 = vmatprep.subr.bf16.mxu0 0
    %731 = vmatpush1.bf16.msra.mxu0 %v560
    %732 = vmatprep.subr.bf16.mxu0 0
    %733 = vmatpush1.bf16.msra.mxu0 %v561
    %734 = vmatprep.subr.bf16.mxu0 0
    %735 = vmatpush1.bf16.msra.mxu0 %v562
    %736 = vmatprep.subr.bf16.mxu0 0
    %737 = vmatpush1.bf16.msra.mxu0 %v563
    %738 = vmatprep.subr.bf16.mxu0 0
    %739 = vmatpush1.bf16.msra.mxu0 %v564
    %740 = vmatprep.subr.bf16.mxu0 0
    %741 = vmatpush1.bf16.msra.mxu0 %v565
    %742 = vmatprep.subr.bf16.mxu0 0
    %743 = vmatpush1.bf16.msra.mxu0 %v566
    %744 = vmatprep.mubr.bf16.mxu0 %v250
    %745 = vmatmul.mubr.bf16.gmra.mrb[0].mxu0 %v249
    %v746 = vpop.f32.mrb[0].mxu0
    %v747 = vadd.f32 %v698, %v746
    %v748 = vpop.f32.mrb[0].mxu0
    %v749 = vpop.f32.mrb[0].mxu0
    %v750 = vadd.f32 %v701, %v749
    %v751 = vpop.f32.mrb[0].mxu0
    %752 = vmatprep.mubr.bf16.mxu0 %v258
    %753 = vmatmul.mubr.bf16.gmra.mrb[0].mxu0 %v257
    %v754 = vpop.f32.mrb[0].mxu0
    %v755 = vadd.f32 %v706, %v754
    %v756 = vpop.f32.mrb[0].mxu0
    %v757 = vpop.f32.mrb[0].mxu0
    %v758 = vadd.f32 %v709, %v757
    %v759 = vpop.f32.mrb[0].mxu0
    %760 = vdwg.mxu0
    %761 = vmatprep.subr.bf16.mxu0 0
    %762 = vmatpush1.bf16.msra.mxu0 %v567
    %763 = vmatprep.subr.bf16.mxu0 0
    %764 = vmatpush1.bf16.msra.mxu0 %v568
    %765 = vmatprep.subr.bf16.mxu0 0
    %766 = vmatpush1.bf16.msra.mxu0 %v569
    %767 = vmatprep.subr.bf16.mxu0 0
    %768 = vmatpush1.bf16.msra.mxu0 %v570
    %769 = vmatprep.subr.bf16.mxu0 0
    %770 = vmatpush1.bf16.msra.mxu0 %v571
    %771 = vmatprep.subr.bf16.mxu0 0
    %772 = vmatpush1.bf16.msra.mxu0 %v572
    %773 = vmatprep.subr.bf16.mxu0 0
    %774 = vmatpush1.bf16.msra.mxu0 %v573
    %775 = vmatprep.subr.bf16.mxu0 0
    %776 = vmatpush1.bf16.msra.mxu0 %v574
    %777 = vmatprep.subr.bf16.mxu0 0
    %778 = vmatpush1.bf16.msra.mxu0 %v575
    %779 = vmatprep.subr.bf16.mxu0 0
    %780 = vmatpush1.bf16.msra.mxu0 %v576
    %781 = vmatprep.subr.bf16.mxu0 0
    %782 = vmatpush1.bf16.msra.mxu0 %v577
    %783 = vmatprep.subr.bf16.mxu0 0
    %784 = vmatpush1.bf16.msra.mxu0 %v578
    %785 = vmatprep.subr.bf16.mxu0 0
    %786 = vmatpush1.bf16.msra.mxu0 %v579
    %787 = vmatprep.subr.bf16.mxu0 0
    %788 = vmatpush1.bf16.msra.mxu0 %v580
    %789 = vmatprep.subr.bf16.mxu0 0
    %790 = vmatpush1.bf16.msra.mxu0 %v581
    %791 = vmatprep.subr.bf16.mxu0 0
    %792 = vmatpush1.bf16.msra.mxu0 %v582
    %793 = vmatprep.mubr.bf16.mxu0 %v252
    %794 = vmatmul.mubr.bf16.gmra.mrb[0].mxu0 %v251
    %v795 = vpop.f32.mrb[0].mxu0
    %v796 = vadd.f32 %v747, %v795
    %v797 = vpop.f32.mrb[0].mxu0
    %v798 = vpop.f32.mrb[0].mxu0
    %v799 = vadd.f32 %v750, %v798
    %v800 = vpop.f32.mrb[0].mxu0
    %801 = vmatprep.mubr.bf16.mxu0 %v260
    %802 = vmatmul.mubr.bf16.gmra.mrb[0].mxu0 %v259
    %v803 = vpop.f32.mrb[0].mxu0
    %v804 = vadd.f32 %v755, %v803
    %v805 = vpop.f32.mrb[0].mxu0
    %v806 = vpop.f32.mrb[0].mxu0
    %v807 = vadd.f32 %v758, %v806
    %v808 = vpop.f32.mrb[0].mxu0
    %809 = vdwg.mxu0
    %810 = vmatprep.subr.bf16.mxu0 0
    %811 = vmatpush1.bf16.msra.mxu0 %v583
    %812 = vmatprep.subr.bf16.mxu0 0
    %813 = vmatpush1.bf16.msra.mxu0 %v584
    %814 = vmatprep.subr.bf16.mxu0 0
    %815 = vmatpush1.bf16.msra.mxu0 %v585
    %816 = vmatprep.subr.bf16.mxu0 0
    %817 = vmatpush1.bf16.msra.mxu0 %v586
    %818 = vmatprep.subr.bf16.mxu0 0
    %819 = vmatpush1.bf16.msra.mxu0 %v587
    %820 = vmatprep.subr.bf16.mxu0 0
    %821 = vmatpush1.bf16.msra.mxu0 %v588
    %822 = vmatprep.subr.bf16.mxu0 0
    %823 = vmatpush1.bf16.msra.mxu0 %v589
    %824 = vmatprep.subr.bf16.mxu0 0
    %825 = vmatpush1.bf16.msra.mxu0 %v590
    %826 = vmatprep.subr.bf16.mxu0 0
    %827 = vmatpush1.bf16.msra.mxu0 %v591
    %828 = vmatprep.subr.bf16.mxu0 0
    %829 = vmatpush1.bf16.msra.mxu0 %v592
    %830 = vmatprep.subr.bf16.mxu0 0
    %831 = vmatpush1.bf16.msra.mxu0 %v593
    %832 = vmatprep.subr.bf16.mxu0 0
    %833 = vmatpush1.bf16.msra.mxu0 %v594
    %834 = vmatprep.subr.bf16.mxu0 0
    %835 = vmatpush1.bf16.msra.mxu0 %v595
    %836 = vmatprep.subr.bf16.mxu0 0
    %837 = vmatpush1.bf16.msra.mxu0 %v596
    %838 = vmatprep.subr.bf16.mxu0 0
    %839 = vmatpush1.bf16.msra.mxu0 %v597
    %840 = vmatprep.subr.bf16.mxu0 0
    %841 = vmatpush1.bf16.msra.mxu0 %v598
    %842 = vmatprep.mubr.bf16.mxu0 %v254
    %843 = vmatmul.mubr.bf16.gmra.mrb[0].mxu0 %v253
    %v844 = vpop.f32.mrb[0].mxu0
    %v845 = vadd.f32 %v796, %v844
    %v846 = vpop.f32.mrb[0].mxu0
    %v847 = vpop.f32.mrb[0].mxu0
    %v848 = vadd.f32 %v799, %v847
    %v849 = vpop.f32.mrb[0].mxu0
    %850 = vmatprep.mubr.bf16.mxu0 %v262
    %851 = vmatmul.mubr.bf16.gmra.mrb[0].mxu0 %v261
    %v852 = vpop.f32.mrb[0].mxu0
    %v853 = vadd.f32 %v804, %v852
    %v854 = vpop.f32.mrb[0].mxu0
    %v855 = vpop.f32.mrb[0].mxu0
    %v856 = vadd.f32 %v807, %v855
    %v857 = vpop.f32.mrb[0].mxu0
    %858 = vdwg.mxu0
    %v859 = vadd.f32 %v845, %v848
    %v860 = vadd.f32 %v859, %v853
    %v861 = vadd.f32 %v860, %v856
    %v862 = vrot.slane %v861, 4
    %v863 = vadd.f32 %v861, %v862
    %v864 = vrot.slane %v863, 2
    %v865 = vadd.f32 %v863, %v864
    %v866 = vrot.slane %v865, 1
    %v867 = vadd.f32 %v865, %v866
    %v868 = vrcp.pop 32.0
    %v869 = vmul.f32 %v867, %v868
    %v870 = vsub.f32 %v845, %v869
    %v871 = vsub.f32 %v848, %v869
    %v872 = vsub.f32 %v853, %v869
    %v873 = vsub.f32 %v856, %v869
    %v874 = vmul.f32 %v870, %v870
    %v875 = vmul.f32 %v871, %v871
    %v876 = vmul.f32 %v872, %v872
    %v877 = vmul.f32 %v873, %v873
    %v878 = vadd.f32 %v874, %v875
    %v879 = vadd.f32 %v878, %v876
    %v880 = vadd.f32 %v879, %v877
    %v881 = vrot.slane %v880, 4
    %v882 = vadd.f32 %v880, %v881
    %v883 = vrot.slane %v882, 2
    %v884 = vadd.f32 %v882, %v883
    %v885 = vrot.slane %v884, 1
    %v886 = vadd.f32 %v884, %v885
    %v887 = vmul.f32 %v886, %v868
    %v888 = vadd.f32 %v887, 0.8
    %v889 = vrsqrt.pop %v888
    %v890 = vmul.f32 %v870, %v889
    %v891 = vmul.f32 %v871, %v889
    %v892 = vmul.f32 %v872, %v889
    %v893 = vmul.f32 %v873, %v889
    %v894 = vld [vmem:[#allocation4] sm:$0x1]
    %v896 = vlaneseq
    %v897 = vshrl.u32 %v896, 7
    %v898 = vsub.s32 0, %v897
    %v899 = vrot.slane %v894, %v898
    %v901 = vmul.f32 %v890, %v899
    %v902 = vmul.f32 %v891, %v899
    %v903 = vmul.f32 %v892, %v899
    %v904 = vmul.f32 %v893, %v899
    %v905 = vld [vmem:[#allocation6] sm:$0x1]
    %v907 = vlaneseq
    %v908 = vshrl.u32 %v907, 7
    %v909 = vsub.s32 0, %v908
    %v910 = vrot.slane %v905, %v909
    %v912 = vadd.f32 %v901, %v910
    %v913 = vadd.f32 %v902, %v910
    %v914 = vadd.f32 %v903, %v910
    %v915 = vadd.f32 %v904, %v910
    %vm916 = vcmp.ge.f32.partialorder %v912, 0.0
    %vm917 = vcmp.ge.f32.partialorder %v913, 0.0
    %vm918 = vcmp.ge.f32.partialorder %v914, 0.0
    %vm919 = vcmp.ge.f32.partialorder %v915, 0.0
    %v920 = vmul.f32 %v912, 0.2
    %v921 = vmul.f32 %v913, 0.2
    %v922 = vmul.f32 %v914, 0.2
    %v923 = vmul.f32 %v915, 0.2
    %v924 = vsel %vm916, %v912, %v920
    %v925 = vsel %vm917, %v913, %v921
    %v926 = vsel %vm918, %v914, %v922
    %v927 = vsel %vm919, %v915, %v923
    %v928 = vpack.c.bf16 %v925, %v924
    %v929 = vpack.c.bf16 %v927, %v926
    %v932 = vunpack.c.l.b16 %v928
    %v933 = vunpack.c.h.b16 %v928
    %v934 = vunpack.c.l.b16 %v929
    %v935 = vunpack.c.h.b16 %v929
    %v936 = vpack.c.b16 %v932, %v932
    %v937 = vpack.c.b16 %v933, %v933
    %v938 = vpack.c.b16 %v934, %v934
    %v939 = vpack.c.b16 %v935, %v935
    %944 = vst [vmem:[%s4] sm:$0xf] %v936
    %945 = vst [vmem:[%s4 + $0x4] sm:$0xf] %v937
    %946 = vst [vmem:[%s4 + $0x8] sm:$0xf] %v938
    %947 = vst [vmem:[%s4 + $0xc] sm:$0xf] %v939
    // Predicated region
    $region30: #{encoder_forward.6} parent=1 // pred_check
      _
    $region31: #{encoder_forward.6} parent=1 // pred_check_branch
      %949 = sbr.rel (0) target = $region33
    $region32: #{encoder_forward.6} parent=1 // pred_region
      _
    $region33: #{encoder_forward.6} parent=1 // pred_fallthru
      _
    // Predicated region
    $region34: #{encoder_forward.6} parent=1 // pred_check
      _
    $region35: #{encoder_forward.6} parent=1 // pred_check_branch
      %951 = sbr.rel (0) target = $region37
    $region36: #{encoder_forward.6} parent=1 // pred_region
      _
    $region37: #{encoder_forward.6} parent=1 // pred_fallthru
      _
    %952 = vsyncpa [#allocation3], 1
    %953 = vsyncpa [#allocation5], 1

// kernel: encoder_forward.9
$region0: #{encoder_forward.9}
  #allocation0 [shape = 'u32[]', space=smem, size = 0x4, offset = 0x4, fixed_abs, tag = 'smem constant byte address 0x4 - core index']
  #allocation1 [shape = 'u32[144,128]{1,0:T(1,128)}', space=vmem, size = 0x12000, scoped, tag = 'internal scratch']
  %s0 = inlined_call_operand.vmem [shape: bf16[2,512], index: 0, kind: input, shape index: {}]
  %s1 = inlined_call_operand.vmem [shape: bf16[512,128], index: 1, kind: input, shape index: {}]
  %s2 = inlined_call_operand.vmem [shape: f32[1,128], index: 2, kind: input, shape index: {}]
  %s3 = inlined_call_operand.hbm [shape: f32[2,128], index: 3, kind: output, shape index: {}]
  %s4 = sld [smem:[#allocation0]]
  $region22: #{encoder_forward.9} parent=0
    _
  %s6 = ssub.s32 1, %s4
  %s7 = scalar_select 0, %s6, %s4
  $region1: #{encoder_forward.9} parent=0
    #allocation2 [shape = 'u8[1024]{0}', space=vmem, size = 0x400, scoped, tag = 'output window, operand 0, single buffered']
    #allocation3 [shape = 's32[1]{0}', space=sflag, size = 0x4, scoped, tag = 'scoped memory for encoder_forward.9']
    %8 = vsyncpa [#allocation3], 0
    // Predicated region
    $region2: #{encoder_forward.9} parent=1 // pred_check
      _
    $region3: #{encoder_forward.9} parent=1 // pred_check_branch
      %10 = sbr.rel (0) target = $region5
    $region4: #{encoder_forward.9} parent=1 // pred_region
      _
    $region5: #{encoder_forward.9} parent=1 // pred_fallthru
      _
    // Predicated region
    $region6: #{encoder_forward.9} parent=1 // pred_check
      _
    $region7: #{encoder_forward.9} parent=1 // pred_check_branch
      %12 = sbr.rel (0) target = $region9
    $region8: #{encoder_forward.9} parent=1 // pred_region
      _
    $region9: #{encoder_forward.9} parent=1 // pred_fallthru
      _
    // Predicated region
    $region10: #{encoder_forward.9} parent=1 // pred_check
      _
    $region11: #{encoder_forward.9} parent=1 // pred_check_branch
      %14 = sbr.rel (0) target = $region13
    $region12: #{encoder_forward.9} parent=1 // pred_region
      _
    $region13: #{encoder_forward.9} parent=1 // pred_fallthru
      _
    %v16 = vld [vmem:[%s0] sm:$0xf]
    %v17 = vld [vmem:[%s1] sm:$0xf]
    %v18 = vld [vmem:[%s1 + $0x4] sm:$0xf]
    %v19 = vld [vmem:[%s1 + $0x8] sm:$0xf]
    %v20 = vld [vmem:[%s1 + $0xc] sm:$0xf]
    %v21 = vld [vmem:[%s1 + $0x10] sm:$0xf]
    %v22 = vld [vmem:[%s1 + $0x14] sm:$0xf]
    %v23 = vld [vmem:[%s1 + $0x18] sm:$0xf]
    %v24 = vld [vmem:[%s1 + $0x1c] sm:$0xf]
    %v25 = vld [vmem:[%s1 + $0x20] sm:$0xf]
    %v26 = vld [vmem:[%s1 + $0x24] sm:$0xf]
    %v27 = vld [vmem:[%s1 + $0x28] sm:$0xf]
    %v28 = vld [vmem:[%s1 + $0x2c] sm:$0xf]
    %v29 = vld [vmem:[%s1 + $0x30] sm:$0xf]
    %v30 = vld [vmem:[%s1 + $0x34] sm:$0xf]
    %v31 = vld [vmem:[%s1 + $0x38] sm:$0xf]
    %v32 = vld [vmem:[%s1 + $0x3c] sm:$0xf]
    %v33 = vld [vmem:[%s1 + $0x40] sm:$0xf]
    %v34 = vld [vmem:[%s1 + $0x44] sm:$0xf]
    %v35 = vld [vmem:[%s1 + $0x48] sm:$0xf]
    %v36 = vld [vmem:[%s1 + $0x4c] sm:$0xf]
    %v37 = vld [vmem:[%s1 + $0x50] sm:$0xf]
    %v38 = vld [vmem:[%s1 + $0x54] sm:$0xf]
    %v39 = vld [vmem:[%s1 + $0x58] sm:$0xf]
    %v40 = vld [vmem:[%s1 + $0x5c] sm:$0xf]
    %v41 = vld [vmem:[%s1 + $0x60] sm:$0xf]
    %v42 = vld [vmem:[%s1 + $0x64] sm:$0xf]
    %v43 = vld [vmem:[%s1 + $0x68] sm:$0xf]
    %v44 = vld [vmem:[%s1 + $0x6c] sm:$0xf]
    %v45 = vld [vmem:[%s1 + $0x70] sm:$0xf]
    %v46 = vld [vmem:[%s1 + $0x74] sm:$0xf]
    %v47 = vld [vmem:[%s1 + $0x78] sm:$0xf]
    %v48 = vld [vmem:[%s1 + $0x7c] sm:$0xf]
    %v49 = vld [vmem:[%s1 + $0x80] sm:$0xf]
    %v50 = vld [vmem:[%s1 + $0x84] sm:$0xf]
    %v51 = vld [vmem:[%s1 + $0x88] sm:$0xf]
    %v52 = vld [vmem:[%s1 + $0x8c] sm:$0xf]
    %v53 = vld [vmem:[%s1 + $0x90] sm:$0xf]
    %v54 = vld [vmem:[%s1 + $0x94] sm:$0xf]
    %v55 = vld [vmem:[%s1 + $0x98] sm:$0xf]
    %v56 = vld [vmem:[%s1 + $0x9c] sm:$0xf]
    %v57 = vld [vmem:[%s1 + $0xa0] sm:$0xf]
    %v58 = vld [vmem:[%s1 + $0xa4] sm:$0xf]
    %v59 = vld [vmem:[%s1 + $0xa8] sm:$0xf]
    %v60 = vld [vmem:[%s1 + $0xac] sm:$0xf]
    %v61 = vld [vmem:[%s1 + $0xb0] sm:$0xf]
    %v62 = vld [vmem:[%s1 + $0xb4] sm:$0xf]
    %v63 = vld [vmem:[%s1 + $0xb8] sm:$0xf]
    %v64 = vld [vmem:[%s1 + $0xbc] sm:$0xf]
    %v65 = vld [vmem:[%s1 + $0xc0] sm:$0xf]
    %v66 = vld [vmem:[%s1 + $0xc4] sm:$0xf]
    %v67 = vld [vmem:[%s1 + $0xc8] sm:$0xf]
    %v68 = vld [vmem:[%s1 + $0xcc] sm:$0xf]
    %v69 = vld [vmem:[%s1 + $0xd0] sm:$0xf]
    %v70 = vld [vmem:[%s1 + $0xd4] sm:$0xf]
    %v71 = vld [vmem:[%s1 + $0xd8] sm:$0xf]
    %v72 = vld [vmem:[%s1 + $0xdc] sm:$0xf]
    %v73 = vld [vmem:[%s1 + $0xe0] sm:$0xf]
    %v74 = vld [vmem:[%s1 + $0xe4] sm:$0xf]
    %v75 = vld [vmem:[%s1 + $0xe8] sm:$0xf]
    %v76 = vld [vmem:[%s1 + $0xec] sm:$0xf]
    %v77 = vld [vmem:[%s1 + $0xf0] sm:$0xf]
    %v78 = vld [vmem:[%s1 + $0xf4] sm:$0xf]
    %v79 = vld [vmem:[%s1 + $0xf8] sm:$0xf]
    %v80 = vld [vmem:[%s1 + $0xfc] sm:$0xf]
    %v81 = vld [vmem:[%s2] sm:$0x1]
    %v83 = vlaneseq
    %v84 = vshrl.u32 %v83, 7
    %v85 = vsub.s32 0, %v84
    %v86 = vrot.slane %v81, %v85
    %v90 = vunpack.c.l.s4 1966171168
    %v91 = vunpack.c.0.s8 %v90
    %v92 = vlaneseq
    %v93 = vshrl.u32 %v92, 7
    %v94 = vsub.s32 %v91, %v93
    %v95 = vrot.slane %v16, %v94
    %v96 = vcombine.high %v95, %v95
    %v98 = vunpack.c.l.s4 1966171168
    %v99 = vunpack.c.0.s8 %v98
    %v100 = vlaneseq
    %v101 = vshrl.u32 %v100, 7
    %v102 = vsub.s32 %v99, %v101
    %v103 = vrot.slane %v95, %v102
    %v105 = vunpack.c.l.s4 1966171168
    %v106 = vunpack.c.0.s8 %v105
    %v107 = vlaneseq
    %v108 = vshrl.u32 %v107, 7
    %v109 = vsub.s32 %v106, %v108
    %v110 = vrot.slane %v96, %v109
    %v111 = vcombine.high %v103, %v103
    %v112 = vcombine.high %v110, %v110
    %v181 = vunpack.c.l.b16 %v17
    %v182 = vunpack.c.l.b16 %v18
    %v183 = vunpack.c.l.b16 %v19
    %v184 = vunpack.c.l.b16 %v20
    %v185 = vunpack.c.l.b16 %v21
    %v186 = vunpack.c.l.b16 %v22
    %v187 = vunpack.c.l.b16 %v23
    %v188 = vunpack.c.l.b16 %v24
    %v189 = vunpack.c.l.b16 %v25
    %v190 = vunpack.c.l.b16 %v26
    %v191 = vunpack.c.l.b16 %v27
    %v192 = vunpack.c.l.b16 %v28
    %v193 = vunpack.c.l.b16 %v29
    %v194 = vunpack.c.l.b16 %v30
    %v195 = vunpack.c.l.b16 %v31
    %v196 = vunpack.c.l.b16 %v32
    %v197 = vunpack.c.l.b16 %v33
    %v198 = vunpack.c.l.b16 %v34
    %v199 = vunpack.c.l.b16 %v35
    %v200 = vunpack.c.l.b16 %v36
    %v201 = vunpack.c.l.b16 %v37
    %v202 = vunpack.c.l.b16 %v38
    %v203 = vunpack.c.l.b16 %v39
    %v204 = vunpack.c.l.b16 %v40
    %v205 = vunpack.c.l.b16 %v41
    %v206 = vunpack.c.l.b16 %v42
    %v207 = vunpack.c.l.b16 %v43
    %v208 = vunpack.c.l.b16 %v44
    %v209 = vunpack.c.l.b16 %v45
    %v210 = vunpack.c.l.b16 %v46
    %v211 = vunpack.c.l.b16 %v47
    %v212 = vunpack.c.l.b16 %v48
    %v213 = vunpack.c.l.b16 %v49
    %v214 = vunpack.c.l.b16 %v50
    %v215 = vunpack.c.l.b16 %v51
    %v216 = vunpack.c.l.b16 %v52
    %v217 = vunpack.c.l.b16 %v53
    %v218 = vunpack.c.l.b16 %v54
    %v219 = vunpack.c.l.b16 %v55
    %v220 = vunpack.c.l.b16 %v56
    %v221 = vunpack.c.l.b16 %v57
    %v222 = vunpack.c.l.b16 %v58
    %v223 = vunpack.c.l.b16 %v59
    %v224 = vunpack.c.l.b16 %v60
    %v225 = vunpack.c.l.b16 %v61
    %v226 = vunpack.c.l.b16 %v62
    %v227 = vunpack.c.l.b16 %v63
    %v228 = vunpack.c.l.b16 %v64
    %v229 = vunpack.c.l.b16 %v65
    %v230 = vunpack.c.l.b16 %v66
    %v231 = vunpack.c.l.b16 %v67
    %v232 = vunpack.c.l.b16 %v68
    %v233 = vunpack.c.l.b16 %v69
    %v234 = vunpack.c.l.b16 %v70
    %v235 = vunpack.c.l.b16 %v71
    %v236 = vunpack.c.l.b16 %v72
    %v237 = vunpack.c.l.b16 %v73
    %v238 = vunpack.c.l.b16 %v74
    %v239 = vunpack.c.l.b16 %v75
    %v240 = vunpack.c.l.b16 %v76
    %v241 = vunpack.c.l.b16 %v77
    %v242 = vunpack.c.l.b16 %v78
    %v243 = vunpack.c.l.b16 %v79
    %v244 = vunpack.c.l.b16 %v80
    %v245 = vpack.c.b16 %v182, %v181
    %v246 = vpack.c.b16 %v184, %v183
    %v247 = vpack.c.b16 %v186, %v185
    %v248 = vpack.c.b16 %v188, %v187
    %v249 = vpack.c.b16 %v190, %v189
    %v250 = vpack.c.b16 %v192, %v191
    %v251 = vpack.c.b16 %v194, %v193
    %v252 = vpack.c.b16 %v196, %v195
    %v253 = vpack.c.b16 %v198, %v197
    %v254 = vpack.c.b16 %v200, %v199
    %v255 = vpack.c.b16 %v202, %v201
    %v256 = vpack.c.b16 %v204, %v203
    %v257 = vpack.c.b16 %v206, %v205
    %v258 = vpack.c.b16 %v208, %v207
    %v259 = vpack.c.b16 %v210, %v209
    %v260 = vpack.c.b16 %v212, %v211
    %v261 = vpack.c.b16 %v214, %v213
    %v262 = vpack.c.b16 %v216, %v215
    %v263 = vpack.c.b16 %v218, %v217
    %v264 = vpack.c.b16 %v220, %v219
    %v265 = vpack.c.b16 %v222, %v221
    %v266 = vpack.c.b16 %v224, %v223
    %v267 = vpack.c.b16 %v226, %v225
    %v268 = vpack.c.b16 %v228, %v227
    %v269 = vpack.c.b16 %v230, %v229
    %v270 = vpack.c.b16 %v232, %v231
    %v271 = vpack.c.b16 %v234, %v233
    %v272 = vpack.c.b16 %v236, %v235
    %v273 = vpack.c.b16 %v238, %v237
    %v274 = vpack.c.b16 %v240, %v239
    %v275 = vpack.c.b16 %v242, %v241
    %v276 = vpack.c.b16 %v244, %v243
    %309 = vmatprep.subr.bf16.mxu0 0
    %310 = vmatpush1.bf16.msra.mxu0 %v245
    %311 = vmatprep.subr.bf16.mxu0 0
    %312 = vmatpush1.bf16.msra.mxu0 %v246
    %313 = vmatprep.subr.bf16.mxu0 0
    %314 = vmatpush1.bf16.msra.mxu0 %v247
    %315 = vmatprep.subr.bf16.mxu0 0
    %316 = vmatpush1.bf16.msra.mxu0 %v248
    %317 = vmatprep.subr.bf16.mxu0 0
    %318 = vmatpush1.bf16.msra.mxu0 %v249
    %319 = vmatprep.subr.bf16.mxu0 0
    %320 = vmatpush1.bf16.msra.mxu0 %v250
    %321 = vmatprep.subr.bf16.mxu0 0
    %322 = vmatpush1.bf16.msra.mxu0 %v251
    %323 = vmatprep.subr.bf16.mxu0 0
    %324 = vmatpush1.bf16.msra.mxu0 %v252
    %325 = vmatprep.subr.bf16.mxu0 0
    %326 = vmatpush1.bf16.msra.mxu0 %v253
    %327 = vmatprep.subr.bf16.mxu0 0
    %328 = vmatpush1.bf16.msra.mxu0 %v254
    %329 = vmatprep.subr.bf16.mxu0 0
    %330 = vmatpush1.bf16.msra.mxu0 %v255
    %331 = vmatprep.subr.bf16.mxu0 0
    %332 = vmatpush1.bf16.msra.mxu0 %v256
    %333 = vmatprep.subr.bf16.mxu0 0
    %334 = vmatpush1.bf16.msra.mxu0 %v257
    %335 = vmatprep.subr.bf16.mxu0 0
    %336 = vmatpush1.bf16.msra.mxu0 %v258
    %337 = vmatprep.subr.bf16.mxu0 0
    %338 = vmatpush1.bf16.msra.mxu0 %v259
    %339 = vmatprep.subr.bf16.mxu0 0
    %340 = vmatpush1.bf16.msra.mxu0 %v260
    %341 = vmatprep.mubr.bf16.mxu0 %v110
    %342 = vmatmul.mubr.bf16.gmra.mrb[0].mxu0 %v103
    %v343 = vpop.f32.mrb[0].mxu0
    %v344 = vadd.f32 %v86, %v343
    %v345 = vpop.f32.mrb[0].mxu0
    %v346 = vpop.f32.mrb[0].mxu0
    %v347 = vpop.f32.mrb[0].mxu0
    %348 = vdwg.mxu0
    %349 = vmatprep.subr.bf16.mxu0 0
    %350 = vmatpush1.bf16.msra.mxu0 %v261
    %351 = vmatprep.subr.bf16.mxu0 0
    %352 = vmatpush1.bf16.msra.mxu0 %v262
    %353 = vmatprep.subr.bf16.mxu0 0
    %354 = vmatpush1.bf16.msra.mxu0 %v263
    %355 = vmatprep.subr.bf16.mxu0 0
    %356 = vmatpush1.bf16.msra.mxu0 %v264
    %357 = vmatprep.subr.bf16.mxu0 0
    %358 = vmatpush1.bf16.msra.mxu0 %v265
    %359 = vmatprep.subr.bf16.mxu0 0
    %360 = vmatpush1.bf16.msra.mxu0 %v266
    %361 = vmatprep.subr.bf16.mxu0 0
    %362 = vmatpush1.bf16.msra.mxu0 %v267
    %363 = vmatprep.subr.bf16.mxu0 0
    %364 = vmatpush1.bf16.msra.mxu0 %v268
    %365 = vmatprep.subr.bf16.mxu0 0
    %366 = vmatpush1.bf16.msra.mxu0 %v269
    %367 = vmatprep.subr.bf16.mxu0 0
    %368 = vmatpush1.bf16.msra.mxu0 %v270
    %369 = vmatprep.subr.bf16.mxu0 0
    %370 = vmatpush1.bf16.msra.mxu0 %v271
    %371 = vmatprep.subr.bf16.mxu0 0
    %372 = vmatpush1.bf16.msra.mxu0 %v272
    %373 = vmatprep.subr.bf16.mxu0 0
    %374 = vmatpush1.bf16.msra.mxu0 %v273
    %375 = vmatprep.subr.bf16.mxu0 0
    %376 = vmatpush1.bf16.msra.mxu0 %v274
    %377 = vmatprep.subr.bf16.mxu0 0
    %378 = vmatpush1.bf16.msra.mxu0 %v275
    %379 = vmatprep.subr.bf16.mxu0 0
    %380 = vmatpush1.bf16.msra.mxu0 %v276
    %381 = vmatprep.mubr.bf16.mxu0 %v112
    %382 = vmatmul.mubr.bf16.gmra.mrb[0].mxu0 %v111
    %v383 = vpop.f32.mrb[0].mxu0
    %v384 = vadd.f32 %v344, %v383
    %v385 = vpop.f32.mrb[0].mxu0
    %v386 = vpop.f32.mrb[0].mxu0
    %v387 = vpop.f32.mrb[0].mxu0
    %388 = vdwg.mxu0
    %389 = vst [vmem:[#allocation2] sm:$0x3] %v384
    // Predicated region
    $region14: #{encoder_forward.9} parent=1 // pred_check
      _
    $region15: #{encoder_forward.9} parent=1 // pred_check_branch
      %391 = sbr.rel (0) target = $region17
    $region16: #{encoder_forward.9} parent=1 // pred_region
      %s393 = ssub.s32 32, 32
      %394 = vsyncadd [#allocation3], %s393
      %s396 = sshll.u32 [#allocation2], 4
      %s397 = int_to_ptr.vmem [resolvable:$true] %s396
      %399 = dma.vmem_to_hbm [thread:$0]  %s397, 32, %s3, [#allocation3]
    $region17: #{encoder_forward.9} parent=1 // pred_fallthru
      _
    // Predicated region
    $region18: #{encoder_forward.9} parent=1 // pred_check
      _
    $region19: #{encoder_forward.9} parent=1 // pred_check_branch
      %401 = sbr.rel (0) target = $region21
    $region20: #{encoder_forward.9} parent=1 // pred_region
      %402 = dma.done [#allocation3], 32
    $region21: #{encoder_forward.9} parent=1 // pred_fallthru
      _
    %403 = vsyncpa [#allocation3], 1

// kernel: encoder_forward.7
$region0: #{encoder_forward.7}
  #allocation0 [shape = 'u32[]', space=smem, size = 0x4, offset = 0x4, fixed_abs, tag = 'smem constant byte address 0x4 - core index']
  #allocation1 [shape = 'u32[144,128]{1,0:T(1,128)}', space=vmem, size = 0x12000, scoped, tag = 'internal scratch']
  %s0 = inlined_call_operand.vmem [shape: bf16[8,2048], index: 0, kind: input, shape index: {}]
  %s1 = inlined_call_operand.hbm [shape: bf16[2048,256], index: 1, kind: input, shape index: {}]
  %s2 = inlined_call_operand.hbm [shape: f32[1,256], index: 2, kind: input, shape index: {}]
  %s3 = inlined_call_operand.hbm [shape: f32[1,256], index: 3, kind: input, shape index: {}]
  %s4 = inlined_call_operand.vmem [shape: bf16[8,256], index: 4, kind: output, shape index: {}]
  %s5 = sld [smem:[#allocation0]]
  $region38: #{encoder_forward.7} parent=0
    _
  %s7 = ssub.s32 1, %s5
  %s8 = scalar_select 0, %s7, %s5
  $region1: #{encoder_forward.7} parent=0
    #allocation2 [shape = 'u8[1048576]{0}', space=vmem, size = 0x100000, scoped, tag = 'input window, operand 1, single buffered']
    #allocation3 [shape = 's32[1]{0}', space=sflag, size = 0x4, scoped, tag = 'scoped memory for encoder_forward.7']
    #allocation4 [shape = 'u8[1024]{0}', space=vmem, size = 0x400, scoped, tag = 'input window, operand 2, single buffered']
    #allocation5 [shape = 's32[1]{0}', space=sflag, size = 0x4, scoped, tag = 'scoped memory for encoder_forward.7']
    #allocation6 [shape = 'u8[1024]{0}', space=vmem, size = 0x400, scoped, tag = 'input window, operand 3, single buffered']
    %9 = vsyncpa [#allocation3], 0
    %10 = vsyncpa [#allocation5], 0
    // Predicated region
    $region2: #{encoder_forward.7} parent=1 // pred_check
      _
    $region3: #{encoder_forward.7} parent=1 // pred_check_branch
      %12 = sbr.rel (0) target = $region5
    $region4: #{encoder_forward.7} parent=1 // pred_region
      _
    $region5: #{encoder_forward.7} parent=1 // pred_fallthru
      _
    // Predicated region
    $region6: #{encoder_forward.7} parent=1 // pred_check
      _
    $region7: #{encoder_forward.7} parent=1 // pred_check_branch
      %14 = sbr.rel (0) target = $region9
    $region8: #{encoder_forward.7} parent=1 // pred_region
      %s16 = ssub.s32 32768, 32768
      %17 = vsyncadd [#allocation3], %s16
      %s18 = sshll.u32 [#allocation2], 4
      %s19 = int_to_ptr.vmem [resolvable:$true] %s18
      %24 = dma.hbm_to_vmem [thread:$0]  %s1, 32768, %s19, [#allocation3], 128, 128, 8
    $region9: #{encoder_forward.7} parent=1 // pred_fallthru
      _
    // Predicated region
    $region10: #{encoder_forward.7} parent=1 // pred_check
      _
    $region11: #{encoder_forward.7} parent=1 // pred_check_branch
      %26 = sbr.rel (0) target = $region13
    $region12: #{encoder_forward.7} parent=1 // pred_region
      %s28 = ssub.s32 32, 32
      %29 = vsyncadd [#allocation5], %s28
      %s31 = sshll.u32 [#allocation4], 4
      %s32 = int_to_ptr.vmem [resolvable:$true] %s31
      %34 = dma.hbm_to_vmem [thread:$0]  %s2, 32, %s32, [#allocation5]
    $region13: #{encoder_forward.7} parent=1 // pred_fallthru
      _
    // Predicated region
    $region14: #{encoder_forward.7} parent=1 // pred_check
      _
    $region15: #{encoder_forward.7} parent=1 // pred_check_branch
      %36 = sbr.rel (0) target = $region17
    $region16: #{encoder_forward.7} parent=1 // pred_region
      %s38 = ssub.s32 32, 32
      %39 = vsyncadd [#allocation5], %s38
      %s41 = sshll.u32 [#allocation6], 4
      %s42 = int_to_ptr.vmem [resolvable:$true] %s41
      %44 = dma.hbm_to_vmem [thread:$0]  %s3, 32, %s42, [#allocation5]
    $region17: #{encoder_forward.7} parent=1 // pred_fallthru
      _
    // Predicated region
    $region18: #{encoder_forward.7} parent=1 // pred_check
      _
    $region19: #{encoder_forward.7} parent=1 // pred_check_branch
      %46 = sbr.rel (0) target = $region21
    $region20: #{encoder_forward.7} parent=1 // pred_region
      %47 = dma.done [#allocation3], 32768
    $region21: #{encoder_forward.7} parent=1 // pred_fallthru
      _
    // Predicated region
    $region22: #{encoder_forward.7} parent=1 // pred_check
      _
    $region23: #{encoder_forward.7} parent=1 // pred_check_branch
      %49 = sbr.rel (0) target = $region25
    $region24: #{encoder_forward.7} parent=1 // pred_region
      %50 = dma.done [#allocation5], 32
    $region25: #{encoder_forward.7} parent=1 // pred_fallthru
      _
    // Predicated region
    $region26: #{encoder_forward.7} parent=1 // pred_check
      _
    $region27: #{encoder_forward.7} parent=1 // pred_check_branch
      %52 = sbr.rel (0) target = $region29
    $region28: #{encoder_forward.7} parent=1 // pred_region
      %53 = dma.done [#allocation5], 32
    $region29: #{encoder_forward.7} parent=1 // pred_fallthru
      _
    %v54 = vld [vmem:[%s0] sm:$0xff]
    %v55 = vld [vmem:[%s0 + $0x8] sm:$0xff]
    %v56 = vld [vmem:[%s0 + $0x10] sm:$0xff]
    %v57 = vld [vmem:[%s0 + $0x18] sm:$0xff]
    %v58 = vld [vmem:[%s0 + $0x20] sm:$0xff]
    %v59 = vld [vmem:[%s0 + $0x28] sm:$0xff]
    %v60 = vld [vmem:[%s0 + $0x30] sm:$0xff]
    %v61 = vld [vmem:[%s0 + $0x38] sm:$0xff]
    %v62 = vld [vmem:[#allocation2] sm:$0xff]
    %v63 = vld [vmem:[#allocation2 + $0x8] sm:$0xff]
    %v64 = vld [vmem:[#allocation2 + $0x10] sm:$0xff]
    %v65 = vld [vmem:[#allocation2 + $0x18] sm:$0xff]
    %v66 = vld [vmem:[#allocation2 + $0x20] sm:$0xff]
    %v67 = vld [vmem:[#allocation2 + $0x28] sm:$0xff]
    %v68 = vld [vmem:[#allocation2 + $0x30] sm:$0xff]
    %v69 = vld [vmem:[#allocation2 + $0x38] sm:$0xff]
    %v70 = vld [vmem:[#allocation2 + $0x40] sm:$0xff]
    %v71 = vld [vmem:[#allocation2 + $0x48] sm:$0xff]
    %v72 = vld [vmem:[#allocation2 + $0x50] sm:$0xff]
    %v73 = vld [vmem:[#allocation2 + $0x58] sm:$0xff]
    %v74 = vld [vmem:[#allocation2 + $0x60] sm:$0xff]
    %v75 = vld [vmem:[#allocation2 + $0x68] sm:$0xff]
    %v76 = vld [vmem:[#allocation2 + $0x70] sm:$0xff]
    %v77 = vld [vmem:[#allocation2 + $0x78] sm:$0xff]
    %v78 = vld [vmem:[#allocation2 + $0x80] sm:$0xff]
    %v79 = vld [vmem:[#allocation2 + $0x88] sm:$0xff]
    %v80 = vld [vmem:[#allocation2 + $0x90] sm:$0xff]
    %v81 = vld [vmem:[#allocation2 + $0x98] sm:$0xff]
    %v82 = vld [vmem:[#allocation2 + $0xa0] sm:$0xff]
    %v83 = vld [vmem:[#allocation2 + $0xa8] sm:$0xff]
    %v84 = vld [vmem:[#allocation2 + $0xb0] sm:$0xff]
    %v85 = vld [vmem:[#allocation2 + $0xb8] sm:$0xff]
    %v86 = vld [vmem:[#allocation2 + $0xc0] sm:$0xff]
    %v87 = vld [vmem:[#allocation2 + $0xc8] sm:$0xff]
    %v88 = vld [vmem:[#allocation2 + $0xd0] sm:$0xff]
    %v89 = vld [vmem:[#allocation2 + $0xd8] sm:$0xff]
    %v90 = vld [vmem:[#allocation2 + $0xe0] sm:$0xff]
    %v91 = vld [vmem:[#allocation2 + $0xe8] sm:$0xff]
    %v92 = vld [vmem:[#allocation2 + $0xf0] sm:$0xff]
    %v93 = vld [vmem:[#allocation2 + $0xf8] sm:$0xff]
    %v94 = vld [vmem:[#allocation2 + $0x100] sm:$0xff]
    %v95 = vld [vmem:[#allocation2 + $0x108] sm:$0xff]
    %v96 = vld [vmem:[#allocation2 + $0x110] sm:$0xff]
    %v97 = vld [vmem:[#allocation2 + $0x118] sm:$0xff]
    %v98 = vld [vmem:[#allocation2 + $0x120] sm:$0xff]
    %v99 = vld [vmem:[#allocation2 + $0x128] sm:$0xff]
    %v100 = vld [vmem:[#allocation2 + $0x130] sm:$0xff]
    %v101 = vld [vmem:[#allocation2 + $0x138] sm:$0xff]
    %v102 = vld [vmem:[#allocation2 + $0x140] sm:$0xff]
    %v103 = vld [vmem:[#allocation2 + $0x148] sm:$0xff]
    %v104 = vld [vmem:[#allocation2 + $0x150] sm:$0xff]
    %v105 = vld [vmem:[#allocation2 + $0x158] sm:$0xff]
    %v106 = vld [vmem:[#allocation2 + $0x160] sm:$0xff]
    %v107 = vld [vmem:[#allocation2 + $0x168] sm:$0xff]
    %v108 = vld [vmem:[#allocation2 + $0x170] sm:$0xff]
    %v109 = vld [vmem:[#allocation2 + $0x178] sm:$0xff]
    %v110 = vld [vmem:[#allocation2 + $0x180] sm:$0xff]
    %v111 = vld [vmem:[#allocation2 + $0x188] sm:$0xff]
    %v112 = vld [vmem:[#allocation2 + $0x190] sm:$0xff]
    %v113 = vld [vmem:[#allocation2 + $0x198] sm:$0xff]
    %v114 = vld [vmem:[#allocation2 + $0x1a0] sm:$0xff]
    %v115 = vld [vmem:[#allocation2 + $0x1a8] sm:$0xff]
    %v116 = vld [vmem:[#allocation2 + $0x1b0] sm:$0xff]
    %v117 = vld [vmem:[#allocation2 + $0x1b8] sm:$0xff]
    %v118 = vld [vmem:[#allocation2 + $0x1c0] sm:$0xff]
    %v119 = vld [vmem:[#allocation2 + $0x1c8] sm:$0xff]
    %v120 = vld [vmem:[#allocation2 + $0x1d0] sm:$0xff]
    %v121 = vld [vmem:[#allocation2 + $0x1d8] sm:$0xff]
    %v122 = vld [vmem:[#allocation2 + $0x1e0] sm:$0xff]
    %v123 = vld [vmem:[#allocation2 + $0x1e8] sm:$0xff]
    %v124 = vld [vmem:[#allocation2 + $0x1f0] sm:$0xff]
    %v125 = vld [vmem:[#allocation2 + $0x1f8] sm:$0xff]
    %v126 = vld [vmem:[#allocation2 + $0x200] sm:$0xff]
    %v127 = vld [vmem:[#allocation2 + $0x208] sm:$0xff]
    %v128 = vld [vmem:[#allocation2 + $0x210] sm:$0xff]
    %v129 = vld [vmem:[#allocation2 + $0x218] sm:$0xff]
    %v130 = vld [vmem:[#allocation2 + $0x220] sm:$0xff]
    %v131 = vld [vmem:[#allocation2 + $0x228] sm:$0xff]
    %v132 = vld [vmem:[#allocation2 + $0x230] sm:$0xff]
    %v133 = vld [vmem:[#allocation2 + $0x238] sm:$0xff]
    %v134 = vld [vmem:[#allocation2 + $0x240] sm:$0xff]
    %v135 = vld [vmem:[#allocation2 + $0x248] sm:$0xff]
    %v136 = vld [vmem:[#allocation2 + $0x250] sm:$0xff]
    %v137 = vld [vmem:[#allocation2 + $0x258] sm:$0xff]
    %v138 = vld [vmem:[#allocation2 + $0x260] sm:$0xff]
    %v139 = vld [vmem:[#allocation2 + $0x268] sm:$0xff]
    %v140 = vld [vmem:[#allocation2 + $0x270] sm:$0xff]
    %v141 = vld [vmem:[#allocation2 + $0x278] sm:$0xff]
    %v142 = vld [vmem:[#allocation2 + $0x280] sm:$0xff]
    %v143 = vld [vmem:[#allocation2 + $0x288] sm:$0xff]
    %v144 = vld [vmem:[#allocation2 + $0x290] sm:$0xff]
    %v145 = vld [vmem:[#allocation2 + $0x298] sm:$0xff]
    %v146 = vld [vmem:[#allocation2 + $0x2a0] sm:$0xff]
    %v147 = vld [vmem:[#allocation2 + $0x2a8] sm:$0xff]
    %v148 = vld [vmem:[#allocation2 + $0x2b0] sm:$0xff]
    %v149 = vld [vmem:[#allocation2 + $0x2b8] sm:$0xff]
    %v150 = vld [vmem:[#allocation2 + $0x2c0] sm:$0xff]
    %v151 = vld [vmem:[#allocation2 + $0x2c8] sm:$0xff]
    %v152 = vld [vmem:[#allocation2 + $0x2d0] sm:$0xff]
    %v153 = vld [vmem:[#allocation2 + $0x2d8] sm:$0xff]
    %v154 = vld [vmem:[#allocation2 + $0x2e0] sm:$0xff]
    %v155 = vld [vmem:[#allocation2 + $0x2e8] sm:$0xff]
    %v156 = vld [vmem:[#allocation2 + $0x2f0] sm:$0xff]
    %v157 = vld [vmem:[#allocation2 + $0x2f8] sm:$0xff]
    %v158 = vld [vmem:[#allocation2 + $0x300] sm:$0xff]
    %v159 = vld [vmem:[#allocation2 + $0x308] sm:$0xff]
    %v160 = vld [vmem:[#allocation2 + $0x310] sm:$0xff]
    %v161 = vld [vmem:[#allocation2 + $0x318] sm:$0xff]
    %v162 = vld [vmem:[#allocation2 + $0x320] sm:$0xff]
    %v163 = vld [vmem:[#allocation2 + $0x328] sm:$0xff]
    %v164 = vld [vmem:[#allocation2 + $0x330] sm:$0xff]
    %v165 = vld [vmem:[#allocation2 + $0x338] sm:$0xff]
    %v166 = vld [vmem:[#allocation2 + $0x340] sm:$0xff]
    %v167 = vld [vmem:[#allocation2 + $0x348] sm:$0xff]
    %v168 = vld [vmem:[#allocation2 + $0x350] sm:$0xff]
    %v169 = vld [vmem:[#allocation2 + $0x358] sm:$0xff]
    %v170 = vld [vmem:[#allocation2 + $0x360] sm:$0xff]
    %v171 = vld [vmem:[#allocation2 + $0x368] sm:$0xff]
    %v172 = vld [vmem:[#allocation2 + $0x370] sm:$0xff]
    %v173 = vld [vmem:[#allocation2 + $0x378] sm:$0xff]
    %v174 = vld [vmem:[#allocation2 + $0x380] sm:$0xff]
    %v175 = vld [vmem:[#allocation2 + $0x388] sm:$0xff]
    %v176 = vld [vmem:[#allocation2 + $0x390] sm:$0xff]
    %v177 = vld [vmem:[#allocation2 + $0x398] sm:$0xff]
    %v178 = vld [vmem:[#allocation2 + $0x3a0] sm:$0xff]
    %v179 = vld [vmem:[#allocation2 + $0x3a8] sm:$0xff]
    %v180 = vld [vmem:[#allocation2 + $0x3b0] sm:$0xff]
    %v181 = vld [vmem:[#allocation2 + $0x3b8] sm:$0xff]
    %v182 = vld [vmem:[#allocation2 + $0x3c0] sm:$0xff]
    %v183 = vld [vmem:[#allocation2 + $0x3c8] sm:$0xff]
    %v184 = vld [vmem:[#allocation2 + $0x3d0] sm:$0xff]
    %v185 = vld [vmem:[#allocation2 + $0x3d8] sm:$0xff]
    %v186 = vld [vmem:[#allocation2 + $0x3e0] sm:$0xff]
    %v187 = vld [vmem:[#allocation2 + $0x3e8] sm:$0xff]
    %v188 = vld [vmem:[#allocation2 + $0x3f0] sm:$0xff]
    %v189 = vld [vmem:[#allocation2 + $0x3f8] sm:$0xff]
    %v190 = vld [vmem:[#allocation2 + $0x400] sm:$0xff]
    %v191 = vld [vmem:[#allocation2 + $0x408] sm:$0xff]
    %v192 = vld [vmem:[#allocation2 + $0x410] sm:$0xff]
    %v193 = vld [vmem:[#allocation2 + $0x418] sm:$0xff]
    %v194 = vld [vmem:[#allocation2 + $0x420] sm:$0xff]
    %v195 = vld [vmem:[#allocation2 + $0x428] sm:$0xff]
    %v196 = vld [vmem:[#allocation2 + $0x430] sm:$0xff]
    %v197 = vld [vmem:[#allocation2 + $0x438] sm:$0xff]
    %v198 = vld [vmem:[#allocation2 + $0x440] sm:$0xff]
    %v199 = vld [vmem:[#allocation2 + $0x448] sm:$0xff]
    %v200 = vld [vmem:[#allocation2 + $0x450] sm:$0xff]
    %v201 = vld [vmem:[#allocation2 + $0x458] sm:$0xff]
    %v202 = vld [vmem:[#allocation2 + $0x460] sm:$0xff]
    %v203 = vld [vmem:[#allocation2 + $0x468] sm:$0xff]
    %v204 = vld [vmem:[#allocation2 + $0x470] sm:$0xff]
    %v205 = vld [vmem:[#allocation2 + $0x478] sm:$0xff]
    %v206 = vld [vmem:[#allocation2 + $0x480] sm:$0xff]
    %v207 = vld [vmem:[#allocation2 + $0x488] sm:$0xff]
    %v208 = vld [vmem:[#allocation2 + $0x490] sm:$0xff]
    %v209 = vld [vmem:[#allocation2 + $0x498] sm:$0xff]
    %v210 = vld [vmem:[#allocation2 + $0x4a0] sm:$0xff]
    %v211 = vld [vmem:[#allocation2 + $0x4a8] sm:$0xff]
    %v212 = vld [vmem:[#allocation2 + $0x4b0] sm:$0xff]
    %v213 = vld [vmem:[#allocation2 + $0x4b8] sm:$0xff]
    %v214 = vld [vmem:[#allocation2 + $0x4c0] sm:$0xff]
    %v215 = vld [vmem:[#allocation2 + $0x4c8] sm:$0xff]
    %v216 = vld [vmem:[#allocation2 + $0x4d0] sm:$0xff]
    %v217 = vld [vmem:[#allocation2 + $0x4d8] sm:$0xff]
    %v218 = vld [vmem:[#allocation2 + $0x4e0] sm:$0xff]
    %v219 = vld [vmem:[#allocation2 + $0x4e8] sm:$0xff]
    %v220 = vld [vmem:[#allocation2 + $0x4f0] sm:$0xff]
    %v221 = vld [vmem:[#allocation2 + $0x4f8] sm:$0xff]
    %v222 = vld [vmem:[#allocation2 + $0x500] sm:$0xff]
    %v223 = vld [vmem:[#allocation2 + $0x508] sm:$0xff]
    %v224 = vld [vmem:[#allocation2 + $0x510] sm:$0xff]
    %v225 = vld [vmem:[#allocation2 + $0x518] sm:$0xff]
    %v226 = vld [vmem:[#allocation2 + $0x520] sm:$0xff]
    %v227 = vld [vmem:[#allocation2 + $0x528] sm:$0xff]
    %v228 = vld [vmem:[#allocation2 + $0x530] sm:$0xff]
    %v229 = vld [vmem:[#allocation2 + $0x538] sm:$0xff]
    %v230 = vld [vmem:[#allocation2 + $0x540] sm:$0xff]
    %v231 = vld [vmem:[#allocation2 + $0x548] sm:$0xff]
    %v232 = vld [vmem:[#allocation2 + $0x550] sm:$0xff]
    %v233 = vld [vmem:[#allocation2 + $0x558] sm:$0xff]
    %v234 = vld [vmem:[#allocation2 + $0x560] sm:$0xff]
    %v235 = vld [vmem:[#allocation2 + $0x568] sm:$0xff]
    %v236 = vld [vmem:[#allocation2 + $0x570] sm:$0xff]
    %v237 = vld [vmem:[#allocation2 + $0x578] sm:$0xff]
    %v238 = vld [vmem:[#allocation2 + $0x580] sm:$0xff]
    %v239 = vld [vmem:[#allocation2 + $0x588] sm:$0xff]
    %v240 = vld [vmem:[#allocation2 + $0x590] sm:$0xff]
    %v241 = vld [vmem:[#allocation2 + $0x598] sm:$0xff]
    %v242 = vld [vmem:[#allocation2 + $0x5a0] sm:$0xff]
    %v243 = vld [vmem:[#allocation2 + $0x5a8] sm:$0xff]
    %v244 = vld [vmem:[#allocation2 + $0x5b0] sm:$0xff]
    %v245 = vld [vmem:[#allocation2 + $0x5b8] sm:$0xff]
    %v246 = vld [vmem:[#allocation2 + $0x5c0] sm:$0xff]
    %v247 = vld [vmem:[#allocation2 + $0x5c8] sm:$0xff]
    %v248 = vld [vmem:[#allocation2 + $0x5d0] sm:$0xff]
    %v249 = vld [vmem:[#allocation2 + $0x5d8] sm:$0xff]
    %v250 = vld [vmem:[#allocation2 + $0x5e0] sm:$0xff]
    %v251 = vld [vmem:[#allocation2 + $0x5e8] sm:$0xff]
    %v252 = vld [vmem:[#allocation2 + $0x5f0] sm:$0xff]
    %v253 = vld [vmem:[#allocation2 + $0x5f8] sm:$0xff]
    %v254 = vld [vmem:[#allocation2 + $0x600] sm:$0xff]
    %v255 = vld [vmem:[#allocation2 + $0x608] sm:$0xff]
    %v256 = vld [vmem:[#allocation2 + $0x610] sm:$0xff]
    %v257 = vld [vmem:[#allocation2 + $0x618] sm:$0xff]
    %v258 = vld [vmem:[#allocation2 + $0x620] sm:$0xff]
    %v259 = vld [vmem:[#allocation2 + $0x628] sm:$0xff]
    %v260 = vld [vmem:[#allocation2 + $0x630] sm:$0xff]
    %v261 = vld [vmem:[#allocation2 + $0x638] sm:$0xff]
    %v262 = vld [vmem:[#allocation2 + $0x640] sm:$0xff]
    %v263 = vld [vmem:[#allocation2 + $0x648] sm:$0xff]
    %v264 = vld [vmem:[#allocation2 + $0x650] sm:$0xff]
    %v265 = vld [vmem:[#allocation2 + $0x658] sm:$0xff]
    %v266 = vld [vmem:[#allocation2 + $0x660] sm:$0xff]
    %v267 = vld [vmem:[#allocation2 + $0x668] sm:$0xff]
    %v268 = vld [vmem:[#allocation2 + $0x670] sm:$0xff]
    %v269 = vld [vmem:[#allocation2 + $0x678] sm:$0xff]
    %v270 = vld [vmem:[#allocation2 + $0x680] sm:$0xff]
    %v271 = vld [vmem:[#allocation2 + $0x688] sm:$0xff]
    %v272 = vld [vmem:[#allocation2 + $0x690] sm:$0xff]
    %v273 = vld [vmem:[#allocation2 + $0x698] sm:$0xff]
    %v274 = vld [vmem:[#allocation2 + $0x6a0] sm:$0xff]
    %v275 = vld [vmem:[#allocation2 + $0x6a8] sm:$0xff]
    %v276 = vld [vmem:[#allocation2 + $0x6b0] sm:$0xff]
    %v277 = vld [vmem:[#allocation2 + $0x6b8] sm:$0xff]
    %v278 = vld [vmem:[#allocation2 + $0x6c0] sm:$0xff]
    %v279 = vld [vmem:[#allocation2 + $0x6c8] sm:$0xff]
    %v280 = vld [vmem:[#allocation2 + $0x6d0] sm:$0xff]
    %v281 = vld [vmem:[#allocation2 + $0x6d8] sm:$0xff]
    %v282 = vld [vmem:[#allocation2 + $0x6e0] sm:$0xff]
    %v283 = vld [vmem:[#allocation2 + $0x6e8] sm:$0xff]
    %v284 = vld [vmem:[#allocation2 + $0x6f0] sm:$0xff]
    %v285 = vld [vmem:[#allocation2 + $0x6f8] sm:$0xff]
    %v286 = vld [vmem:[#allocation2 + $0x700] sm:$0xff]
    %v287 = vld [vmem:[#allocation2 + $0x708] sm:$0xff]
    %v288 = vld [vmem:[#allocation2 + $0x710] sm:$0xff]
    %v289 = vld [vmem:[#allocation2 + $0x718] sm:$0xff]
    %v290 = vld [vmem:[#allocation2 + $0x720] sm:$0xff]
    %v291 = vld [vmem:[#allocation2 + $0x728] sm:$0xff]
    %v292 = vld [vmem:[#allocation2 + $0x730] sm:$0xff]
    %v293 = vld [vmem:[#allocation2 + $0x738] sm:$0xff]
    %v294 = vld [vmem:[#allocation2 + $0x740] sm:$0xff]
    %v295 = vld [vmem:[#allocation2 + $0x748] sm:$0xff]
    %v296 = vld [vmem:[#allocation2 + $0x750] sm:$0xff]
    %v297 = vld [vmem:[#allocation2 + $0x758] sm:$0xff]
    %v298 = vld [vmem:[#allocation2 + $0x760] sm:$0xff]
    %v299 = vld [vmem:[#allocation2 + $0x768] sm:$0xff]
    %v300 = vld [vmem:[#allocation2 + $0x770] sm:$0xff]
    %v301 = vld [vmem:[#allocation2 + $0x778] sm:$0xff]
    %v302 = vld [vmem:[#allocation2 + $0x780] sm:$0xff]
    %v303 = vld [vmem:[#allocation2 + $0x788] sm:$0xff]
    %v304 = vld [vmem:[#allocation2 + $0x790] sm:$0xff]
    %v305 = vld [vmem:[#allocation2 + $0x798] sm:$0xff]
    %v306 = vld [vmem:[#allocation2 + $0x7a0] sm:$0xff]
    %v307 = vld [vmem:[#allocation2 + $0x7a8] sm:$0xff]
    %v308 = vld [vmem:[#allocation2 + $0x7b0] sm:$0xff]
    %v309 = vld [vmem:[#allocation2 + $0x7b8] sm:$0xff]
    %v310 = vld [vmem:[#allocation2 + $0x7c0] sm:$0xff]
    %v311 = vld [vmem:[#allocation2 + $0x7c8] sm:$0xff]
    %v312 = vld [vmem:[#allocation2 + $0x7d0] sm:$0xff]
    %v313 = vld [vmem:[#allocation2 + $0x7d8] sm:$0xff]
    %v314 = vld [vmem:[#allocation2 + $0x7e0] sm:$0xff]
    %v315 = vld [vmem:[#allocation2 + $0x7e8] sm:$0xff]
    %v316 = vld [vmem:[#allocation2 + $0x7f0] sm:$0xff]
    %v317 = vld [vmem:[#allocation2 + $0x7f8] sm:$0xff]
    %v326 = vunpack.c.l.b16 %v54
    %v327 = vunpack.c.h.b16 %v54
    %v328 = vunpack.c.l.b16 %v55
    %v329 = vunpack.c.h.b16 %v55
    %v330 = vunpack.c.l.b16 %v56
    %v331 = vunpack.c.h.b16 %v56
    %v332 = vunpack.c.l.b16 %v57
    %v333 = vunpack.c.h.b16 %v57
    %v334 = vunpack.c.l.b16 %v58
    %v335 = vunpack.c.h.b16 %v58
    %v336 = vunpack.c.l.b16 %v59
    %v337 = vunpack.c.h.b16 %v59
    %v338 = vunpack.c.l.b16 %v60
    %v339 = vunpack.c.h.b16 %v60
    %v340 = vunpack.c.l.b16 %v61
    %v341 = vunpack.c.h.b16 %v61
    %v342 = vpack.c.b16 %v326, %v326
    %v343 = vpack.c.b16 %v327, %v327
    %v344 = vpack.c.b16 %v328, %v328
    %v345 = vpack.c.b16 %v329, %v329
    %v346 = vpack.c.b16 %v330, %v330
    %v347 = vpack.c.b16 %v331, %v331
    %v348 = vpack.c.b16 %v332, %v332
    %v349 = vpack.c.b16 %v333, %v333
    %v350 = vpack.c.b16 %v334, %v334
    %v351 = vpack.c.b16 %v335, %v335
    %v352 = vpack.c.b16 %v336, %v336
    %v353 = vpack.c.b16 %v337, %v337
    %v354 = vpack.c.b16 %v338, %v338
    %v355 = vpack.c.b16 %v339, %v339
    %v356 = vpack.c.b16 %v340, %v340
    %v357 = vpack.c.b16 %v341, %v341
    %v630 = vunpack.c.l.b16 %v62
    %v631 = vunpack.c.h.b16 %v62
    %v632 = vunpack.c.l.b16 %v63
    %v633 = vunpack.c.h.b16 %v63
    %v634 = vunpack.c.l.b16 %v64
    %v635 = vunpack.c.h.b16 %v64
    %v636 = vunpack.c.l.b16 %v65
    %v637 = vunpack.c.h.b16 %v65
    %v638 = vunpack.c.l.b16 %v66
    %v639 = vunpack.c.h.b16 %v66
    %v640 = vunpack.c.l.b16 %v67
    %v641 = vunpack.c.h.b16 %v67
    %v642 = vunpack.c.l.b16 %v68
    %v643 = vunpack.c.h.b16 %v68
    %v644 = vunpack.c.l.b16 %v69
    %v645 = vunpack.c.h.b16 %v69
    %v646 = vunpack.c.l.b16 %v70
    %v647 = vunpack.c.h.b16 %v70
    %v648 = vunpack.c.l.b16 %v71
    %v649 = vunpack.c.h.b16 %v71
    %v650 = vunpack.c.l.b16 %v72
    %v651 = vunpack.c.h.b16 %v72
    %v652 = vunpack.c.l.b16 %v73
    %v653 = vunpack.c.h.b16 %v73
    %v654 = vunpack.c.l.b16 %v74
    %v655 = vunpack.c.h.b16 %v74
    %v656 = vunpack.c.l.b16 %v75
    %v657 = vunpack.c.h.b16 %v75
    %v658 = vunpack.c.l.b16 %v76
    %v659 = vunpack.c.h.b16 %v76
    %v660 = vunpack.c.l.b16 %v77
    %v661 = vunpack.c.h.b16 %v77
    %v662 = vunpack.c.l.b16 %v78
    %v663 = vunpack.c.h.b16 %v78
    %v664 = vunpack.c.l.b16 %v79
    %v665 = vunpack.c.h.b16 %v79
    %v666 = vunpack.c.l.b16 %v80
    %v667 = vunpack.c.h.b16 %v80
    %v668 = vunpack.c.l.b16 %v81
    %v669 = vunpack.c.h.b16 %v81
    %v670 = vunpack.c.l.b16 %v82
    %v671 = vunpack.c.h.b16 %v82
    %v672 = vunpack.c.l.b16 %v83
    %v673 = vunpack.c.h.b16 %v83
    %v674 = vunpack.c.l.b16 %v84
    %v675 = vunpack.c.h.b16 %v84
    %v676 = vunpack.c.l.b16 %v85
    %v677 = vunpack.c.h.b16 %v85
    %v678 = vunpack.c.l.b16 %v86
    %v679 = vunpack.c.h.b16 %v86
    %v680 = vunpack.c.l.b16 %v87
    %v681 = vunpack.c.h.b16 %v87
    %v682 = vunpack.c.l.b16 %v88
    %v683 = vunpack.c.h.b16 %v88
    %v684 = vunpack.c.l.b16 %v89
    %v685 = vunpack.c.h.b16 %v89
    %v686 = vunpack.c.l.b16 %v90
    %v687 = vunpack.c.h.b16 %v90
    %v688 = vunpack.c.l.b16 %v91
    %v689 = vunpack.c.h.b16 %v91
    %v690 = vunpack.c.l.b16 %v92
    %v691 = vunpack.c.h.b16 %v92
    %v692 = vunpack.c.l.b16 %v93
    %v693 = vunpack.c.h.b16 %v93
    %v694 = vunpack.c.l.b16 %v94
    %v695 = vunpack.c.h.b16 %v94
    %v696 = vunpack.c.l.b16 %v95
    %v697 = vunpack.c.h.b16 %v95
    %v698 = vunpack.c.l.b16 %v96
    %v699 = vunpack.c.h.b16 %v96
    %v700 = vunpack.c.l.b16 %v97
    %v701 = vunpack.c.h.b16 %v97
    %v702 = vunpack.c.l.b16 %v98
    %v703 = vunpack.c.h.b16 %v98
    %v704 = vunpack.c.l.b16 %v99
    %v705 = vunpack.c.h.b16 %v99
    %v706 = vunpack.c.l.b16 %v100
    %v707 = vunpack.c.h.b16 %v100
    %v708 = vunpack.c.l.b16 %v101
    %v709 = vunpack.c.h.b16 %v101
    %v710 = vunpack.c.l.b16 %v102
    %v711 = vunpack.c.h.b16 %v102
    %v712 = vunpack.c.l.b16 %v103
    %v713 = vunpack.c.h.b16 %v103
    %v714 = vunpack.c.l.b16 %v104
    %v715 = vunpack.c.h.b16 %v104
    %v716 = vunpack.c.l.b16 %v105
    %v717 = vunpack.c.h.b16 %v105
    %v718 = vunpack.c.l.b16 %v106
    %v719 = vunpack.c.h.b16 %v106
    %v720 = vunpack.c.l.b16 %v107
    %v721 = vunpack.c.h.b16 %v107
    %v722 = vunpack.c.l.b16 %v108
    %v723 = vunpack.c.h.b16 %v108
    %v724 = vunpack.c.l.b16 %v109
    %v725 = vunpack.c.h.b16 %v109
    %v726 = vunpack.c.l.b16 %v110
    %v727 = vunpack.c.h.b16 %v110
    %v728 = vunpack.c.l.b16 %v111
    %v729 = vunpack.c.h.b16 %v111
    %v730 = vunpack.c.l.b16 %v112
    %v731 = vunpack.c.h.b16 %v112
    %v732 = vunpack.c.l.b16 %v113
    %v733 = vunpack.c.h.b16 %v113
    %v734 = vunpack.c.l.b16 %v114
    %v735 = vunpack.c.h.b16 %v114
    %v736 = vunpack.c.l.b16 %v115
    %v737 = vunpack.c.h.b16 %v115
    %v738 = vunpack.c.l.b16 %v116
    %v739 = vunpack.c.h.b16 %v116
    %v740 = vunpack.c.l.b16 %v117
    %v741 = vunpack.c.h.b16 %v117
    %v742 = vunpack.c.l.b16 %v118
    %v743 = vunpack.c.h.b16 %v118
    %v744 = vunpack.c.l.b16 %v119
    %v745 = vunpack.c.h.b16 %v119
    %v746 = vunpack.c.l.b16 %v120
    %v747 = vunpack.c.h.b16 %v120
    %v748 = vunpack.c.l.b16 %v121
    %v749 = vunpack.c.h.b16 %v121
    %v750 = vunpack.c.l.b16 %v122
    %v751 = vunpack.c.h.b16 %v122
    %v752 = vunpack.c.l.b16 %v123
    %v753 = vunpack.c.h.b16 %v123
    %v754 = vunpack.c.l.b16 %v124
    %v755 = vunpack.c.h.b16 %v124
    %v756 = vunpack.c.l.b16 %v125
    %v757 = vunpack.c.h.b16 %v125
    %v758 = vunpack.c.l.b16 %v126
    %v759 = vunpack.c.h.b16 %v126
    %v760 = vunpack.c.l.b16 %v127
    %v761 = vunpack.c.h.b16 %v127
    %v762 = vunpack.c.l.b16 %v128
    %v763 = vunpack.c.h.b16 %v128
    %v764 = vunpack.c.l.b16 %v129
    %v765 = vunpack.c.h.b16 %v129
    %v766 = vunpack.c.l.b16 %v130
    %v767 = vunpack.c.h.b16 %v130
    %v768 = vunpack.c.l.b16 %v131
    %v769 = vunpack.c.h.b16 %v131
    %v770 = vunpack.c.l.b16 %v132
    %v771 = vunpack.c.h.b16 %v132
    %v772 = vunpack.c.l.b16 %v133
    %v773 = vunpack.c.h.b16 %v133
    %v774 = vunpack.c.l.b16 %v134
    %v775 = vunpack.c.h.b16 %v134
    %v776 = vunpack.c.l.b16 %v135
    %v777 = vunpack.c.h.b16 %v135
    %v778 = vunpack.c.l.b16 %v136
    %v779 = vunpack.c.h.b16 %v136
    %v780 = vunpack.c.l.b16 %v137
    %v781 = vunpack.c.h.b16 %v137
    %v782 = vunpack.c.l.b16 %v138
    %v783 = vunpack.c.h.b16 %v138
    %v784 = vunpack.c.l.b16 %v139
    %v785 = vunpack.c.h.b16 %v139
    %v786 = vunpack.c.l.b16 %v140
    %v787 = vunpack.c.h.b16 %v140
    %v788 = vunpack.c.l.b16 %v141
    %v789 = vunpack.c.h.b16 %v141
    %v790 = vunpack.c.l.b16 %v142
    %v791 = vunpack.c.h.b16 %v142
    %v792 = vunpack.c.l.b16 %v143
    %v793 = vunpack.c.h.b16 %v143
    %v794 = vunpack.c.l.b16 %v144
    %v795 = vunpack.c.h.b16 %v144
    %v796 = vunpack.c.l.b16 %v145
    %v797 = vunpack.c.h.b16 %v145
    %v798 = vunpack.c.l.b16 %v146
    %v799 = vunpack.c.h.b16 %v146
    %v800 = vunpack.c.l.b16 %v147
    %v801 = vunpack.c.h.b16 %v147
    %v802 = vunpack.c.l.b16 %v148
    %v803 = vunpack.c.h.b16 %v148
    %v804 = vunpack.c.l.b16 %v149
    %v805 = vunpack.c.h.b16 %v149
    %v806 = vunpack.c.l.b16 %v150
    %v807 = vunpack.c.h.b16 %v150
    %v808 = vunpack.c.l.b16 %v151
    %v809 = vunpack.c.h.b16 %v151
    %v810 = vunpack.c.l.b16 %v152
    %v811 = vunpack.c.h.b16 %v152
    %v812 = vunpack.c.l.b16 %v153
    %v813 = vunpack.c.h.b16 %v153
    %v814 = vunpack.c.l.b16 %v154
    %v815 = vunpack.c.h.b16 %v154
    %v816 = vunpack.c.l.b16 %v155
    %v817 = vunpack.c.h.b16 %v155
    %v818 = vunpack.c.l.b16 %v156
    %v819 = vunpack.c.h.b16 %v156
    %v820 = vunpack.c.l.b16 %v157
    %v821 = vunpack.c.h.b16 %v157
    %v822 = vunpack.c.l.b16 %v158
    %v823 = vunpack.c.h.b16 %v158
    %v824 = vunpack.c.l.b16 %v159
    %v825 = vunpack.c.h.b16 %v159
    %v826 = vunpack.c.l.b16 %v160
    %v827 = vunpack.c.h.b16 %v160
    %v828 = vunpack.c.l.b16 %v161
    %v829 = vunpack.c.h.b16 %v161
    %v830 = vunpack.c.l.b16 %v162
    %v831 = vunpack.c.h.b16 %v162
    %v832 = vunpack.c.l.b16 %v163
    %v833 = vunpack.c.h.b16 %v163
    %v834 = vunpack.c.l.b16 %v164
    %v835 = vunpack.c.h.b16 %v164
    %v836 = vunpack.c.l.b16 %v165
    %v837 = vunpack.c.h.b16 %v165
    %v838 = vunpack.c.l.b16 %v166
    %v839 = vunpack.c.h.b16 %v166
    %v840 = vunpack.c.l.b16 %v167
    %v841 = vunpack.c.h.b16 %v167
    %v842 = vunpack.c.l.b16 %v168
    %v843 = vunpack.c.h.b16 %v168
    %v844 = vunpack.c.l.b16 %v169
    %v845 = vunpack.c.h.b16 %v169
    %v846 = vunpack.c.l.b16 %v170
    %v847 = vunpack.c.h.b16 %v170
    %v848 = vunpack.c.l.b16 %v171
    %v849 = vunpack.c.h.b16 %v171
    %v850 = vunpack.c.l.b16 %v172
    %v851 = vunpack.c.h.b16 %v172
    %v852 = vunpack.c.l.b16 %v173
    %v853 = vunpack.c.h.b16 %v173
    %v854 = vunpack.c.l.b16 %v174
    %v855 = vunpack.c.h.b16 %v174
    %v856 = vunpack.c.l.b16 %v175
    %v857 = vunpack.c.h.b16 %v175
    %v858 = vunpack.c.l.b16 %v176
    %v859 = vunpack.c.h.b16 %v176
    %v860 = vunpack.c.l.b16 %v177
    %v861 = vunpack.c.h.b16 %v177
    %v862 = vunpack.c.l.b16 %v178
    %v863 = vunpack.c.h.b16 %v178
    %v864 = vunpack.c.l.b16 %v179
    %v865 = vunpack.c.h.b16 %v179
    %v866 = vunpack.c.l.b16 %v180
    %v867 = vunpack.c.h.b16 %v180
    %v868 = vunpack.c.l.b16 %v181
    %v869 = vunpack.c.h.b16 %v181
    %v870 = vunpack.c.l.b16 %v182
    %v871 = vunpack.c.h.b16 %v182
    %v872 = vunpack.c.l.b16 %v183
    %v873 = vunpack.c.h.b16 %v183
    %v874 = vunpack.c.l.b16 %v184
    %v875 = vunpack.c.h.b16 %v184
    %v876 = vunpack.c.l.b16 %v185
    %v877 = vunpack.c.h.b16 %v185
    %v878 = vunpack.c.l.b16 %v186
    %v879 = vunpack.c.h.b16 %v186
    %v880 = vunpack.c.l.b16 %v187
    %v881 = vunpack.c.h.b16 %v187
    %v882 = vunpack.c.l.b16 %v188
    %v883 = vunpack.c.h.b16 %v188
    %v884 = vunpack.c.l.b16 %v189
    %v885 = vunpack.c.h.b16 %v189
    %v886 = vunpack.c.l.b16 %v190
    %v887 = vunpack.c.h.b16 %v190
    %v888 = vunpack.c.l.b16 %v191
    %v889 = vunpack.c.h.b16 %v191
    %v890 = vunpack.c.l.b16 %v192
    %v891 = vunpack.c.h.b16 %v192
    %v892 = vunpack.c.l.b16 %v193
    %v893 = vunpack.c.h.b16 %v193
    %v894 = vunpack.c.l.b16 %v194
    %v895 = vunpack.c.h.b16 %v194
    %v896 = vunpack.c.l.b16 %v195
    %v897 = vunpack.c.h.b16 %v195
    %v898 = vunpack.c.l.b16 %v196
    %v899 = vunpack.c.h.b16 %v196
    %v900 = vunpack.c.l.b16 %v197
    %v901 = vunpack.c.h.b16 %v197
    %v902 = vunpack.c.l.b16 %v198
    %v903 = vunpack.c.h.b16 %v198
    %v904 = vunpack.c.l.b16 %v199
    %v905 = vunpack.c.h.b16 %v199
    %v906 = vunpack.c.l.b16 %v200
    %v907 = vunpack.c.h.b16 %v200
    %v908 = vunpack.c.l.b16 %v201
    %v909 = vunpack.c.h.b16 %v201
    %v910 = vunpack.c.l.b16 %v202
    %v911 = vunpack.c.h.b16 %v202
    %v912 = vunpack.c.l.b16 %v203
    %v913 = vunpack.c.h.b16 %v203
    %v914 = vunpack.c.l.b16 %v204
    %v915 = vunpack.c.h.b16 %v204
    %v916 = vunpack.c.l.b16 %v205
    %v917 = vunpack.c.h.b16 %v205
    %v918 = vunpack.c.l.b16 %v206
    %v919 = vunpack.c.h.b16 %v206
    %v920 = vunpack.c.l.b16 %v207
    %v921 = vunpack.c.h.b16 %v207
    %v922 = vunpack.c.l.b16 %v208
    %v923 = vunpack.c.h.b16 %v208
    %v924 = vunpack.c.l.b16 %v209
    %v925 = vunpack.c.h.b16 %v209
    %v926 = vunpack.c.l.b16 %v210
    %v927 = vunpack.c.h.b16 %v210
    %v928 = vunpack.c.l.b16 %v211
    %v929 = vunpack.c.h.b16 %v211
    %v930 = vunpack.c.l.b16 %v212
    %v931 = vunpack.c.h.b16 %v212
    %v932 = vunpack.c.l.b16 %v213
    %v933 = vunpack.c.h.b16 %v213
    %v934 = vunpack.c.l.b16 %v214
    %v935 = vunpack.c.h.b16 %v214
    %v936 = vunpack.c.l.b16 %v215
    %v937 = vunpack.c.h.b16 %v215
    %v938 = vunpack.c.l.b16 %v216
    %v939 = vunpack.c.h.b16 %v216
    %v940 = vunpack.c.l.b16 %v217
    %v941 = vunpack.c.h.b16 %v217
    %v942 = vunpack.c.l.b16 %v218
    %v943 = vunpack.c.h.b16 %v218
    %v944 = vunpack.c.l.b16 %v219
    %v945 = vunpack.c.h.b16 %v219
    %v946 = vunpack.c.l.b16 %v220
    %v947 = vunpack.c.h.b16 %v220
    %v948 = vunpack.c.l.b16 %v221
    %v949 = vunpack.c.h.b16 %v221
    %v950 = vunpack.c.l.b16 %v222
    %v951 = vunpack.c.h.b16 %v222
    %v952 = vunpack.c.l.b16 %v223
    %v953 = vunpack.c.h.b16 %v223
    %v954 = vunpack.c.l.b16 %v224
    %v955 = vunpack.c.h.b16 %v224
    %v956 = vunpack.c.l.b16 %v225
    %v957 = vunpack.c.h.b16 %v225
    %v958 = vunpack.c.l.b16 %v226
    %v959 = vunpack.c.h.b16 %v226
    %v960 = vunpack.c.l.b16 %v227
    %v961 = vunpack.c.h.b16 %v227
    %v962 = vunpack.c.l.b16 %v228
    %v963 = vunpack.c.h.b16 %v228
    %v964 = vunpack.c.l.b16 %v229
    %v965 = vunpack.c.h.b16 %v229
    %v966 = vunpack.c.l.b16 %v230
    %v967 = vunpack.c.h.b16 %v230
    %v968 = vunpack.c.l.b16 %v231
    %v969 = vunpack.c.h.b16 %v231
    %v970 = vunpack.c.l.b16 %v232
    %v971 = vunpack.c.h.b16 %v232
    %v972 = vunpack.c.l.b16 %v233
    %v973 = vunpack.c.h.b16 %v233
    %v974 = vunpack.c.l.b16 %v234
    %v975 = vunpack.c.h.b16 %v234
    %v976 = vunpack.c.l.b16 %v235
    %v977 = vunpack.c.h.b16 %v235
    %v978 = vunpack.c.l.b16 %v236
    %v979 = vunpack.c.h.b16 %v236
    %v980 = vunpack.c.l.b16 %v237
    %v981 = vunpack.c.h.b16 %v237
    %v982 = vunpack.c.l.b16 %v238
    %v983 = vunpack.c.h.b16 %v238
    %v984 = vunpack.c.l.b16 %v239
    %v985 = vunpack.c.h.b16 %v239
    %v986 = vunpack.c.l.b16 %v240
    %v987 = vunpack.c.h.b16 %v240
    %v988 = vunpack.c.l.b16 %v241
    %v989 = vunpack.c.h.b16 %v241
    %v990 = vunpack.c.l.b16 %v242
    %v991 = vunpack.c.h.b16 %v242
    %v992 = vunpack.c.l.b16 %v243
    %v993 = vunpack.c.h.b16 %v243
    %v994 = vunpack.c.l.b16 %v244
    %v995 = vunpack.c.h.b16 %v244
    %v996 = vunpack.c.l.b16 %v245
    %v997 = vunpack.c.h.b16 %v245
    %v998 = vunpack.c.l.b16 %v246
    %v999 = vunpack.c.h.b16 %v246
    %v1000 = vunpack.c.l.b16 %v247
    %v1001 = vunpack.c.h.b16 %v247
    %v1002 = vunpack.c.l.b16 %v248
    %v1003 = vunpack.c.h.b16 %v248
    %v1004 = vunpack.c.l.b16 %v249
    %v1005 = vunpack.c.h.b16 %v249
    %v1006 = vunpack.c.l.b16 %v250
    %v1007 = vunpack.c.h.b16 %v250
    %v1008 = vunpack.c.l.b16 %v251
    %v1009 = vunpack.c.h.b16 %v251
    %v1010 = vunpack.c.l.b16 %v252
    %v1011 = vunpack.c.h.b16 %v252
    %v1012 = vunpack.c.l.b16 %v253
    %v1013 = vunpack.c.h.b16 %v253
    %v1014 = vunpack.c.l.b16 %v254
    %v1015 = vunpack.c.h.b16 %v254
    %v1016 = vunpack.c.l.b16 %v255
    %v1017 = vunpack.c.h.b16 %v255
    %v1018 = vunpack.c.l.b16 %v256
    %v1019 = vunpack.c.h.b16 %v256
    %v1020 = vunpack.c.l.b16 %v257
    %v1021 = vunpack.c.h.b16 %v257
    %v1022 = vunpack.c.l.b16 %v258
    %v1023 = vunpack.c.h.b16 %v258
    %v1024 = vunpack.c.l.b16 %v259
    %v1025 = vunpack.c.h.b16 %v259
    %v1026 = vunpack.c.l.b16 %v260
    %v1027 = vunpack.c.h.b16 %v260
    %v1028 = vunpack.c.l.b16 %v261
    %v1029 = vunpack.c.h.b16 %v261
    %v1030 = vunpack.c.l.b16 %v262
    %v1031 = vunpack.c.h.b16 %v262
    %v1032 = vunpack.c.l.b16 %v263
    %v1033 = vunpack.c.h.b16 %v263
    %v1034 = vunpack.c.l.b16 %v264
    %v1035 = vunpack.c.h.b16 %v264
    %v1036 = vunpack.c.l.b16 %v265
    %v1037 = vunpack.c.h.b16 %v265
    %v1038 = vunpack.c.l.b16 %v266
    %v1039 = vunpack.c.h.b16 %v266
    %v1040 = vunpack.c.l.b16 %v267
    %v1041 = vunpack.c.h.b16 %v267
    %v1042 = vunpack.c.l.b16 %v268
    %v1043 = vunpack.c.h.b16 %v268
    %v1044 = vunpack.c.l.b16 %v269
    %v1045 = vunpack.c.h.b16 %v269
    %v1046 = vunpack.c.l.b16 %v270
    %v1047 = vunpack.c.h.b16 %v270
    %v1048 = vunpack.c.l.b16 %v271
    %v1049 = vunpack.c.h.b16 %v271
    %v1050 = vunpack.c.l.b16 %v272
    %v1051 = vunpack.c.h.b16 %v272
    %v1052 = vunpack.c.l.b16 %v273
    %v1053 = vunpack.c.h.b16 %v273
    %v1054 = vunpack.c.l.b16 %v274
    %v1055 = vunpack.c.h.b16 %v274
    %v1056 = vunpack.c.l.b16 %v275
    %v1057 = vunpack.c.h.b16 %v275
    %v1058 = vunpack.c.l.b16 %v276
    %v1059 = vunpack.c.h.b16 %v276
    %v1060 = vunpack.c.l.b16 %v277
    %v1061 = vunpack.c.h.b16 %v277
    %v1062 = vunpack.c.l.b16 %v278
    %v1063 = vunpack.c.h.b16 %v278
    %v1064 = vunpack.c.l.b16 %v279
    %v1065 = vunpack.c.h.b16 %v279
    %v1066 = vunpack.c.l.b16 %v280
    %v1067 = vunpack.c.h.b16 %v280
    %v1068 = vunpack.c.l.b16 %v281
    %v1069 = vunpack.c.h.b16 %v281
    %v1070 = vunpack.c.l.b16 %v282
    %v1071 = vunpack.c.h.b16 %v282
    %v1072 = vunpack.c.l.b16 %v283
    %v1073 = vunpack.c.h.b16 %v283
    %v1074 = vunpack.c.l.b16 %v284
    %v1075 = vunpack.c.h.b16 %v284
    %v1076 = vunpack.c.l.b16 %v285
    %v1077 = vunpack.c.h.b16 %v285
    %v1078 = vunpack.c.l.b16 %v286
    %v1079 = vunpack.c.h.b16 %v286
    %v1080 = vunpack.c.l.b16 %v287
    %v1081 = vunpack.c.h.b16 %v287
    %v1082 = vunpack.c.l.b16 %v288
    %v1083 = vunpack.c.h.b16 %v288
    %v1084 = vunpack.c.l.b16 %v289
    %v1085 = vunpack.c.h.b16 %v289
    %v1086 = vunpack.c.l.b16 %v290
    %v1087 = vunpack.c.h.b16 %v290
    %v1088 = vunpack.c.l.b16 %v291
    %v1089 = vunpack.c.h.b16 %v291
    %v1090 = vunpack.c.l.b16 %v292
    %v1091 = vunpack.c.h.b16 %v292
    %v1092 = vunpack.c.l.b16 %v293
    %v1093 = vunpack.c.h.b16 %v293
    %v1094 = vunpack.c.l.b16 %v294
    %v1095 = vunpack.c.h.b16 %v294
    %v1096 = vunpack.c.l.b16 %v295
    %v1097 = vunpack.c.h.b16 %v295
    %v1098 = vunpack.c.l.b16 %v296
    %v1099 = vunpack.c.h.b16 %v296
    %v1100 = vunpack.c.l.b16 %v297
    %v1101 = vunpack.c.h.b16 %v297
    %v1102 = vunpack.c.l.b16 %v298
    %v1103 = vunpack.c.h.b16 %v298
    %v1104 = vunpack.c.l.b16 %v299
    %v1105 = vunpack.c.h.b16 %v299
    %v1106 = vunpack.c.l.b16 %v300
    %v1107 = vunpack.c.h.b16 %v300
    %v1108 = vunpack.c.l.b16 %v301
    %v1109 = vunpack.c.h.b16 %v301
    %v1110 = vunpack.c.l.b16 %v302
    %v1111 = vunpack.c.h.b16 %v302
    %v1112 = vunpack.c.l.b16 %v303
    %v1113 = vunpack.c.h.b16 %v303
    %v1114 = vunpack.c.l.b16 %v304
    %v1115 = vunpack.c.h.b16 %v304
    %v1116 = vunpack.c.l.b16 %v305
    %v1117 = vunpack.c.h.b16 %v305
    %v1118 = vunpack.c.l.b16 %v306
    %v1119 = vunpack.c.h.b16 %v306
    %v1120 = vunpack.c.l.b16 %v307
    %v1121 = vunpack.c.h.b16 %v307
    %v1122 = vunpack.c.l.b16 %v308
    %v1123 = vunpack.c.h.b16 %v308
    %v1124 = vunpack.c.l.b16 %v309
    %v1125 = vunpack.c.h.b16 %v309
    %v1126 = vunpack.c.l.b16 %v310
    %v1127 = vunpack.c.h.b16 %v310
    %v1128 = vunpack.c.l.b16 %v311
    %v1129 = vunpack.c.h.b16 %v311
    %v1130 = vunpack.c.l.b16 %v312
    %v1131 = vunpack.c.h.b16 %v312
    %v1132 = vunpack.c.l.b16 %v313
    %v1133 = vunpack.c.h.b16 %v313
    %v1134 = vunpack.c.l.b16 %v314
    %v1135 = vunpack.c.h.b16 %v314
    %v1136 = vunpack.c.l.b16 %v315
    %v1137 = vunpack.c.h.b16 %v315
    %v1138 = vunpack.c.l.b16 %v316
    %v1139 = vunpack.c.h.b16 %v316
    %v1140 = vunpack.c.l.b16 %v317
    %v1141 = vunpack.c.h.b16 %v317
    %v1142 = vpack.c.b16 %v632, %v630
    %v1143 = vpack.c.b16 %v633, %v631
    %v1144 = vpack.c.b16 %v636, %v634
    %v1145 = vpack.c.b16 %v637, %v635
    %v1146 = vpack.c.b16 %v640, %v638
    %v1147 = vpack.c.b16 %v641, %v639
    %v1148 = vpack.c.b16 %v644, %v642
    %v1149 = vpack.c.b16 %v645, %v643
    %v1150 = vpack.c.b16 %v648, %v646
    %v1151 = vpack.c.b16 %v649, %v647
    %v1152 = vpack.c.b16 %v652, %v650
    %v1153 = vpack.c.b16 %v653, %v651
    %v1154 = vpack.c.b16 %v656, %v654
    %v1155 = vpack.c.b16 %v657, %v655
    %v1156 = vpack.c.b16 %v660, %v658
    %v1157 = vpack.c.b16 %v661, %v659
    %v1158 = vpack.c.b16 %v664, %v662
    %v1159 = vpack.c.b16 %v665, %v663
    %v1160 = vpack.c.b16 %v668, %v666
    %v1161 = vpack.c.b16 %v669, %v667
    %v1162 = vpack.c.b16 %v672, %v670
    %v1163 = vpack.c.b16 %v673, %v671
    %v1164 = vpack.c.b16 %v676, %v674
    %v1165 = vpack.c.b16 %v677, %v675
    %v1166 = vpack.c.b16 %v680, %v678
    %v1167 = vpack.c.b16 %v681, %v679
    %v1168 = vpack.c.b16 %v684, %v682
    %v1169 = vpack.c.b16 %v685, %v683
    %v1170 = vpack.c.b16 %v688, %v686
    %v1171 = vpack.c.b16 %v689, %v687
    %v1172 = vpack.c.b16 %v692, %v690
    %v1173 = vpack.c.b16 %v693, %v691
    %v1174 = vpack.c.b16 %v696, %v694
    %v1175 = vpack.c.b16 %v697, %v695
    %v1176 = vpack.c.b16 %v700, %v698
    %v1177 = vpack.c.b16 %v701, %v699
    %v1178 = vpack.c.b16 %v704, %v702
    %v1179 = vpack.c.b16 %v705, %v703
    %v1180 = vpack.c.b16 %v708, %v706
    %v1181 = vpack.c.b16 %v709, %v707
    %v1182 = vpack.c.b16 %v712, %v710
    %v1183 = vpack.c.b16 %v713, %v711
    %v1184 = vpack.c.b16 %v716, %v714
    %v1185 = vpack.c.b16 %v717, %v715
    %v1186 = vpack.c.b16 %v720, %v718
    %v1187 = vpack.c.b16 %v721, %v719
    %v1188 = vpack.c.b16 %v724, %v722
    %v1189 = vpack.c.b16 %v725, %v723
    %v1190 = vpack.c.b16 %v728, %v726
    %v1191 = vpack.c.b16 %v729, %v727
    %v1192 = vpack.c.b16 %v732, %v730
    %v1193 = vpack.c.b16 %v733, %v731
    %v1194 = vpack.c.b16 %v736, %v734
    %v1195 = vpack.c.b16 %v737, %v735
    %v1196 = vpack.c.b16 %v740, %v738
    %v1197 = vpack.c.b16 %v741, %v739
    %v1198 = vpack.c.b16 %v744, %v742
    %v1199 = vpack.c.b16 %v745, %v743
    %v1200 = vpack.c.b16 %v748, %v746
    %v1201 = vpack.c.b16 %v749, %v747
    %v1202 = vpack.c.b16 %v752, %v750
    %v1203 = vpack.c.b16 %v753, %v751
    %v1204 = vpack.c.b16 %v756, %v754
    %v1205 = vpack.c.b16 %v757, %v755
    %v1206 = vpack.c.b16 %v760, %v758
    %v1207 = vpack.c.b16 %v761, %v759
    %v1208 = vpack.c.b16 %v764, %v762
    %v1209 = vpack.c.b16 %v765, %v763
    %v1210 = vpack.c.b16 %v768, %v766
    %v1211 = vpack.c.b16 %v769, %v767
    %v1212 = vpack.c.b16 %v772, %v770
    %v1213 = vpack.c.b16 %v773, %v771
    %v1214 = vpack.c.b16 %v776, %v774
    %v1215 = vpack.c.b16 %v777, %v775
    %v1216 = vpack.c.b16 %v780, %v778
    %v1217 = vpack.c.b16 %v781, %v779
    %v1218 = vpack.c.b16 %v784, %v782
    %v1219 = vpack.c.b16 %v785, %v783
    %v1220 = vpack.c.b16 %v788, %v786
    %v1221 = vpack.c.b16 %v789, %v787
    %v1222 = vpack.c.b16 %v792, %v790
    %v1223 = vpack.c.b16 %v793, %v791
    %v1224 = vpack.c.b16 %v796, %v794
    %v1225 = vpack.c.b16 %v797, %v795
    %v1226 = vpack.c.b16 %v800, %v798
    %v1227 = vpack.c.b16 %v801, %v799
    %v1228 = vpack.c.b16 %v804, %v802
    %v1229 = vpack.c.b16 %v805, %v803
    %v1230 = vpack.c.b16 %v808, %v806
    %v1231 = vpack.c.b16 %v809, %v807
    %v1232 = vpack.c.b16 %v812, %v810
    %v1233 = vpack.c.b16 %v813, %v811
    %v1234 = vpack.c.b16 %v816, %v814
    %v1235 = vpack.c.b16 %v817, %v815
    %v1236 = vpack.c.b16 %v820, %v818
    %v1237 = vpack.c.b16 %v821, %v819
    %v1238 = vpack.c.b16 %v824, %v822
    %v1239 = vpack.c.b16 %v825, %v823
    %v1240 = vpack.c.b16 %v828, %v826
    %v1241 = vpack.c.b16 %v829, %v827
    %v1242 = vpack.c.b16 %v832, %v830
    %v1243 = vpack.c.b16 %v833, %v831
    %v1244 = vpack.c.b16 %v836, %v834
    %v1245 = vpack.c.b16 %v837, %v835
    %v1246 = vpack.c.b16 %v840, %v838
    %v1247 = vpack.c.b16 %v841, %v839
    %v1248 = vpack.c.b16 %v844, %v842
    %v1249 = vpack.c.b16 %v845, %v843
    %v1250 = vpack.c.b16 %v848, %v846
    %v1251 = vpack.c.b16 %v849, %v847
    %v1252 = vpack.c.b16 %v852, %v850
    %v1253 = vpack.c.b16 %v853, %v851
    %v1254 = vpack.c.b16 %v856, %v854
    %v1255 = vpack.c.b16 %v857, %v855
    %v1256 = vpack.c.b16 %v860, %v858
    %v1257 = vpack.c.b16 %v861, %v859
    %v1258 = vpack.c.b16 %v864, %v862
    %v1259 = vpack.c.b16 %v865, %v863
    %v1260 = vpack.c.b16 %v868, %v866
    %v1261 = vpack.c.b16 %v869, %v867
    %v1262 = vpack.c.b16 %v872, %v870
    %v1263 = vpack.c.b16 %v873, %v871
    %v1264 = vpack.c.b16 %v876, %v874
    %v1265 = vpack.c.b16 %v877, %v875
    %v1266 = vpack.c.b16 %v880, %v878
    %v1267 = vpack.c.b16 %v881, %v879
    %v1268 = vpack.c.b16 %v884, %v882
    %v1269 = vpack.c.b16 %v885, %v883
    %v1270 = vpack.c.b16 %v888, %v886
    %v1271 = vpack.c.b16 %v889, %v887
    %v1272 = vpack.c.b16 %v892, %v890
    %v1273 = vpack.c.b16 %v893, %v891
    %v1274 = vpack.c.b16 %v896, %v894
    %v1275 = vpack.c.b16 %v897, %v895
    %v1276 = vpack.c.b16 %v900, %v898
    %v1277 = vpack.c.b16 %v901, %v899
    %v1278 = vpack.c.b16 %v904, %v902
    %v1279 = vpack.c.b16 %v905, %v903
    %v1280 = vpack.c.b16 %v908, %v906
    %v1281 = vpack.c.b16 %v909, %v907
    %v1282 = vpack.c.b16 %v912, %v910
    %v1283 = vpack.c.b16 %v913, %v911
    %v1284 = vpack.c.b16 %v916, %v914
    %v1285 = vpack.c.b16 %v917, %v915
    %v1286 = vpack.c.b16 %v920, %v918
    %v1287 = vpack.c.b16 %v921, %v919
    %v1288 = vpack.c.b16 %v924, %v922
    %v1289 = vpack.c.b16 %v925, %v923
    %v1290 = vpack.c.b16 %v928, %v926
    %v1291 = vpack.c.b16 %v929, %v927
    %v1292 = vpack.c.b16 %v932, %v930
    %v1293 = vpack.c.b16 %v933, %v931
    %v1294 = vpack.c.b16 %v936, %v934
    %v1295 = vpack.c.b16 %v937, %v935
    %v1296 = vpack.c.b16 %v940, %v938
    %v1297 = vpack.c.b16 %v941, %v939
    %v1298 = vpack.c.b16 %v944, %v942
    %v1299 = vpack.c.b16 %v945, %v943
    %v1300 = vpack.c.b16 %v948, %v946
    %v1301 = vpack.c.b16 %v949, %v947
    %v1302 = vpack.c.b16 %v952, %v950
    %v1303 = vpack.c.b16 %v953, %v951
    %v1304 = vpack.c.b16 %v956, %v954
    %v1305 = vpack.c.b16 %v957, %v955
    %v1306 = vpack.c.b16 %v960, %v958
    %v1307 = vpack.c.b16 %v961, %v959
    %v1308 = vpack.c.b16 %v964, %v962
    %v1309 = vpack.c.b16 %v965, %v963
    %v1310 = vpack.c.b16 %v968, %v966
    %v1311 = vpack.c.b16 %v969, %v967
    %v1312 = vpack.c.b16 %v972, %v970
    %v1313 = vpack.c.b16 %v973, %v971
    %v1314 = vpack.c.b16 %v976, %v974
    %v1315 = vpack.c.b16 %v977, %v975
    %v1316 = vpack.c.b16 %v980, %v978
    %v1317 = vpack.c.b16 %v981, %v979
    %v1318 = vpack.c.b16 %v984, %v982
    %v1319 = vpack.c.b16 %v985, %v983
    %v1320 = vpack.c.b16 %v988, %v986
    %v1321 = vpack.c.b16 %v989, %v987
    %v1322 = vpack.c.b16 %v992, %v990
    %v1323 = vpack.c.b16 %v993, %v991
    %v1324 = vpack.c.b16 %v996, %v994
    %v1325 = vpack.c.b16 %v997, %v995
    %v1326 = vpack.c.b16 %v1000, %v998
    %v1327 = vpack.c.b16 %v1001, %v999
    %v1328 = vpack.c.b16 %v1004, %v1002
    %v1329 = vpack.c.b16 %v1005, %v1003
    %v1330 = vpack.c.b16 %v1008, %v1006
    %v1331 = vpack.c.b16 %v1009, %v1007
    %v1332 = vpack.c.b16 %v1012, %v1010
    %v1333 = vpack.c.b16 %v1013, %v1011
    %v1334 = vpack.c.b16 %v1016, %v1014
    %v1335 = vpack.c.b16 %v1017, %v1015
    %v1336 = vpack.c.b16 %v1020, %v1018
    %v1337 = vpack.c.b16 %v1021, %v1019
    %v1338 = vpack.c.b16 %v1024, %v1022
    %v1339 = vpack.c.b16 %v1025, %v1023
    %v1340 = vpack.c.b16 %v1028, %v1026
    %v1341 = vpack.c.b16 %v1029, %v1027
    %v1342 = vpack.c.b16 %v1032, %v1030
    %v1343 = vpack.c.b16 %v1033, %v1031
    %v1344 = vpack.c.b16 %v1036, %v1034
    %v1345 = vpack.c.b16 %v1037, %v1035
    %v1346 = vpack.c.b16 %v1040, %v1038
    %v1347 = vpack.c.b16 %v1041, %v1039
    %v1348 = vpack.c.b16 %v1044, %v1042
    %v1349 = vpack.c.b16 %v1045, %v1043
    %v1350 = vpack.c.b16 %v1048, %v1046
    %v1351 = vpack.c.b16 %v1049, %v1047
    %v1352 = vpack.c.b16 %v1052, %v1050
    %v1353 = vpack.c.b16 %v1053, %v1051
    %v1354 = vpack.c.b16 %v1056, %v1054
    %v1355 = vpack.c.b16 %v1057, %v1055
    %v1356 = vpack.c.b16 %v1060, %v1058
    %v1357 = vpack.c.b16 %v1061, %v1059
    %v1358 = vpack.c.b16 %v1064, %v1062
    %v1359 = vpack.c.b16 %v1065, %v1063
    %v1360 = vpack.c.b16 %v1068, %v1066
    %v1361 = vpack.c.b16 %v1069, %v1067
    %v1362 = vpack.c.b16 %v1072, %v1070
    %v1363 = vpack.c.b16 %v1073, %v1071
    %v1364 = vpack.c.b16 %v1076, %v1074
    %v1365 = vpack.c.b16 %v1077, %v1075
    %v1366 = vpack.c.b16 %v1080, %v1078
    %v1367 = vpack.c.b16 %v1081, %v1079
    %v1368 = vpack.c.b16 %v1084, %v1082
    %v1369 = vpack.c.b16 %v1085, %v1083
    %v1370 = vpack.c.b16 %v1088, %v1086
    %v1371 = vpack.c.b16 %v1089, %v1087
    %v1372 = vpack.c.b16 %v1092, %v1090
    %v1373 = vpack.c.b16 %v1093, %v1091
    %v1374 = vpack.c.b16 %v1096, %v1094
    %v1375 = vpack.c.b16 %v1097, %v1095
    %v1376 = vpack.c.b16 %v1100, %v1098
    %v1377 = vpack.c.b16 %v1101, %v1099
    %v1378 = vpack.c.b16 %v1104, %v1102
    %v1379 = vpack.c.b16 %v1105, %v1103
    %v1380 = vpack.c.b16 %v1108, %v1106
    %v1381 = vpack.c.b16 %v1109, %v1107
    %v1382 = vpack.c.b16 %v1112, %v1110
    %v1383 = vpack.c.b16 %v1113, %v1111
    %v1384 = vpack.c.b16 %v1116, %v1114
    %v1385 = vpack.c.b16 %v1117, %v1115
    %v1386 = vpack.c.b16 %v1120, %v1118
    %v1387 = vpack.c.b16 %v1121, %v1119
    %v1388 = vpack.c.b16 %v1124, %v1122
    %v1389 = vpack.c.b16 %v1125, %v1123
    %v1390 = vpack.c.b16 %v1128, %v1126
    %v1391 = vpack.c.b16 %v1129, %v1127
    %v1392 = vpack.c.b16 %v1132, %v1130
    %v1393 = vpack.c.b16 %v1133, %v1131
    %v1394 = vpack.c.b16 %v1136, %v1134
    %v1395 = vpack.c.b16 %v1137, %v1135
    %v1396 = vpack.c.b16 %v1140, %v1138
    %v1397 = vpack.c.b16 %v1141, %v1139
    %1654 = vmatprep.subr.bf16.mxu0 %v1143
    %1655 = vmatpush1.bf16.msra.mxu0 %v1142
    %1656 = vmatprep.subr.bf16.mxu0 %v1145
    %1657 = vmatpush1.bf16.msra.mxu0 %v1144
    %1658 = vmatprep.subr.bf16.mxu0 %v1147
    %1659 = vmatpush1.bf16.msra.mxu0 %v1146
    %1660 = vmatprep.subr.bf16.mxu0 %v1149
    %1661 = vmatpush1.bf16.msra.mxu0 %v1148
    %1662 = vmatprep.subr.bf16.mxu0 %v1151
    %1663 = vmatpush1.bf16.msra.mxu0 %v1150
    %1664 = vmatprep.subr.bf16.mxu0 %v1153
    %1665 = vmatpush1.bf16.msra.mxu0 %v1152
    %1666 = vmatprep.subr.bf16.mxu0 %v1155
    %1667 = vmatpush1.bf16.msra.mxu0 %v1154
    %1668 = vmatprep.subr.bf16.mxu0 %v1157
    %1669 = vmatpush1.bf16.msra.mxu0 %v1156
    %1670 = vmatprep.subr.bf16.mxu0 %v1159
    %1671 = vmatpush1.bf16.msra.mxu0 %v1158
    %1672 = vmatprep.subr.bf16.mxu0 %v1161
    %1673 = vmatpush1.bf16.msra.mxu0 %v1160
    %1674 = vmatprep.subr.bf16.mxu0 %v1163
    %1675 = vmatpush1.bf16.msra.mxu0 %v1162
    %1676 = vmatprep.subr.bf16.mxu0 %v1165
    %1677 = vmatpush1.bf16.msra.mxu0 %v1164
    %1678 = vmatprep.subr.bf16.mxu0 %v1167
    %1679 = vmatpush1.bf16.msra.mxu0 %v1166
    %1680 = vmatprep.subr.bf16.mxu0 %v1169
    %1681 = vmatpush1.bf16.msra.mxu0 %v1168
    %1682 = vmatprep.subr.bf16.mxu0 %v1171
    %1683 = vmatpush1.bf16.msra.mxu0 %v1170
    %1684 = vmatprep.subr.bf16.mxu0 %v1173
    %1685 = vmatpush1.bf16.msra.mxu0 %v1172
    %1686 = vmatprep.mubr.bf16.mxu0 %v343
    %1687 = vmatmul.mubr.bf16.gmra.mrb[0].mxu0 %v342
    %v1688 = vpop.f32.mrb[0].mxu0
    %v1689 = vadd.f32 0.0, %v1688
    %v1690 = vpop.f32.mrb[0].mxu0
    %v1691 = vadd.f32 0.0, %v1690
    %v1692 = vpop.f32.mrb[0].mxu0
    %v1693 = vpop.f32.mrb[0].mxu0
    %1694 = vdwg.mxu0
    %1695 = vmatprep.subr.bf16.mxu0 %v1175
    %1696 = vmatpush1.bf16.msra.mxu0 %v1174
    %1697 = vmatprep.subr.bf16.mxu0 %v1177
    %1698 = vmatpush1.bf16.msra.mxu0 %v1176
    %1699 = vmatprep.subr.bf16.mxu0 %v1179
    %1700 = vmatpush1.bf16.msra.mxu0 %v1178
    %1701 = vmatprep.subr.bf16.mxu0 %v1181
    %1702 = vmatpush1.bf16.msra.mxu0 %v1180
    %1703 = vmatprep.subr.bf16.mxu0 %v1183
    %1704 = vmatpush1.bf16.msra.mxu0 %v1182
    %1705 = vmatprep.subr.bf16.mxu0 %v1185
    %1706 = vmatpush1.bf16.msra.mxu0 %v1184
    %1707 = vmatprep.subr.bf16.mxu0 %v1187
    %1708 = vmatpush1.bf16.msra.mxu0 %v1186
    %1709 = vmatprep.subr.bf16.mxu0 %v1189
    %1710 = vmatpush1.bf16.msra.mxu0 %v1188
    %1711 = vmatprep.subr.bf16.mxu0 %v1191
    %1712 = vmatpush1.bf16.msra.mxu0 %v1190
    %1713 = vmatprep.subr.bf16.mxu0 %v1193
    %1714 = vmatpush1.bf16.msra.mxu0 %v1192
    %1715 = vmatprep.subr.bf16.mxu0 %v1195
    %1716 = vmatpush1.bf16.msra.mxu0 %v1194
    %1717 = vmatprep.subr.bf16.mxu0 %v1197
    %1718 = vmatpush1.bf16.msra.mxu0 %v1196
    %1719 = vmatprep.subr.bf16.mxu0 %v1199
    %1720 = vmatpush1.bf16.msra.mxu0 %v1198
    %1721 = vmatprep.subr.bf16.mxu0 %v1201
    %1722 = vmatpush1.bf16.msra.mxu0 %v1200
    %1723 = vmatprep.subr.bf16.mxu0 %v1203
    %1724 = vmatpush1.bf16.msra.mxu0 %v1202
    %1725 = vmatprep.subr.bf16.mxu0 %v1205
    %1726 = vmatpush1.bf16.msra.mxu0 %v1204
    %1727 = vmatprep.mubr.bf16.mxu0 %v345
    %1728 = vmatmul.mubr.bf16.gmra.mrb[0].mxu0 %v344
    %v1729 = vpop.f32.mrb[0].mxu0
    %v1730 = vadd.f32 %v1689, %v1729
    %v1731 = vpop.f32.mrb[0].mxu0
    %v1732 = vadd.f32 %v1691, %v1731
    %v1733 = vpop.f32.mrb[0].mxu0
    %v1734 = vpop.f32.mrb[0].mxu0
    %1735 = vdwg.mxu0
    %1736 = vmatprep.subr.bf16.mxu0 %v1207
    %1737 = vmatpush1.bf16.msra.mxu0 %v1206
    %1738 = vmatprep.subr.bf16.mxu0 %v1209
    %1739 = vmatpush1.bf16.msra.mxu0 %v1208
    %1740 = vmatprep.subr.bf16.mxu0 %v1211
    %1741 = vmatpush1.bf16.msra.mxu0 %v1210
    %1742 = vmatprep.subr.bf16.mxu0 %v1213
    %1743 = vmatpush1.bf16.msra.mxu0 %v1212
    %1744 = vmatprep.subr.bf16.mxu0 %v1215
    %1745 = vmatpush1.bf16.msra.mxu0 %v1214
    %1746 = vmatprep.subr.bf16.mxu0 %v1217
    %1747 = vmatpush1.bf16.msra.mxu0 %v1216
    %1748 = vmatprep.subr.bf16.mxu0 %v1219
    %1749 = vmatpush1.bf16.msra.mxu0 %v1218
    %1750 = vmatprep.subr.bf16.mxu0 %v1221
    %1751 = vmatpush1.bf16.msra.mxu0 %v1220
    %1752 = vmatprep.subr.bf16.mxu0 %v1223
    %1753 = vmatpush1.bf16.msra.mxu0 %v1222
    %1754 = vmatprep.subr.bf16.mxu0 %v1225
    %1755 = vmatpush1.bf16.msra.mxu0 %v1224
    %1756 = vmatprep.subr.bf16.mxu0 %v1227
    %1757 = vmatpush1.bf16.msra.mxu0 %v1226
    %1758 = vmatprep.subr.bf16.mxu0 %v1229
    %1759 = vmatpush1.bf16.msra.mxu0 %v1228
    %1760 = vmatprep.subr.bf16.mxu0 %v1231
    %1761 = vmatpush1.bf16.msra.mxu0 %v1230
    %1762 = vmatprep.subr.bf16.mxu0 %v1233
    %1763 = vmatpush1.bf16.msra.mxu0 %v1232
    %1764 = vmatprep.subr.bf16.mxu0 %v1235
    %1765 = vmatpush1.bf16.msra.mxu0 %v1234
    %1766 = vmatprep.subr.bf16.mxu0 %v1237
    %1767 = vmatpush1.bf16.msra.mxu0 %v1236
    %1768 = vmatprep.mubr.bf16.mxu0 %v347
    %1769 = vmatmul.mubr.bf16.gmra.mrb[0].mxu0 %v346
    %v1770 = vpop.f32.mrb[0].mxu0
    %v1771 = vadd.f32 %v1730, %v1770
    %v1772 = vpop.f32.mrb[0].mxu0
    %v1773 = vadd.f32 %v1732, %v1772
    %v1774 = vpop.f32.mrb[0].mxu0
    %v1775 = vpop.f32.mrb[0].mxu0
    %1776 = vdwg.mxu0
    %1777 = vmatprep.subr.bf16.mxu0 %v1239
    %1778 = vmatpush1.bf16.msra.mxu0 %v1238
    %1779 = vmatprep.subr.bf16.mxu0 %v1241
    %1780 = vmatpush1.bf16.msra.mxu0 %v1240
    %1781 = vmatprep.subr.bf16.mxu0 %v1243
    %1782 = vmatpush1.bf16.msra.mxu0 %v1242
    %1783 = vmatprep.subr.bf16.mxu0 %v1245
    %1784 = vmatpush1.bf16.msra.mxu0 %v1244
    %1785 = vmatprep.subr.bf16.mxu0 %v1247
    %1786 = vmatpush1.bf16.msra.mxu0 %v1246
    %1787 = vmatprep.subr.bf16.mxu0 %v1249
    %1788 = vmatpush1.bf16.msra.mxu0 %v1248
    %1789 = vmatprep.subr.bf16.mxu0 %v1251
    %1790 = vmatpush1.bf16.msra.mxu0 %v1250
    %1791 = vmatprep.subr.bf16.mxu0 %v1253
    %1792 = vmatpush1.bf16.msra.mxu0 %v1252
    %1793 = vmatprep.subr.bf16.mxu0 %v1255
    %1794 = vmatpush1.bf16.msra.mxu0 %v1254
    %1795 = vmatprep.subr.bf16.mxu0 %v1257
    %1796 = vmatpush1.bf16.msra.mxu0 %v1256
    %1797 = vmatprep.subr.bf16.mxu0 %v1259
    %1798 = vmatpush1.bf16.msra.mxu0 %v1258
    %1799 = vmatprep.subr.bf16.mxu0 %v1261
    %1800 = vmatpush1.bf16.msra.mxu0 %v1260
    %1801 = vmatprep.subr.bf16.mxu0 %v1263
    %1802 = vmatpush1.bf16.msra.mxu0 %v1262
    %1803 = vmatprep.subr.bf16.mxu0 %v1265
    %1804 = vmatpush1.bf16.msra.mxu0 %v1264
    %1805 = vmatprep.subr.bf16.mxu0 %v1267
    %1806 = vmatpush1.bf16.msra.mxu0 %v1266
    %1807 = vmatprep.subr.bf16.mxu0 %v1269
    %1808 = vmatpush1.bf16.msra.mxu0 %v1268
    %1809 = vmatprep.mubr.bf16.mxu0 %v349
    %1810 = vmatmul.mubr.bf16.gmra.mrb[0].mxu0 %v348
    %v1811 = vpop.f32.mrb[0].mxu0
    %v1812 = vadd.f32 %v1771, %v1811
    %v1813 = vpop.f32.mrb[0].mxu0
    %v1814 = vadd.f32 %v1773, %v1813
    %v1815 = vpop.f32.mrb[0].mxu0
    %v1816 = vpop.f32.mrb[0].mxu0
    %1817 = vdwg.mxu0
    %1818 = vmatprep.subr.bf16.mxu0 %v1271
    %1819 = vmatpush1.bf16.msra.mxu0 %v1270
    %1820 = vmatprep.subr.bf16.mxu0 %v1273
    %1821 = vmatpush1.bf16.msra.mxu0 %v1272
    %1822 = vmatprep.subr.bf16.mxu0 %v1275
    %1823 = vmatpush1.bf16.msra.mxu0 %v1274
    %1824 = vmatprep.subr.bf16.mxu0 %v1277
    %1825 = vmatpush1.bf16.msra.mxu0 %v1276
    %1826 = vmatprep.subr.bf16.mxu0 %v1279
    %1827 = vmatpush1.bf16.msra.mxu0 %v1278
    %1828 = vmatprep.subr.bf16.mxu0 %v1281
    %1829 = vmatpush1.bf16.msra.mxu0 %v1280
    %1830 = vmatprep.subr.bf16.mxu0 %v1283
    %1831 = vmatpush1.bf16.msra.mxu0 %v1282
    %1832 = vmatprep.subr.bf16.mxu0 %v1285
    %1833 = vmatpush1.bf16.msra.mxu0 %v1284
    %1834 = vmatprep.subr.bf16.mxu0 %v1287
    %1835 = vmatpush1.bf16.msra.mxu0 %v1286
    %1836 = vmatprep.subr.bf16.mxu0 %v1289
    %1837 = vmatpush1.bf16.msra.mxu0 %v1288
    %1838 = vmatprep.subr.bf16.mxu0 %v1291
    %1839 = vmatpush1.bf16.msra.mxu0 %v1290
    %1840 = vmatprep.subr.bf16.mxu0 %v1293
    %1841 = vmatpush1.bf16.msra.mxu0 %v1292
    %1842 = vmatprep.subr.bf16.mxu0 %v1295
    %1843 = vmatpush1.bf16.msra.mxu0 %v1294
    %1844 = vmatprep.subr.bf16.mxu0 %v1297
    %1845 = vmatpush1.bf16.msra.mxu0 %v1296
    %1846 = vmatprep.subr.bf16.mxu0 %v1299
    %1847 = vmatpush1.bf16.msra.mxu0 %v1298
    %1848 = vmatprep.subr.bf16.mxu0 %v1301
    %1849 = vmatpush1.bf16.msra.mxu0 %v1300
    %1850 = vmatprep.mubr.bf16.mxu0 %v351
    %1851 = vmatmul.mubr.bf16.gmra.mrb[0].mxu0 %v350
    %v1852 = vpop.f32.mrb[0].mxu0
    %v1853 = vadd.f32 %v1812, %v1852
    %v1854 = vpop.f32.mrb[0].mxu0
    %v1855 = vadd.f32 %v1814, %v1854
    %v1856 = vpop.f32.mrb[0].mxu0
    %v1857 = vpop.f32.mrb[0].mxu0
    %1858 = vdwg.mxu0
    %1859 = vmatprep.subr.bf16.mxu0 %v1303
    %1860 = vmatpush1.bf16.msra.mxu0 %v1302
    %1861 = vmatprep.subr.bf16.mxu0 %v1305
    %1862 = vmatpush1.bf16.msra.mxu0 %v1304
    %1863 = vmatprep.subr.bf16.mxu0 %v1307
    %1864 = vmatpush1.bf16.msra.mxu0 %v1306
    %1865 = vmatprep.subr.bf16.mxu0 %v1309
    %1866 = vmatpush1.bf16.msra.mxu0 %v1308
    %1867 = vmatprep.subr.bf16.mxu0 %v1311
    %1868 = vmatpush1.bf16.msra.mxu0 %v1310
    %1869 = vmatprep.subr.bf16.mxu0 %v1313
    %1870 = vmatpush1.bf16.msra.mxu0 %v1312
    %1871 = vmatprep.subr.bf16.mxu0 %v1315
    %1872 = vmatpush1.bf16.msra.mxu0 %v1314
    %1873 = vmatprep.subr.bf16.mxu0 %v1317
    %1874 = vmatpush1.bf16.msra.mxu0 %v1316
    %1875 = vmatprep.subr.bf16.mxu0 %v1319
    %1876 = vmatpush1.bf16.msra.mxu0 %v1318
    %1877 = vmatprep.subr.bf16.mxu0 %v1321
    %1878 = vmatpush1.bf16.msra.mxu0 %v1320
    %1879 = vmatprep.subr.bf16.mxu0 %v1323
    %1880 = vmatpush1.bf16.msra.mxu0 %v1322
    %1881 = vmatprep.subr.bf16.mxu0 %v1325
    %1882 = vmatpush1.bf16.msra.mxu0 %v1324
    %1883 = vmatprep.subr.bf16.mxu0 %v1327
    %1884 = vmatpush1.bf16.msra.mxu0 %v1326
    %1885 = vmatprep.subr.bf16.mxu0 %v1329
    %1886 = vmatpush1.bf16.msra.mxu0 %v1328
    %1887 = vmatprep.subr.bf16.mxu0 %v1331
    %1888 = vmatpush1.bf16.msra.mxu0 %v1330
    %1889 = vmatprep.subr.bf16.mxu0 %v1333
    %1890 = vmatpush1.bf16.msra.mxu0 %v1332
    %1891 = vmatprep.mubr.bf16.mxu0 %v353
    %1892 = vmatmul.mubr.bf16.gmra.mrb[0].mxu0 %v352
    %v1893 = vpop.f32.mrb[0].mxu0
    %v1894 = vadd.f32 %v1853, %v1893
    %v1895 = vpop.f32.mrb[0].mxu0
    %v1896 = vadd.f32 %v1855, %v1895
    %v1897 = vpop.f32.mrb[0].mxu0
    %v1898 = vpop.f32.mrb[0].mxu0
    %1899 = vdwg.mxu0
    %1900 = vmatprep.subr.bf16.mxu0 %v1335
    %1901 = vmatpush1.bf16.msra.mxu0 %v1334
    %1902 = vmatprep.subr.bf16.mxu0 %v1337
    %1903 = vmatpush1.bf16.msra.mxu0 %v1336
    %1904 = vmatprep.subr.bf16.mxu0 %v1339
    %1905 = vmatpush1.bf16.msra.mxu0 %v1338
    %1906 = vmatprep.subr.bf16.mxu0 %v1341
    %1907 = vmatpush1.bf16.msra.mxu0 %v1340
    %1908 = vmatprep.subr.bf16.mxu0 %v1343
    %1909 = vmatpush1.bf16.msra.mxu0 %v1342
    %1910 = vmatprep.subr.bf16.mxu0 %v1345
    %1911 = vmatpush1.bf16.msra.mxu0 %v1344
    %1912 = vmatprep.subr.bf16.mxu0 %v1347
    %1913 = vmatpush1.bf16.msra.mxu0 %v1346
    %1914 = vmatprep.subr.bf16.mxu0 %v1349
    %1915 = vmatpush1.bf16.msra.mxu0 %v1348
    %1916 = vmatprep.subr.bf16.mxu0 %v1351
    %1917 = vmatpush1.bf16.msra.mxu0 %v1350
    %1918 = vmatprep.subr.bf16.mxu0 %v1353
    %1919 = vmatpush1.bf16.msra.mxu0 %v1352
    %1920 = vmatprep.subr.bf16.mxu0 %v1355
    %1921 = vmatpush1.bf16.msra.mxu0 %v1354
    %1922 = vmatprep.subr.bf16.mxu0 %v1357
    %1923 = vmatpush1.bf16.msra.mxu0 %v1356
    %1924 = vmatprep.subr.bf16.mxu0 %v1359
    %1925 = vmatpush1.bf16.msra.mxu0 %v1358
    %1926 = vmatprep.subr.bf16.mxu0 %v1361
    %1927 = vmatpush1.bf16.msra.mxu0 %v1360
    %1928 = vmatprep.subr.bf16.mxu0 %v1363
    %1929 = vmatpush1.bf16.msra.mxu0 %v1362
    %1930 = vmatprep.subr.bf16.mxu0 %v1365
    %1931 = vmatpush1.bf16.msra.mxu0 %v1364
    %1932 = vmatprep.mubr.bf16.mxu0 %v355
    %1933 = vmatmul.mubr.bf16.gmra.mrb[0].mxu0 %v354
    %v1934 = vpop.f32.mrb[0].mxu0
    %v1935 = vadd.f32 %v1894, %v1934
    %v1936 = vpop.f32.mrb[0].mxu0
    %v1937 = vadd.f32 %v1896, %v1936
    %v1938 = vpop.f32.mrb[0].mxu0
    %v1939 = vpop.f32.mrb[0].mxu0
    %1940 = vdwg.mxu0
    %1941 = vmatprep.subr.bf16.mxu0 %v1367
    %1942 = vmatpush1.bf16.msra.mxu0 %v1366
    %1943 = vmatprep.subr.bf16.mxu0 %v1369
    %1944 = vmatpush1.bf16.msra.mxu0 %v1368
    %1945 = vmatprep.subr.bf16.mxu0 %v1371
    %1946 = vmatpush1.bf16.msra.mxu0 %v1370
    %1947 = vmatprep.subr.bf16.mxu0 %v1373
    %1948 = vmatpush1.bf16.msra.mxu0 %v1372
    %1949 = vmatprep.subr.bf16.mxu0 %v1375
    %1950 = vmatpush1.bf16.msra.mxu0 %v1374
    %1951 = vmatprep.subr.bf16.mxu0 %v1377
    %1952 = vmatpush1.bf16.msra.mxu0 %v1376
    %1953 = vmatprep.subr.bf16.mxu0 %v1379
    %1954 = vmatpush1.bf16.msra.mxu0 %v1378
    %1955 = vmatprep.subr.bf16.mxu0 %v1381
    %1956 = vmatpush1.bf16.msra.mxu0 %v1380
    %1957 = vmatprep.subr.bf16.mxu0 %v1383
    %1958 = vmatpush1.bf16.msra.mxu0 %v1382
    %1959 = vmatprep.subr.bf16.mxu0 %v1385
    %1960 = vmatpush1.bf16.msra.mxu0 %v1384
    %1961 = vmatprep.subr.bf16.mxu0 %v1387
    %1962 = vmatpush1.bf16.msra.mxu0 %v1386
    %1963 = vmatprep.subr.bf16.mxu0 %v1389
    %1964 = vmatpush1.bf16.msra.mxu0 %v1388
    %1965 = vmatprep.subr.bf16.mxu0 %v1391
    %1966 = vmatpush1.bf16.msra.mxu0 %v1390
    %1967 = vmatprep.subr.bf16.mxu0 %v1393
    %1968 = vmatpush1.bf16.msra.mxu0 %v1392
    %1969 = vmatprep.subr.bf16.mxu0 %v1395
    %1970 = vmatpush1.bf16.msra.mxu0 %v1394
    %1971 = vmatprep.subr.bf16.mxu0 %v1397
    %1972 = vmatpush1.bf16.msra.mxu0 %v1396
    %1973 = vmatprep.mubr.bf16.mxu0 %v357
    %1974 = vmatmul.mubr.bf16.gmra.mrb[0].mxu0 %v356
    %v1975 = vpop.f32.mrb[0].mxu0
    %v1976 = vadd.f32 %v1935, %v1975
    %v1977 = vpop.f32.mrb[0].mxu0
    %v1978 = vadd.f32 %v1937, %v1977
    %v1979 = vpop.f32.mrb[0].mxu0
    %v1980 = vpop.f32.mrb[0].mxu0
    %1981 = vdwg.mxu0
    %v1982 = vrot.slane %v1976, 4
    %v1983 = vadd.f32 %v1976, %v1982
    %v1984 = vrot.slane %v1983, 2
    %v1985 = vadd.f32 %v1983, %v1984
    %v1986 = vrot.slane %v1985, 1
    %v1987 = vadd.f32 %v1985, %v1986
    %v1988 = vrot.slane %v1978, 4
    %v1989 = vadd.f32 %v1978, %v1988
    %v1990 = vrot.slane %v1989, 2
    %v1991 = vadd.f32 %v1989, %v1990
    %v1992 = vrot.slane %v1991, 1
    %v1993 = vadd.f32 %v1991, %v1992
    %v1994 = vrcp.pop 8.0
    %v1995 = vmul.f32 %v1987, %v1994
    %v1996 = vmul.f32 %v1993, %v1994
    %v1997 = vsub.f32 %v1976, %v1995
    %v1998 = vsub.f32 %v1978, %v1996
    %v1999 = vmul.f32 %v1997, %v1997
    %v2000 = vmul.f32 %v1998, %v1998
    %v2001 = vrot.slane %v1999, 4
    %v2002 = vadd.f32 %v1999, %v2001
    %v2003 = vrot.slane %v2002, 2
    %v2004 = vadd.f32 %v2002, %v2003
    %v2005 = vrot.slane %v2004, 1
    %v2006 = vadd.f32 %v2004, %v2005
    %v2007 = vrot.slane %v2000, 4
    %v2008 = vadd.f32 %v2000, %v2007
    %v2009 = vrot.slane %v2008, 2
    %v2010 = vadd.f32 %v2008, %v2009
    %v2011 = vrot.slane %v2010, 1
    %v2012 = vadd.f32 %v2010, %v2011
    %v2013 = vmul.f32 %v2006, %v1994
    %v2014 = vmul.f32 %v2012, %v1994
    %v2015 = vadd.f32 %v2013, 0.8
    %v2016 = vadd.f32 %v2014, 0.8
    %v2017 = vrsqrt.pop %v2015
    %v2018 = vrsqrt.pop %v2016
    %v2019 = vmul.f32 %v1997, %v2017
    %v2020 = vmul.f32 %v1998, %v2018
    %v2021 = vld [vmem:[#allocation4] sm:$0x3]
    %v2023 = vlaneseq
    %v2024 = vshrl.u32 %v2023, 7
    %v2025 = vsub.s32 0, %v2024
    %v2026 = vrot.slane %v2021, %v2025
    %v2027 = vlaneseq
    %v2028 = vshrl.u32 %v2027, 7
    %v2029 = vsub.s32 1, %v2028
    %v2030 = vrot.slane %v2021, %v2029
    %v2033 = vmul.f32 %v2019, %v2026
    %v2034 = vmul.f32 %v2020, %v2030
    %v2035 = vld [vmem:[#allocation6] sm:$0x3]
    %v2037 = vlaneseq
    %v2038 = vshrl.u32 %v2037, 7
    %v2039 = vsub.s32 0, %v2038
    %v2040 = vrot.slane %v2035, %v2039
    %v2041 = vlaneseq
    %v2042 = vshrl.u32 %v2041, 7
    %v2043 = vsub.s32 1, %v2042
    %v2044 = vrot.slane %v2035, %v2043
    %v2047 = vadd.f32 %v2033, %v2040
    %v2048 = vadd.f32 %v2034, %v2044
    %vm2049 = vcmp.ge.f32.partialorder %v2047, 0.0
    %vm2050 = vcmp.ge.f32.partialorder %v2048, 0.0
    %v2051 = vmul.f32 %v2047, 0.2
    %v2052 = vmul.f32 %v2048, 0.2
    %v2053 = vsel %vm2049, %v2047, %v2051
    %v2054 = vsel %vm2050, %v2048, %v2052
    %v2055 = vpack.c.bf16 %v2053, %v2053
    %v2056 = vpack.c.bf16 %v2054, %v2054
    %v2059 = vunpack.c.l.b16 %v2055
    %v2060 = vunpack.c.l.b16 %v2056
    %v2061 = vpack.c.b16 %v2060, %v2059
    %2063 = vst [vmem:[%s4] sm:$0xff] %v2061
    // Predicated region
    $region30: #{encoder_forward.7} parent=1 // pred_check
      _
    $region31: #{encoder_forward.7} parent=1 // pred_check_branch
      %2065 = sbr.rel (0) target = $region33
    $region32: #{encoder_forward.7} parent=1 // pred_region
      _
    $region33: #{encoder_forward.7} parent=1 // pred_fallthru
      _
    // Predicated region
    $region34: #{encoder_forward.7} parent=1 // pred_check
      _
    $region35: #{encoder_forward.7} parent=1 // pred_check_branch
      %2067 = sbr.rel (0) target = $region37
    $region36: #{encoder_forward.7} parent=1 // pred_region
      _
    $region37: #{encoder_forward.7} parent=1 // pred_fallthru
      _
    %2068 = vsyncpa [#allocation3], 1
    %2069 = vsyncpa [#allocation5], 1

// kernel: encoder_forward.8
$region0: #{encoder_forward.8}
  #allocation0 [shape = 'u32[]', space=smem, size = 0x4, offset = 0x4, fixed_abs, tag = 'smem constant byte address 0x4 - core index']
  #allocation1 [shape = 'u32[144,128]{1,0:T(1,128)}', space=vmem, size = 0x12000, scoped, tag = 'internal scratch']
  %s0 = inlined_call_operand.vmem [shape: bf16[2,4096], index: 0, kind: input, shape index: {}]
  %s1 = inlined_call_operand.vmem [shape: bf16[4096,512], index: 1, kind: input, shape index: {}]
  %s2 = inlined_call_operand.vmem [shape: f32[1,512], index: 2, kind: input, shape index: {}]
  %s3 = inlined_call_operand.vmem [shape: f32[1,512], index: 3, kind: input, shape index: {}]
  %s4 = inlined_call_operand.vmem [shape: bf16[2,512], index: 4, kind: output, shape index: {}]
  %s5 = sld [smem:[#allocation0]]
  $region26: #{encoder_forward.8} parent=0
    _
  %s7 = ssub.s32 1, %s5
  %s8 = scalar_select 0, %s7, %s5
  // Predicated region
  $region2: #{encoder_forward.8} parent=0 // pred_check
    _
  $region3: #{encoder_forward.8} parent=0 // pred_check_branch
    %10 = sbr.rel (0) target = $region5
  $region4: #{encoder_forward.8} parent=0 // pred_region
    _
  $region5: #{encoder_forward.8} parent=0 // pred_fallthru
    _
  // Predicated region
  $region6: #{encoder_forward.8} parent=0 // pred_check
    _
  $region7: #{encoder_forward.8} parent=0 // pred_check_branch
    %12 = sbr.rel (0) target = $region9
  $region8: #{encoder_forward.8} parent=0 // pred_region
    _
  $region9: #{encoder_forward.8} parent=0 // pred_fallthru
    _
  // Predicated region
  $region10: #{encoder_forward.8} parent=0 // pred_check
    _
  $region11: #{encoder_forward.8} parent=0 // pred_check_branch
    %14 = sbr.rel (0) target = $region13
  $region12: #{encoder_forward.8} parent=0 // pred_region
    _
  $region13: #{encoder_forward.8} parent=0 // pred_fallthru
    _
  // Predicated region
  $region14: #{encoder_forward.8} parent=0 // pred_check
    _
  $region15: #{encoder_forward.8} parent=0 // pred_check_branch
    %16 = sbr.rel (0) target = $region17
  $region16: #{encoder_forward.8} parent=0 // pred_region
    _
  $region17: #{encoder_forward.8} parent=0 // pred_fallthru
    _
  %v17 = vld [vmem:[%s0] sm:$0xff]
  %v18 = vld [vmem:[%s0 + $0x8] sm:$0xff]
  %v19 = vld [vmem:[%s0 + $0x10] sm:$0xff]
  %v20 = vld [vmem:[%s0 + $0x18] sm:$0xff]
  %v21 = vld [vmem:[%s1] sm:$0xff]
  %v22 = vld [vmem:[%s1 + $0x8] sm:$0xff]
  %v23 = vld [vmem:[%s1 + $0x10] sm:$0xff]
  %v24 = vld [vmem:[%s1 + $0x18] sm:$0xff]
  %v25 = vld [vmem:[%s1 + $0x20] sm:$0xff]
  %v26 = vld [vmem:[%s1 + $0x28] sm:$0xff]
  %v27 = vld [vmem:[%s1 + $0x30] sm:$0xff]
  %v28 = vld [vmem:[%s1 + $0x38] sm:$0xff]
  %v29 = vld [vmem:[%s1 + $0x40] sm:$0xff]
  %v30 = vld [vmem:[%s1 + $0x48] sm:$0xff]
  %v31 = vld [vmem:[%s1 + $0x50] sm:$0xff]
  %v32 = vld [vmem:[%s1 + $0x58] sm:$0xff]
  %v33 = vld [vmem:[%s1 + $0x60] sm:$0xff]
  %v34 = vld [vmem:[%s1 + $0x68] sm:$0xff]
  %v35 = vld [vmem:[%s1 + $0x70] sm:$0xff]
  %v36 = vld [vmem:[%s1 + $0x78] sm:$0xff]
  %v37 = vld [vmem:[%s1 + $0x80] sm:$0xff]
  %v38 = vld [vmem:[%s1 + $0x88] sm:$0xff]
  %v39 = vld [vmem:[%s1 + $0x90] sm:$0xff]
  %v40 = vld [vmem:[%s1 + $0x98] sm:$0xff]
  %v41 = vld [vmem:[%s1 + $0xa0] sm:$0xff]
  %v42 = vld [vmem:[%s1 + $0xa8] sm:$0xff]
  %v43 = vld [vmem:[%s1 + $0xb0] sm:$0xff]
  %v44 = vld [vmem:[%s1 + $0xb8] sm:$0xff]
  %v45 = vld [vmem:[%s1 + $0xc0] sm:$0xff]
  %v46 = vld [vmem:[%s1 + $0xc8] sm:$0xff]
  %v47 = vld [vmem:[%s1 + $0xd0] sm:$0xff]
  %v48 = vld [vmem:[%s1 + $0xd8] sm:$0xff]
  %v49 = vld [vmem:[%s1 + $0xe0] sm:$0xff]
  %v50 = vld [vmem:[%s1 + $0xe8] sm:$0xff]
  %v51 = vld [vmem:[%s1 + $0xf0] sm:$0xff]
  %v52 = vld [vmem:[%s1 + $0xf8] sm:$0xff]
  %v53 = vld [vmem:[%s1 + $0x100] sm:$0xff]
  %v54 = vld [vmem:[%s1 + $0x108] sm:$0xff]
  %v55 = vld [vmem:[%s1 + $0x110] sm:$0xff]
  %v56 = vld [vmem:[%s1 + $0x118] sm:$0xff]
  %v57 = vld [vmem:[%s1 + $0x120] sm:$0xff]
  %v58 = vld [vmem:[%s1 + $0x128] sm:$0xff]
  %v59 = vld [vmem:[%s1 + $0x130] sm:$0xff]
  %v60 = vld [vmem:[%s1 + $0x138] sm:$0xff]
  %v61 = vld [vmem:[%s1 + $0x140] sm:$0xff]
  %v62 = vld [vmem:[%s1 + $0x148] sm:$0xff]
  %v63 = vld [vmem:[%s1 + $0x150] sm:$0xff]
  %v64 = vld [vmem:[%s1 + $0x158] sm:$0xff]
  %v65 = vld [vmem:[%s1 + $0x160] sm:$0xff]
  %v66 = vld [vmem:[%s1 + $0x168] sm:$0xff]
  %v67 = vld [vmem:[%s1 + $0x170] sm:$0xff]
  %v68 = vld [vmem:[%s1 + $0x178] sm:$0xff]
  %v69 = vld [vmem:[%s1 + $0x180] sm:$0xff]
  %v70 = vld [vmem:[%s1 + $0x188] sm:$0xff]
  %v71 = vld [vmem:[%s1 + $0x190] sm:$0xff]
  %v72 = vld [vmem:[%s1 + $0x198] sm:$0xff]
  %v73 = vld [vmem:[%s1 + $0x1a0] sm:$0xff]
  %v74 = vld [vmem:[%s1 + $0x1a8] sm:$0xff]
  %v75 = vld [vmem:[%s1 + $0x1b0] sm:$0xff]
  %v76 = vld [vmem:[%s1 + $0x1b8] sm:$0xff]
  %v77 = vld [vmem:[%s1 + $0x1c0] sm:$0xff]
  %v78 = vld [vmem:[%s1 + $0x1c8] sm:$0xff]
  %v79 = vld [vmem:[%s1 + $0x1d0] sm:$0xff]
  %v80 = vld [vmem:[%s1 + $0x1d8] sm:$0xff]
  %v81 = vld [vmem:[%s1 + $0x1e0] sm:$0xff]
  %v82 = vld [vmem:[%s1 + $0x1e8] sm:$0xff]
  %v83 = vld [vmem:[%s1 + $0x1f0] sm:$0xff]
  %v84 = vld [vmem:[%s1 + $0x1f8] sm:$0xff]
  %v85 = vld [vmem:[%s1 + $0x200] sm:$0xff]
  %v86 = vld [vmem:[%s1 + $0x208] sm:$0xff]
  %v87 = vld [vmem:[%s1 + $0x210] sm:$0xff]
  %v88 = vld [vmem:[%s1 + $0x218] sm:$0xff]
  %v89 = vld [vmem:[%s1 + $0x220] sm:$0xff]
  %v90 = vld [vmem:[%s1 + $0x228] sm:$0xff]
  %v91 = vld [vmem:[%s1 + $0x230] sm:$0xff]
  %v92 = vld [vmem:[%s1 + $0x238] sm:$0xff]
  %v93 = vld [vmem:[%s1 + $0x240] sm:$0xff]
  %v94 = vld [vmem:[%s1 + $0x248] sm:$0xff]
  %v95 = vld [vmem:[%s1 + $0x250] sm:$0xff]
  %v96 = vld [vmem:[%s1 + $0x258] sm:$0xff]
  %v97 = vld [vmem:[%s1 + $0x260] sm:$0xff]
  %v98 = vld [vmem:[%s1 + $0x268] sm:$0xff]
  %v99 = vld [vmem:[%s1 + $0x270] sm:$0xff]
  %v100 = vld [vmem:[%s1 + $0x278] sm:$0xff]
  %v101 = vld [vmem:[%s1 + $0x280] sm:$0xff]
  %v102 = vld [vmem:[%s1 + $0x288] sm:$0xff]
  %v103 = vld [vmem:[%s1 + $0x290] sm:$0xff]
  %v104 = vld [vmem:[%s1 + $0x298] sm:$0xff]
  %v105 = vld [vmem:[%s1 + $0x2a0] sm:$0xff]
  %v106 = vld [vmem:[%s1 + $0x2a8] sm:$0xff]
  %v107 = vld [vmem:[%s1 + $0x2b0] sm:$0xff]
  %v108 = vld [vmem:[%s1 + $0x2b8] sm:$0xff]
  %v109 = vld [vmem:[%s1 + $0x2c0] sm:$0xff]
  %v110 = vld [vmem:[%s1 + $0x2c8] sm:$0xff]
  %v111 = vld [vmem:[%s1 + $0x2d0] sm:$0xff]
  %v112 = vld [vmem:[%s1 + $0x2d8] sm:$0xff]
  %v113 = vld [vmem:[%s1 + $0x2e0] sm:$0xff]
  %v114 = vld [vmem:[%s1 + $0x2e8] sm:$0xff]
  %v115 = vld [vmem:[%s1 + $0x2f0] sm:$0xff]
  %v116 = vld [vmem:[%s1 + $0x2f8] sm:$0xff]
  %v117 = vld [vmem:[%s1 + $0x300] sm:$0xff]
  %v118 = vld [vmem:[%s1 + $0x308] sm:$0xff]
  %v119 = vld [vmem:[%s1 + $0x310] sm:$0xff]
  %v120 = vld [vmem:[%s1 + $0x318] sm:$0xff]
  %v121 = vld [vmem:[%s1 + $0x320] sm:$0xff]
  %v122 = vld [vmem:[%s1 + $0x328] sm:$0xff]
  %v123 = vld [vmem:[%s1 + $0x330] sm:$0xff]
  %v124 = vld [vmem:[%s1 + $0x338] sm:$0xff]
  %v125 = vld [vmem:[%s1 + $0x340] sm:$0xff]
  %v126 = vld [vmem:[%s1 + $0x348] sm:$0xff]
  %v127 = vld [vmem:[%s1 + $0x350] sm:$0xff]
  %v128 = vld [vmem:[%s1 + $0x358] sm:$0xff]
  %v129 = vld [vmem:[%s1 + $0x360] sm:$0xff]
  %v130 = vld [vmem:[%s1 + $0x368] sm:$0xff]
  %v131 = vld [vmem:[%s1 + $0x370] sm:$0xff]
  %v132 = vld [vmem:[%s1 + $0x378] sm:$0xff]
  %v133 = vld [vmem:[%s1 + $0x380] sm:$0xff]
  %v134 = vld [vmem:[%s1 + $0x388] sm:$0xff]
  %v135 = vld [vmem:[%s1 + $0x390] sm:$0xff]
  %v136 = vld [vmem:[%s1 + $0x398] sm:$0xff]
  %v137 = vld [vmem:[%s1 + $0x3a0] sm:$0xff]
  %v138 = vld [vmem:[%s1 + $0x3a8] sm:$0xff]
  %v139 = vld [vmem:[%s1 + $0x3b0] sm:$0xff]
  %v140 = vld [vmem:[%s1 + $0x3b8] sm:$0xff]
  %v141 = vld [vmem:[%s1 + $0x3c0] sm:$0xff]
  %v142 = vld [vmem:[%s1 + $0x3c8] sm:$0xff]
  %v143 = vld [vmem:[%s1 + $0x3d0] sm:$0xff]
  %v144 = vld [vmem:[%s1 + $0x3d8] sm:$0xff]
  %v145 = vld [vmem:[%s1 + $0x3e0] sm:$0xff]
  %v146 = vld [vmem:[%s1 + $0x3e8] sm:$0xff]
  %v147 = vld [vmem:[%s1 + $0x3f0] sm:$0xff]
  %v148 = vld [vmem:[%s1 + $0x3f8] sm:$0xff]
  %v149 = vld [vmem:[%s1 + $0x400] sm:$0xff]
  %v150 = vld [vmem:[%s1 + $0x408] sm:$0xff]
  %v151 = vld [vmem:[%s1 + $0x410] sm:$0xff]
  %v152 = vld [vmem:[%s1 + $0x418] sm:$0xff]
  %v153 = vld [vmem:[%s1 + $0x420] sm:$0xff]
  %v154 = vld [vmem:[%s1 + $0x428] sm:$0xff]
  %v155 = vld [vmem:[%s1 + $0x430] sm:$0xff]
  %v156 = vld [vmem:[%s1 + $0x438] sm:$0xff]
  %v157 = vld [vmem:[%s1 + $0x440] sm:$0xff]
  %v158 = vld [vmem:[%s1 + $0x448] sm:$0xff]
  %v159 = vld [vmem:[%s1 + $0x450] sm:$0xff]
  %v160 = vld [vmem:[%s1 + $0x458] sm:$0xff]
  %v161 = vld [vmem:[%s1 + $0x460] sm:$0xff]
  %v162 = vld [vmem:[%s1 + $0x468] sm:$0xff]
  %v163 = vld [vmem:[%s1 + $0x470] sm:$0xff]
  %v164 = vld [vmem:[%s1 + $0x478] sm:$0xff]
  %v165 = vld [vmem:[%s1 + $0x480] sm:$0xff]
  %v166 = vld [vmem:[%s1 + $0x488] sm:$0xff]
  %v167 = vld [vmem:[%s1 + $0x490] sm:$0xff]
  %v168 = vld [vmem:[%s1 + $0x498] sm:$0xff]
  %v169 = vld [vmem:[%s1 + $0x4a0] sm:$0xff]
  %v170 = vld [vmem:[%s1 + $0x4a8] sm:$0xff]
  %v171 = vld [vmem:[%s1 + $0x4b0] sm:$0xff]
  %v172 = vld [vmem:[%s1 + $0x4b8] sm:$0xff]
  %v173 = vld [vmem:[%s1 + $0x4c0] sm:$0xff]
  %v174 = vld [vmem:[%s1 + $0x4c8] sm:$0xff]
  %v175 = vld [vmem:[%s1 + $0x4d0] sm:$0xff]
  %v176 = vld [vmem:[%s1 + $0x4d8] sm:$0xff]
  %v177 = vld [vmem:[%s1 + $0x4e0] sm:$0xff]
  %v178 = vld [vmem:[%s1 + $0x4e8] sm:$0xff]
  %v179 = vld [vmem:[%s1 + $0x4f0] sm:$0xff]
  %v180 = vld [vmem:[%s1 + $0x4f8] sm:$0xff]
  %v181 = vld [vmem:[%s1 + $0x500] sm:$0xff]
  %v182 = vld [vmem:[%s1 + $0x508] sm:$0xff]
  %v183 = vld [vmem:[%s1 + $0x510] sm:$0xff]
  %v184 = vld [vmem:[%s1 + $0x518] sm:$0xff]
  %v185 = vld [vmem:[%s1 + $0x520] sm:$0xff]
  %v186 = vld [vmem:[%s1 + $0x528] sm:$0xff]
  %v187 = vld [vmem:[%s1 + $0x530] sm:$0xff]
  %v188 = vld [vmem:[%s1 + $0x538] sm:$0xff]
  %v189 = vld [vmem:[%s1 + $0x540] sm:$0xff]
  %v190 = vld [vmem:[%s1 + $0x548] sm:$0xff]
  %v191 = vld [vmem:[%s1 + $0x550] sm:$0xff]
  %v192 = vld [vmem:[%s1 + $0x558] sm:$0xff]
  %v193 = vld [vmem:[%s1 + $0x560] sm:$0xff]
  %v194 = vld [vmem:[%s1 + $0x568] sm:$0xff]
  %v195 = vld [vmem:[%s1 + $0x570] sm:$0xff]
  %v196 = vld [vmem:[%s1 + $0x578] sm:$0xff]
  %v197 = vld [vmem:[%s1 + $0x580] sm:$0xff]
  %v198 = vld [vmem:[%s1 + $0x588] sm:$0xff]
  %v199 = vld [vmem:[%s1 + $0x590] sm:$0xff]
  %v200 = vld [vmem:[%s1 + $0x598] sm:$0xff]
  %v201 = vld [vmem:[%s1 + $0x5a0] sm:$0xff]
  %v202 = vld [vmem:[%s1 + $0x5a8] sm:$0xff]
  %v203 = vld [vmem:[%s1 + $0x5b0] sm:$0xff]
  %v204 = vld [vmem:[%s1 + $0x5b8] sm:$0xff]
  %v205 = vld [vmem:[%s1 + $0x5c0] sm:$0xff]
  %v206 = vld [vmem:[%s1 + $0x5c8] sm:$0xff]
  %v207 = vld [vmem:[%s1 + $0x5d0] sm:$0xff]
  %v208 = vld [vmem:[%s1 + $0x5d8] sm:$0xff]
  %v209 = vld [vmem:[%s1 + $0x5e0] sm:$0xff]
  %v210 = vld [vmem:[%s1 + $0x5e8] sm:$0xff]
  %v211 = vld [vmem:[%s1 + $0x5f0] sm:$0xff]
  %v212 = vld [vmem:[%s1 + $0x5f8] sm:$0xff]
  %v213 = vld [vmem:[%s1 + $0x600] sm:$0xff]
  %v214 = vld [vmem:[%s1 + $0x608] sm:$0xff]
  %v215 = vld [vmem:[%s1 + $0x610] sm:$0xff]
  %v216 = vld [vmem:[%s1 + $0x618] sm:$0xff]
  %v217 = vld [vmem:[%s1 + $0x620] sm:$0xff]
  %v218 = vld [vmem:[%s1 + $0x628] sm:$0xff]
  %v219 = vld [vmem:[%s1 + $0x630] sm:$0xff]
  %v220 = vld [vmem:[%s1 + $0x638] sm:$0xff]
  %v221 = vld [vmem:[%s1 + $0x640] sm:$0xff]
  %v222 = vld [vmem:[%s1 + $0x648] sm:$0xff]
  %v223 = vld [vmem:[%s1 + $0x650] sm:$0xff]
  %v224 = vld [vmem:[%s1 + $0x658] sm:$0xff]
  %v225 = vld [vmem:[%s1 + $0x660] sm:$0xff]
  %v226 = vld [vmem:[%s1 + $0x668] sm:$0xff]
  %v227 = vld [vmem:[%s1 + $0x670] sm:$0xff]
  %v228 = vld [vmem:[%s1 + $0x678] sm:$0xff]
  %v229 = vld [vmem:[%s1 + $0x680] sm:$0xff]
  %v230 = vld [vmem:[%s1 + $0x688] sm:$0xff]
  %v231 = vld [vmem:[%s1 + $0x690] sm:$0xff]
  %v232 = vld [vmem:[%s1 + $0x698] sm:$0xff]
  %v233 = vld [vmem:[%s1 + $0x6a0] sm:$0xff]
  %v234 = vld [vmem:[%s1 + $0x6a8] sm:$0xff]
  %v235 = vld [vmem:[%s1 + $0x6b0] sm:$0xff]
  %v236 = vld [vmem:[%s1 + $0x6b8] sm:$0xff]
  %v237 = vld [vmem:[%s1 + $0x6c0] sm:$0xff]
  %v238 = vld [vmem:[%s1 + $0x6c8] sm:$0xff]
  %v239 = vld [vmem:[%s1 + $0x6d0] sm:$0xff]
  %v240 = vld [vmem:[%s1 + $0x6d8] sm:$0xff]
  %v241 = vld [vmem:[%s1 + $0x6e0] sm:$0xff]
  %v242 = vld [vmem:[%s1 + $0x6e8] sm:$0xff]
  %v243 = vld [vmem:[%s1 + $0x6f0] sm:$0xff]
  %v244 = vld [vmem:[%s1 + $0x6f8] sm:$0xff]
  %v245 = vld [vmem:[%s1 + $0x700] sm:$0xff]
  %v246 = vld [vmem:[%s1 + $0x708] sm:$0xff]
  %v247 = vld [vmem:[%s1 + $0x710] sm:$0xff]
  %v248 = vld [vmem:[%s1 + $0x718] sm:$0xff]
  %v249 = vld [vmem:[%s1 + $0x720] sm:$0xff]
  %v250 = vld [vmem:[%s1 + $0x728] sm:$0xff]
  %v251 = vld [vmem:[%s1 + $0x730] sm:$0xff]
  %v252 = vld [vmem:[%s1 + $0x738] sm:$0xff]
  %v253 = vld [vmem:[%s1 + $0x740] sm:$0xff]
  %v254 = vld [vmem:[%s1 + $0x748] sm:$0xff]
  %v255 = vld [vmem:[%s1 + $0x750] sm:$0xff]
  %v256 = vld [vmem:[%s1 + $0x758] sm:$0xff]
  %v257 = vld [vmem:[%s1 + $0x760] sm:$0xff]
  %v258 = vld [vmem:[%s1 + $0x768] sm:$0xff]
  %v259 = vld [vmem:[%s1 + $0x770] sm:$0xff]
  %v260 = vld [vmem:[%s1 + $0x778] sm:$0xff]
  %v261 = vld [vmem:[%s1 + $0x780] sm:$0xff]
  %v262 = vld [vmem:[%s1 + $0x788] sm:$0xff]
  %v263 = vld [vmem:[%s1 + $0x790] sm:$0xff]
  %v264 = vld [vmem:[%s1 + $0x798] sm:$0xff]
  %v265 = vld [vmem:[%s1 + $0x7a0] sm:$0xff]
  %v266 = vld [vmem:[%s1 + $0x7a8] sm:$0xff]
  %v267 = vld [vmem:[%s1 + $0x7b0] sm:$0xff]
  %v268 = vld [vmem:[%s1 + $0x7b8] sm:$0xff]
  %v269 = vld [vmem:[%s1 + $0x7c0] sm:$0xff]
  %v270 = vld [vmem:[%s1 + $0x7c8] sm:$0xff]
  %v271 = vld [vmem:[%s1 + $0x7d0] sm:$0xff]
  %v272 = vld [vmem:[%s1 + $0x7d8] sm:$0xff]
  %v273 = vld [vmem:[%s1 + $0x7e0] sm:$0xff]
  %v274 = vld [vmem:[%s1 + $0x7e8] sm:$0xff]
  %v275 = vld [vmem:[%s1 + $0x7f0] sm:$0xff]
  %v276 = vld [vmem:[%s1 + $0x7f8] sm:$0xff]
  %v277 = vld [vmem:[%s1 + $0x800] sm:$0xff]
  %v278 = vld [vmem:[%s1 + $0x808] sm:$0xff]
  %v279 = vld [vmem:[%s1 + $0x810] sm:$0xff]
  %v280 = vld [vmem:[%s1 + $0x818] sm:$0xff]
  %v281 = vld [vmem:[%s1 + $0x820] sm:$0xff]
  %v282 = vld [vmem:[%s1 + $0x828] sm:$0xff]
  %v283 = vld [vmem:[%s1 + $0x830] sm:$0xff]
  %v284 = vld [vmem:[%s1 + $0x838] sm:$0xff]
  %v285 = vld [vmem:[%s1 + $0x840] sm:$0xff]
  %v286 = vld [vmem:[%s1 + $0x848] sm:$0xff]
  %v287 = vld [vmem:[%s1 + $0x850] sm:$0xff]
  %v288 = vld [vmem:[%s1 + $0x858] sm:$0xff]
  %v289 = vld [vmem:[%s1 + $0x860] sm:$0xff]
  %v290 = vld [vmem:[%s1 + $0x868] sm:$0xff]
  %v291 = vld [vmem:[%s1 + $0x870] sm:$0xff]
  %v292 = vld [vmem:[%s1 + $0x878] sm:$0xff]
  %v293 = vld [vmem:[%s1 + $0x880] sm:$0xff]
  %v294 = vld [vmem:[%s1 + $0x888] sm:$0xff]
  %v295 = vld [vmem:[%s1 + $0x890] sm:$0xff]
  %v296 = vld [vmem:[%s1 + $0x898] sm:$0xff]
  %v297 = vld [vmem:[%s1 + $0x8a0] sm:$0xff]
  %v298 = vld [vmem:[%s1 + $0x8a8] sm:$0xff]
  %v299 = vld [vmem:[%s1 + $0x8b0] sm:$0xff]
  %v300 = vld [vmem:[%s1 + $0x8b8] sm:$0xff]
  %v301 = vld [vmem:[%s1 + $0x8c0] sm:$0xff]
  %v302 = vld [vmem:[%s1 + $0x8c8] sm:$0xff]
  %v303 = vld [vmem:[%s1 + $0x8d0] sm:$0xff]
  %v304 = vld [vmem:[%s1 + $0x8d8] sm:$0xff]
  %v305 = vld [vmem:[%s1 + $0x8e0] sm:$0xff]
  %v306 = vld [vmem:[%s1 + $0x8e8] sm:$0xff]
  %v307 = vld [vmem:[%s1 + $0x8f0] sm:$0xff]
  %v308 = vld [vmem:[%s1 + $0x8f8] sm:$0xff]
  %v309 = vld [vmem:[%s1 + $0x900] sm:$0xff]
  %v310 = vld [vmem:[%s1 + $0x908] sm:$0xff]
  %v311 = vld [vmem:[%s1 + $0x910] sm:$0xff]
  %v312 = vld [vmem:[%s1 + $0x918] sm:$0xff]
  %v313 = vld [vmem:[%s1 + $0x920] sm:$0xff]
  %v314 = vld [vmem:[%s1 + $0x928] sm:$0xff]
  %v315 = vld [vmem:[%s1 + $0x930] sm:$0xff]
  %v316 = vld [vmem:[%s1 + $0x938] sm:$0xff]
  %v317 = vld [vmem:[%s1 + $0x940] sm:$0xff]
  %v318 = vld [vmem:[%s1 + $0x948] sm:$0xff]
  %v319 = vld [vmem:[%s1 + $0x950] sm:$0xff]
  %v320 = vld [vmem:[%s1 + $0x958] sm:$0xff]
  %v321 = vld [vmem:[%s1 + $0x960] sm:$0xff]
  %v322 = vld [vmem:[%s1 + $0x968] sm:$0xff]
  %v323 = vld [vmem:[%s1 + $0x970] sm:$0xff]
  %v324 = vld [vmem:[%s1 + $0x978] sm:$0xff]
  %v325 = vld [vmem:[%s1 + $0x980] sm:$0xff]
  %v326 = vld [vmem:[%s1 + $0x988] sm:$0xff]
  %v327 = vld [vmem:[%s1 + $0x990] sm:$0xff]
  %v328 = vld [vmem:[%s1 + $0x998] sm:$0xff]
  %v329 = vld [vmem:[%s1 + $0x9a0] sm:$0xff]
  %v330 = vld [vmem:[%s1 + $0x9a8] sm:$0xff]
  %v331 = vld [vmem:[%s1 + $0x9b0] sm:$0xff]
  %v332 = vld [vmem:[%s1 + $0x9b8] sm:$0xff]
  %v333 = vld [vmem:[%s1 + $0x9c0] sm:$0xff]
  %v334 = vld [vmem:[%s1 + $0x9c8] sm:$0xff]
  %v335 = vld [vmem:[%s1 + $0x9d0] sm:$0xff]
  %v336 = vld [vmem:[%s1 + $0x9d8] sm:$0xff]
  %v337 = vld [vmem:[%s1 + $0x9e0] sm:$0xff]
  %v338 = vld [vmem:[%s1 + $0x9e8] sm:$0xff]
  %v339 = vld [vmem:[%s1 + $0x9f0] sm:$0xff]
  %v340 = vld [vmem:[%s1 + $0x9f8] sm:$0xff]
  %v341 = vld [vmem:[%s1 + $0xa00] sm:$0xff]
  %v342 = vld [vmem:[%s1 + $0xa08] sm:$0xff]
  %v343 = vld [vmem:[%s1 + $0xa10] sm:$0xff]
  %v344 = vld [vmem:[%s1 + $0xa18] sm:$0xff]
  %v345 = vld [vmem:[%s1 + $0xa20] sm:$0xff]
  %v346 = vld [vmem:[%s1 + $0xa28] sm:$0xff]
  %v347 = vld [vmem:[%s1 + $0xa30] sm:$0xff]
  %v348 = vld [vmem:[%s1 + $0xa38] sm:$0xff]
  %v349 = vld [vmem:[%s1 + $0xa40] sm:$0xff]
  %v350 = vld [vmem:[%s1 + $0xa48] sm:$0xff]
  %v351 = vld [vmem:[%s1 + $0xa50] sm:$0xff]
  %v352 = vld [vmem:[%s1 + $0xa58] sm:$0xff]
  %v353 = vld [vmem:[%s1 + $0xa60] sm:$0xff]
  %v354 = vld [vmem:[%s1 + $0xa68] sm:$0xff]
  %v355 = vld [vmem:[%s1 + $0xa70] sm:$0xff]
  %v356 = vld [vmem:[%s1 + $0xa78] sm:$0xff]
  %v357 = vld [vmem:[%s1 + $0xa80] sm:$0xff]
  %v358 = vld [vmem:[%s1 + $0xa88] sm:$0xff]
  %v359 = vld [vmem:[%s1 + $0xa90] sm:$0xff]
  %v360 = vld [vmem:[%s1 + $0xa98] sm:$0xff]
  %v361 = vld [vmem:[%s1 + $0xaa0] sm:$0xff]
  %v362 = vld [vmem:[%s1 + $0xaa8] sm:$0xff]
  %v363 = vld [vmem:[%s1 + $0xab0] sm:$0xff]
  %v364 = vld [vmem:[%s1 + $0xab8] sm:$0xff]
  %v365 = vld [vmem:[%s1 + $0xac0] sm:$0xff]
  %v366 = vld [vmem:[%s1 + $0xac8] sm:$0xff]
  %v367 = vld [vmem:[%s1 + $0xad0] sm:$0xff]
  %v368 = vld [vmem:[%s1 + $0xad8] sm:$0xff]
  %v369 = vld [vmem:[%s1 + $0xae0] sm:$0xff]
  %v370 = vld [vmem:[%s1 + $0xae8] sm:$0xff]
  %v371 = vld [vmem:[%s1 + $0xaf0] sm:$0xff]
  %v372 = vld [vmem:[%s1 + $0xaf8] sm:$0xff]
  %v373 = vld [vmem:[%s1 + $0xb00] sm:$0xff]
  %v374 = vld [vmem:[%s1 + $0xb08] sm:$0xff]
  %v375 = vld [vmem:[%s1 + $0xb10] sm:$0xff]
  %v376 = vld [vmem:[%s1 + $0xb18] sm:$0xff]
  %v377 = vld [vmem:[%s1 + $0xb20] sm:$0xff]
  %v378 = vld [vmem:[%s1 + $0xb28] sm:$0xff]
  %v379 = vld [vmem:[%s1 + $0xb30] sm:$0xff]
  %v380 = vld [vmem:[%s1 + $0xb38] sm:$0xff]
  %v381 = vld [vmem:[%s1 + $0xb40] sm:$0xff]
  %v382 = vld [vmem:[%s1 + $0xb48] sm:$0xff]
  %v383 = vld [vmem:[%s1 + $0xb50] sm:$0xff]
  %v384 = vld [vmem:[%s1 + $0xb58] sm:$0xff]
  %v385 = vld [vmem:[%s1 + $0xb60] sm:$0xff]
  %v386 = vld [vmem:[%s1 + $0xb68] sm:$0xff]
  %v387 = vld [vmem:[%s1 + $0xb70] sm:$0xff]
  %v388 = vld [vmem:[%s1 + $0xb78] sm:$0xff]
  %v389 = vld [vmem:[%s1 + $0xb80] sm:$0xff]
  %v390 = vld [vmem:[%s1 + $0xb88] sm:$0xff]
  %v391 = vld [vmem:[%s1 + $0xb90] sm:$0xff]
  %v392 = vld [vmem:[%s1 + $0xb98] sm:$0xff]
  %v393 = vld [vmem:[%s1 + $0xba0] sm:$0xff]
  %v394 = vld [vmem:[%s1 + $0xba8] sm:$0xff]
  %v395 = vld [vmem:[%s1 + $0xbb0] sm:$0xff]
  %v396 = vld [vmem:[%s1 + $0xbb8] sm:$0xff]
  %v397 = vld [vmem:[%s1 + $0xbc0] sm:$0xff]
  %v398 = vld [vmem:[%s1 + $0xbc8] sm:$0xff]
  %v399 = vld [vmem:[%s1 + $0xbd0] sm:$0xff]
  %v400 = vld [vmem:[%s1 + $0xbd8] sm:$0xff]
  %v401 = vld [vmem:[%s1 + $0xbe0] sm:$0xff]
  %v402 = vld [vmem:[%s1 + $0xbe8] sm:$0xff]
  %v403 = vld [vmem:[%s1 + $0xbf0] sm:$0xff]
  %v404 = vld [vmem:[%s1 + $0xbf8] sm:$0xff]
  %v405 = vld [vmem:[%s1 + $0xc00] sm:$0xff]
  %v406 = vld [vmem:[%s1 + $0xc08] sm:$0xff]
  %v407 = vld [vmem:[%s1 + $0xc10] sm:$0xff]
  %v408 = vld [vmem:[%s1 + $0xc18] sm:$0xff]
  %v409 = vld [vmem:[%s1 + $0xc20] sm:$0xff]
  %v410 = vld [vmem:[%s1 + $0xc28] sm:$0xff]
  %v411 = vld [vmem:[%s1 + $0xc30] sm:$0xff]
  %v412 = vld [vmem:[%s1 + $0xc38] sm:$0xff]
  %v413 = vld [vmem:[%s1 + $0xc40] sm:$0xff]
  %v414 = vld [vmem:[%s1 + $0xc48] sm:$0xff]
  %v415 = vld [vmem:[%s1 + $0xc50] sm:$0xff]
  %v416 = vld [vmem:[%s1 + $0xc58] sm:$0xff]
  %v417 = vld [vmem:[%s1 + $0xc60] sm:$0xff]
  %v418 = vld [vmem:[%s1 + $0xc68] sm:$0xff]
  %v419 = vld [vmem:[%s1 + $0xc70] sm:$0xff]
  %v420 = vld [vmem:[%s1 + $0xc78] sm:$0xff]
  %v421 = vld [vmem:[%s1 + $0xc80] sm:$0xff]
  %v422 = vld [vmem:[%s1 + $0xc88] sm:$0xff]
  %v423 = vld [vmem:[%s1 + $0xc90] sm:$0xff]
  %v424 = vld [vmem:[%s1 + $0xc98] sm:$0xff]
  %v425 = vld [vmem:[%s1 + $0xca0] sm:$0xff]
  %v426 = vld [vmem:[%s1 + $0xca8] sm:$0xff]
  %v427 = vld [vmem:[%s1 + $0xcb0] sm:$0xff]
  %v428 = vld [vmem:[%s1 + $0xcb8] sm:$0xff]
  %v429 = vld [vmem:[%s1 + $0xcc0] sm:$0xff]
  %v430 = vld [vmem:[%s1 + $0xcc8] sm:$0xff]
  %v431 = vld [vmem:[%s1 + $0xcd0] sm:$0xff]
  %v432 = vld [vmem:[%s1 + $0xcd8] sm:$0xff]
  %v433 = vld [vmem:[%s1 + $0xce0] sm:$0xff]
  %v434 = vld [vmem:[%s1 + $0xce8] sm:$0xff]
  %v435 = vld [vmem:[%s1 + $0xcf0] sm:$0xff]
  %v436 = vld [vmem:[%s1 + $0xcf8] sm:$0xff]
  %v437 = vld [vmem:[%s1 + $0xd00] sm:$0xff]
  %v438 = vld [vmem:[%s1 + $0xd08] sm:$0xff]
  %v439 = vld [vmem:[%s1 + $0xd10] sm:$0xff]
  %v440 = vld [vmem:[%s1 + $0xd18] sm:$0xff]
  %v441 = vld [vmem:[%s1 + $0xd20] sm:$0xff]
  %v442 = vld [vmem:[%s1 + $0xd28] sm:$0xff]
  %v443 = vld [vmem:[%s1 + $0xd30] sm:$0xff]
  %v444 = vld [vmem:[%s1 + $0xd38] sm:$0xff]
  %v445 = vld [vmem:[%s1 + $0xd40] sm:$0xff]
  %v446 = vld [vmem:[%s1 + $0xd48] sm:$0xff]
  %v447 = vld [vmem:[%s1 + $0xd50] sm:$0xff]
  %v448 = vld [vmem:[%s1 + $0xd58] sm:$0xff]
  %v449 = vld [vmem:[%s1 + $0xd60] sm:$0xff]
  %v450 = vld [vmem:[%s1 + $0xd68] sm:$0xff]
  %v451 = vld [vmem:[%s1 + $0xd70] sm:$0xff]
  %v452 = vld [vmem:[%s1 + $0xd78] sm:$0xff]
  %v453 = vld [vmem:[%s1 + $0xd80] sm:$0xff]
  %v454 = vld [vmem:[%s1 + $0xd88] sm:$0xff]
  %v455 = vld [vmem:[%s1 + $0xd90] sm:$0xff]
  %v456 = vld [vmem:[%s1 + $0xd98] sm:$0xff]
  %v457 = vld [vmem:[%s1 + $0xda0] sm:$0xff]
  %v458 = vld [vmem:[%s1 + $0xda8] sm:$0xff]
  %v459 = vld [vmem:[%s1 + $0xdb0] sm:$0xff]
  %v460 = vld [vmem:[%s1 + $0xdb8] sm:$0xff]
  %v461 = vld [vmem:[%s1 + $0xdc0] sm:$0xff]
  %v462 = vld [vmem:[%s1 + $0xdc8] sm:$0xff]
  %v463 = vld [vmem:[%s1 + $0xdd0] sm:$0xff]
  %v464 = vld [vmem:[%s1 + $0xdd8] sm:$0xff]
  %v465 = vld [vmem:[%s1 + $0xde0] sm:$0xff]
  %v466 = vld [vmem:[%s1 + $0xde8] sm:$0xff]
  %v467 = vld [vmem:[%s1 + $0xdf0] sm:$0xff]
  %v468 = vld [vmem:[%s1 + $0xdf8] sm:$0xff]
  %v469 = vld [vmem:[%s1 + $0xe00] sm:$0xff]
  %v470 = vld [vmem:[%s1 + $0xe08] sm:$0xff]
  %v471 = vld [vmem:[%s1 + $0xe10] sm:$0xff]
  %v472 = vld [vmem:[%s1 + $0xe18] sm:$0xff]
  %v473 = vld [vmem:[%s1 + $0xe20] sm:$0xff]
  %v474 = vld [vmem:[%s1 + $0xe28] sm:$0xff]
  %v475 = vld [vmem:[%s1 + $0xe30] sm:$0xff]
  %v476 = vld [vmem:[%s1 + $0xe38] sm:$0xff]
  %v477 = vld [vmem:[%s1 + $0xe40] sm:$0xff]
  %v478 = vld [vmem:[%s1 + $0xe48] sm:$0xff]
  %v479 = vld [vmem:[%s1 + $0xe50] sm:$0xff]
  %v480 = vld [vmem:[%s1 + $0xe58] sm:$0xff]
  %v481 = vld [vmem:[%s1 + $0xe60] sm:$0xff]
  %v482 = vld [vmem:[%s1 + $0xe68] sm:$0xff]
  %v483 = vld [vmem:[%s1 + $0xe70] sm:$0xff]
  %v484 = vld [vmem:[%s1 + $0xe78] sm:$0xff]
  %v485 = vld [vmem:[%s1 + $0xe80] sm:$0xff]
  %v486 = vld [vmem:[%s1 + $0xe88] sm:$0xff]
  %v487 = vld [vmem:[%s1 + $0xe90] sm:$0xff]
  %v488 = vld [vmem:[%s1 + $0xe98] sm:$0xff]
  %v489 = vld [vmem:[%s1 + $0xea0] sm:$0xff]
  %v490 = vld [vmem:[%s1 + $0xea8] sm:$0xff]
  %v491 = vld [vmem:[%s1 + $0xeb0] sm:$0xff]
  %v492 = vld [vmem:[%s1 + $0xeb8] sm:$0xff]
  %v493 = vld [vmem:[%s1 + $0xec0] sm:$0xff]
  %v494 = vld [vmem:[%s1 + $0xec8] sm:$0xff]
  %v495 = vld [vmem:[%s1 + $0xed0] sm:$0xff]
  %v496 = vld [vmem:[%s1 + $0xed8] sm:$0xff]
  %v497 = vld [vmem:[%s1 + $0xee0] sm:$0xff]
  %v498 = vld [vmem:[%s1 + $0xee8] sm:$0xff]
  %v499 = vld [vmem:[%s1 + $0xef0] sm:$0xff]
  %v500 = vld [vmem:[%s1 + $0xef8] sm:$0xff]
  %v501 = vld [vmem:[%s1 + $0xf00] sm:$0xff]
  %v502 = vld [vmem:[%s1 + $0xf08] sm:$0xff]
  %v503 = vld [vmem:[%s1 + $0xf10] sm:$0xff]
  %v504 = vld [vmem:[%s1 + $0xf18] sm:$0xff]
  %v505 = vld [vmem:[%s1 + $0xf20] sm:$0xff]
  %v506 = vld [vmem:[%s1 + $0xf28] sm:$0xff]
  %v507 = vld [vmem:[%s1 + $0xf30] sm:$0xff]
  %v508 = vld [vmem:[%s1 + $0xf38] sm:$0xff]
  %v509 = vld [vmem:[%s1 + $0xf40] sm:$0xff]
  %v510 = vld [vmem:[%s1 + $0xf48] sm:$0xff]
  %v511 = vld [vmem:[%s1 + $0xf50] sm:$0xff]
  %v512 = vld [vmem:[%s1 + $0xf58] sm:$0xff]
  %v513 = vld [vmem:[%s1 + $0xf60] sm:$0xff]
  %v514 = vld [vmem:[%s1 + $0xf68] sm:$0xff]
  %v515 = vld [vmem:[%s1 + $0xf70] sm:$0xff]
  %v516 = vld [vmem:[%s1 + $0xf78] sm:$0xff]
  %v517 = vld [vmem:[%s1 + $0xf80] sm:$0xff]
  %v518 = vld [vmem:[%s1 + $0xf88] sm:$0xff]
  %v519 = vld [vmem:[%s1 + $0xf90] sm:$0xff]
  %v520 = vld [vmem:[%s1 + $0xf98] sm:$0xff]
  %v521 = vld [vmem:[%s1 + $0xfa0] sm:$0xff]
  %v522 = vld [vmem:[%s1 + $0xfa8] sm:$0xff]
  %v523 = vld [vmem:[%s1 + $0xfb0] sm:$0xff]
  %v524 = vld [vmem:[%s1 + $0xfb8] sm:$0xff]
  %v525 = vld [vmem:[%s1 + $0xfc0] sm:$0xff]
  %v526 = vld [vmem:[%s1 + $0xfc8] sm:$0xff]
  %v527 = vld [vmem:[%s1 + $0xfd0] sm:$0xff]
  %v528 = vld [vmem:[%s1 + $0xfd8] sm:$0xff]
  %v529 = vld [vmem:[%s1 + $0xfe0] sm:$0xff]
  %v530 = vld [vmem:[%s1 + $0xfe8] sm:$0xff]
  %v531 = vld [vmem:[%s1 + $0xff0] sm:$0xff]
  %v532 = vld [vmem:[%s1 + $0xff8] sm:$0xff]
  %v533 = vld [vmem:[%s1 + $0x1000] sm:$0xff]
  %v534 = vld [vmem:[%s1 + $0x1008] sm:$0xff]
  %v535 = vld [vmem:[%s1 + $0x1010] sm:$0xff]
  %v536 = vld [vmem:[%s1 + $0x1018] sm:$0xff]
  %v537 = vld [vmem:[%s1 + $0x1020] sm:$0xff]
  %v538 = vld [vmem:[%s1 + $0x1028] sm:$0xff]
  %v539 = vld [vmem:[%s1 + $0x1030] sm:$0xff]
  %v540 = vld [vmem:[%s1 + $0x1038] sm:$0xff]
  %v541 = vld [vmem:[%s1 + $0x1040] sm:$0xff]
  %v542 = vld [vmem:[%s1 + $0x1048] sm:$0xff]
  %v543 = vld [vmem:[%s1 + $0x1050] sm:$0xff]
  %v544 = vld [vmem:[%s1 + $0x1058] sm:$0xff]
  %v545 = vld [vmem:[%s1 + $0x1060] sm:$0xff]
  %v546 = vld [vmem:[%s1 + $0x1068] sm:$0xff]
  %v547 = vld [vmem:[%s1 + $0x1070] sm:$0xff]
  %v548 = vld [vmem:[%s1 + $0x1078] sm:$0xff]
  %v549 = vld [vmem:[%s1 + $0x1080] sm:$0xff]
  %v550 = vld [vmem:[%s1 + $0x1088] sm:$0xff]
  %v551 = vld [vmem:[%s1 + $0x1090] sm:$0xff]
  %v552 = vld [vmem:[%s1 + $0x1098] sm:$0xff]
  %v553 = vld [vmem:[%s1 + $0x10a0] sm:$0xff]
  %v554 = vld [vmem:[%s1 + $0x10a8] sm:$0xff]
  %v555 = vld [vmem:[%s1 + $0x10b0] sm:$0xff]
  %v556 = vld [vmem:[%s1 + $0x10b8] sm:$0xff]
  %v557 = vld [vmem:[%s1 + $0x10c0] sm:$0xff]
  %v558 = vld [vmem:[%s1 + $0x10c8] sm:$0xff]
  %v559 = vld [vmem:[%s1 + $0x10d0] sm:$0xff]
  %v560 = vld [vmem:[%s1 + $0x10d8] sm:$0xff]
  %v561 = vld [vmem:[%s1 + $0x10e0] sm:$0xff]
  %v562 = vld [vmem:[%s1 + $0x10e8] sm:$0xff]
  %v563 = vld [vmem:[%s1 + $0x10f0] sm:$0xff]
  %v564 = vld [vmem:[%s1 + $0x10f8] sm:$0xff]
  %v565 = vld [vmem:[%s1 + $0x1100] sm:$0xff]
  %v566 = vld [vmem:[%s1 + $0x1108] sm:$0xff]
  %v567 = vld [vmem:[%s1 + $0x1110] sm:$0xff]
  %v568 = vld [vmem:[%s1 + $0x1118] sm:$0xff]
  %v569 = vld [vmem:[%s1 + $0x1120] sm:$0xff]
  %v570 = vld [vmem:[%s1 + $0x1128] sm:$0xff]
  %v571 = vld [vmem:[%s1 + $0x1130] sm:$0xff]
  %v572 = vld [vmem:[%s1 + $0x1138] sm:$0xff]
  %v573 = vld [vmem:[%s1 + $0x1140] sm:$0xff]
  %v574 = vld [vmem:[%s1 + $0x1148] sm:$0xff]
  %v575 = vld [vmem:[%s1 + $0x1150] sm:$0xff]
  %v576 = vld [vmem:[%s1 + $0x1158] sm:$0xff]
  %v577 = vld [vmem:[%s1 + $0x1160] sm:$0xff]
  %v578 = vld [vmem:[%s1 + $0x1168] sm:$0xff]
  %v579 = vld [vmem:[%s1 + $0x1170] sm:$0xff]
  %v580 = vld [vmem:[%s1 + $0x1178] sm:$0xff]
  %v581 = vld [vmem:[%s1 + $0x1180] sm:$0xff]
  %v582 = vld [vmem:[%s1 + $0x1188] sm:$0xff]
  %v583 = vld [vmem:[%s1 + $0x1190] sm:$0xff]
  %v584 = vld [vmem:[%s1 + $0x1198] sm:$0xff]
  %v585 = vld [vmem:[%s1 + $0x11a0] sm:$0xff]
  %v586 = vld [vmem:[%s1 + $0x11a8] sm:$0xff]
  %v587 = vld [vmem:[%s1 + $0x11b0] sm:$0xff]
  %v588 = vld [vmem:[%s1 + $0x11b8] sm:$0xff]
  %v589 = vld [vmem:[%s1 + $0x11c0] sm:$0xff]
  %v590 = vld [vmem:[%s1 + $0x11c8] sm:$0xff]
  %v591 = vld [vmem:[%s1 + $0x11d0] sm:$0xff]
  %v592 = vld [vmem:[%s1 + $0x11d8] sm:$0xff]
  %v593 = vld [vmem:[%s1 + $0x11e0] sm:$0xff]
  %v594 = vld [vmem:[%s1 + $0x11e8] sm:$0xff]
  %v595 = vld [vmem:[%s1 + $0x11f0] sm:$0xff]
  %v596 = vld [vmem:[%s1 + $0x11f8] sm:$0xff]
  %v597 = vld [vmem:[%s1 + $0x1200] sm:$0xff]
  %v598 = vld [vmem:[%s1 + $0x1208] sm:$0xff]
  %v599 = vld [vmem:[%s1 + $0x1210] sm:$0xff]
  %v600 = vld [vmem:[%s1 + $0x1218] sm:$0xff]
  %v601 = vld [vmem:[%s1 + $0x1220] sm:$0xff]
  %v602 = vld [vmem:[%s1 + $0x1228] sm:$0xff]
  %v603 = vld [vmem:[%s1 + $0x1230] sm:$0xff]
  %v604 = vld [vmem:[%s1 + $0x1238] sm:$0xff]
  %v605 = vld [vmem:[%s1 + $0x1240] sm:$0xff]
  %v606 = vld [vmem:[%s1 + $0x1248] sm:$0xff]
  %v607 = vld [vmem:[%s1 + $0x1250] sm:$0xff]
  %v608 = vld [vmem:[%s1 + $0x1258] sm:$0xff]
  %v609 = vld [vmem:[%s1 + $0x1260] sm:$0xff]
  %v610 = vld [vmem:[%s1 + $0x1268] sm:$0xff]
  %v611 = vld [vmem:[%s1 + $0x1270] sm:$0xff]
  %v612 = vld [vmem:[%s1 + $0x1278] sm:$0xff]
  %v613 = vld [vmem:[%s1 + $0x1280] sm:$0xff]
  %v614 = vld [vmem:[%s1 + $0x1288] sm:$0xff]
  %v615 = vld [vmem:[%s1 + $0x1290] sm:$0xff]
  %v616 = vld [vmem:[%s1 + $0x1298] sm:$0xff]
  %v617 = vld [vmem:[%s1 + $0x12a0] sm:$0xff]
  %v618 = vld [vmem:[%s1 + $0x12a8] sm:$0xff]
  %v619 = vld [vmem:[%s1 + $0x12b0] sm:$0xff]
  %v620 = vld [vmem:[%s1 + $0x12b8] sm:$0xff]
  %v621 = vld [vmem:[%s1 + $0x12c0] sm:$0xff]
  %v622 = vld [vmem:[%s1 + $0x12c8] sm:$0xff]
  %v623 = vld [vmem:[%s1 + $0x12d0] sm:$0xff]
  %v624 = vld [vmem:[%s1 + $0x12d8] sm:$0xff]
  %v625 = vld [vmem:[%s1 + $0x12e0] sm:$0xff]
  %v626 = vld [vmem:[%s1 + $0x12e8] sm:$0xff]
  %v627 = vld [vmem:[%s1 + $0x12f0] sm:$0xff]
  %v628 = vld [vmem:[%s1 + $0x12f8] sm:$0xff]
  %v629 = vld [vmem:[%s1 + $0x1300] sm:$0xff]
  %v630 = vld [vmem:[%s1 + $0x1308] sm:$0xff]
  %v631 = vld [vmem:[%s1 + $0x1310] sm:$0xff]
  %v632 = vld [vmem:[%s1 + $0x1318] sm:$0xff]
  %v633 = vld [vmem:[%s1 + $0x1320] sm:$0xff]
  %v634 = vld [vmem:[%s1 + $0x1328] sm:$0xff]
  %v635 = vld [vmem:[%s1 + $0x1330] sm:$0xff]
  %v636 = vld [vmem:[%s1 + $0x1338] sm:$0xff]
  %v637 = vld [vmem:[%s1 + $0x1340] sm:$0xff]
  %v638 = vld [vmem:[%s1 + $0x1348] sm:$0xff]
  %v639 = vld [vmem:[%s1 + $0x1350] sm:$0xff]
  %v640 = vld [vmem:[%s1 + $0x1358] sm:$0xff]
  %v641 = vld [vmem:[%s1 + $0x1360] sm:$0xff]
  %v642 = vld [vmem:[%s1 + $0x1368] sm:$0xff]
  %v643 = vld [vmem:[%s1 + $0x1370] sm:$0xff]
  %v644 = vld [vmem:[%s1 + $0x1378] sm:$0xff]
  %v645 = vld [vmem:[%s1 + $0x1380] sm:$0xff]
  %v646 = vld [vmem:[%s1 + $0x1388] sm:$0xff]
  %v647 = vld [vmem:[%s1 + $0x1390] sm:$0xff]
  %v648 = vld [vmem:[%s1 + $0x1398] sm:$0xff]
  %v649 = vld [vmem:[%s1 + $0x13a0] sm:$0xff]
  %v650 = vld [vmem:[%s1 + $0x13a8] sm:$0xff]
  %v651 = vld [vmem:[%s1 + $0x13b0] sm:$0xff]
  %v652 = vld [vmem:[%s1 + $0x13b8] sm:$0xff]
  %v653 = vld [vmem:[%s1 + $0x13c0] sm:$0xff]
  %v654 = vld [vmem:[%s1 + $0x13c8] sm:$0xff]
  %v655 = vld [vmem:[%s1 + $0x13d0] sm:$0xff]
  %v656 = vld [vmem:[%s1 + $0x13d8] sm:$0xff]
  %v657 = vld [vmem:[%s1 + $0x13e0] sm:$0xff]
  %v658 = vld [vmem:[%s1 + $0x13e8] sm:$0xff]
  %v659 = vld [vmem:[%s1 + $0x13f0] sm:$0xff]
  %v660 = vld [vmem:[%s1 + $0x13f8] sm:$0xff]
  %v661 = vld [vmem:[%s1 + $0x1400] sm:$0xff]
  %v662 = vld [vmem:[%s1 + $0x1408] sm:$0xff]
  %v663 = vld [vmem:[%s1 + $0x1410] sm:$0xff]
  %v664 = vld [vmem:[%s1 + $0x1418] sm:$0xff]
  %v665 = vld [vmem:[%s1 + $0x1420] sm:$0xff]
  %v666 = vld [vmem:[%s1 + $0x1428] sm:$0xff]
  %v667 = vld [vmem:[%s1 + $0x1430] sm:$0xff]
  %v668 = vld [vmem:[%s1 + $0x1438] sm:$0xff]
  %v669 = vld [vmem:[%s1 + $0x1440] sm:$0xff]
  %v670 = vld [vmem:[%s1 + $0x1448] sm:$0xff]
  %v671 = vld [vmem:[%s1 + $0x1450] sm:$0xff]
  %v672 = vld [vmem:[%s1 + $0x1458] sm:$0xff]
  %v673 = vld [vmem:[%s1 + $0x1460] sm:$0xff]
  %v674 = vld [vmem:[%s1 + $0x1468] sm:$0xff]
  %v675 = vld [vmem:[%s1 + $0x1470] sm:$0xff]
  %v676 = vld [vmem:[%s1 + $0x1478] sm:$0xff]
  %v677 = vld [vmem:[%s1 + $0x1480] sm:$0xff]
  %v678 = vld [vmem:[%s1 + $0x1488] sm:$0xff]
  %v679 = vld [vmem:[%s1 + $0x1490] sm:$0xff]
  %v680 = vld [vmem:[%s1 + $0x1498] sm:$0xff]
  %v681 = vld [vmem:[%s1 + $0x14a0] sm:$0xff]
  %v682 = vld [vmem:[%s1 + $0x14a8] sm:$0xff]
  %v683 = vld [vmem:[%s1 + $0x14b0] sm:$0xff]
  %v684 = vld [vmem:[%s1 + $0x14b8] sm:$0xff]
  %v685 = vld [vmem:[%s1 + $0x14c0] sm:$0xff]
  %v686 = vld [vmem:[%s1 + $0x14c8] sm:$0xff]
  %v687 = vld [vmem:[%s1 + $0x14d0] sm:$0xff]
  %v688 = vld [vmem:[%s1 + $0x14d8] sm:$0xff]
  %v689 = vld [vmem:[%s1 + $0x14e0] sm:$0xff]
  %v690 = vld [vmem:[%s1 + $0x14e8] sm:$0xff]
  %v691 = vld [vmem:[%s1 + $0x14f0] sm:$0xff]
  %v692 = vld [vmem:[%s1 + $0x14f8] sm:$0xff]
  %v693 = vld [vmem:[%s1 + $0x1500] sm:$0xff]
  %v694 = vld [vmem:[%s1 + $0x1508] sm:$0xff]
  %v695 = vld [vmem:[%s1 + $0x1510] sm:$0xff]
  %v696 = vld [vmem:[%s1 + $0x1518] sm:$0xff]
  %v697 = vld [vmem:[%s1 + $0x1520] sm:$0xff]
  %v698 = vld [vmem:[%s1 + $0x1528] sm:$0xff]
  %v699 = vld [vmem:[%s1 + $0x1530] sm:$0xff]
  %v700 = vld [vmem:[%s1 + $0x1538] sm:$0xff]
  %v701 = vld [vmem:[%s1 + $0x1540] sm:$0xff]
  %v702 = vld [vmem:[%s1 + $0x1548] sm:$0xff]
  %v703 = vld [vmem:[%s1 + $0x1550] sm:$0xff]
  %v704 = vld [vmem:[%s1 + $0x1558] sm:$0xff]
  %v705 = vld [vmem:[%s1 + $0x1560] sm:$0xff]
  %v706 = vld [vmem:[%s1 + $0x1568] sm:$0xff]
  %v707 = vld [vmem:[%s1 + $0x1570] sm:$0xff]
  %v708 = vld [vmem:[%s1 + $0x1578] sm:$0xff]
  %v709 = vld [vmem:[%s1 + $0x1580] sm:$0xff]
  %v710 = vld [vmem:[%s1 + $0x1588] sm:$0xff]
  %v711 = vld [vmem:[%s1 + $0x1590] sm:$0xff]
  %v712 = vld [vmem:[%s1 + $0x1598] sm:$0xff]
  %v713 = vld [vmem:[%s1 + $0x15a0] sm:$0xff]
  %v714 = vld [vmem:[%s1 + $0x15a8] sm:$0xff]
  %v715 = vld [vmem:[%s1 + $0x15b0] sm:$0xff]
  %v716 = vld [vmem:[%s1 + $0x15b8] sm:$0xff]
  %v717 = vld [vmem:[%s1 + $0x15c0] sm:$0xff]
  %v718 = vld [vmem:[%s1 + $0x15c8] sm:$0xff]
  %v719 = vld [vmem:[%s1 + $0x15d0] sm:$0xff]
  %v720 = vld [vmem:[%s1 + $0x15d8] sm:$0xff]
  %v721 = vld [vmem:[%s1 + $0x15e0] sm:$0xff]
  %v722 = vld [vmem:[%s1 + $0x15e8] sm:$0xff]
  %v723 = vld [vmem:[%s1 + $0x15f0] sm:$0xff]
  %v724 = vld [vmem:[%s1 + $0x15f8] sm:$0xff]
  %v725 = vld [vmem:[%s1 + $0x1600] sm:$0xff]
  %v726 = vld [vmem:[%s1 + $0x1608] sm:$0xff]
  %v727 = vld [vmem:[%s1 + $0x1610] sm:$0xff]
  %v728 = vld [vmem:[%s1 + $0x1618] sm:$0xff]
  %v729 = vld [vmem:[%s1 + $0x1620] sm:$0xff]
  %v730 = vld [vmem:[%s1 + $0x1628] sm:$0xff]
  %v731 = vld [vmem:[%s1 + $0x1630] sm:$0xff]
  %v732 = vld [vmem:[%s1 + $0x1638] sm:$0xff]
  %v733 = vld [vmem:[%s1 + $0x1640] sm:$0xff]
  %v734 = vld [vmem:[%s1 + $0x1648] sm:$0xff]
  %v735 = vld [vmem:[%s1 + $0x1650] sm:$0xff]
  %v736 = vld [vmem:[%s1 + $0x1658] sm:$0xff]
  %v737 = vld [vmem:[%s1 + $0x1660] sm:$0xff]
  %v738 = vld [vmem:[%s1 + $0x1668] sm:$0xff]
  %v739 = vld [vmem:[%s1 + $0x1670] sm:$0xff]
  %v740 = vld [vmem:[%s1 + $0x1678] sm:$0xff]
  %v741 = vld [vmem:[%s1 + $0x1680] sm:$0xff]
  %v742 = vld [vmem:[%s1 + $0x1688] sm:$0xff]
  %v743 = vld [vmem:[%s1 + $0x1690] sm:$0xff]
  %v744 = vld [vmem:[%s1 + $0x1698] sm:$0xff]
  %v745 = vld [vmem:[%s1 + $0x16a0] sm:$0xff]
  %v746 = vld [vmem:[%s1 + $0x16a8] sm:$0xff]
  %v747 = vld [vmem:[%s1 + $0x16b0] sm:$0xff]
  %v748 = vld [vmem:[%s1 + $0x16b8] sm:$0xff]
  %v749 = vld [vmem:[%s1 + $0x16c0] sm:$0xff]
  %v750 = vld [vmem:[%s1 + $0x16c8] sm:$0xff]
  %v751 = vld [vmem:[%s1 + $0x16d0] sm:$0xff]
  %v752 = vld [vmem:[%s1 + $0x16d8] sm:$0xff]
  %v753 = vld [vmem:[%s1 + $0x16e0] sm:$0xff]
  %v754 = vld [vmem:[%s1 + $0x16e8] sm:$0xff]
  %v755 = vld [vmem:[%s1 + $0x16f0] sm:$0xff]
  %v756 = vld [vmem:[%s1 + $0x16f8] sm:$0xff]
  %v757 = vld [vmem:[%s1 + $0x1700] sm:$0xff]
  %v758 = vld [vmem:[%s1 + $0x1708] sm:$0xff]
  %v759 = vld [vmem:[%s1 + $0x1710] sm:$0xff]
  %v760 = vld [vmem:[%s1 + $0x1718] sm:$0xff]
  %v761 = vld [vmem:[%s1 + $0x1720] sm:$0xff]
  %v762 = vld [vmem:[%s1 + $0x1728] sm:$0xff]
  %v763 = vld [vmem:[%s1 + $0x1730] sm:$0xff]
  %v764 = vld [vmem:[%s1 + $0x1738] sm:$0xff]
  %v765 = vld [vmem:[%s1 + $0x1740] sm:$0xff]
  %v766 = vld [vmem:[%s1 + $0x1748] sm:$0xff]
  %v767 = vld [vmem:[%s1 + $0x1750] sm:$0xff]
  %v768 = vld [vmem:[%s1 + $0x1758] sm:$0xff]
  %v769 = vld [vmem:[%s1 + $0x1760] sm:$0xff]
  %v770 = vld [vmem:[%s1 + $0x1768] sm:$0xff]
  %v771 = vld [vmem:[%s1 + $0x1770] sm:$0xff]
  %v772 = vld [vmem:[%s1 + $0x1778] sm:$0xff]
  %v773 = vld [vmem:[%s1 + $0x1780] sm:$0xff]
  %v774 = vld [vmem:[%s1 + $0x1788] sm:$0xff]
  %v775 = vld [vmem:[%s1 + $0x1790] sm:$0xff]
  %v776 = vld [vmem:[%s1 + $0x1798] sm:$0xff]
  %v777 = vld [vmem:[%s1 + $0x17a0] sm:$0xff]
  %v778 = vld [vmem:[%s1 + $0x17a8] sm:$0xff]
  %v779 = vld [vmem:[%s1 + $0x17b0] sm:$0xff]
  %v780 = vld [vmem:[%s1 + $0x17b8] sm:$0xff]
  %v781 = vld [vmem:[%s1 + $0x17c0] sm:$0xff]
  %v782 = vld [vmem:[%s1 + $0x17c8] sm:$0xff]
  %v783 = vld [vmem:[%s1 + $0x17d0] sm:$0xff]
  %v784 = vld [vmem:[%s1 + $0x17d8] sm:$0xff]
  %v785 = vld [vmem:[%s1 + $0x17e0] sm:$0xff]
  %v786 = vld [vmem:[%s1 + $0x17e8] sm:$0xff]
  %v787 = vld [vmem:[%s1 + $0x17f0] sm:$0xff]
  %v788 = vld [vmem:[%s1 + $0x17f8] sm:$0xff]
  %v789 = vld [vmem:[%s1 + $0x1800] sm:$0xff]
  %v790 = vld [vmem:[%s1 + $0x1808] sm:$0xff]
  %v791 = vld [vmem:[%s1 + $0x1810] sm:$0xff]
  %v792 = vld [vmem:[%s1 + $0x1818] sm:$0xff]
  %v793 = vld [vmem:[%s1 + $0x1820] sm:$0xff]
  %v794 = vld [vmem:[%s1 + $0x1828] sm:$0xff]
  %v795 = vld [vmem:[%s1 + $0x1830] sm:$0xff]
  %v796 = vld [vmem:[%s1 + $0x1838] sm:$0xff]
  %v797 = vld [vmem:[%s1 + $0x1840] sm:$0xff]
  %v798 = vld [vmem:[%s1 + $0x1848] sm:$0xff]
  %v799 = vld [vmem:[%s1 + $0x1850] sm:$0xff]
  %v800 = vld [vmem:[%s1 + $0x1858] sm:$0xff]
  %v801 = vld [vmem:[%s1 + $0x1860] sm:$0xff]
  %v802 = vld [vmem:[%s1 + $0x1868] sm:$0xff]
  %v803 = vld [vmem:[%s1 + $0x1870] sm:$0xff]
  %v804 = vld [vmem:[%s1 + $0x1878] sm:$0xff]
  %v805 = vld [vmem:[%s1 + $0x1880] sm:$0xff]
  %v806 = vld [vmem:[%s1 + $0x1888] sm:$0xff]
  %v807 = vld [vmem:[%s1 + $0x1890] sm:$0xff]
  %v808 = vld [vmem:[%s1 + $0x1898] sm:$0xff]
  %v809 = vld [vmem:[%s1 + $0x18a0] sm:$0xff]
  %v810 = vld [vmem:[%s1 + $0x18a8] sm:$0xff]
  %v811 = vld [vmem:[%s1 + $0x18b0] sm:$0xff]
  %v812 = vld [vmem:[%s1 + $0x18b8] sm:$0xff]
  %v813 = vld [vmem:[%s1 + $0x18c0] sm:$0xff]
  %v814 = vld [vmem:[%s1 + $0x18c8] sm:$0xff]
  %v815 = vld [vmem:[%s1 + $0x18d0] sm:$0xff]
  %v816 = vld [vmem:[%s1 + $0x18d8] sm:$0xff]
  %v817 = vld [vmem:[%s1 + $0x18e0] sm:$0xff]
  %v818 = vld [vmem:[%s1 + $0x18e8] sm:$0xff]
  %v819 = vld [vmem:[%s1 + $0x18f0] sm:$0xff]
  %v820 = vld [vmem:[%s1 + $0x18f8] sm:$0xff]
  %v821 = vld [vmem:[%s1 + $0x1900] sm:$0xff]
  %v822 = vld [vmem:[%s1 + $0x1908] sm:$0xff]
  %v823 = vld [vmem:[%s1 + $0x1910] sm:$0xff]
  %v824 = vld [vmem:[%s1 + $0x1918] sm:$0xff]
  %v825 = vld [vmem:[%s1 + $0x1920] sm:$0xff]
  %v826 = vld [vmem:[%s1 + $0x1928] sm:$0xff]
  %v827 = vld [vmem:[%s1 + $0x1930] sm:$0xff]
  %v828 = vld [vmem:[%s1 + $0x1938] sm:$0xff]
  %v829 = vld [vmem:[%s1 + $0x1940] sm:$0xff]
  %v830 = vld [vmem:[%s1 + $0x1948] sm:$0xff]
  %v831 = vld [vmem:[%s1 + $0x1950] sm:$0xff]
  %v832 = vld [vmem:[%s1 + $0x1958] sm:$0xff]
  %v833 = vld [vmem:[%s1 + $0x1960] sm:$0xff]
  %v834 = vld [vmem:[%s1 + $0x1968] sm:$0xff]
  %v835 = vld [vmem:[%s1 + $0x1970] sm:$0xff]
  %v836 = vld [vmem:[%s1 + $0x1978] sm:$0xff]
  %v837 = vld [vmem:[%s1 + $0x1980] sm:$0xff]
  %v838 = vld [vmem:[%s1 + $0x1988] sm:$0xff]
  %v839 = vld [vmem:[%s1 + $0x1990] sm:$0xff]
  %v840 = vld [vmem:[%s1 + $0x1998] sm:$0xff]
  %v841 = vld [vmem:[%s1 + $0x19a0] sm:$0xff]
  %v842 = vld [vmem:[%s1 + $0x19a8] sm:$0xff]
  %v843 = vld [vmem:[%s1 + $0x19b0] sm:$0xff]
  %v844 = vld [vmem:[%s1 + $0x19b8] sm:$0xff]
  %v845 = vld [vmem:[%s1 + $0x19c0] sm:$0xff]
  %v846 = vld [vmem:[%s1 + $0x19c8] sm:$0xff]
  %v847 = vld [vmem:[%s1 + $0x19d0] sm:$0xff]
  %v848 = vld [vmem:[%s1 + $0x19d8] sm:$0xff]
  %v849 = vld [vmem:[%s1 + $0x19e0] sm:$0xff]
  %v850 = vld [vmem:[%s1 + $0x19e8] sm:$0xff]
  %v851 = vld [vmem:[%s1 + $0x19f0] sm:$0xff]
  %v852 = vld [vmem:[%s1 + $0x19f8] sm:$0xff]
  %v853 = vld [vmem:[%s1 + $0x1a00] sm:$0xff]
  %v854 = vld [vmem:[%s1 + $0x1a08] sm:$0xff]
  %v855 = vld [vmem:[%s1 + $0x1a10] sm:$0xff]
  %v856 = vld [vmem:[%s1 + $0x1a18] sm:$0xff]
  %v857 = vld [vmem:[%s1 + $0x1a20] sm:$0xff]
  %v858 = vld [vmem:[%s1 + $0x1a28] sm:$0xff]
  %v859 = vld [vmem:[%s1 + $0x1a30] sm:$0xff]
  %v860 = vld [vmem:[%s1 + $0x1a38] sm:$0xff]
  %v861 = vld [vmem:[%s1 + $0x1a40] sm:$0xff]
  %v862 = vld [vmem:[%s1 + $0x1a48] sm:$0xff]
  %v863 = vld [vmem:[%s1 + $0x1a50] sm:$0xff]
  %v864 = vld [vmem:[%s1 + $0x1a58] sm:$0xff]
  %v865 = vld [vmem:[%s1 + $0x1a60] sm:$0xff]
  %v866 = vld [vmem:[%s1 + $0x1a68] sm:$0xff]
  %v867 = vld [vmem:[%s1 + $0x1a70] sm:$0xff]
  %v868 = vld [vmem:[%s1 + $0x1a78] sm:$0xff]
  %v869 = vld [vmem:[%s1 + $0x1a80] sm:$0xff]
  %v870 = vld [vmem:[%s1 + $0x1a88] sm:$0xff]
  %v871 = vld [vmem:[%s1 + $0x1a90] sm:$0xff]
  %v872 = vld [vmem:[%s1 + $0x1a98] sm:$0xff]
  %v873 = vld [vmem:[%s1 + $0x1aa0] sm:$0xff]
  %v874 = vld [vmem:[%s1 + $0x1aa8] sm:$0xff]
  %v875 = vld [vmem:[%s1 + $0x1ab0] sm:$0xff]
  %v876 = vld [vmem:[%s1 + $0x1ab8] sm:$0xff]
  %v877 = vld [vmem:[%s1 + $0x1ac0] sm:$0xff]
  %v878 = vld [vmem:[%s1 + $0x1ac8] sm:$0xff]
  %v879 = vld [vmem:[%s1 + $0x1ad0] sm:$0xff]
  %v880 = vld [vmem:[%s1 + $0x1ad8] sm:$0xff]
  %v881 = vld [vmem:[%s1 + $0x1ae0] sm:$0xff]
  %v882 = vld [vmem:[%s1 + $0x1ae8] sm:$0xff]
  %v883 = vld [vmem:[%s1 + $0x1af0] sm:$0xff]
  %v884 = vld [vmem:[%s1 + $0x1af8] sm:$0xff]
  %v885 = vld [vmem:[%s1 + $0x1b00] sm:$0xff]
  %v886 = vld [vmem:[%s1 + $0x1b08] sm:$0xff]
  %v887 = vld [vmem:[%s1 + $0x1b10] sm:$0xff]
  %v888 = vld [vmem:[%s1 + $0x1b18] sm:$0xff]
  %v889 = vld [vmem:[%s1 + $0x1b20] sm:$0xff]
  %v890 = vld [vmem:[%s1 + $0x1b28] sm:$0xff]
  %v891 = vld [vmem:[%s1 + $0x1b30] sm:$0xff]
  %v892 = vld [vmem:[%s1 + $0x1b38] sm:$0xff]
  %v893 = vld [vmem:[%s1 + $0x1b40] sm:$0xff]
  %v894 = vld [vmem:[%s1 + $0x1b48] sm:$0xff]
  %v895 = vld [vmem:[%s1 + $0x1b50] sm:$0xff]
  %v896 = vld [vmem:[%s1 + $0x1b58] sm:$0xff]
  %v897 = vld [vmem:[%s1 + $0x1b60] sm:$0xff]
  %v898 = vld [vmem:[%s1 + $0x1b68] sm:$0xff]
  %v899 = vld [vmem:[%s1 + $0x1b70] sm:$0xff]
  %v900 = vld [vmem:[%s1 + $0x1b78] sm:$0xff]
  %v901 = vld [vmem:[%s1 + $0x1b80] sm:$0xff]
  %v902 = vld [vmem:[%s1 + $0x1b88] sm:$0xff]
  %v903 = vld [vmem:[%s1 + $0x1b90] sm:$0xff]
  %v904 = vld [vmem:[%s1 + $0x1b98] sm:$0xff]
  %v905 = vld [vmem:[%s1 + $0x1ba0] sm:$0xff]
  %v906 = vld [vmem:[%s1 + $0x1ba8] sm:$0xff]
  %v907 = vld [vmem:[%s1 + $0x1bb0] sm:$0xff]
  %v908 = vld [vmem:[%s1 + $0x1bb8] sm:$0xff]
  %v909 = vld [vmem:[%s1 + $0x1bc0] sm:$0xff]
  %v910 = vld [vmem:[%s1 + $0x1bc8] sm:$0xff]
  %v911 = vld [vmem:[%s1 + $0x1bd0] sm:$0xff]
  %v912 = vld [vmem:[%s1 + $0x1bd8] sm:$0xff]
  %v913 = vld [vmem:[%s1 + $0x1be0] sm:$0xff]
  %v914 = vld [vmem:[%s1 + $0x1be8] sm:$0xff]
  %v915 = vld [vmem:[%s1 + $0x1bf0] sm:$0xff]
  %v916 = vld [vmem:[%s1 + $0x1bf8] sm:$0xff]
  %v917 = vld [vmem:[%s1 + $0x1c00] sm:$0xff]
  %v918 = vld [vmem:[%s1 + $0x1c08] sm:$0xff]
  %v919 = vld [vmem:[%s1 + $0x1c10] sm:$0xff]
  %v920 = vld [vmem:[%s1 + $0x1c18] sm:$0xff]
  %v921 = vld [vmem:[%s1 + $0x1c20] sm:$0xff]
  %v922 = vld [vmem:[%s1 + $0x1c28] sm:$0xff]
  %v923 = vld [vmem:[%s1 + $0x1c30] sm:$0xff]
  %v924 = vld [vmem:[%s1 + $0x1c38] sm:$0xff]
  %v925 = vld [vmem:[%s1 + $0x1c40] sm:$0xff]
  %v926 = vld [vmem:[%s1 + $0x1c48] sm:$0xff]
  %v927 = vld [vmem:[%s1 + $0x1c50] sm:$0xff]
  %v928 = vld [vmem:[%s1 + $0x1c58] sm:$0xff]
  %v929 = vld [vmem:[%s1 + $0x1c60] sm:$0xff]
  %v930 = vld [vmem:[%s1 + $0x1c68] sm:$0xff]
  %v931 = vld [vmem:[%s1 + $0x1c70] sm:$0xff]
  %v932 = vld [vmem:[%s1 + $0x1c78] sm:$0xff]
  %v933 = vld [vmem:[%s1 + $0x1c80] sm:$0xff]
  %v934 = vld [vmem:[%s1 + $0x1c88] sm:$0xff]
  %v935 = vld [vmem:[%s1 + $0x1c90] sm:$0xff]
  %v936 = vld [vmem:[%s1 + $0x1c98] sm:$0xff]
  %v937 = vld [vmem:[%s1 + $0x1ca0] sm:$0xff]
  %v938 = vld [vmem:[%s1 + $0x1ca8] sm:$0xff]
  %v939 = vld [vmem:[%s1 + $0x1cb0] sm:$0xff]
  %v940 = vld [vmem:[%s1 + $0x1cb8] sm:$0xff]
  %v941 = vld [vmem:[%s1 + $0x1cc0] sm:$0xff]
  %v942 = vld [vmem:[%s1 + $0x1cc8] sm:$0xff]
  %v943 = vld [vmem:[%s1 + $0x1cd0] sm:$0xff]
  %v944 = vld [vmem:[%s1 + $0x1cd8] sm:$0xff]
  %v945 = vld [vmem:[%s1 + $0x1ce0] sm:$0xff]
  %v946 = vld [vmem:[%s1 + $0x1ce8] sm:$0xff]
  %v947 = vld [vmem:[%s1 + $0x1cf0] sm:$0xff]
  %v948 = vld [vmem:[%s1 + $0x1cf8] sm:$0xff]
  %v949 = vld [vmem:[%s1 + $0x1d00] sm:$0xff]
  %v950 = vld [vmem:[%s1 + $0x1d08] sm:$0xff]
  %v951 = vld [vmem:[%s1 + $0x1d10] sm:$0xff]
  %v952 = vld [vmem:[%s1 + $0x1d18] sm:$0xff]
  %v953 = vld [vmem:[%s1 + $0x1d20] sm:$0xff]
  %v954 = vld [vmem:[%s1 + $0x1d28] sm:$0xff]
  %v955 = vld [vmem:[%s1 + $0x1d30] sm:$0xff]
  %v956 = vld [vmem:[%s1 + $0x1d38] sm:$0xff]
  %v957 = vld [vmem:[%s1 + $0x1d40] sm:$0xff]
  %v958 = vld [vmem:[%s1 + $0x1d48] sm:$0xff]
  %v959 = vld [vmem:[%s1 + $0x1d50] sm:$0xff]
  %v960 = vld [vmem:[%s1 + $0x1d58] sm:$0xff]
  %v961 = vld [vmem:[%s1 + $0x1d60] sm:$0xff]
  %v962 = vld [vmem:[%s1 + $0x1d68] sm:$0xff]
  %v963 = vld [vmem:[%s1 + $0x1d70] sm:$0xff]
  %v964 = vld [vmem:[%s1 + $0x1d78] sm:$0xff]
  %v965 = vld [vmem:[%s1 + $0x1d80] sm:$0xff]
  %v966 = vld [vmem:[%s1 + $0x1d88] sm:$0xff]
  %v967 = vld [vmem:[%s1 + $0x1d90] sm:$0xff]
  %v968 = vld [vmem:[%s1 + $0x1d98] sm:$0xff]
  %v969 = vld [vmem:[%s1 + $0x1da0] sm:$0xff]
  %v970 = vld [vmem:[%s1 + $0x1da8] sm:$0xff]
  %v971 = vld [vmem:[%s1 + $0x1db0] sm:$0xff]
  %v972 = vld [vmem:[%s1 + $0x1db8] sm:$0xff]
  %v973 = vld [vmem:[%s1 + $0x1dc0] sm:$0xff]
  %v974 = vld [vmem:[%s1 + $0x1dc8] sm:$0xff]
  %v975 = vld [vmem:[%s1 + $0x1dd0] sm:$0xff]
  %v976 = vld [vmem:[%s1 + $0x1dd8] sm:$0xff]
  %v977 = vld [vmem:[%s1 + $0x1de0] sm:$0xff]
  %v978 = vld [vmem:[%s1 + $0x1de8] sm:$0xff]
  %v979 = vld [vmem:[%s1 + $0x1df0] sm:$0xff]
  %v980 = vld [vmem:[%s1 + $0x1df8] sm:$0xff]
  %v981 = vld [vmem:[%s1 + $0x1e00] sm:$0xff]
  %v982 = vld [vmem:[%s1 + $0x1e08] sm:$0xff]
  %v983 = vld [vmem:[%s1 + $0x1e10] sm:$0xff]
  %v984 = vld [vmem:[%s1 + $0x1e18] sm:$0xff]
  %v985 = vld [vmem:[%s1 + $0x1e20] sm:$0xff]
  %v986 = vld [vmem:[%s1 + $0x1e28] sm:$0xff]
  %v987 = vld [vmem:[%s1 + $0x1e30] sm:$0xff]
  %v988 = vld [vmem:[%s1 + $0x1e38] sm:$0xff]
  %v989 = vld [vmem:[%s1 + $0x1e40] sm:$0xff]
  %v990 = vld [vmem:[%s1 + $0x1e48] sm:$0xff]
  %v991 = vld [vmem:[%s1 + $0x1e50] sm:$0xff]
  %v992 = vld [vmem:[%s1 + $0x1e58] sm:$0xff]
  %v993 = vld [vmem:[%s1 + $0x1e60] sm:$0xff]
  %v994 = vld [vmem:[%s1 + $0x1e68] sm:$0xff]
  %v995 = vld [vmem:[%s1 + $0x1e70] sm:$0xff]
  %v996 = vld [vmem:[%s1 + $0x1e78] sm:$0xff]
  %v997 = vld [vmem:[%s1 + $0x1e80] sm:$0xff]
  %v998 = vld [vmem:[%s1 + $0x1e88] sm:$0xff]
  %v999 = vld [vmem:[%s1 + $0x1e90] sm:$0xff]
  %v1000 = vld [vmem:[%s1 + $0x1e98] sm:$0xff]
  %v1001 = vld [vmem:[%s1 + $0x1ea0] sm:$0xff]
  %v1002 = vld [vmem:[%s1 + $0x1ea8] sm:$0xff]
  %v1003 = vld [vmem:[%s1 + $0x1eb0] sm:$0xff]
  %v1004 = vld [vmem:[%s1 + $0x1eb8] sm:$0xff]
  %v1005 = vld [vmem:[%s1 + $0x1ec0] sm:$0xff]
  %v1006 = vld [vmem:[%s1 + $0x1ec8] sm:$0xff]
  %v1007 = vld [vmem:[%s1 + $0x1ed0] sm:$0xff]
  %v1008 = vld [vmem:[%s1 + $0x1ed8] sm:$0xff]
  %v1009 = vld [vmem:[%s1 + $0x1ee0] sm:$0xff]
  %v1010 = vld [vmem:[%s1 + $0x1ee8] sm:$0xff]
  %v1011 = vld [vmem:[%s1 + $0x1ef0] sm:$0xff]
  %v1012 = vld [vmem:[%s1 + $0x1ef8] sm:$0xff]
  %v1013 = vld [vmem:[%s1 + $0x1f00] sm:$0xff]
  %v1014 = vld [vmem:[%s1 + $0x1f08] sm:$0xff]
  %v1015 = vld [vmem:[%s1 + $0x1f10] sm:$0xff]
  %v1016 = vld [vmem:[%s1 + $0x1f18] sm:$0xff]
  %v1017 = vld [vmem:[%s1 + $0x1f20] sm:$0xff]
  %v1018 = vld [vmem:[%s1 + $0x1f28] sm:$0xff]
  %v1019 = vld [vmem:[%s1 + $0x1f30] sm:$0xff]
  %v1020 = vld [vmem:[%s1 + $0x1f38] sm:$0xff]
  %v1021 = vld [vmem:[%s1 + $0x1f40] sm:$0xff]
  %v1022 = vld [vmem:[%s1 + $0x1f48] sm:$0xff]
  %v1023 = vld [vmem:[%s1 + $0x1f50] sm:$0xff]
  %v1024 = vld [vmem:[%s1 + $0x1f58] sm:$0xff]
  %v1025 = vld [vmem:[%s1 + $0x1f60] sm:$0xff]
  %v1026 = vld [vmem:[%s1 + $0x1f68] sm:$0xff]
  %v1027 = vld [vmem:[%s1 + $0x1f70] sm:$0xff]
  %v1028 = vld [vmem:[%s1 + $0x1f78] sm:$0xff]
  %v1029 = vld [vmem:[%s1 + $0x1f80] sm:$0xff]
  %v1030 = vld [vmem:[%s1 + $0x1f88] sm:$0xff]
  %v1031 = vld [vmem:[%s1 + $0x1f90] sm:$0xff]
  %v1032 = vld [vmem:[%s1 + $0x1f98] sm:$0xff]
  %v1033 = vld [vmem:[%s1 + $0x1fa0] sm:$0xff]
  %v1034 = vld [vmem:[%s1 + $0x1fa8] sm:$0xff]
  %v1035 = vld [vmem:[%s1 + $0x1fb0] sm:$0xff]
  %v1036 = vld [vmem:[%s1 + $0x1fb8] sm:$0xff]
  %v1037 = vld [vmem:[%s1 + $0x1fc0] sm:$0xff]
  %v1038 = vld [vmem:[%s1 + $0x1fc8] sm:$0xff]
  %v1039 = vld [vmem:[%s1 + $0x1fd0] sm:$0xff]
  %v1040 = vld [vmem:[%s1 + $0x1fd8] sm:$0xff]
  %v1041 = vld [vmem:[%s1 + $0x1fe0] sm:$0xff]
  %v1042 = vld [vmem:[%s1 + $0x1fe8] sm:$0xff]
  %v1043 = vld [vmem:[%s1 + $0x1ff0] sm:$0xff]
  %v1044 = vld [vmem:[%s1 + $0x1ff8] sm:$0xff]
  %v1049 = vcombine.high %v17, %v17
  %v1051 = vunpack.c.l.s4 1966171168
  %v1052 = vunpack.c.0.s8 %v1051
  %v1053 = vlaneseq
  %v1054 = vshrl.u32 %v1053, 7
  %v1055 = vsub.s32 %v1052, %v1054
  %v1056 = vrot.slane %v17, %v1055
  %v1058 = vunpack.c.l.s4 1966171168
  %v1059 = vunpack.c.0.s8 %v1058
  %v1060 = vlaneseq
  %v1061 = vshrl.u32 %v1060, 7
  %v1062 = vsub.s32 %v1059, %v1061
  %v1063 = vrot.slane %v1049, %v1062
  %v1064 = vcombine.high %v1056, %v1056
  %v1065 = vcombine.high %v1063, %v1063
  %v1067 = vunpack.c.l.s4 1966171168
  %v1068 = vunpack.c.0.s8 %v1067
  %v1069 = vlaneseq
  %v1070 = vshrl.u32 %v1069, 7
  %v1071 = vsub.s32 %v1068, %v1070
  %v1072 = vrot.slane %v1056, %v1071
  %v1074 = vunpack.c.l.s4 1966171168
  %v1075 = vunpack.c.0.s8 %v1074
  %v1076 = vlaneseq
  %v1077 = vshrl.u32 %v1076, 7
  %v1078 = vsub.s32 %v1075, %v1077
  %v1079 = vrot.slane %v1063, %v1078
  %v1081 = vunpack.c.l.s4 1966171168
  %v1082 = vunpack.c.0.s8 %v1081
  %v1083 = vlaneseq
  %v1084 = vshrl.u32 %v1083, 7
  %v1085 = vsub.s32 %v1082, %v1084
  %v1086 = vrot.slane %v1064, %v1085
  %v1088 = vunpack.c.l.s4 1966171168
  %v1089 = vunpack.c.0.s8 %v1088
  %v1090 = vlaneseq
  %v1091 = vshrl.u32 %v1090, 7
  %v1092 = vsub.s32 %v1089, %v1091
  %v1093 = vrot.slane %v1065, %v1092
  %v1094 = vcombine.high %v1072, %v1072
  %v1095 = vcombine.high %v1079, %v1079
  %v1096 = vcombine.high %v1086, %v1086
  %v1097 = vcombine.high %v1093, %v1093
  %v1098 = vcombine.high %v18, %v18
  %v1100 = vunpack.c.l.s4 1966171168
  %v1101 = vunpack.c.0.s8 %v1100
  %v1102 = vlaneseq
  %v1103 = vshrl.u32 %v1102, 7
  %v1104 = vsub.s32 %v1101, %v1103
  %v1105 = vrot.slane %v18, %v1104
  %v1107 = vunpack.c.l.s4 1966171168
  %v1108 = vunpack.c.0.s8 %v1107
  %v1109 = vlaneseq
  %v1110 = vshrl.u32 %v1109, 7
  %v1111 = vsub.s32 %v1108, %v1110
  %v1112 = vrot.slane %v1098, %v1111
  %v1113 = vcombine.high %v1105, %v1105
  %v1114 = vcombine.high %v1112, %v1112
  %v1116 = vunpack.c.l.s4 1966171168
  %v1117 = vunpack.c.0.s8 %v1116
  %v1118 = vlaneseq
  %v1119 = vshrl.u32 %v1118, 7
  %v1120 = vsub.s32 %v1117, %v1119
  %v1121 = vrot.slane %v1105, %v1120
  %v1123 = vunpack.c.l.s4 1966171168
  %v1124 = vunpack.c.0.s8 %v1123
  %v1125 = vlaneseq
  %v1126 = vshrl.u32 %v1125, 7
  %v1127 = vsub.s32 %v1124, %v1126
  %v1128 = vrot.slane %v1112, %v1127
  %v1130 = vunpack.c.l.s4 1966171168
  %v1131 = vunpack.c.0.s8 %v1130
  %v1132 = vlaneseq
  %v1133 = vshrl.u32 %v1132, 7
  %v1134 = vsub.s32 %v1131, %v1133
  %v1135 = vrot.slane %v1113, %v1134
  %v1137 = vunpack.c.l.s4 1966171168
  %v1138 = vunpack.c.0.s8 %v1137
  %v1139 = vlaneseq
  %v1140 = vshrl.u32 %v1139, 7
  %v1141 = vsub.s32 %v1138, %v1140
  %v1142 = vrot.slane %v1114, %v1141
  %v1143 = vcombine.high %v1121, %v1121
  %v1144 = vcombine.high %v1128, %v1128
  %v1145 = vcombine.high %v1135, %v1135
  %v1146 = vcombine.high %v1142, %v1142
  %v1147 = vcombine.high %v19, %v19
  %v1149 = vunpack.c.l.s4 1966171168
  %v1150 = vunpack.c.0.s8 %v1149
  %v1151 = vlaneseq
  %v1152 = vshrl.u32 %v1151, 7
  %v1153 = vsub.s32 %v1150, %v1152
  %v1154 = vrot.slane %v19, %v1153
  %v1156 = vunpack.c.l.s4 1966171168
  %v1157 = vunpack.c.0.s8 %v1156
  %v1158 = vlaneseq
  %v1159 = vshrl.u32 %v1158, 7
  %v1160 = vsub.s32 %v1157, %v1159
  %v1161 = vrot.slane %v1147, %v1160
  %v1162 = vcombine.high %v1154, %v1154
  %v1163 = vcombine.high %v1161, %v1161
  %v1165 = vunpack.c.l.s4 1966171168
  %v1166 = vunpack.c.0.s8 %v1165
  %v1167 = vlaneseq
  %v1168 = vshrl.u32 %v1167, 7
  %v1169 = vsub.s32 %v1166, %v1168
  %v1170 = vrot.slane %v1154, %v1169
  %v1172 = vunpack.c.l.s4 1966171168
  %v1173 = vunpack.c.0.s8 %v1172
  %v1174 = vlaneseq
  %v1175 = vshrl.u32 %v1174, 7
  %v1176 = vsub.s32 %v1173, %v1175
  %v1177 = vrot.slane %v1161, %v1176
  %v1179 = vunpack.c.l.s4 1966171168
  %v1180 = vunpack.c.0.s8 %v1179
  %v1181 = vlaneseq
  %v1182 = vshrl.u32 %v1181, 7
  %v1183 = vsub.s32 %v1180, %v1182
  %v1184 = vrot.slane %v1162, %v1183
  %v1186 = vunpack.c.l.s4 1966171168
  %v1187 = vunpack.c.0.s8 %v1186
  %v1188 = vlaneseq
  %v1189 = vshrl.u32 %v1188, 7
  %v1190 = vsub.s32 %v1187, %v1189
  %v1191 = vrot.slane %v1163, %v1190
  %v1192 = vcombine.high %v1170, %v1170
  %v1193 = vcombine.high %v1177, %v1177
  %v1194 = vcombine.high %v1184, %v1184
  %v1195 = vcombine.high %v1191, %v1191
  %v1196 = vcombine.high %v20, %v20
  %v1198 = vunpack.c.l.s4 1966171168
  %v1199 = vunpack.c.0.s8 %v1198
  %v1200 = vlaneseq
  %v1201 = vshrl.u32 %v1200, 7
  %v1202 = vsub.s32 %v1199, %v1201
  %v1203 = vrot.slane %v20, %v1202
  %v1205 = vunpack.c.l.s4 1966171168
  %v1206 = vunpack.c.0.s8 %v1205
  %v1207 = vlaneseq
  %v1208 = vshrl.u32 %v1207, 7
  %v1209 = vsub.s32 %v1206, %v1208
  %v1210 = vrot.slane %v1196, %v1209
  %v1211 = vcombine.high %v1203, %v1203
  %v1212 = vcombine.high %v1210, %v1210
  %v1214 = vunpack.c.l.s4 1966171168
  %v1215 = vunpack.c.0.s8 %v1214
  %v1216 = vlaneseq
  %v1217 = vshrl.u32 %v1216, 7
  %v1218 = vsub.s32 %v1215, %v1217
  %v1219 = vrot.slane %v1203, %v1218
  %v1221 = vunpack.c.l.s4 1966171168
  %v1222 = vunpack.c.0.s8 %v1221
  %v1223 = vlaneseq
  %v1224 = vshrl.u32 %v1223, 7
  %v1225 = vsub.s32 %v1222, %v1224
  %v1226 = vrot.slane %v1210, %v1225
  %v1228 = vunpack.c.l.s4 1966171168
  %v1229 = vunpack.c.0.s8 %v1228
  %v1230 = vlaneseq
  %v1231 = vshrl.u32 %v1230, 7
  %v1232 = vsub.s32 %v1229, %v1231
  %v1233 = vrot.slane %v1211, %v1232
  %v1235 = vunpack.c.l.s4 1966171168
  %v1236 = vunpack.c.0.s8 %v1235
  %v1237 = vlaneseq
  %v1238 = vshrl.u32 %v1237, 7
  %v1239 = vsub.s32 %v1236, %v1238
  %v1240 = vrot.slane %v1212, %v1239
  %v1241 = vcombine.high %v1219, %v1219
  %v1242 = vcombine.high %v1226, %v1226
  %v1243 = vcombine.high %v1233, %v1233
  %v1244 = vcombine.high %v1240, %v1240
  %v2301 = vunpack.c.l.b16 %v21
  %v2302 = vunpack.c.h.b16 %v21
  %v2303 = vunpack.c.l.b16 %v22
  %v2304 = vunpack.c.h.b16 %v22
  %v2305 = vunpack.c.l.b16 %v23
  %v2306 = vunpack.c.h.b16 %v23
  %v2307 = vunpack.c.l.b16 %v24
  %v2308 = vunpack.c.h.b16 %v24
  %v2309 = vunpack.c.l.b16 %v25
  %v2310 = vunpack.c.h.b16 %v25
  %v2311 = vunpack.c.l.b16 %v26
  %v2312 = vunpack.c.h.b16 %v26
  %v2313 = vunpack.c.l.b16 %v27
  %v2314 = vunpack.c.h.b16 %v27
  %v2315 = vunpack.c.l.b16 %v28
  %v2316 = vunpack.c.h.b16 %v28
  %v2317 = vunpack.c.l.b16 %v29
  %v2318 = vunpack.c.h.b16 %v29
  %v2319 = vunpack.c.l.b16 %v30
  %v2320 = vunpack.c.h.b16 %v30
  %v2321 = vunpack.c.l.b16 %v31
  %v2322 = vunpack.c.h.b16 %v31
  %v2323 = vunpack.c.l.b16 %v32
  %v2324 = vunpack.c.h.b16 %v32
  %v2325 = vunpack.c.l.b16 %v33
  %v2326 = vunpack.c.h.b16 %v33
  %v2327 = vunpack.c.l.b16 %v34
  %v2328 = vunpack.c.h.b16 %v34
  %v2329 = vunpack.c.l.b16 %v35
  %v2330 = vunpack.c.h.b16 %v35
  %v2331 = vunpack.c.l.b16 %v36
  %v2332 = vunpack.c.h.b16 %v36
  %v2333 = vunpack.c.l.b16 %v37
  %v2334 = vunpack.c.h.b16 %v37
  %v2335 = vunpack.c.l.b16 %v38
  %v2336 = vunpack.c.h.b16 %v38
  %v2337 = vunpack.c.l.b16 %v39
  %v2338 = vunpack.c.h.b16 %v39
  %v2339 = vunpack.c.l.b16 %v40
  %v2340 = vunpack.c.h.b16 %v40
  %v2341 = vunpack.c.l.b16 %v41
  %v2342 = vunpack.c.h.b16 %v41
  %v2343 = vunpack.c.l.b16 %v42
  %v2344 = vunpack.c.h.b16 %v42
  %v2345 = vunpack.c.l.b16 %v43
  %v2346 = vunpack.c.h.b16 %v43
  %v2347 = vunpack.c.l.b16 %v44
  %v2348 = vunpack.c.h.b16 %v44
  %v2349 = vunpack.c.l.b16 %v45
  %v2350 = vunpack.c.h.b16 %v45
  %v2351 = vunpack.c.l.b16 %v46
  %v2352 = vunpack.c.h.b16 %v46
  %v2353 = vunpack.c.l.b16 %v47
  %v2354 = vunpack.c.h.b16 %v47
  %v2355 = vunpack.c.l.b16 %v48
  %v2356 = vunpack.c.h.b16 %v48
  %v2357 = vunpack.c.l.b16 %v49
  %v2358 = vunpack.c.h.b16 %v49
  %v2359 = vunpack.c.l.b16 %v50
  %v2360 = vunpack.c.h.b16 %v50
  %v2361 = vunpack.c.l.b16 %v51
  %v2362 = vunpack.c.h.b16 %v51
  %v2363 = vunpack.c.l.b16 %v52
  %v2364 = vunpack.c.h.b16 %v52
  %v2365 = vunpack.c.l.b16 %v53
  %v2366 = vunpack.c.h.b16 %v53
  %v2367 = vunpack.c.l.b16 %v54
  %v2368 = vunpack.c.h.b16 %v54
  %v2369 = vunpack.c.l.b16 %v55
  %v2370 = vunpack.c.h.b16 %v55
  %v2371 = vunpack.c.l.b16 %v56
  %v2372 = vunpack.c.h.b16 %v56
  %v2373 = vunpack.c.l.b16 %v57
  %v2374 = vunpack.c.h.b16 %v57
  %v2375 = vunpack.c.l.b16 %v58
  %v2376 = vunpack.c.h.b16 %v58
  %v2377 = vunpack.c.l.b16 %v59
  %v2378 = vunpack.c.h.b16 %v59
  %v2379 = vunpack.c.l.b16 %v60
  %v2380 = vunpack.c.h.b16 %v60
  %v2381 = vunpack.c.l.b16 %v61
  %v2382 = vunpack.c.h.b16 %v61
  %v2383 = vunpack.c.l.b16 %v62
  %v2384 = vunpack.c.h.b16 %v62
  %v2385 = vunpack.c.l.b16 %v63
  %v2386 = vunpack.c.h.b16 %v63
  %v2387 = vunpack.c.l.b16 %v64
  %v2388 = vunpack.c.h.b16 %v64
  %v2389 = vunpack.c.l.b16 %v65
  %v2390 = vunpack.c.h.b16 %v65
  %v2391 = vunpack.c.l.b16 %v66
  %v2392 = vunpack.c.h.b16 %v66
  %v2393 = vunpack.c.l.b16 %v67
  %v2394 = vunpack.c.h.b16 %v67
  %v2395 = vunpack.c.l.b16 %v68
  %v2396 = vunpack.c.h.b16 %v68
  %v2397 = vunpack.c.l.b16 %v69
  %v2398 = vunpack.c.h.b16 %v69
  %v2399 = vunpack.c.l.b16 %v70
  %v2400 = vunpack.c.h.b16 %v70
  %v2401 = vunpack.c.l.b16 %v71
  %v2402 = vunpack.c.h.b16 %v71
  %v2403 = vunpack.c.l.b16 %v72
  %v2404 = vunpack.c.h.b16 %v72
  %v2405 = vunpack.c.l.b16 %v73
  %v2406 = vunpack.c.h.b16 %v73
  %v2407 = vunpack.c.l.b16 %v74
  %v2408 = vunpack.c.h.b16 %v74
  %v2409 = vunpack.c.l.b16 %v75
  %v2410 = vunpack.c.h.b16 %v75
  %v2411 = vunpack.c.l.b16 %v76
  %v2412 = vunpack.c.h.b16 %v76
  %v2413 = vunpack.c.l.b16 %v77
  %v2414 = vunpack.c.h.b16 %v77
  %v2415 = vunpack.c.l.b16 %v78
  %v2416 = vunpack.c.h.b16 %v78
  %v2417 = vunpack.c.l.b16 %v79
  %v2418 = vunpack.c.h.b16 %v79
  %v2419 = vunpack.c.l.b16 %v80
  %v2420 = vunpack.c.h.b16 %v80
  %v2421 = vunpack.c.l.b16 %v81
  %v2422 = vunpack.c.h.b16 %v81
  %v2423 = vunpack.c.l.b16 %v82
  %v2424 = vunpack.c.h.b16 %v82
  %v2425 = vunpack.c.l.b16 %v83
  %v2426 = vunpack.c.h.b16 %v83
  %v2427 = vunpack.c.l.b16 %v84
  %v2428 = vunpack.c.h.b16 %v84
  %v2429 = vunpack.c.l.b16 %v85
  %v2430 = vunpack.c.h.b16 %v85
  %v2431 = vunpack.c.l.b16 %v86
  %v2432 = vunpack.c.h.b16 %v86
  %v2433 = vunpack.c.l.b16 %v87
  %v2434 = vunpack.c.h.b16 %v87
  %v2435 = vunpack.c.l.b16 %v88
  %v2436 = vunpack.c.h.b16 %v88
  %v2437 = vunpack.c.l.b16 %v89
  %v2438 = vunpack.c.h.b16 %v89
  %v2439 = vunpack.c.l.b16 %v90
  %v2440 = vunpack.c.h.b16 %v90
  %v2441 = vunpack.c.l.b16 %v91
  %v2442 = vunpack.c.h.b16 %v91
  %v2443 = vunpack.c.l.b16 %v92
  %v2444 = vunpack.c.h.b16 %v92
  %v2445 = vunpack.c.l.b16 %v93
  %v2446 = vunpack.c.h.b16 %v93
  %v2447 = vunpack.c.l.b16 %v94
  %v2448 = vunpack.c.h.b16 %v94
  %v2449 = vunpack.c.l.b16 %v95
  %v2450 = vunpack.c.h.b16 %v95
  %v2451 = vunpack.c.l.b16 %v96
  %v2452 = vunpack.c.h.b16 %v96
  %v2453 = vunpack.c.l.b16 %v97
  %v2454 = vunpack.c.h.b16 %v97
  %v2455 = vunpack.c.l.b16 %v98
  %v2456 = vunpack.c.h.b16 %v98
  %v2457 = vunpack.c.l.b16 %v99
  %v2458 = vunpack.c.h.b16 %v99
  %v2459 = vunpack.c.l.b16 %v100
  %v2460 = vunpack.c.h.b16 %v100
  %v2461 = vunpack.c.l.b16 %v101
  %v2462 = vunpack.c.h.b16 %v101
  %v2463 = vunpack.c.l.b16 %v102
  %v2464 = vunpack.c.h.b16 %v102
  %v2465 = vunpack.c.l.b16 %v103
  %v2466 = vunpack.c.h.b16 %v103
  %v2467 = vunpack.c.l.b16 %v104
  %v2468 = vunpack.c.h.b16 %v104
  %v2469 = vunpack.c.l.b16 %v105
  %v2470 = vunpack.c.h.b16 %v105
  %v2471 = vunpack.c.l.b16 %v106
  %v2472 = vunpack.c.h.b16 %v106
  %v2473 = vunpack.c.l.b16 %v107
  %v2474 = vunpack.c.h.b16 %v107
  %v2475 = vunpack.c.l.b16 %v108
  %v2476 = vunpack.c.h.b16 %v108
  %v2477 = vunpack.c.l.b16 %v109
  %v2478 = vunpack.c.h.b16 %v109
  %v2479 = vunpack.c.l.b16 %v110
  %v2480 = vunpack.c.h.b16 %v110
  %v2481 = vunpack.c.l.b16 %v111
  %v2482 = vunpack.c.h.b16 %v111
  %v2483 = vunpack.c.l.b16 %v112
  %v2484 = vunpack.c.h.b16 %v112
  %v2485 = vunpack.c.l.b16 %v113
  %v2486 = vunpack.c.h.b16 %v113
  %v2487 = vunpack.c.l.b16 %v114
  %v2488 = vunpack.c.h.b16 %v114
  %v2489 = vunpack.c.l.b16 %v115
  %v2490 = vunpack.c.h.b16 %v115
  %v2491 = vunpack.c.l.b16 %v116
  %v2492 = vunpack.c.h.b16 %v116
  %v2493 = vunpack.c.l.b16 %v117
  %v2494 = vunpack.c.h.b16 %v117
  %v2495 = vunpack.c.l.b16 %v118
  %v2496 = vunpack.c.h.b16 %v118
  %v2497 = vunpack.c.l.b16 %v119
  %v2498 = vunpack.c.h.b16 %v119
  %v2499 = vunpack.c.l.b16 %v120
  %v2500 = vunpack.c.h.b16 %v120
  %v2501 = vunpack.c.l.b16 %v121
  %v2502 = vunpack.c.h.b16 %v121
  %v2503 = vunpack.c.l.b16 %v122
  %v2504 = vunpack.c.h.b16 %v122
  %v2505 = vunpack.c.l.b16 %v123
  %v2506 = vunpack.c.h.b16 %v123
  %v2507 = vunpack.c.l.b16 %v124
  %v2508 = vunpack.c.h.b16 %v124
  %v2509 = vunpack.c.l.b16 %v125
  %v2510 = vunpack.c.h.b16 %v125
  %v2511 = vunpack.c.l.b16 %v126
  %v2512 = vunpack.c.h.b16 %v126
  %v2513 = vunpack.c.l.b16 %v127
  %v2514 = vunpack.c.h.b16 %v127
  %v2515 = vunpack.c.l.b16 %v128
  %v2516 = vunpack.c.h.b16 %v128
  %v2517 = vunpack.c.l.b16 %v129
  %v2518 = vunpack.c.h.b16 %v129
  %v2519 = vunpack.c.l.b16 %v130
  %v2520 = vunpack.c.h.b16 %v130
  %v2521 = vunpack.c.l.b16 %v131
  %v2522 = vunpack.c.h.b16 %v131
  %v2523 = vunpack.c.l.b16 %v132
  %v2524 = vunpack.c.h.b16 %v132
  %v2525 = vunpack.c.l.b16 %v133
  %v2526 = vunpack.c.h.b16 %v133
  %v2527 = vunpack.c.l.b16 %v134
  %v2528 = vunpack.c.h.b16 %v134
  %v2529 = vunpack.c.l.b16 %v135
  %v2530 = vunpack.c.h.b16 %v135
  %v2531 = vunpack.c.l.b16 %v136
  %v2532 = vunpack.c.h.b16 %v136
  %v2533 = vunpack.c.l.b16 %v137
  %v2534 = vunpack.c.h.b16 %v137
  %v2535 = vunpack.c.l.b16 %v138
  %v2536 = vunpack.c.h.b16 %v138
  %v2537 = vunpack.c.l.b16 %v139
  %v2538 = vunpack.c.h.b16 %v139
  %v2539 = vunpack.c.l.b16 %v140
  %v2540 = vunpack.c.h.b16 %v140
  %v2541 = vunpack.c.l.b16 %v141
  %v2542 = vunpack.c.h.b16 %v141
  %v2543 = vunpack.c.l.b16 %v142
  %v2544 = vunpack.c.h.b16 %v142
  %v2545 = vunpack.c.l.b16 %v143
  %v2546 = vunpack.c.h.b16 %v143
  %v2547 = vunpack.c.l.b16 %v144
  %v2548 = vunpack.c.h.b16 %v144
  %v2549 = vunpack.c.l.b16 %v145
  %v2550 = vunpack.c.h.b16 %v145
  %v2551 = vunpack.c.l.b16 %v146
  %v2552 = vunpack.c.h.b16 %v146
  %v2553 = vunpack.c.l.b16 %v147
  %v2554 = vunpack.c.h.b16 %v147
  %v2555 = vunpack.c.l.b16 %v148
  %v2556 = vunpack.c.h.b16 %v148
  %v2557 = vunpack.c.l.b16 %v149
  %v2558 = vunpack.c.h.b16 %v149
  %v2559 = vunpack.c.l.b16 %v150
  %v2560 = vunpack.c.h.b16 %v150
  %v2561 = vunpack.c.l.b16 %v151
  %v2562 = vunpack.c.h.b16 %v151
  %v2563 = vunpack.c.l.b16 %v152
  %v2564 = vunpack.c.h.b16 %v152
  %v2565 = vunpack.c.l.b16 %v153
  %v2566 = vunpack.c.h.b16 %v153
  %v2567 = vunpack.c.l.b16 %v154
  %v2568 = vunpack.c.h.b16 %v154
  %v2569 = vunpack.c.l.b16 %v155
  %v2570 = vunpack.c.h.b16 %v155
  %v2571 = vunpack.c.l.b16 %v156
  %v2572 = vunpack.c.h.b16 %v156
  %v2573 = vunpack.c.l.b16 %v157
  %v2574 = vunpack.c.h.b16 %v157
  %v2575 = vunpack.c.l.b16 %v158
  %v2576 = vunpack.c.h.b16 %v158
  %v2577 = vunpack.c.l.b16 %v159
  %v2578 = vunpack.c.h.b16 %v159
  %v2579 = vunpack.c.l.b16 %v160
  %v2580 = vunpack.c.h.b16 %v160
  %v2581 = vunpack.c.l.b16 %v161
  %v2582 = vunpack.c.h.b16 %v161
  %v2583 = vunpack.c.l.b16 %v162
  %v2584 = vunpack.c.h.b16 %v162
  %v2585 = vunpack.c.l.b16 %v163
  %v2586 = vunpack.c.h.b16 %v163
  %v2587 = vunpack.c.l.b16 %v164
  %v2588 = vunpack.c.h.b16 %v164
  %v2589 = vunpack.c.l.b16 %v165
  %v2590 = vunpack.c.h.b16 %v165
  %v2591 = vunpack.c.l.b16 %v166
  %v2592 = vunpack.c.h.b16 %v166
  %v2593 = vunpack.c.l.b16 %v167
  %v2594 = vunpack.c.h.b16 %v167
  %v2595 = vunpack.c.l.b16 %v168
  %v2596 = vunpack.c.h.b16 %v168
  %v2597 = vunpack.c.l.b16 %v169
  %v2598 = vunpack.c.h.b16 %v169
  %v2599 = vunpack.c.l.b16 %v170
  %v2600 = vunpack.c.h.b16 %v170
  %v2601 = vunpack.c.l.b16 %v171
  %v2602 = vunpack.c.h.b16 %v171
  %v2603 = vunpack.c.l.b16 %v172
  %v2604 = vunpack.c.h.b16 %v172
  %v2605 = vunpack.c.l.b16 %v173
  %v2606 = vunpack.c.h.b16 %v173
  %v2607 = vunpack.c.l.b16 %v174
  %v2608 = vunpack.c.h.b16 %v174
  %v2609 = vunpack.c.l.b16 %v175
  %v2610 = vunpack.c.h.b16 %v175
  %v2611 = vunpack.c.l.b16 %v176
  %v2612 = vunpack.c.h.b16 %v176
  %v2613 = vunpack.c.l.b16 %v177
  %v2614 = vunpack.c.h.b16 %v177
  %v2615 = vunpack.c.l.b16 %v178
  %v2616 = vunpack.c.h.b16 %v178
  %v2617 = vunpack.c.l.b16 %v179
  %v2618 = vunpack.c.h.b16 %v179
  %v2619 = vunpack.c.l.b16 %v180
  %v2620 = vunpack.c.h.b16 %v180
  %v2621 = vunpack.c.l.b16 %v181
  %v2622 = vunpack.c.h.b16 %v181
  %v2623 = vunpack.c.l.b16 %v182
  %v2624 = vunpack.c.h.b16 %v182
  %v2625 = vunpack.c.l.b16 %v183
  %v2626 = vunpack.c.h.b16 %v183
  %v2627 = vunpack.c.l.b16 %v184
  %v2628 = vunpack.c.h.b16 %v184
  %v2629 = vunpack.c.l.b16 %v185
  %v2630 = vunpack.c.h.b16 %v185
  %v2631 = vunpack.c.l.b16 %v186
  %v2632 = vunpack.c.h.b16 %v186
  %v2633 = vunpack.c.l.b16 %v187
  %v2634 = vunpack.c.h.b16 %v187
  %v2635 = vunpack.c.l.b16 %v188
  %v2636 = vunpack.c.h.b16 %v188
  %v2637 = vunpack.c.l.b16 %v189
  %v2638 = vunpack.c.h.b16 %v189
  %v2639 = vunpack.c.l.b16 %v190
  %v2640 = vunpack.c.h.b16 %v190
  %v2641 = vunpack.c.l.b16 %v191
  %v2642 = vunpack.c.h.b16 %v191
  %v2643 = vunpack.c.l.b16 %v192
  %v2644 = vunpack.c.h.b16 %v192
  %v2645 = vunpack.c.l.b16 %v193
  %v2646 = vunpack.c.h.b16 %v193
  %v2647 = vunpack.c.l.b16 %v194
  %v2648 = vunpack.c.h.b16 %v194
  %v2649 = vunpack.c.l.b16 %v195
  %v2650 = vunpack.c.h.b16 %v195
  %v2651 = vunpack.c.l.b16 %v196
  %v2652 = vunpack.c.h.b16 %v196
  %v2653 = vunpack.c.l.b16 %v197
  %v2654 = vunpack.c.h.b16 %v197
  %v2655 = vunpack.c.l.b16 %v198
  %v2656 = vunpack.c.h.b16 %v198
  %v2657 = vunpack.c.l.b16 %v199
  %v2658 = vunpack.c.h.b16 %v199
  %v2659 = vunpack.c.l.b16 %v200
  %v2660 = vunpack.c.h.b16 %v200
  %v2661 = vunpack.c.l.b16 %v201
  %v2662 = vunpack.c.h.b16 %v201
  %v2663 = vunpack.c.l.b16 %v202
  %v2664 = vunpack.c.h.b16 %v202
  %v2665 = vunpack.c.l.b16 %v203
  %v2666 = vunpack.c.h.b16 %v203
  %v2667 = vunpack.c.l.b16 %v204
  %v2668 = vunpack.c.h.b16 %v204
  %v2669 = vunpack.c.l.b16 %v205
  %v2670 = vunpack.c.h.b16 %v205
  %v2671 = vunpack.c.l.b16 %v206
  %v2672 = vunpack.c.h.b16 %v206
  %v2673 = vunpack.c.l.b16 %v207
  %v2674 = vunpack.c.h.b16 %v207
  %v2675 = vunpack.c.l.b16 %v208
  %v2676 = vunpack.c.h.b16 %v208
  %v2677 = vunpack.c.l.b16 %v209
  %v2678 = vunpack.c.h.b16 %v209
  %v2679 = vunpack.c.l.b16 %v210
  %v2680 = vunpack.c.h.b16 %v210
  %v2681 = vunpack.c.l.b16 %v211
  %v2682 = vunpack.c.h.b16 %v211
  %v2683 = vunpack.c.l.b16 %v212
  %v2684 = vunpack.c.h.b16 %v212
  %v2685 = vunpack.c.l.b16 %v213
  %v2686 = vunpack.c.h.b16 %v213
  %v2687 = vunpack.c.l.b16 %v214
  %v2688 = vunpack.c.h.b16 %v214
  %v2689 = vunpack.c.l.b16 %v215
  %v2690 = vunpack.c.h.b16 %v215
  %v2691 = vunpack.c.l.b16 %v216
  %v2692 = vunpack.c.h.b16 %v216
  %v2693 = vunpack.c.l.b16 %v217
  %v2694 = vunpack.c.h.b16 %v217
  %v2695 = vunpack.c.l.b16 %v218
  %v2696 = vunpack.c.h.b16 %v218
  %v2697 = vunpack.c.l.b16 %v219
  %v2698 = vunpack.c.h.b16 %v219
  %v2699 = vunpack.c.l.b16 %v220
  %v2700 = vunpack.c.h.b16 %v220
  %v2701 = vunpack.c.l.b16 %v221
  %v2702 = vunpack.c.h.b16 %v221
  %v2703 = vunpack.c.l.b16 %v222
  %v2704 = vunpack.c.h.b16 %v222
  %v2705 = vunpack.c.l.b16 %v223
  %v2706 = vunpack.c.h.b16 %v223
  %v2707 = vunpack.c.l.b16 %v224
  %v2708 = vunpack.c.h.b16 %v224
  %v2709 = vunpack.c.l.b16 %v225
  %v2710 = vunpack.c.h.b16 %v225
  %v2711 = vunpack.c.l.b16 %v226
  %v2712 = vunpack.c.h.b16 %v226
  %v2713 = vunpack.c.l.b16 %v227
  %v2714 = vunpack.c.h.b16 %v227
  %v2715 = vunpack.c.l.b16 %v228
  %v2716 = vunpack.c.h.b16 %v228
  %v2717 = vunpack.c.l.b16 %v229
  %v2718 = vunpack.c.h.b16 %v229
  %v2719 = vunpack.c.l.b16 %v230
  %v2720 = vunpack.c.h.b16 %v230
  %v2721 = vunpack.c.l.b16 %v231
  %v2722 = vunpack.c.h.b16 %v231
  %v2723 = vunpack.c.l.b16 %v232
  %v2724 = vunpack.c.h.b16 %v232
  %v2725 = vunpack.c.l.b16 %v233
  %v2726 = vunpack.c.h.b16 %v233
  %v2727 = vunpack.c.l.b16 %v234
  %v2728 = vunpack.c.h.b16 %v234
  %v2729 = vunpack.c.l.b16 %v235
  %v2730 = vunpack.c.h.b16 %v235
  %v2731 = vunpack.c.l.b16 %v236
  %v2732 = vunpack.c.h.b16 %v236
  %v2733 = vunpack.c.l.b16 %v237
  %v2734 = vunpack.c.h.b16 %v237
  %v2735 = vunpack.c.l.b16 %v238
  %v2736 = vunpack.c.h.b16 %v238
  %v2737 = vunpack.c.l.b16 %v239
  %v2738 = vunpack.c.h.b16 %v239
  %v2739 = vunpack.c.l.b16 %v240
  %v2740 = vunpack.c.h.b16 %v240
  %v2741 = vunpack.c.l.b16 %v241
  %v2742 = vunpack.c.h.b16 %v241
  %v2743 = vunpack.c.l.b16 %v242
  %v2744 = vunpack.c.h.b16 %v242
  %v2745 = vunpack.c.l.b16 %v243
  %v2746 = vunpack.c.h.b16 %v243
  %v2747 = vunpack.c.l.b16 %v244
  %v2748 = vunpack.c.h.b16 %v244
  %v2749 = vunpack.c.l.b16 %v245
  %v2750 = vunpack.c.h.b16 %v245
  %v2751 = vunpack.c.l.b16 %v246
  %v2752 = vunpack.c.h.b16 %v246
  %v2753 = vunpack.c.l.b16 %v247
  %v2754 = vunpack.c.h.b16 %v247
  %v2755 = vunpack.c.l.b16 %v248
  %v2756 = vunpack.c.h.b16 %v248
  %v2757 = vunpack.c.l.b16 %v249
  %v2758 = vunpack.c.h.b16 %v249
  %v2759 = vunpack.c.l.b16 %v250
  %v2760 = vunpack.c.h.b16 %v250
  %v2761 = vunpack.c.l.b16 %v251
  %v2762 = vunpack.c.h.b16 %v251
  %v2763 = vunpack.c.l.b16 %v252
  %v2764 = vunpack.c.h.b16 %v252
  %v2765 = vunpack.c.l.b16 %v253
  %v2766 = vunpack.c.h.b16 %v253
  %v2767 = vunpack.c.l.b16 %v254
  %v2768 = vunpack.c.h.b16 %v254
  %v2769 = vunpack.c.l.b16 %v255
  %v2770 = vunpack.c.h.b16 %v255
  %v2771 = vunpack.c.l.b16 %v256
  %v2772 = vunpack.c.h.b16 %v256
  %v2773 = vunpack.c.l.b16 %v257
  %v2774 = vunpack.c.h.b16 %v257
  %v2775 = vunpack.c.l.b16 %v258
  %v2776 = vunpack.c.h.b16 %v258
  %v2777 = vunpack.c.l.b16 %v259
  %v2778 = vunpack.c.h.b16 %v259
  %v2779 = vunpack.c.l.b16 %v260
  %v2780 = vunpack.c.h.b16 %v260
  %v2781 = vunpack.c.l.b16 %v261
  %v2782 = vunpack.c.h.b16 %v261
  %v2783 = vunpack.c.l.b16 %v262
  %v2784 = vunpack.c.h.b16 %v262
  %v2785 = vunpack.c.l.b16 %v263
  %v2786 = vunpack.c.h.b16 %v263
  %v2787 = vunpack.c.l.b16 %v264
  %v2788 = vunpack.c.h.b16 %v264
  %v2789 = vunpack.c.l.b16 %v265
  %v2790 = vunpack.c.h.b16 %v265
  %v2791 = vunpack.c.l.b16 %v266
  %v2792 = vunpack.c.h.b16 %v266
  %v2793 = vunpack.c.l.b16 %v267
  %v2794 = vunpack.c.h.b16 %v267
  %v2795 = vunpack.c.l.b16 %v268
  %v2796 = vunpack.c.h.b16 %v268
  %v2797 = vunpack.c.l.b16 %v269
  %v2798 = vunpack.c.h.b16 %v269
  %v2799 = vunpack.c.l.b16 %v270
  %v2800 = vunpack.c.h.b16 %v270
  %v2801 = vunpack.c.l.b16 %v271
  %v2802 = vunpack.c.h.b16 %v271
  %v2803 = vunpack.c.l.b16 %v272
  %v2804 = vunpack.c.h.b16 %v272
  %v2805 = vunpack.c.l.b16 %v273
  %v2806 = vunpack.c.h.b16 %v273
  %v2807 = vunpack.c.l.b16 %v274
  %v2808 = vunpack.c.h.b16 %v274
  %v2809 = vunpack.c.l.b16 %v275
  %v2810 = vunpack.c.h.b16 %v275
  %v2811 = vunpack.c.l.b16 %v276
  %v2812 = vunpack.c.h.b16 %v276
  %v2813 = vunpack.c.l.b16 %v277
  %v2814 = vunpack.c.h.b16 %v277
  %v2815 = vunpack.c.l.b16 %v278
  %v2816 = vunpack.c.h.b16 %v278
  %v2817 = vunpack.c.l.b16 %v279
  %v2818 = vunpack.c.h.b16 %v279
  %v2819 = vunpack.c.l.b16 %v280
  %v2820 = vunpack.c.h.b16 %v280
  %v2821 = vunpack.c.l.b16 %v281
  %v2822 = vunpack.c.h.b16 %v281
  %v2823 = vunpack.c.l.b16 %v282
  %v2824 = vunpack.c.h.b16 %v282
  %v2825 = vunpack.c.l.b16 %v283
  %v2826 = vunpack.c.h.b16 %v283
  %v2827 = vunpack.c.l.b16 %v284
  %v2828 = vunpack.c.h.b16 %v284
  %v2829 = vunpack.c.l.b16 %v285
  %v2830 = vunpack.c.h.b16 %v285
  %v2831 = vunpack.c.l.b16 %v286
  %v2832 = vunpack.c.h.b16 %v286
  %v2833 = vunpack.c.l.b16 %v287
  %v2834 = vunpack.c.h.b16 %v287
  %v2835 = vunpack.c.l.b16 %v288
  %v2836 = vunpack.c.h.b16 %v288
  %v2837 = vunpack.c.l.b16 %v289
  %v2838 = vunpack.c.h.b16 %v289
  %v2839 = vunpack.c.l.b16 %v290
  %v2840 = vunpack.c.h.b16 %v290
  %v2841 = vunpack.c.l.b16 %v291
  %v2842 = vunpack.c.h.b16 %v291
  %v2843 = vunpack.c.l.b16 %v292
  %v2844 = vunpack.c.h.b16 %v292
  %v2845 = vunpack.c.l.b16 %v293
  %v2846 = vunpack.c.h.b16 %v293
  %v2847 = vunpack.c.l.b16 %v294
  %v2848 = vunpack.c.h.b16 %v294
  %v2849 = vunpack.c.l.b16 %v295
  %v2850 = vunpack.c.h.b16 %v295
  %v2851 = vunpack.c.l.b16 %v296
  %v2852 = vunpack.c.h.b16 %v296
  %v2853 = vunpack.c.l.b16 %v297
  %v2854 = vunpack.c.h.b16 %v297
  %v2855 = vunpack.c.l.b16 %v298
  %v2856 = vunpack.c.h.b16 %v298
  %v2857 = vunpack.c.l.b16 %v299
  %v2858 = vunpack.c.h.b16 %v299
  %v2859 = vunpack.c.l.b16 %v300
  %v2860 = vunpack.c.h.b16 %v300
  %v2861 = vunpack.c.l.b16 %v301
  %v2862 = vunpack.c.h.b16 %v301
  %v2863 = vunpack.c.l.b16 %v302
  %v2864 = vunpack.c.h.b16 %v302
  %v2865 = vunpack.c.l.b16 %v303
  %v2866 = vunpack.c.h.b16 %v303
  %v2867 = vunpack.c.l.b16 %v304
  %v2868 = vunpack.c.h.b16 %v304
  %v2869 = vunpack.c.l.b16 %v305
  %v2870 = vunpack.c.h.b16 %v305
  %v2871 = vunpack.c.l.b16 %v306
  %v2872 = vunpack.c.h.b16 %v306
  %v2873 = vunpack.c.l.b16 %v307
  %v2874 = vunpack.c.h.b16 %v307
  %v2875 = vunpack.c.l.b16 %v308
  %v2876 = vunpack.c.h.b16 %v308
  %v2877 = vunpack.c.l.b16 %v309
  %v2878 = vunpack.c.h.b16 %v309
  %v2879 = vunpack.c.l.b16 %v310
  %v2880 = vunpack.c.h.b16 %v310
  %v2881 = vunpack.c.l.b16 %v311
  %v2882 = vunpack.c.h.b16 %v311
  %v2883 = vunpack.c.l.b16 %v312
  %v2884 = vunpack.c.h.b16 %v312
  %v2885 = vunpack.c.l.b16 %v313
  %v2886 = vunpack.c.h.b16 %v313
  %v2887 = vunpack.c.l.b16 %v314
  %v2888 = vunpack.c.h.b16 %v314
  %v2889 = vunpack.c.l.b16 %v315
  %v2890 = vunpack.c.h.b16 %v315
  %v2891 = vunpack.c.l.b16 %v316
  %v2892 = vunpack.c.h.b16 %v316
  %v2893 = vunpack.c.l.b16 %v317
  %v2894 = vunpack.c.h.b16 %v317
  %v2895 = vunpack.c.l.b16 %v318
  %v2896 = vunpack.c.h.b16 %v318
  %v2897 = vunpack.c.l.b16 %v319
  %v2898 = vunpack.c.h.b16 %v319
  %v2899 = vunpack.c.l.b16 %v320
  %v2900 = vunpack.c.h.b16 %v320
  %v2901 = vunpack.c.l.b16 %v321
  %v2902 = vunpack.c.h.b16 %v321
  %v2903 = vunpack.c.l.b16 %v322
  %v2904 = vunpack.c.h.b16 %v322
  %v2905 = vunpack.c.l.b16 %v323
  %v2906 = vunpack.c.h.b16 %v323
  %v2907 = vunpack.c.l.b16 %v324
  %v2908 = vunpack.c.h.b16 %v324
  %v2909 = vunpack.c.l.b16 %v325
  %v2910 = vunpack.c.h.b16 %v325
  %v2911 = vunpack.c.l.b16 %v326
  %v2912 = vunpack.c.h.b16 %v326
  %v2913 = vunpack.c.l.b16 %v327
  %v2914 = vunpack.c.h.b16 %v327
  %v2915 = vunpack.c.l.b16 %v328
  %v2916 = vunpack.c.h.b16 %v328
  %v2917 = vunpack.c.l.b16 %v329
  %v2918 = vunpack.c.h.b16 %v329
  %v2919 = vunpack.c.l.b16 %v330
  %v2920 = vunpack.c.h.b16 %v330
  %v2921 = vunpack.c.l.b16 %v331
  %v2922 = vunpack.c.h.b16 %v331
  %v2923 = vunpack.c.l.b16 %v332
  %v2924 = vunpack.c.h.b16 %v332
  %v2925 = vunpack.c.l.b16 %v333
  %v2926 = vunpack.c.h.b16 %v333
  %v2927 = vunpack.c.l.b16 %v334
  %v2928 = vunpack.c.h.b16 %v334
  %v2929 = vunpack.c.l.b16 %v335
  %v2930 = vunpack.c.h.b16 %v335
  %v2931 = vunpack.c.l.b16 %v336
  %v2932 = vunpack.c.h.b16 %v336
  %v2933 = vunpack.c.l.b16 %v337
  %v2934 = vunpack.c.h.b16 %v337
  %v2935 = vunpack.c.l.b16 %v338
  %v2936 = vunpack.c.h.b16 %v338
  %v2937 = vunpack.c.l.b16 %v339
  %v2938 = vunpack.c.h.b16 %v339
  %v2939 = vunpack.c.l.b16 %v340
  %v2940 = vunpack.c.h.b16 %v340
  %v2941 = vunpack.c.l.b16 %v341
  %v2942 = vunpack.c.h.b16 %v341
  %v2943 = vunpack.c.l.b16 %v342
  %v2944 = vunpack.c.h.b16 %v342
  %v2945 = vunpack.c.l.b16 %v343
  %v2946 = vunpack.c.h.b16 %v343
  %v2947 = vunpack.c.l.b16 %v344
  %v2948 = vunpack.c.h.b16 %v344
  %v2949 = vunpack.c.l.b16 %v345
  %v2950 = vunpack.c.h.b16 %v345
  %v2951 = vunpack.c.l.b16 %v346
  %v2952 = vunpack.c.h.b16 %v346
  %v2953 = vunpack.c.l.b16 %v347
  %v2954 = vunpack.c.h.b16 %v347
  %v2955 = vunpack.c.l.b16 %v348
  %v2956 = vunpack.c.h.b16 %v348
  %v2957 = vunpack.c.l.b16 %v349
  %v2958 = vunpack.c.h.b16 %v349
  %v2959 = vunpack.c.l.b16 %v350
  %v2960 = vunpack.c.h.b16 %v350
  %v2961 = vunpack.c.l.b16 %v351
  %v2962 = vunpack.c.h.b16 %v351
  %v2963 = vunpack.c.l.b16 %v352
  %v2964 = vunpack.c.h.b16 %v352
  %v2965 = vunpack.c.l.b16 %v353
  %v2966 = vunpack.c.h.b16 %v353
  %v2967 = vunpack.c.l.b16 %v354
  %v2968 = vunpack.c.h.b16 %v354
  %v2969 = vunpack.c.l.b16 %v355
  %v2970 = vunpack.c.h.b16 %v355
  %v2971 = vunpack.c.l.b16 %v356
  %v2972 = vunpack.c.h.b16 %v356
  %v2973 = vunpack.c.l.b16 %v357
  %v2974 = vunpack.c.h.b16 %v357
  %v2975 = vunpack.c.l.b16 %v358
  %v2976 = vunpack.c.h.b16 %v358
  %v2977 = vunpack.c.l.b16 %v359
  %v2978 = vunpack.c.h.b16 %v359
  %v2979 = vunpack.c.l.b16 %v360
  %v2980 = vunpack.c.h.b16 %v360
  %v2981 = vunpack.c.l.b16 %v361
  %v2982 = vunpack.c.h.b16 %v361
  %v2983 = vunpack.c.l.b16 %v362
  %v2984 = vunpack.c.h.b16 %v362
  %v2985 = vunpack.c.l.b16 %v363
  %v2986 = vunpack.c.h.b16 %v363
  %v2987 = vunpack.c.l.b16 %v364
  %v2988 = vunpack.c.h.b16 %v364
  %v2989 = vunpack.c.l.b16 %v365
  %v2990 = vunpack.c.h.b16 %v365
  %v2991 = vunpack.c.l.b16 %v366
  %v2992 = vunpack.c.h.b16 %v366
  %v2993 = vunpack.c.l.b16 %v367
  %v2994 = vunpack.c.h.b16 %v367
  %v2995 = vunpack.c.l.b16 %v368
  %v2996 = vunpack.c.h.b16 %v368
  %v2997 = vunpack.c.l.b16 %v369
  %v2998 = vunpack.c.h.b16 %v369
  %v2999 = vunpack.c.l.b16 %v370
  %v3000 = vunpack.c.h.b16 %v370
  %v3001 = vunpack.c.l.b16 %v371
  %v3002 = vunpack.c.h.b16 %v371
  %v3003 = vunpack.c.l.b16 %v372
  %v3004 = vunpack.c.h.b16 %v372
  %v3005 = vunpack.c.l.b16 %v373
  %v3006 = vunpack.c.h.b16 %v373
  %v3007 = vunpack.c.l.b16 %v374
  %v3008 = vunpack.c.h.b16 %v374
  %v3009 = vunpack.c.l.b16 %v375
  %v3010 = vunpack.c.h.b16 %v375
  %v3011 = vunpack.c.l.b16 %v376
  %v3012 = vunpack.c.h.b16 %v376
  %v3013 = vunpack.c.l.b16 %v377
  %v3014 = vunpack.c.h.b16 %v377
  %v3015 = vunpack.c.l.b16 %v378
  %v3016 = vunpack.c.h.b16 %v378
  %v3017 = vunpack.c.l.b16 %v379
  %v3018 = vunpack.c.h.b16 %v379
  %v3019 = vunpack.c.l.b16 %v380
  %v3020 = vunpack.c.h.b16 %v380
  %v3021 = vunpack.c.l.b16 %v381
  %v3022 = vunpack.c.h.b16 %v381
  %v3023 = vunpack.c.l.b16 %v382
  %v3024 = vunpack.c.h.b16 %v382
  %v3025 = vunpack.c.l.b16 %v383
  %v3026 = vunpack.c.h.b16 %v383
  %v3027 = vunpack.c.l.b16 %v384
  %v3028 = vunpack.c.h.b16 %v384
  %v3029 = vunpack.c.l.b16 %v385
  %v3030 = vunpack.c.h.b16 %v385
  %v3031 = vunpack.c.l.b16 %v386
  %v3032 = vunpack.c.h.b16 %v386
  %v3033 = vunpack.c.l.b16 %v387
  %v3034 = vunpack.c.h.b16 %v387
  %v3035 = vunpack.c.l.b16 %v388
  %v3036 = vunpack.c.h.b16 %v388
  %v3037 = vunpack.c.l.b16 %v389
  %v3038 = vunpack.c.h.b16 %v389
  %v3039 = vunpack.c.l.b16 %v390
  %v3040 = vunpack.c.h.b16 %v390
  %v3041 = vunpack.c.l.b16 %v391
  %v3042 = vunpack.c.h.b16 %v391
  %v3043 = vunpack.c.l.b16 %v392
  %v3044 = vunpack.c.h.b16 %v392
  %v3045 = vunpack.c.l.b16 %v393
  %v3046 = vunpack.c.h.b16 %v393
  %v3047 = vunpack.c.l.b16 %v394
  %v3048 = vunpack.c.h.b16 %v394
  %v3049 = vunpack.c.l.b16 %v395
  %v3050 = vunpack.c.h.b16 %v395
  %v3051 = vunpack.c.l.b16 %v396
  %v3052 = vunpack.c.h.b16 %v396
  %v3053 = vunpack.c.l.b16 %v397
  %v3054 = vunpack.c.h.b16 %v397
  %v3055 = vunpack.c.l.b16 %v398
  %v3056 = vunpack.c.h.b16 %v398
  %v3057 = vunpack.c.l.b16 %v399
  %v3058 = vunpack.c.h.b16 %v399
  %v3059 = vunpack.c.l.b16 %v400
  %v3060 = vunpack.c.h.b16 %v400
  %v3061 = vunpack.c.l.b16 %v401
  %v3062 = vunpack.c.h.b16 %v401
  %v3063 = vunpack.c.l.b16 %v402
  %v3064 = vunpack.c.h.b16 %v402
  %v3065 = vunpack.c.l.b16 %v403
  %v3066 = vunpack.c.h.b16 %v403
  %v3067 = vunpack.c.l.b16 %v404
  %v3068 = vunpack.c.h.b16 %v404
  %v3069 = vunpack.c.l.b16 %v405
  %v3070 = vunpack.c.h.b16 %v405
  %v3071 = vunpack.c.l.b16 %v406
  %v3072 = vunpack.c.h.b16 %v406
  %v3073 = vunpack.c.l.b16 %v407
  %v3074 = vunpack.c.h.b16 %v407
  %v3075 = vunpack.c.l.b16 %v408
  %v3076 = vunpack.c.h.b16 %v408
  %v3077 = vunpack.c.l.b16 %v409
  %v3078 = vunpack.c.h.b16 %v409
  %v3079 = vunpack.c.l.b16 %v410
  %v3080 = vunpack.c.h.b16 %v410
  %v3081 = vunpack.c.l.b16 %v411
  %v3082 = vunpack.c.h.b16 %v411
  %v3083 = vunpack.c.l.b16 %v412
  %v3084 = vunpack.c.h.b16 %v412
  %v3085 = vunpack.c.l.b16 %v413
  %v3086 = vunpack.c.h.b16 %v413
  %v3087 = vunpack.c.l.b16 %v414
  %v3088 = vunpack.c.h.b16 %v414
  %v3089 = vunpack.c.l.b16 %v415
  %v3090 = vunpack.c.h.b16 %v415
  %v3091 = vunpack.c.l.b16 %v416
  %v3092 = vunpack.c.h.b16 %v416
  %v3093 = vunpack.c.l.b16 %v417
  %v3094 = vunpack.c.h.b16 %v417
  %v3095 = vunpack.c.l.b16 %v418
  %v3096 = vunpack.c.h.b16 %v418
  %v3097 = vunpack.c.l.b16 %v419
  %v3098 = vunpack.c.h.b16 %v419
  %v3099 = vunpack.c.l.b16 %v420
  %v3100 = vunpack.c.h.b16 %v420
  %v3101 = vunpack.c.l.b16 %v421
  %v3102 = vunpack.c.h.b16 %v421
  %v3103 = vunpack.c.l.b16 %v422
  %v3104 = vunpack.c.h.b16 %v422
  %v3105 = vunpack.c.l.b16 %v423
  %v3106 = vunpack.c.h.b16 %v423
  %v3107 = vunpack.c.l.b16 %v424
  %v3108 = vunpack.c.h.b16 %v424
  %v3109 = vunpack.c.l.b16 %v425
  %v3110 = vunpack.c.h.b16 %v425
  %v3111 = vunpack.c.l.b16 %v426
  %v3112 = vunpack.c.h.b16 %v426
  %v3113 = vunpack.c.l.b16 %v427
  %v3114 = vunpack.c.h.b16 %v427
  %v3115 = vunpack.c.l.b16 %v428
  %v3116 = vunpack.c.h.b16 %v428
  %v3117 = vunpack.c.l.b16 %v429
  %v3118 = vunpack.c.h.b16 %v429
  %v3119 = vunpack.c.l.b16 %v430
  %v3120 = vunpack.c.h.b16 %v430
  %v3121 = vunpack.c.l.b16 %v431
  %v3122 = vunpack.c.h.b16 %v431
  %v3123 = vunpack.c.l.b16 %v432
  %v3124 = vunpack.c.h.b16 %v432
  %v3125 = vunpack.c.l.b16 %v433
  %v3126 = vunpack.c.h.b16 %v433
  %v3127 = vunpack.c.l.b16 %v434
  %v3128 = vunpack.c.h.b16 %v434
  %v3129 = vunpack.c.l.b16 %v435
  %v3130 = vunpack.c.h.b16 %v435
  %v3131 = vunpack.c.l.b16 %v436
  %v3132 = vunpack.c.h.b16 %v436
  %v3133 = vunpack.c.l.b16 %v437
  %v3134 = vunpack.c.h.b16 %v437
  %v3135 = vunpack.c.l.b16 %v438
  %v3136 = vunpack.c.h.b16 %v438
  %v3137 = vunpack.c.l.b16 %v439
  %v3138 = vunpack.c.h.b16 %v439
  %v3139 = vunpack.c.l.b16 %v440
  %v3140 = vunpack.c.h.b16 %v440
  %v3141 = vunpack.c.l.b16 %v441
  %v3142 = vunpack.c.h.b16 %v441
  %v3143 = vunpack.c.l.b16 %v442
  %v3144 = vunpack.c.h.b16 %v442
  %v3145 = vunpack.c.l.b16 %v443
  %v3146 = vunpack.c.h.b16 %v443
  %v3147 = vunpack.c.l.b16 %v444
  %v3148 = vunpack.c.h.b16 %v444
  %v3149 = vunpack.c.l.b16 %v445
  %v3150 = vunpack.c.h.b16 %v445
  %v3151 = vunpack.c.l.b16 %v446
  %v3152 = vunpack.c.h.b16 %v446
  %v3153 = vunpack.c.l.b16 %v447
  %v3154 = vunpack.c.h.b16 %v447
  %v3155 = vunpack.c.l.b16 %v448
  %v3156 = vunpack.c.h.b16 %v448
  %v3157 = vunpack.c.l.b16 %v449
  %v3158 = vunpack.c.h.b16 %v449
  %v3159 = vunpack.c.l.b16 %v450
  %v3160 = vunpack.c.h.b16 %v450
  %v3161 = vunpack.c.l.b16 %v451
  %v3162 = vunpack.c.h.b16 %v451
  %v3163 = vunpack.c.l.b16 %v452
  %v3164 = vunpack.c.h.b16 %v452
  %v3165 = vunpack.c.l.b16 %v453
  %v3166 = vunpack.c.h.b16 %v453
  %v3167 = vunpack.c.l.b16 %v454
  %v3168 = vunpack.c.h.b16 %v454
  %v3169 = vunpack.c.l.b16 %v455
  %v3170 = vunpack.c.h.b16 %v455
  %v3171 = vunpack.c.l.b16 %v456
  %v3172 = vunpack.c.h.b16 %v456
  %v3173 = vunpack.c.l.b16 %v457
  %v3174 = vunpack.c.h.b16 %v457
  %v3175 = vunpack.c.l.b16 %v458
  %v3176 = vunpack.c.h.b16 %v458
  %v3177 = vunpack.c.l.b16 %v459
  %v3178 = vunpack.c.h.b16 %v459
  %v3179 = vunpack.c.l.b16 %v460
  %v3180 = vunpack.c.h.b16 %v460
  %v3181 = vunpack.c.l.b16 %v461
  %v3182 = vunpack.c.h.b16 %v461
  %v3183 = vunpack.c.l.b16 %v462
  %v3184 = vunpack.c.h.b16 %v462
  %v3185 = vunpack.c.l.b16 %v463
  %v3186 = vunpack.c.h.b16 %v463
  %v3187 = vunpack.c.l.b16 %v464
  %v3188 = vunpack.c.h.b16 %v464
  %v3189 = vunpack.c.l.b16 %v465
  %v3190 = vunpack.c.h.b16 %v465
  %v3191 = vunpack.c.l.b16 %v466
  %v3192 = vunpack.c.h.b16 %v466
  %v3193 = vunpack.c.l.b16 %v467
  %v3194 = vunpack.c.h.b16 %v467
  %v3195 = vunpack.c.l.b16 %v468
  %v3196 = vunpack.c.h.b16 %v468
  %v3197 = vunpack.c.l.b16 %v469
  %v3198 = vunpack.c.h.b16 %v469
  %v3199 = vunpack.c.l.b16 %v470
  %v3200 = vunpack.c.h.b16 %v470
  %v3201 = vunpack.c.l.b16 %v471
  %v3202 = vunpack.c.h.b16 %v471
  %v3203 = vunpack.c.l.b16 %v472
  %v3204 = vunpack.c.h.b16 %v472
  %v3205 = vunpack.c.l.b16 %v473
  %v3206 = vunpack.c.h.b16 %v473
  %v3207 = vunpack.c.l.b16 %v474
  %v3208 = vunpack.c.h.b16 %v474
  %v3209 = vunpack.c.l.b16 %v475
  %v3210 = vunpack.c.h.b16 %v475
  %v3211 = vunpack.c.l.b16 %v476
  %v3212 = vunpack.c.h.b16 %v476
  %v3213 = vunpack.c.l.b16 %v477
  %v3214 = vunpack.c.h.b16 %v477
  %v3215 = vunpack.c.l.b16 %v478
  %v3216 = vunpack.c.h.b16 %v478
  %v3217 = vunpack.c.l.b16 %v479
  %v3218 = vunpack.c.h.b16 %v479
  %v3219 = vunpack.c.l.b16 %v480
  %v3220 = vunpack.c.h.b16 %v480
  %v3221 = vunpack.c.l.b16 %v481
  %v3222 = vunpack.c.h.b16 %v481
  %v3223 = vunpack.c.l.b16 %v482
  %v3224 = vunpack.c.h.b16 %v482
  %v3225 = vunpack.c.l.b16 %v483
  %v3226 = vunpack.c.h.b16 %v483
  %v3227 = vunpack.c.l.b16 %v484
  %v3228 = vunpack.c.h.b16 %v484
  %v3229 = vunpack.c.l.b16 %v485
  %v3230 = vunpack.c.h.b16 %v485
  %v3231 = vunpack.c.l.b16 %v486
  %v3232 = vunpack.c.h.b16 %v486
  %v3233 = vunpack.c.l.b16 %v487
  %v3234 = vunpack.c.h.b16 %v487
  %v3235 = vunpack.c.l.b16 %v488
  %v3236 = vunpack.c.h.b16 %v488
  %v3237 = vunpack.c.l.b16 %v489
  %v3238 = vunpack.c.h.b16 %v489
  %v3239 = vunpack.c.l.b16 %v490
  %v3240 = vunpack.c.h.b16 %v490
  %v3241 = vunpack.c.l.b16 %v491
  %v3242 = vunpack.c.h.b16 %v491
  %v3243 = vunpack.c.l.b16 %v492
  %v3244 = vunpack.c.h.b16 %v492
  %v3245 = vunpack.c.l.b16 %v493
  %v3246 = vunpack.c.h.b16 %v493
  %v3247 = vunpack.c.l.b16 %v494
  %v3248 = vunpack.c.h.b16 %v494
  %v3249 = vunpack.c.l.b16 %v495
  %v3250 = vunpack.c.h.b16 %v495
  %v3251 = vunpack.c.l.b16 %v496
  %v3252 = vunpack.c.h.b16 %v496
  %v3253 = vunpack.c.l.b16 %v497
  %v3254 = vunpack.c.h.b16 %v497
  %v3255 = vunpack.c.l.b16 %v498
  %v3256 = vunpack.c.h.b16 %v498
  %v3257 = vunpack.c.l.b16 %v499
  %v3258 = vunpack.c.h.b16 %v499
  %v3259 = vunpack.c.l.b16 %v500
  %v3260 = vunpack.c.h.b16 %v500
  %v3261 = vunpack.c.l.b16 %v501
  %v3262 = vunpack.c.h.b16 %v501
  %v3263 = vunpack.c.l.b16 %v502
  %v3264 = vunpack.c.h.b16 %v502
  %v3265 = vunpack.c.l.b16 %v503
  %v3266 = vunpack.c.h.b16 %v503
  %v3267 = vunpack.c.l.b16 %v504
  %v3268 = vunpack.c.h.b16 %v504
  %v3269 = vunpack.c.l.b16 %v505
  %v3270 = vunpack.c.h.b16 %v505
  %v3271 = vunpack.c.l.b16 %v506
  %v3272 = vunpack.c.h.b16 %v506
  %v3273 = vunpack.c.l.b16 %v507
  %v3274 = vunpack.c.h.b16 %v507
  %v3275 = vunpack.c.l.b16 %v508
  %v3276 = vunpack.c.h.b16 %v508
  %v3277 = vunpack.c.l.b16 %v509
  %v3278 = vunpack.c.h.b16 %v509
  %v3279 = vunpack.c.l.b16 %v510
  %v3280 = vunpack.c.h.b16 %v510
  %v3281 = vunpack.c.l.b16 %v511
  %v3282 = vunpack.c.h.b16 %v511
  %v3283 = vunpack.c.l.b16 %v512
  %v3284 = vunpack.c.h.b16 %v512
  %v3285 = vunpack.c.l.b16 %v513
  %v3286 = vunpack.c.h.b16 %v513
  %v3287 = vunpack.c.l.b16 %v514
  %v3288 = vunpack.c.h.b16 %v514
  %v3289 = vunpack.c.l.b16 %v515
  %v3290 = vunpack.c.h.b16 %v515
  %v3291 = vunpack.c.l.b16 %v516
  %v3292 = vunpack.c.h.b16 %v516
  %v3293 = vunpack.c.l.b16 %v517
  %v3294 = vunpack.c.h.b16 %v517
  %v3295 = vunpack.c.l.b16 %v518
  %v3296 = vunpack.c.h.b16 %v518
  %v3297 = vunpack.c.l.b16 %v519
  %v3298 = vunpack.c.h.b16 %v519
  %v3299 = vunpack.c.l.b16 %v520
  %v3300 = vunpack.c.h.b16 %v520
  %v3301 = vunpack.c.l.b16 %v521
  %v3302 = vunpack.c.h.b16 %v521
  %v3303 = vunpack.c.l.b16 %v522
  %v3304 = vunpack.c.h.b16 %v522
  %v3305 = vunpack.c.l.b16 %v523
  %v3306 = vunpack.c.h.b16 %v523
  %v3307 = vunpack.c.l.b16 %v524
  %v3308 = vunpack.c.h.b16 %v524
  %v3309 = vunpack.c.l.b16 %v525
  %v3310 = vunpack.c.h.b16 %v525
  %v3311 = vunpack.c.l.b16 %v526
  %v3312 = vunpack.c.h.b16 %v526
  %v3313 = vunpack.c.l.b16 %v527
  %v3314 = vunpack.c.h.b16 %v527
  %v3315 = vunpack.c.l.b16 %v528
  %v3316 = vunpack.c.h.b16 %v528
  %v3317 = vunpack.c.l.b16 %v529
  %v3318 = vunpack.c.h.b16 %v529
  %v3319 = vunpack.c.l.b16 %v530
  %v3320 = vunpack.c.h.b16 %v530
  %v3321 = vunpack.c.l.b16 %v531
  %v3322 = vunpack.c.h.b16 %v531
  %v3323 = vunpack.c.l.b16 %v532
  %v3324 = vunpack.c.h.b16 %v532
  %v3325 = vunpack.c.l.b16 %v533
  %v3326 = vunpack.c.h.b16 %v533
  %v3327 = vunpack.c.l.b16 %v534
  %v3328 = vunpack.c.h.b16 %v534
  %v3329 = vunpack.c.l.b16 %v535
  %v3330 = vunpack.c.h.b16 %v535
  %v3331 = vunpack.c.l.b16 %v536
  %v3332 = vunpack.c.h.b16 %v536
  %v3333 = vunpack.c.l.b16 %v537
  %v3334 = vunpack.c.h.b16 %v537
  %v3335 = vunpack.c.l.b16 %v538
  %v3336 = vunpack.c.h.b16 %v538
  %v3337 = vunpack.c.l.b16 %v539
  %v3338 = vunpack.c.h.b16 %v539
  %v3339 = vunpack.c.l.b16 %v540
  %v3340 = vunpack.c.h.b16 %v540
  %v3341 = vunpack.c.l.b16 %v541
  %v3342 = vunpack.c.h.b16 %v541
  %v3343 = vunpack.c.l.b16 %v542
  %v3344 = vunpack.c.h.b16 %v542
  %v3345 = vunpack.c.l.b16 %v543
  %v3346 = vunpack.c.h.b16 %v543
  %v3347 = vunpack.c.l.b16 %v544
  %v3348 = vunpack.c.h.b16 %v544
  %v3349 = vunpack.c.l.b16 %v545
  %v3350 = vunpack.c.h.b16 %v545
  %v3351 = vunpack.c.l.b16 %v546
  %v3352 = vunpack.c.h.b16 %v546
  %v3353 = vunpack.c.l.b16 %v547
  %v3354 = vunpack.c.h.b16 %v547
  %v3355 = vunpack.c.l.b16 %v548
  %v3356 = vunpack.c.h.b16 %v548
  %v3357 = vunpack.c.l.b16 %v549
  %v3358 = vunpack.c.h.b16 %v549
  %v3359 = vunpack.c.l.b16 %v550
  %v3360 = vunpack.c.h.b16 %v550
  %v3361 = vunpack.c.l.b16 %v551
  %v3362 = vunpack.c.h.b16 %v551
  %v3363 = vunpack.c.l.b16 %v552
  %v3364 = vunpack.c.h.b16 %v552
  %v3365 = vunpack.c.l.b16 %v553
  %v3366 = vunpack.c.h.b16 %v553
  %v3367 = vunpack.c.l.b16 %v554
  %v3368 = vunpack.c.h.b16 %v554
  %v3369 = vunpack.c.l.b16 %v555
  %v3370 = vunpack.c.h.b16 %v555
  %v3371 = vunpack.c.l.b16 %v556
  %v3372 = vunpack.c.h.b16 %v556
  %v3373 = vunpack.c.l.b16 %v557
  %v3374 = vunpack.c.h.b16 %v557
  %v3375 = vunpack.c.l.b16 %v558
  %v3376 = vunpack.c.h.b16 %v558
  %v3377 = vunpack.c.l.b16 %v559
  %v3378 = vunpack.c.h.b16 %v559
  %v3379 = vunpack.c.l.b16 %v560
  %v3380 = vunpack.c.h.b16 %v560
  %v3381 = vunpack.c.l.b16 %v561
  %v3382 = vunpack.c.h.b16 %v561
  %v3383 = vunpack.c.l.b16 %v562
  %v3384 = vunpack.c.h.b16 %v562
  %v3385 = vunpack.c.l.b16 %v563
  %v3386 = vunpack.c.h.b16 %v563
  %v3387 = vunpack.c.l.b16 %v564
  %v3388 = vunpack.c.h.b16 %v564
  %v3389 = vunpack.c.l.b16 %v565
  %v3390 = vunpack.c.h.b16 %v565
  %v3391 = vunpack.c.l.b16 %v566
  %v3392 = vunpack.c.h.b16 %v566
  %v3393 = vunpack.c.l.b16 %v567
  %v3394 = vunpack.c.h.b16 %v567
  %v3395 = vunpack.c.l.b16 %v568
  %v3396 = vunpack.c.h.b16 %v568
  %v3397 = vunpack.c.l.b16 %v569
  %v3398 = vunpack.c.h.b16 %v569
  %v3399 = vunpack.c.l.b16 %v570
  %v3400 = vunpack.c.h.b16 %v570
  %v3401 = vunpack.c.l.b16 %v571
  %v3402 = vunpack.c.h.b16 %v571
  %v3403 = vunpack.c.l.b16 %v572
  %v3404 = vunpack.c.h.b16 %v572
  %v3405 = vunpack.c.l.b16 %v573
  %v3406 = vunpack.c.h.b16 %v573
  %v3407 = vunpack.c.l.b16 %v574
  %v3408 = vunpack.c.h.b16 %v574
  %v3409 = vunpack.c.l.b16 %v575
  %v3410 = vunpack.c.h.b16 %v575
  %v3411 = vunpack.c.l.b16 %v576
  %v3412 = vunpack.c.h.b16 %v576
  %v3413 = vunpack.c.l.b16 %v577
  %v3414 = vunpack.c.h.b16 %v577
  %v3415 = vunpack.c.l.b16 %v578
  %v3416 = vunpack.c.h.b16 %v578
  %v3417 = vunpack.c.l.b16 %v579
  %v3418 = vunpack.c.h.b16 %v579
  %v3419 = vunpack.c.l.b16 %v580
  %v3420 = vunpack.c.h.b16 %v580
  %v3421 = vunpack.c.l.b16 %v581
  %v3422 = vunpack.c.h.b16 %v581
  %v3423 = vunpack.c.l.b16 %v582
  %v3424 = vunpack.c.h.b16 %v582
  %v3425 = vunpack.c.l.b16 %v583
  %v3426 = vunpack.c.h.b16 %v583
  %v3427 = vunpack.c.l.b16 %v584
  %v3428 = vunpack.c.h.b16 %v584
  %v3429 = vunpack.c.l.b16 %v585
  %v3430 = vunpack.c.h.b16 %v585
  %v3431 = vunpack.c.l.b16 %v586
  %v3432 = vunpack.c.h.b16 %v586
  %v3433 = vunpack.c.l.b16 %v587
  %v3434 = vunpack.c.h.b16 %v587
  %v3435 = vunpack.c.l.b16 %v588
  %v3436 = vunpack.c.h.b16 %v588
  %v3437 = vunpack.c.l.b16 %v589
  %v3438 = vunpack.c.h.b16 %v589
  %v3439 = vunpack.c.l.b16 %v590
  %v3440 = vunpack.c.h.b16 %v590
  %v3441 = vunpack.c.l.b16 %v591
  %v3442 = vunpack.c.h.b16 %v591
  %v3443 = vunpack.c.l.b16 %v592
  %v3444 = vunpack.c.h.b16 %v592
  %v3445 = vunpack.c.l.b16 %v593
  %v3446 = vunpack.c.h.b16 %v593
  %v3447 = vunpack.c.l.b16 %v594
  %v3448 = vunpack.c.h.b16 %v594
  %v3449 = vunpack.c.l.b16 %v595
  %v3450 = vunpack.c.h.b16 %v595
  %v3451 = vunpack.c.l.b16 %v596
  %v3452 = vunpack.c.h.b16 %v596
  %v3453 = vunpack.c.l.b16 %v597
  %v3454 = vunpack.c.h.b16 %v597
  %v3455 = vunpack.c.l.b16 %v598
  %v3456 = vunpack.c.h.b16 %v598
  %v3457 = vunpack.c.l.b16 %v599
  %v3458 = vunpack.c.h.b16 %v599
  %v3459 = vunpack.c.l.b16 %v600
  %v3460 = vunpack.c.h.b16 %v600
  %v3461 = vunpack.c.l.b16 %v601
  %v3462 = vunpack.c.h.b16 %v601
  %v3463 = vunpack.c.l.b16 %v602
  %v3464 = vunpack.c.h.b16 %v602
  %v3465 = vunpack.c.l.b16 %v603
  %v3466 = vunpack.c.h.b16 %v603
  %v3467 = vunpack.c.l.b16 %v604
  %v3468 = vunpack.c.h.b16 %v604
  %v3469 = vunpack.c.l.b16 %v605
  %v3470 = vunpack.c.h.b16 %v605
  %v3471 = vunpack.c.l.b16 %v606
  %v3472 = vunpack.c.h.b16 %v606
  %v3473 = vunpack.c.l.b16 %v607
  %v3474 = vunpack.c.h.b16 %v607
  %v3475 = vunpack.c.l.b16 %v608
  %v3476 = vunpack.c.h.b16 %v608
  %v3477 = vunpack.c.l.b16 %v609
  %v3478 = vunpack.c.h.b16 %v609
  %v3479 = vunpack.c.l.b16 %v610
  %v3480 = vunpack.c.h.b16 %v610
  %v3481 = vunpack.c.l.b16 %v611
  %v3482 = vunpack.c.h.b16 %v611
  %v3483 = vunpack.c.l.b16 %v612
  %v3484 = vunpack.c.h.b16 %v612
  %v3485 = vunpack.c.l.b16 %v613
  %v3486 = vunpack.c.h.b16 %v613
  %v3487 = vunpack.c.l.b16 %v614
  %v3488 = vunpack.c.h.b16 %v614
  %v3489 = vunpack.c.l.b16 %v615
  %v3490 = vunpack.c.h.b16 %v615
  %v3491 = vunpack.c.l.b16 %v616
  %v3492 = vunpack.c.h.b16 %v616
  %v3493 = vunpack.c.l.b16 %v617
  %v3494 = vunpack.c.h.b16 %v617
  %v3495 = vunpack.c.l.b16 %v618
  %v3496 = vunpack.c.h.b16 %v618
  %v3497 = vunpack.c.l.b16 %v619
  %v3498 = vunpack.c.h.b16 %v619
  %v3499 = vunpack.c.l.b16 %v620
  %v3500 = vunpack.c.h.b16 %v620
  %v3501 = vunpack.c.l.b16 %v621
  %v3502 = vunpack.c.h.b16 %v621
  %v3503 = vunpack.c.l.b16 %v622
  %v3504 = vunpack.c.h.b16 %v622
  %v3505 = vunpack.c.l.b16 %v623
  %v3506 = vunpack.c.h.b16 %v623
  %v3507 = vunpack.c.l.b16 %v624
  %v3508 = vunpack.c.h.b16 %v624
  %v3509 = vunpack.c.l.b16 %v625
  %v3510 = vunpack.c.h.b16 %v625
  %v3511 = vunpack.c.l.b16 %v626
  %v3512 = vunpack.c.h.b16 %v626
  %v3513 = vunpack.c.l.b16 %v627
  %v3514 = vunpack.c.h.b16 %v627
  %v3515 = vunpack.c.l.b16 %v628
  %v3516 = vunpack.c.h.b16 %v628
  %v3517 = vunpack.c.l.b16 %v629
  %v3518 = vunpack.c.h.b16 %v629
  %v3519 = vunpack.c.l.b16 %v630
  %v3520 = vunpack.c.h.b16 %v630
  %v3521 = vunpack.c.l.b16 %v631
  %v3522 = vunpack.c.h.b16 %v631
  %v3523 = vunpack.c.l.b16 %v632
  %v3524 = vunpack.c.h.b16 %v632
  %v3525 = vunpack.c.l.b16 %v633
  %v3526 = vunpack.c.h.b16 %v633
  %v3527 = vunpack.c.l.b16 %v634
  %v3528 = vunpack.c.h.b16 %v634
  %v3529 = vunpack.c.l.b16 %v635
  %v3530 = vunpack.c.h.b16 %v635
  %v3531 = vunpack.c.l.b16 %v636
  %v3532 = vunpack.c.h.b16 %v636
  %v3533 = vunpack.c.l.b16 %v637
  %v3534 = vunpack.c.h.b16 %v637
  %v3535 = vunpack.c.l.b16 %v638
  %v3536 = vunpack.c.h.b16 %v638
  %v3537 = vunpack.c.l.b16 %v639
  %v3538 = vunpack.c.h.b16 %v639
  %v3539 = vunpack.c.l.b16 %v640
  %v3540 = vunpack.c.h.b16 %v640
  %v3541 = vunpack.c.l.b16 %v641
  %v3542 = vunpack.c.h.b16 %v641
  %v3543 = vunpack.c.l.b16 %v642
  %v3544 = vunpack.c.h.b16 %v642
  %v3545 = vunpack.c.l.b16 %v643
  %v3546 = vunpack.c.h.b16 %v643
  %v3547 = vunpack.c.l.b16 %v644
  %v3548 = vunpack.c.h.b16 %v644
  %v3549 = vunpack.c.l.b16 %v645
  %v3550 = vunpack.c.h.b16 %v645
  %v3551 = vunpack.c.l.b16 %v646
  %v3552 = vunpack.c.h.b16 %v646
  %v3553 = vunpack.c.l.b16 %v647
  %v3554 = vunpack.c.h.b16 %v647
  %v3555 = vunpack.c.l.b16 %v648
  %v3556 = vunpack.c.h.b16 %v648
  %v3557 = vunpack.c.l.b16 %v649
  %v3558 = vunpack.c.h.b16 %v649
  %v3559 = vunpack.c.l.b16 %v650
  %v3560 = vunpack.c.h.b16 %v650
  %v3561 = vunpack.c.l.b16 %v651
  %v3562 = vunpack.c.h.b16 %v651
  %v3563 = vunpack.c.l.b16 %v652
  %v3564 = vunpack.c.h.b16 %v652
  %v3565 = vunpack.c.l.b16 %v653
  %v3566 = vunpack.c.h.b16 %v653
  %v3567 = vunpack.c.l.b16 %v654
  %v3568 = vunpack.c.h.b16 %v654
  %v3569 = vunpack.c.l.b16 %v655
  %v3570 = vunpack.c.h.b16 %v655
  %v3571 = vunpack.c.l.b16 %v656
  %v3572 = vunpack.c.h.b16 %v656
  %v3573 = vunpack.c.l.b16 %v657
  %v3574 = vunpack.c.h.b16 %v657
  %v3575 = vunpack.c.l.b16 %v658
  %v3576 = vunpack.c.h.b16 %v658
  %v3577 = vunpack.c.l.b16 %v659
  %v3578 = vunpack.c.h.b16 %v659
  %v3579 = vunpack.c.l.b16 %v660
  %v3580 = vunpack.c.h.b16 %v660
  %v3581 = vunpack.c.l.b16 %v661
  %v3582 = vunpack.c.h.b16 %v661
  %v3583 = vunpack.c.l.b16 %v662
  %v3584 = vunpack.c.h.b16 %v662
  %v3585 = vunpack.c.l.b16 %v663
  %v3586 = vunpack.c.h.b16 %v663
  %v3587 = vunpack.c.l.b16 %v664
  %v3588 = vunpack.c.h.b16 %v664
  %v3589 = vunpack.c.l.b16 %v665
  %v3590 = vunpack.c.h.b16 %v665
  %v3591 = vunpack.c.l.b16 %v666
  %v3592 = vunpack.c.h.b16 %v666
  %v3593 = vunpack.c.l.b16 %v667
  %v3594 = vunpack.c.h.b16 %v667
  %v3595 = vunpack.c.l.b16 %v668
  %v3596 = vunpack.c.h.b16 %v668
  %v3597 = vunpack.c.l.b16 %v669
  %v3598 = vunpack.c.h.b16 %v669
  %v3599 = vunpack.c.l.b16 %v670
  %v3600 = vunpack.c.h.b16 %v670
  %v3601 = vunpack.c.l.b16 %v671
  %v3602 = vunpack.c.h.b16 %v671
  %v3603 = vunpack.c.l.b16 %v672
  %v3604 = vunpack.c.h.b16 %v672
  %v3605 = vunpack.c.l.b16 %v673
  %v3606 = vunpack.c.h.b16 %v673
  %v3607 = vunpack.c.l.b16 %v674
  %v3608 = vunpack.c.h.b16 %v674
  %v3609 = vunpack.c.l.b16 %v675
  %v3610 = vunpack.c.h.b16 %v675
  %v3611 = vunpack.c.l.b16 %v676
  %v3612 = vunpack.c.h.b16 %v676
  %v3613 = vunpack.c.l.b16 %v677
  %v3614 = vunpack.c.h.b16 %v677
  %v3615 = vunpack.c.l.b16 %v678
  %v3616 = vunpack.c.h.b16 %v678
  %v3617 = vunpack.c.l.b16 %v679
  %v3618 = vunpack.c.h.b16 %v679
  %v3619 = vunpack.c.l.b16 %v680
  %v3620 = vunpack.c.h.b16 %v680
  %v3621 = vunpack.c.l.b16 %v681
  %v3622 = vunpack.c.h.b16 %v681
  %v3623 = vunpack.c.l.b16 %v682
  %v3624 = vunpack.c.h.b16 %v682
  %v3625 = vunpack.c.l.b16 %v683
  %v3626 = vunpack.c.h.b16 %v683
  %v3627 = vunpack.c.l.b16 %v684
  %v3628 = vunpack.c.h.b16 %v684
  %v3629 = vunpack.c.l.b16 %v685
  %v3630 = vunpack.c.h.b16 %v685
  %v3631 = vunpack.c.l.b16 %v686
  %v3632 = vunpack.c.h.b16 %v686
  %v3633 = vunpack.c.l.b16 %v687
  %v3634 = vunpack.c.h.b16 %v687
  %v3635 = vunpack.c.l.b16 %v688
  %v3636 = vunpack.c.h.b16 %v688
  %v3637 = vunpack.c.l.b16 %v689
  %v3638 = vunpack.c.h.b16 %v689
  %v3639 = vunpack.c.l.b16 %v690
  %v3640 = vunpack.c.h.b16 %v690
  %v3641 = vunpack.c.l.b16 %v691
  %v3642 = vunpack.c.h.b16 %v691
  %v3643 = vunpack.c.l.b16 %v692
  %v3644 = vunpack.c.h.b16 %v692
  %v3645 = vunpack.c.l.b16 %v693
  %v3646 = vunpack.c.h.b16 %v693
  %v3647 = vunpack.c.l.b16 %v694
  %v3648 = vunpack.c.h.b16 %v694
  %v3649 = vunpack.c.l.b16 %v695
  %v3650 = vunpack.c.h.b16 %v695
  %v3651 = vunpack.c.l.b16 %v696
  %v3652 = vunpack.c.h.b16 %v696
  %v3653 = vunpack.c.l.b16 %v697
  %v3654 = vunpack.c.h.b16 %v697
  %v3655 = vunpack.c.l.b16 %v698
  %v3656 = vunpack.c.h.b16 %v698
  %v3657 = vunpack.c.l.b16 %v699
  %v3658 = vunpack.c.h.b16 %v699
  %v3659 = vunpack.c.l.b16 %v700
  %v3660 = vunpack.c.h.b16 %v700
  %v3661 = vunpack.c.l.b16 %v701
  %v3662 = vunpack.c.h.b16 %v701
  %v3663 = vunpack.c.l.b16 %v702
  %v3664 = vunpack.c.h.b16 %v702
  %v3665 = vunpack.c.l.b16 %v703
  %v3666 = vunpack.c.h.b16 %v703
  %v3667 = vunpack.c.l.b16 %v704
  %v3668 = vunpack.c.h.b16 %v704
  %v3669 = vunpack.c.l.b16 %v705
  %v3670 = vunpack.c.h.b16 %v705
  %v3671 = vunpack.c.l.b16 %v706
  %v3672 = vunpack.c.h.b16 %v706
  %v3673 = vunpack.c.l.b16 %v707
  %v3674 = vunpack.c.h.b16 %v707
  %v3675 = vunpack.c.l.b16 %v708
  %v3676 = vunpack.c.h.b16 %v708
  %v3677 = vunpack.c.l.b16 %v709
  %v3678 = vunpack.c.h.b16 %v709
  %v3679 = vunpack.c.l.b16 %v710
  %v3680 = vunpack.c.h.b16 %v710
  %v3681 = vunpack.c.l.b16 %v711
  %v3682 = vunpack.c.h.b16 %v711
  %v3683 = vunpack.c.l.b16 %v712
  %v3684 = vunpack.c.h.b16 %v712
  %v3685 = vunpack.c.l.b16 %v713
  %v3686 = vunpack.c.h.b16 %v713
  %v3687 = vunpack.c.l.b16 %v714
  %v3688 = vunpack.c.h.b16 %v714
  %v3689 = vunpack.c.l.b16 %v715
  %v3690 = vunpack.c.h.b16 %v715
  %v3691 = vunpack.c.l.b16 %v716
  %v3692 = vunpack.c.h.b16 %v716
  %v3693 = vunpack.c.l.b16 %v717
  %v3694 = vunpack.c.h.b16 %v717
  %v3695 = vunpack.c.l.b16 %v718
  %v3696 = vunpack.c.h.b16 %v718
  %v3697 = vunpack.c.l.b16 %v719
  %v3698 = vunpack.c.h.b16 %v719
  %v3699 = vunpack.c.l.b16 %v720
  %v3700 = vunpack.c.h.b16 %v720
  %v3701 = vunpack.c.l.b16 %v721
  %v3702 = vunpack.c.h.b16 %v721
  %v3703 = vunpack.c.l.b16 %v722
  %v3704 = vunpack.c.h.b16 %v722
  %v3705 = vunpack.c.l.b16 %v723
  %v3706 = vunpack.c.h.b16 %v723
  %v3707 = vunpack.c.l.b16 %v724
  %v3708 = vunpack.c.h.b16 %v724
  %v3709 = vunpack.c.l.b16 %v725
  %v3710 = vunpack.c.h.b16 %v725
  %v3711 = vunpack.c.l.b16 %v726
  %v3712 = vunpack.c.h.b16 %v726
  %v3713 = vunpack.c.l.b16 %v727
  %v3714 = vunpack.c.h.b16 %v727
  %v3715 = vunpack.c.l.b16 %v728
  %v3716 = vunpack.c.h.b16 %v728
  %v3717 = vunpack.c.l.b16 %v729
  %v3718 = vunpack.c.h.b16 %v729
  %v3719 = vunpack.c.l.b16 %v730
  %v3720 = vunpack.c.h.b16 %v730
  %v3721 = vunpack.c.l.b16 %v731
  %v3722 = vunpack.c.h.b16 %v731
  %v3723 = vunpack.c.l.b16 %v732
  %v3724 = vunpack.c.h.b16 %v732
  %v3725 = vunpack.c.l.b16 %v733
  %v3726 = vunpack.c.h.b16 %v733
  %v3727 = vunpack.c.l.b16 %v734
  %v3728 = vunpack.c.h.b16 %v734
  %v3729 = vunpack.c.l.b16 %v735
  %v3730 = vunpack.c.h.b16 %v735
  %v3731 = vunpack.c.l.b16 %v736
  %v3732 = vunpack.c.h.b16 %v736
  %v3733 = vunpack.c.l.b16 %v737
  %v3734 = vunpack.c.h.b16 %v737
  %v3735 = vunpack.c.l.b16 %v738
  %v3736 = vunpack.c.h.b16 %v738
  %v3737 = vunpack.c.l.b16 %v739
  %v3738 = vunpack.c.h.b16 %v739
  %v3739 = vunpack.c.l.b16 %v740
  %v3740 = vunpack.c.h.b16 %v740
  %v3741 = vunpack.c.l.b16 %v741
  %v3742 = vunpack.c.h.b16 %v741
  %v3743 = vunpack.c.l.b16 %v742
  %v3744 = vunpack.c.h.b16 %v742
  %v3745 = vunpack.c.l.b16 %v743
  %v3746 = vunpack.c.h.b16 %v743
  %v3747 = vunpack.c.l.b16 %v744
  %v3748 = vunpack.c.h.b16 %v744
  %v3749 = vunpack.c.l.b16 %v745
  %v3750 = vunpack.c.h.b16 %v745
  %v3751 = vunpack.c.l.b16 %v746
  %v3752 = vunpack.c.h.b16 %v746
  %v3753 = vunpack.c.l.b16 %v747
  %v3754 = vunpack.c.h.b16 %v747
  %v3755 = vunpack.c.l.b16 %v748
  %v3756 = vunpack.c.h.b16 %v748
  %v3757 = vunpack.c.l.b16 %v749
  %v3758 = vunpack.c.h.b16 %v749
  %v3759 = vunpack.c.l.b16 %v750
  %v3760 = vunpack.c.h.b16 %v750
  %v3761 = vunpack.c.l.b16 %v751
  %v3762 = vunpack.c.h.b16 %v751
  %v3763 = vunpack.c.l.b16 %v752
  %v3764 = vunpack.c.h.b16 %v752
  %v3765 = vunpack.c.l.b16 %v753
  %v3766 = vunpack.c.h.b16 %v753
  %v3767 = vunpack.c.l.b16 %v754
  %v3768 = vunpack.c.h.b16 %v754
  %v3769 = vunpack.c.l.b16 %v755
  %v3770 = vunpack.c.h.b16 %v755
  %v3771 = vunpack.c.l.b16 %v756
  %v3772 = vunpack.c.h.b16 %v756
  %v3773 = vunpack.c.l.b16 %v757
  %v3774 = vunpack.c.h.b16 %v757
  %v3775 = vunpack.c.l.b16 %v758
  %v3776 = vunpack.c.h.b16 %v758
  %v3777 = vunpack.c.l.b16 %v759
  %v3778 = vunpack.c.h.b16 %v759
  %v3779 = vunpack.c.l.b16 %v760
  %v3780 = vunpack.c.h.b16 %v760
  %v3781 = vunpack.c.l.b16 %v761
  %v3782 = vunpack.c.h.b16 %v761
  %v3783 = vunpack.c.l.b16 %v762
  %v3784 = vunpack.c.h.b16 %v762
  %v3785 = vunpack.c.l.b16 %v763
  %v3786 = vunpack.c.h.b16 %v763
  %v3787 = vunpack.c.l.b16 %v764
  %v3788 = vunpack.c.h.b16 %v764
  %v3789 = vunpack.c.l.b16 %v765
  %v3790 = vunpack.c.h.b16 %v765
  %v3791 = vunpack.c.l.b16 %v766
  %v3792 = vunpack.c.h.b16 %v766
  %v3793 = vunpack.c.l.b16 %v767
  %v3794 = vunpack.c.h.b16 %v767
  %v3795 = vunpack.c.l.b16 %v768
  %v3796 = vunpack.c.h.b16 %v768
  %v3797 = vunpack.c.l.b16 %v769
  %v3798 = vunpack.c.h.b16 %v769
  %v3799 = vunpack.c.l.b16 %v770
  %v3800 = vunpack.c.h.b16 %v770
  %v3801 = vunpack.c.l.b16 %v771
  %v3802 = vunpack.c.h.b16 %v771
  %v3803 = vunpack.c.l.b16 %v772
  %v3804 = vunpack.c.h.b16 %v772
  %v3805 = vunpack.c.l.b16 %v773
  %v3806 = vunpack.c.h.b16 %v773
  %v3807 = vunpack.c.l.b16 %v774
  %v3808 = vunpack.c.h.b16 %v774
  %v3809 = vunpack.c.l.b16 %v775
  %v3810 = vunpack.c.h.b16 %v775
  %v3811 = vunpack.c.l.b16 %v776
  %v3812 = vunpack.c.h.b16 %v776
  %v3813 = vunpack.c.l.b16 %v777
  %v3814 = vunpack.c.h.b16 %v777
  %v3815 = vunpack.c.l.b16 %v778
  %v3816 = vunpack.c.h.b16 %v778
  %v3817 = vunpack.c.l.b16 %v779
  %v3818 = vunpack.c.h.b16 %v779
  %v3819 = vunpack.c.l.b16 %v780
  %v3820 = vunpack.c.h.b16 %v780
  %v3821 = vunpack.c.l.b16 %v781
  %v3822 = vunpack.c.h.b16 %v781
  %v3823 = vunpack.c.l.b16 %v782
  %v3824 = vunpack.c.h.b16 %v782
  %v3825 = vunpack.c.l.b16 %v783
  %v3826 = vunpack.c.h.b16 %v783
  %v3827 = vunpack.c.l.b16 %v784
  %v3828 = vunpack.c.h.b16 %v784
  %v3829 = vunpack.c.l.b16 %v785
  %v3830 = vunpack.c.h.b16 %v785
  %v3831 = vunpack.c.l.b16 %v786
  %v3832 = vunpack.c.h.b16 %v786
  %v3833 = vunpack.c.l.b16 %v787
  %v3834 = vunpack.c.h.b16 %v787
  %v3835 = vunpack.c.l.b16 %v788
  %v3836 = vunpack.c.h.b16 %v788
  %v3837 = vunpack.c.l.b16 %v789
  %v3838 = vunpack.c.h.b16 %v789
  %v3839 = vunpack.c.l.b16 %v790
  %v3840 = vunpack.c.h.b16 %v790
  %v3841 = vunpack.c.l.b16 %v791
  %v3842 = vunpack.c.h.b16 %v791
  %v3843 = vunpack.c.l.b16 %v792
  %v3844 = vunpack.c.h.b16 %v792
  %v3845 = vunpack.c.l.b16 %v793
  %v3846 = vunpack.c.h.b16 %v793
  %v3847 = vunpack.c.l.b16 %v794
  %v3848 = vunpack.c.h.b16 %v794
  %v3849 = vunpack.c.l.b16 %v795
  %v3850 = vunpack.c.h.b16 %v795
  %v3851 = vunpack.c.l.b16 %v796
  %v3852 = vunpack.c.h.b16 %v796
  %v3853 = vunpack.c.l.b16 %v797
  %v3854 = vunpack.c.h.b16 %v797
  %v3855 = vunpack.c.l.b16 %v798
  %v3856 = vunpack.c.h.b16 %v798
  %v3857 = vunpack.c.l.b16 %v799
  %v3858 = vunpack.c.h.b16 %v799
  %v3859 = vunpack.c.l.b16 %v800
  %v3860 = vunpack.c.h.b16 %v800
  %v3861 = vunpack.c.l.b16 %v801
  %v3862 = vunpack.c.h.b16 %v801
  %v3863 = vunpack.c.l.b16 %v802
  %v3864 = vunpack.c.h.b16 %v802
  %v3865 = vunpack.c.l.b16 %v803
  %v3866 = vunpack.c.h.b16 %v803
  %v3867 = vunpack.c.l.b16 %v804
  %v3868 = vunpack.c.h.b16 %v804
  %v3869 = vunpack.c.l.b16 %v805
  %v3870 = vunpack.c.h.b16 %v805
  %v3871 = vunpack.c.l.b16 %v806
  %v3872 = vunpack.c.h.b16 %v806
  %v3873 = vunpack.c.l.b16 %v807
  %v3874 = vunpack.c.h.b16 %v807
  %v3875 = vunpack.c.l.b16 %v808
  %v3876 = vunpack.c.h.b16 %v808
  %v3877 = vunpack.c.l.b16 %v809
  %v3878 = vunpack.c.h.b16 %v809
  %v3879 = vunpack.c.l.b16 %v810
  %v3880 = vunpack.c.h.b16 %v810
  %v3881 = vunpack.c.l.b16 %v811
  %v3882 = vunpack.c.h.b16 %v811
  %v3883 = vunpack.c.l.b16 %v812
  %v3884 = vunpack.c.h.b16 %v812
  %v3885 = vunpack.c.l.b16 %v813
  %v3886 = vunpack.c.h.b16 %v813
  %v3887 = vunpack.c.l.b16 %v814
  %v3888 = vunpack.c.h.b16 %v814
  %v3889 = vunpack.c.l.b16 %v815
  %v3890 = vunpack.c.h.b16 %v815
  %v3891 = vunpack.c.l.b16 %v816
  %v3892 = vunpack.c.h.b16 %v816
  %v3893 = vunpack.c.l.b16 %v817
  %v3894 = vunpack.c.h.b16 %v817
  %v3895 = vunpack.c.l.b16 %v818
  %v3896 = vunpack.c.h.b16 %v818
  %v3897 = vunpack.c.l.b16 %v819
  %v3898 = vunpack.c.h.b16 %v819
  %v3899 = vunpack.c.l.b16 %v820
  %v3900 = vunpack.c.h.b16 %v820
  %v3901 = vunpack.c.l.b16 %v821
  %v3902 = vunpack.c.h.b16 %v821
  %v3903 = vunpack.c.l.b16 %v822
  %v3904 = vunpack.c.h.b16 %v822
  %v3905 = vunpack.c.l.b16 %v823
  %v3906 = vunpack.c.h.b16 %v823
  %v3907 = vunpack.c.l.b16 %v824
  %v3908 = vunpack.c.h.b16 %v824
  %v3909 = vunpack.c.l.b16 %v825
  %v3910 = vunpack.c.h.b16 %v825
  %v3911 = vunpack.c.l.b16 %v826
  %v3912 = vunpack.c.h.b16 %v826
  %v3913 = vunpack.c.l.b16 %v827
  %v3914 = vunpack.c.h.b16 %v827
  %v3915 = vunpack.c.l.b16 %v828
  %v3916 = vunpack.c.h.b16 %v828
  %v3917 = vunpack.c.l.b16 %v829
  %v3918 = vunpack.c.h.b16 %v829
  %v3919 = vunpack.c.l.b16 %v830
  %v3920 = vunpack.c.h.b16 %v830
  %v3921 = vunpack.c.l.b16 %v831
  %v3922 = vunpack.c.h.b16 %v831
  %v3923 = vunpack.c.l.b16 %v832
  %v3924 = vunpack.c.h.b16 %v832
  %v3925 = vunpack.c.l.b16 %v833
  %v3926 = vunpack.c.h.b16 %v833
  %v3927 = vunpack.c.l.b16 %v834
  %v3928 = vunpack.c.h.b16 %v834
  %v3929 = vunpack.c.l.b16 %v835
  %v3930 = vunpack.c.h.b16 %v835
  %v3931 = vunpack.c.l.b16 %v836
  %v3932 = vunpack.c.h.b16 %v836
  %v3933 = vunpack.c.l.b16 %v837
  %v3934 = vunpack.c.h.b16 %v837
  %v3935 = vunpack.c.l.b16 %v838
  %v3936 = vunpack.c.h.b16 %v838
  %v3937 = vunpack.c.l.b16 %v839
  %v3938 = vunpack.c.h.b16 %v839
  %v3939 = vunpack.c.l.b16 %v840
  %v3940 = vunpack.c.h.b16 %v840
  %v3941 = vunpack.c.l.b16 %v841
  %v3942 = vunpack.c.h.b16 %v841
  %v3943 = vunpack.c.l.b16 %v842
  %v3944 = vunpack.c.h.b16 %v842
  %v3945 = vunpack.c.l.b16 %v843
  %v3946 = vunpack.c.h.b16 %v843
  %v3947 = vunpack.c.l.b16 %v844
  %v3948 = vunpack.c.h.b16 %v844
  %v3949 = vunpack.c.l.b16 %v845
  %v3950 = vunpack.c.h.b16 %v845
  %v3951 = vunpack.c.l.b16 %v846
  %v3952 = vunpack.c.h.b16 %v846
  %v3953 = vunpack.c.l.b16 %v847
  %v3954 = vunpack.c.h.b16 %v847
  %v3955 = vunpack.c.l.b16 %v848
  %v3956 = vunpack.c.h.b16 %v848
  %v3957 = vunpack.c.l.b16 %v849
  %v3958 = vunpack.c.h.b16 %v849
  %v3959 = vunpack.c.l.b16 %v850
  %v3960 = vunpack.c.h.b16 %v850
  %v3961 = vunpack.c.l.b16 %v851
  %v3962 = vunpack.c.h.b16 %v851
  %v3963 = vunpack.c.l.b16 %v852
  %v3964 = vunpack.c.h.b16 %v852
  %v3965 = vunpack.c.l.b16 %v853
  %v3966 = vunpack.c.h.b16 %v853
  %v3967 = vunpack.c.l.b16 %v854
  %v3968 = vunpack.c.h.b16 %v854
  %v3969 = vunpack.c.l.b16 %v855
  %v3970 = vunpack.c.h.b16 %v855
  %v3971 = vunpack.c.l.b16 %v856
  %v3972 = vunpack.c.h.b16 %v856
  %v3973 = vunpack.c.l.b16 %v857
  %v3974 = vunpack.c.h.b16 %v857
  %v3975 = vunpack.c.l.b16 %v858
  %v3976 = vunpack.c.h.b16 %v858
  %v3977 = vunpack.c.l.b16 %v859
  %v3978 = vunpack.c.h.b16 %v859
  %v3979 = vunpack.c.l.b16 %v860
  %v3980 = vunpack.c.h.b16 %v860
  %v3981 = vunpack.c.l.b16 %v861
  %v3982 = vunpack.c.h.b16 %v861
  %v3983 = vunpack.c.l.b16 %v862
  %v3984 = vunpack.c.h.b16 %v862
  %v3985 = vunpack.c.l.b16 %v863
  %v3986 = vunpack.c.h.b16 %v863
  %v3987 = vunpack.c.l.b16 %v864
  %v3988 = vunpack.c.h.b16 %v864
  %v3989 = vunpack.c.l.b16 %v865
  %v3990 = vunpack.c.h.b16 %v865
  %v3991 = vunpack.c.l.b16 %v866
  %v3992 = vunpack.c.h.b16 %v866
  %v3993 = vunpack.c.l.b16 %v867
  %v3994 = vunpack.c.h.b16 %v867
  %v3995 = vunpack.c.l.b16 %v868
  %v3996 = vunpack.c.h.b16 %v868
  %v3997 = vunpack.c.l.b16 %v869
  %v3998 = vunpack.c.h.b16 %v869
  %v3999 = vunpack.c.l.b16 %v870
  %v4000 = vunpack.c.h.b16 %v870
  %v4001 = vunpack.c.l.b16 %v871
  %v4002 = vunpack.c.h.b16 %v871
  %v4003 = vunpack.c.l.b16 %v872
  %v4004 = vunpack.c.h.b16 %v872
  %v4005 = vunpack.c.l.b16 %v873
  %v4006 = vunpack.c.h.b16 %v873
  %v4007 = vunpack.c.l.b16 %v874
  %v4008 = vunpack.c.h.b16 %v874
  %v4009 = vunpack.c.l.b16 %v875
  %v4010 = vunpack.c.h.b16 %v875
  %v4011 = vunpack.c.l.b16 %v876
  %v4012 = vunpack.c.h.b16 %v876
  %v4013 = vunpack.c.l.b16 %v877
  %v4014 = vunpack.c.h.b16 %v877
  %v4015 = vunpack.c.l.b16 %v878
  %v4016 = vunpack.c.h.b16 %v878
  %v4017 = vunpack.c.l.b16 %v879
  %v4018 = vunpack.c.h.b16 %v879
  %v4019 = vunpack.c.l.b16 %v880
  %v4020 = vunpack.c.h.b16 %v880
  %v4021 = vunpack.c.l.b16 %v881
  %v4022 = vunpack.c.h.b16 %v881
  %v4023 = vunpack.c.l.b16 %v882
  %v4024 = vunpack.c.h.b16 %v882
  %v4025 = vunpack.c.l.b16 %v883
  %v4026 = vunpack.c.h.b16 %v883
  %v4027 = vunpack.c.l.b16 %v884
  %v4028 = vunpack.c.h.b16 %v884
  %v4029 = vunpack.c.l.b16 %v885
  %v4030 = vunpack.c.h.b16 %v885
  %v4031 = vunpack.c.l.b16 %v886
  %v4032 = vunpack.c.h.b16 %v886
  %v4033 = vunpack.c.l.b16 %v887
  %v4034 = vunpack.c.h.b16 %v887
  %v4035 = vunpack.c.l.b16 %v888
  %v4036 = vunpack.c.h.b16 %v888
  %v4037 = vunpack.c.l.b16 %v889
  %v4038 = vunpack.c.h.b16 %v889
  %v4039 = vunpack.c.l.b16 %v890
  %v4040 = vunpack.c.h.b16 %v890
  %v4041 = vunpack.c.l.b16 %v891
  %v4042 = vunpack.c.h.b16 %v891
  %v4043 = vunpack.c.l.b16 %v892
  %v4044 = vunpack.c.h.b16 %v892
  %v4045 = vunpack.c.l.b16 %v893
  %v4046 = vunpack.c.h.b16 %v893
  %v4047 = vunpack.c.l.b16 %v894
  %v4048 = vunpack.c.h.b16 %v894
  %v4049 = vunpack.c.l.b16 %v895
  %v4050 = vunpack.c.h.b16 %v895
  %v4051 = vunpack.c.l.b16 %v896
  %v4052 = vunpack.c.h.b16 %v896
  %v4053 = vunpack.c.l.b16 %v897
  %v4054 = vunpack.c.h.b16 %v897
  %v4055 = vunpack.c.l.b16 %v898
  %v4056 = vunpack.c.h.b16 %v898
  %v4057 = vunpack.c.l.b16 %v899
  %v4058 = vunpack.c.h.b16 %v899
  %v4059 = vunpack.c.l.b16 %v900
  %v4060 = vunpack.c.h.b16 %v900
  %v4061 = vunpack.c.l.b16 %v901
  %v4062 = vunpack.c.h.b16 %v901
  %v4063 = vunpack.c.l.b16 %v902
  %v4064 = vunpack.c.h.b16 %v902
  %v4065 = vunpack.c.l.b16 %v903
  %v4066 = vunpack.c.h.b16 %v903
  %v4067 = vunpack.c.l.b16 %v904
  %v4068 = vunpack.c.h.b16 %v904
  %v4069 = vunpack.c.l.b16 %v905
  %v4070 = vunpack.c.h.b16 %v905
  %v4071 = vunpack.c.l.b16 %v906
  %v4072 = vunpack.c.h.b16 %v906
  %v4073 = vunpack.c.l.b16 %v907
  %v4074 = vunpack.c.h.b16 %v907
  %v4075 = vunpack.c.l.b16 %v908
  %v4076 = vunpack.c.h.b16 %v908
  %v4077 = vunpack.c.l.b16 %v909
  %v4078 = vunpack.c.h.b16 %v909
  %v4079 = vunpack.c.l.b16 %v910
  %v4080 = vunpack.c.h.b16 %v910
  %v4081 = vunpack.c.l.b16 %v911
  %v4082 = vunpack.c.h.b16 %v911
  %v4083 = vunpack.c.l.b16 %v912
  %v4084 = vunpack.c.h.b16 %v912
  %v4085 = vunpack.c.l.b16 %v913
  %v4086 = vunpack.c.h.b16 %v913
  %v4087 = vunpack.c.l.b16 %v914
  %v4088 = vunpack.c.h.b16 %v914
  %v4089 = vunpack.c.l.b16 %v915
  %v4090 = vunpack.c.h.b16 %v915
  %v4091 = vunpack.c.l.b16 %v916
  %v4092 = vunpack.c.h.b16 %v916
  %v4093 = vunpack.c.l.b16 %v917
  %v4094 = vunpack.c.h.b16 %v917
  %v4095 = vunpack.c.l.b16 %v918
  %v4096 = vunpack.c.h.b16 %v918
  %v4097 = vunpack.c.l.b16 %v919
  %v4098 = vunpack.c.h.b16 %v919
  %v4099 = vunpack.c.l.b16 %v920
  %v4100 = vunpack.c.h.b16 %v920
  %v4101 = vunpack.c.l.b16 %v921
  %v4102 = vunpack.c.h.b16 %v921
  %v4103 = vunpack.c.l.b16 %v922
  %v4104 = vunpack.c.h.b16 %v922
  %v4105 = vunpack.c.l.b16 %v923
  %v4106 = vunpack.c.h.b16 %v923
  %v4107 = vunpack.c.l.b16 %v924
  %v4108 = vunpack.c.h.b16 %v924
  %v4109 = vunpack.c.l.b16 %v925
  %v4110 = vunpack.c.h.b16 %v925
  %v4111 = vunpack.c.l.b16 %v926
  %v4112 = vunpack.c.h.b16 %v926
  %v4113 = vunpack.c.l.b16 %v927
  %v4114 = vunpack.c.h.b16 %v927
  %v4115 = vunpack.c.l.b16 %v928
  %v4116 = vunpack.c.h.b16 %v928
  %v4117 = vunpack.c.l.b16 %v929
  %v4118 = vunpack.c.h.b16 %v929
  %v4119 = vunpack.c.l.b16 %v930
  %v4120 = vunpack.c.h.b16 %v930
  %v4121 = vunpack.c.l.b16 %v931
  %v4122 = vunpack.c.h.b16 %v931
  %v4123 = vunpack.c.l.b16 %v932
  %v4124 = vunpack.c.h.b16 %v932
  %v4125 = vunpack.c.l.b16 %v933
  %v4126 = vunpack.c.h.b16 %v933
  %v4127 = vunpack.c.l.b16 %v934
  %v4128 = vunpack.c.h.b16 %v934
  %v4129 = vunpack.c.l.b16 %v935
  %v4130 = vunpack.c.h.b16 %v935
  %v4131 = vunpack.c.l.b16 %v936
  %v4132 = vunpack.c.h.b16 %v936
  %v4133 = vunpack.c.l.b16 %v937
  %v4134 = vunpack.c.h.b16 %v937
  %v4135 = vunpack.c.l.b16 %v938
  %v4136 = vunpack.c.h.b16 %v938
  %v4137 = vunpack.c.l.b16 %v939
  %v4138 = vunpack.c.h.b16 %v939
  %v4139 = vunpack.c.l.b16 %v940
  %v4140 = vunpack.c.h.b16 %v940
  %v4141 = vunpack.c.l.b16 %v941
  %v4142 = vunpack.c.h.b16 %v941
  %v4143 = vunpack.c.l.b16 %v942
  %v4144 = vunpack.c.h.b16 %v942
  %v4145 = vunpack.c.l.b16 %v943
  %v4146 = vunpack.c.h.b16 %v943
  %v4147 = vunpack.c.l.b16 %v944
  %v4148 = vunpack.c.h.b16 %v944
  %v4149 = vunpack.c.l.b16 %v945
  %v4150 = vunpack.c.h.b16 %v945
  %v4151 = vunpack.c.l.b16 %v946
  %v4152 = vunpack.c.h.b16 %v946
  %v4153 = vunpack.c.l.b16 %v947
  %v4154 = vunpack.c.h.b16 %v947
  %v4155 = vunpack.c.l.b16 %v948
  %v4156 = vunpack.c.h.b16 %v948
  %v4157 = vunpack.c.l.b16 %v949
  %v4158 = vunpack.c.h.b16 %v949
  %v4159 = vunpack.c.l.b16 %v950
  %v4160 = vunpack.c.h.b16 %v950
  %v4161 = vunpack.c.l.b16 %v951
  %v4162 = vunpack.c.h.b16 %v951
  %v4163 = vunpack.c.l.b16 %v952
  %v4164 = vunpack.c.h.b16 %v952
  %v4165 = vunpack.c.l.b16 %v953
  %v4166 = vunpack.c.h.b16 %v953
  %v4167 = vunpack.c.l.b16 %v954
  %v4168 = vunpack.c.h.b16 %v954
  %v4169 = vunpack.c.l.b16 %v955
  %v4170 = vunpack.c.h.b16 %v955
  %v4171 = vunpack.c.l.b16 %v956
  %v4172 = vunpack.c.h.b16 %v956
  %v4173 = vunpack.c.l.b16 %v957
  %v4174 = vunpack.c.h.b16 %v957
  %v4175 = vunpack.c.l.b16 %v958
  %v4176 = vunpack.c.h.b16 %v958
  %v4177 = vunpack.c.l.b16 %v959
  %v4178 = vunpack.c.h.b16 %v959
  %v4179 = vunpack.c.l.b16 %v960
  %v4180 = vunpack.c.h.b16 %v960
  %v4181 = vunpack.c.l.b16 %v961
  %v4182 = vunpack.c.h.b16 %v961
  %v4183 = vunpack.c.l.b16 %v962
  %v4184 = vunpack.c.h.b16 %v962
  %v4185 = vunpack.c.l.b16 %v963
  %v4186 = vunpack.c.h.b16 %v963
  %v4187 = vunpack.c.l.b16 %v964
  %v4188 = vunpack.c.h.b16 %v964
  %v4189 = vunpack.c.l.b16 %v965
  %v4190 = vunpack.c.h.b16 %v965
  %v4191 = vunpack.c.l.b16 %v966
  %v4192 = vunpack.c.h.b16 %v966
  %v4193 = vunpack.c.l.b16 %v967
  %v4194 = vunpack.c.h.b16 %v967
  %v4195 = vunpack.c.l.b16 %v968
  %v4196 = vunpack.c.h.b16 %v968
  %v4197 = vunpack.c.l.b16 %v969
  %v4198 = vunpack.c.h.b16 %v969
  %v4199 = vunpack.c.l.b16 %v970
  %v4200 = vunpack.c.h.b16 %v970
  %v4201 = vunpack.c.l.b16 %v971
  %v4202 = vunpack.c.h.b16 %v971
  %v4203 = vunpack.c.l.b16 %v972
  %v4204 = vunpack.c.h.b16 %v972
  %v4205 = vunpack.c.l.b16 %v973
  %v4206 = vunpack.c.h.b16 %v973
  %v4207 = vunpack.c.l.b16 %v974
  %v4208 = vunpack.c.h.b16 %v974
  %v4209 = vunpack.c.l.b16 %v975
  %v4210 = vunpack.c.h.b16 %v975
  %v4211 = vunpack.c.l.b16 %v976
  %v4212 = vunpack.c.h.b16 %v976
  %v4213 = vunpack.c.l.b16 %v977
  %v4214 = vunpack.c.h.b16 %v977
  %v4215 = vunpack.c.l.b16 %v978
  %v4216 = vunpack.c.h.b16 %v978
  %v4217 = vunpack.c.l.b16 %v979
  %v4218 = vunpack.c.h.b16 %v979
  %v4219 = vunpack.c.l.b16 %v980
  %v4220 = vunpack.c.h.b16 %v980
  %v4221 = vunpack.c.l.b16 %v981
  %v4222 = vunpack.c.h.b16 %v981
  %v4223 = vunpack.c.l.b16 %v982
  %v4224 = vunpack.c.h.b16 %v982
  %v4225 = vunpack.c.l.b16 %v983
  %v4226 = vunpack.c.h.b16 %v983
  %v4227 = vunpack.c.l.b16 %v984
  %v4228 = vunpack.c.h.b16 %v984
  %v4229 = vunpack.c.l.b16 %v985
  %v4230 = vunpack.c.h.b16 %v985
  %v4231 = vunpack.c.l.b16 %v986
  %v4232 = vunpack.c.h.b16 %v986
  %v4233 = vunpack.c.l.b16 %v987
  %v4234 = vunpack.c.h.b16 %v987
  %v4235 = vunpack.c.l.b16 %v988
  %v4236 = vunpack.c.h.b16 %v988
  %v4237 = vunpack.c.l.b16 %v989
  %v4238 = vunpack.c.h.b16 %v989
  %v4239 = vunpack.c.l.b16 %v990
  %v4240 = vunpack.c.h.b16 %v990
  %v4241 = vunpack.c.l.b16 %v991
  %v4242 = vunpack.c.h.b16 %v991
  %v4243 = vunpack.c.l.b16 %v992
  %v4244 = vunpack.c.h.b16 %v992
  %v4245 = vunpack.c.l.b16 %v993
  %v4246 = vunpack.c.h.b16 %v993
  %v4247 = vunpack.c.l.b16 %v994
  %v4248 = vunpack.c.h.b16 %v994
  %v4249 = vunpack.c.l.b16 %v995
  %v4250 = vunpack.c.h.b16 %v995
  %v4251 = vunpack.c.l.b16 %v996
  %v4252 = vunpack.c.h.b16 %v996
  %v4253 = vunpack.c.l.b16 %v997
  %v4254 = vunpack.c.h.b16 %v997
  %v4255 = vunpack.c.l.b16 %v998
  %v4256 = vunpack.c.h.b16 %v998
  %v4257 = vunpack.c.l.b16 %v999
  %v4258 = vunpack.c.h.b16 %v999
  %v4259 = vunpack.c.l.b16 %v1000
  %v4260 = vunpack.c.h.b16 %v1000
  %v4261 = vunpack.c.l.b16 %v1001
  %v4262 = vunpack.c.h.b16 %v1001
  %v4263 = vunpack.c.l.b16 %v1002
  %v4264 = vunpack.c.h.b16 %v1002
  %v4265 = vunpack.c.l.b16 %v1003
  %v4266 = vunpack.c.h.b16 %v1003
  %v4267 = vunpack.c.l.b16 %v1004
  %v4268 = vunpack.c.h.b16 %v1004
  %v4269 = vunpack.c.l.b16 %v1005
  %v4270 = vunpack.c.h.b16 %v1005
  %v4271 = vunpack.c.l.b16 %v1006
  %v4272 = vunpack.c.h.b16 %v1006
  %v4273 = vunpack.c.l.b16 %v1007
  %v4274 = vunpack.c.h.b16 %v1007
  %v4275 = vunpack.c.l.b16 %v1008
  %v4276 = vunpack.c.h.b16 %v1008
  %v4277 = vunpack.c.l.b16 %v1009
  %v4278 = vunpack.c.h.b16 %v1009
  %v4279 = vunpack.c.l.b16 %v1010
  %v4280 = vunpack.c.h.b16 %v1010
  %v4281 = vunpack.c.l.b16 %v1011
  %v4282 = vunpack.c.h.b16 %v1011
  %v4283 = vunpack.c.l.b16 %v1012
  %v4284 = vunpack.c.h.b16 %v1012
  %v4285 = vunpack.c.l.b16 %v1013
  %v4286 = vunpack.c.h.b16 %v1013
  %v4287 = vunpack.c.l.b16 %v1014
  %v4288 = vunpack.c.h.b16 %v1014
  %v4289 = vunpack.c.l.b16 %v1015
  %v4290 = vunpack.c.h.b16 %v1015
  %v4291 = vunpack.c.l.b16 %v1016
  %v4292 = vunpack.c.h.b16 %v1016
  %v4293 = vunpack.c.l.b16 %v1017
  %v4294 = vunpack.c.h.b16 %v1017
  %v4295 = vunpack.c.l.b16 %v1018
  %v4296 = vunpack.c.h.b16 %v1018
  %v4297 = vunpack.c.l.b16 %v1019
  %v4298 = vunpack.c.h.b16 %v1019
  %v4299 = vunpack.c.l.b16 %v1020
  %v4300 = vunpack.c.h.b16 %v1020
  %v4301 = vunpack.c.l.b16 %v1021
  %v4302 = vunpack.c.h.b16 %v1021
  %v4303 = vunpack.c.l.b16 %v1022
  %v4304 = vunpack.c.h.b16 %v1022
  %v4305 = vunpack.c.l.b16 %v1023
  %v4306 = vunpack.c.h.b16 %v1023
  %v4307 = vunpack.c.l.b16 %v1024
  %v4308 = vunpack.c.h.b16 %v1024
  %v4309 = vunpack.c.l.b16 %v1025
  %v4310 = vunpack.c.h.b16 %v1025
  %v4311 = vunpack.c.l.b16 %v1026
  %v4312 = vunpack.c.h.b16 %v1026
  %v4313 = vunpack.c.l.b16 %v1027
  %v4314 = vunpack.c.h.b16 %v1027
  %v4315 = vunpack.c.l.b16 %v1028
  %v4316 = vunpack.c.h.b16 %v1028
  %v4317 = vunpack.c.l.b16 %v1029
  %v4318 = vunpack.c.h.b16 %v1029
  %v4319 = vunpack.c.l.b16 %v1030
  %v4320 = vunpack.c.h.b16 %v1030
  %v4321 = vunpack.c.l.b16 %v1031
  %v4322 = vunpack.c.h.b16 %v1031
  %v4323 = vunpack.c.l.b16 %v1032
  %v4324 = vunpack.c.h.b16 %v1032
  %v4325 = vunpack.c.l.b16 %v1033
  %v4326 = vunpack.c.h.b16 %v1033
  %v4327 = vunpack.c.l.b16 %v1034
  %v4328 = vunpack.c.h.b16 %v1034
  %v4329 = vunpack.c.l.b16 %v1035
  %v4330 = vunpack.c.h.b16 %v1035
  %v4331 = vunpack.c.l.b16 %v1036
  %v4332 = vunpack.c.h.b16 %v1036
  %v4333 = vunpack.c.l.b16 %v1037
  %v4334 = vunpack.c.h.b16 %v1037
  %v4335 = vunpack.c.l.b16 %v1038
  %v4336 = vunpack.c.h.b16 %v1038
  %v4337 = vunpack.c.l.b16 %v1039
  %v4338 = vunpack.c.h.b16 %v1039
  %v4339 = vunpack.c.l.b16 %v1040
  %v4340 = vunpack.c.h.b16 %v1040
  %v4341 = vunpack.c.l.b16 %v1041
  %v4342 = vunpack.c.h.b16 %v1041
  %v4343 = vunpack.c.l.b16 %v1042
  %v4344 = vunpack.c.h.b16 %v1042
  %v4345 = vunpack.c.l.b16 %v1043
  %v4346 = vunpack.c.h.b16 %v1043
  %v4347 = vunpack.c.l.b16 %v1044
  %v4348 = vunpack.c.h.b16 %v1044
  %v4349 = vpack.c.b16 %v2305, %v2301
  %v4350 = vpack.c.b16 %v2306, %v2302
  %v4351 = vpack.c.b16 %v2307, %v2303
  %v4352 = vpack.c.b16 %v2308, %v2304
  %v4353 = vpack.c.b16 %v2313, %v2309
  %v4354 = vpack.c.b16 %v2314, %v2310
  %v4355 = vpack.c.b16 %v2315, %v2311
  %v4356 = vpack.c.b16 %v2316, %v2312
  %v4357 = vpack.c.b16 %v2321, %v2317
  %v4358 = vpack.c.b16 %v2322, %v2318
  %v4359 = vpack.c.b16 %v2323, %v2319
  %v4360 = vpack.c.b16 %v2324, %v2320
  %v4361 = vpack.c.b16 %v2329, %v2325
  %v4362 = vpack.c.b16 %v2330, %v2326
  %v4363 = vpack.c.b16 %v2331, %v2327
  %v4364 = vpack.c.b16 %v2332, %v2328
  %v4365 = vpack.c.b16 %v2337, %v2333
  %v4366 = vpack.c.b16 %v2338, %v2334
  %v4367 = vpack.c.b16 %v2339, %v2335
  %v4368 = vpack.c.b16 %v2340, %v2336
  %v4369 = vpack.c.b16 %v2345, %v2341
  %v4370 = vpack.c.b16 %v2346, %v2342
  %v4371 = vpack.c.b16 %v2347, %v2343
  %v4372 = vpack.c.b16 %v2348, %v2344
  %v4373 = vpack.c.b16 %v2353, %v2349
  %v4374 = vpack.c.b16 %v2354, %v2350
  %v4375 = vpack.c.b16 %v2355, %v2351
  %v4376 = vpack.c.b16 %v2356, %v2352
  %v4377 = vpack.c.b16 %v2361, %v2357
  %v4378 = vpack.c.b16 %v2362, %v2358
  %v4379 = vpack.c.b16 %v2363, %v2359
  %v4380 = vpack.c.b16 %v2364, %v2360
  %v4381 = vpack.c.b16 %v2369, %v2365
  %v4382 = vpack.c.b16 %v2370, %v2366
  %v4383 = vpack.c.b16 %v2371, %v2367
  %v4384 = vpack.c.b16 %v2372, %v2368
  %v4385 = vpack.c.b16 %v2377, %v2373
  %v4386 = vpack.c.b16 %v2378, %v2374
  %v4387 = vpack.c.b16 %v2379, %v2375
  %v4388 = vpack.c.b16 %v2380, %v2376
  %v4389 = vpack.c.b16 %v2385, %v2381
  %v4390 = vpack.c.b16 %v2386, %v2382
  %v4391 = vpack.c.b16 %v2387, %v2383
  %v4392 = vpack.c.b16 %v2388, %v2384
  %v4393 = vpack.c.b16 %v2393, %v2389
  %v4394 = vpack.c.b16 %v2394, %v2390
  %v4395 = vpack.c.b16 %v2395, %v2391
  %v4396 = vpack.c.b16 %v2396, %v2392
  %v4397 = vpack.c.b16 %v2401, %v2397
  %v4398 = vpack.c.b16 %v2402, %v2398
  %v4399 = vpack.c.b16 %v2403, %v2399
  %v4400 = vpack.c.b16 %v2404, %v2400
  %v4401 = vpack.c.b16 %v2409, %v2405
  %v4402 = vpack.c.b16 %v2410, %v2406
  %v4403 = vpack.c.b16 %v2411, %v2407
  %v4404 = vpack.c.b16 %v2412, %v2408
  %v4405 = vpack.c.b16 %v2417, %v2413
  %v4406 = vpack.c.b16 %v2418, %v2414
  %v4407 = vpack.c.b16 %v2419, %v2415
  %v4408 = vpack.c.b16 %v2420, %v2416
  %v4409 = vpack.c.b16 %v2425, %v2421
  %v4410 = vpack.c.b16 %v2426, %v2422
  %v4411 = vpack.c.b16 %v2427, %v2423
  %v4412 = vpack.c.b16 %v2428, %v2424
  %v4413 = vpack.c.b16 %v2433, %v2429
  %v4414 = vpack.c.b16 %v2434, %v2430
  %v4415 = vpack.c.b16 %v2435, %v2431
  %v4416 = vpack.c.b16 %v2436, %v2432
  %v4417 = vpack.c.b16 %v2441, %v2437
  %v4418 = vpack.c.b16 %v2442, %v2438
  %v4419 = vpack.c.b16 %v2443, %v2439
  %v4420 = vpack.c.b16 %v2444, %v2440
  %v4421 = vpack.c.b16 %v2449, %v2445
  %v4422 = vpack.c.b16 %v2450, %v2446
  %v4423 = vpack.c.b16 %v2451, %v2447
  %v4424 = vpack.c.b16 %v2452, %v2448
  %v4425 = vpack.c.b16 %v2457, %v2453
  %v4426 = vpack.c.b16 %v2458, %v2454
  %v4427 = vpack.c.b16 %v2459, %v2455
  %v4428 = vpack.c.b16 %v2460, %v2456
  %v4429 = vpack.c.b16 %v2465, %v2461
  %v4430 = vpack.c.b16 %v2466, %v2462
  %v4431 = vpack.c.b16 %v2467, %v2463
  %v4432 = vpack.c.b16 %v2468, %v2464
  %v4433 = vpack.c.b16 %v2473, %v2469
  %v4434 = vpack.c.b16 %v2474, %v2470
  %v4435 = vpack.c.b16 %v2475, %v2471
  %v4436 = vpack.c.b16 %v2476, %v2472
  %v4437 = vpack.c.b16 %v2481, %v2477
  %v4438 = vpack.c.b16 %v2482, %v2478
  %v4439 = vpack.c.b16 %v2483, %v2479
  %v4440 = vpack.c.b16 %v2484, %v2480
  %v4441 = vpack.c.b16 %v2489, %v2485
  %v4442 = vpack.c.b16 %v2490, %v2486
  %v4443 = vpack.c.b16 %v2491, %v2487
  %v4444 = vpack.c.b16 %v2492, %v2488
  %v4445 = vpack.c.b16 %v2497, %v2493
  %v4446 = vpack.c.b16 %v2498, %v2494
  %v4447 = vpack.c.b16 %v2499, %v2495
  %v4448 = vpack.c.b16 %v2500, %v2496
  %v4449 = vpack.c.b16 %v2505, %v2501
  %v4450 = vpack.c.b16 %v2506, %v2502
  %v4451 = vpack.c.b16 %v2507, %v2503
  %v4452 = vpack.c.b16 %v2508, %v2504
  %v4453 = vpack.c.b16 %v2513, %v2509
  %v4454 = vpack.c.b16 %v2514, %v2510
  %v4455 = vpack.c.b16 %v2515, %v2511
  %v4456 = vpack.c.b16 %v2516, %v2512
  %v4457 = vpack.c.b16 %v2521, %v2517
  %v4458 = vpack.c.b16 %v2522, %v2518
  %v4459 = vpack.c.b16 %v2523, %v2519
  %v4460 = vpack.c.b16 %v2524, %v2520
  %v4461 = vpack.c.b16 %v2529, %v2525
  %v4462 = vpack.c.b16 %v2530, %v2526
  %v4463 = vpack.c.b16 %v2531, %v2527
  %v4464 = vpack.c.b16 %v2532, %v2528
  %v4465 = vpack.c.b16 %v2537, %v2533
  %v4466 = vpack.c.b16 %v2538, %v2534
  %v4467 = vpack.c.b16 %v2539, %v2535
  %v4468 = vpack.c.b16 %v2540, %v2536
  %v4469 = vpack.c.b16 %v2545, %v2541
  %v4470 = vpack.c.b16 %v2546, %v2542
  %v4471 = vpack.c.b16 %v2547, %v2543
  %v4472 = vpack.c.b16 %v2548, %v2544
  %v4473 = vpack.c.b16 %v2553, %v2549
  %v4474 = vpack.c.b16 %v2554, %v2550
  %v4475 = vpack.c.b16 %v2555, %v2551
  %v4476 = vpack.c.b16 %v2556, %v2552
  %v4477 = vpack.c.b16 %v2561, %v2557
  %v4478 = vpack.c.b16 %v2562, %v2558
  %v4479 = vpack.c.b16 %v2563, %v2559
  %v4480 = vpack.c.b16 %v2564, %v2560
  %v4481 = vpack.c.b16 %v2569, %v2565
  %v4482 = vpack.c.b16 %v2570, %v2566
  %v4483 = vpack.c.b16 %v2571, %v2567
  %v4484 = vpack.c.b16 %v2572, %v2568
  %v4485 = vpack.c.b16 %v2577, %v2573
  %v4486 = vpack.c.b16 %v2578, %v2574
  %v4487 = vpack.c.b16 %v2579, %v2575
  %v4488 = vpack.c.b16 %v2580, %v2576
  %v4489 = vpack.c.b16 %v2585, %v2581
  %v4490 = vpack.c.b16 %v2586, %v2582
  %v4491 = vpack.c.b16 %v2587, %v2583
  %v4492 = vpack.c.b16 %v2588, %v2584
  %v4493 = vpack.c.b16 %v2593, %v2589
  %v4494 = vpack.c.b16 %v2594, %v2590
  %v4495 = vpack.c.b16 %v2595, %v2591
  %v4496 = vpack.c.b16 %v2596, %v2592
  %v4497 = vpack.c.b16 %v2601, %v2597
  %v4498 = vpack.c.b16 %v2602, %v2598
  %v4499 = vpack.c.b16 %v2603, %v2599
  %v4500 = vpack.c.b16 %v2604, %v2600
  %v4501 = vpack.c.b16 %v2609, %v2605
  %v4502 = vpack.c.b16 %v2610, %v2606
  %v4503 = vpack.c.b16 %v2611, %v2607
  %v4504 = vpack.c.b16 %v2612, %v2608
  %v4505 = vpack.c.b16 %v2617, %v2613
  %v4506 = vpack.c.b16 %v2618, %v2614
  %v4507 = vpack.c.b16 %v2619, %v2615
  %v4508 = vpack.c.b16 %v2620, %v2616
  %v4509 = vpack.c.b16 %v2625, %v2621
  %v4510 = vpack.c.b16 %v2626, %v2622
  %v4511 = vpack.c.b16 %v2627, %v2623
  %v4512 = vpack.c.b16 %v2628, %v2624
  %v4513 = vpack.c.b16 %v2633, %v2629
  %v4514 = vpack.c.b16 %v2634, %v2630
  %v4515 = vpack.c.b16 %v2635, %v2631
  %v4516 = vpack.c.b16 %v2636, %v2632
  %v4517 = vpack.c.b16 %v2641, %v2637
  %v4518 = vpack.c.b16 %v2642, %v2638
  %v4519 = vpack.c.b16 %v2643, %v2639
  %v4520 = vpack.c.b16 %v2644, %v2640
  %v4521 = vpack.c.b16 %v2649, %v2645
  %v4522 = vpack.c.b16 %v2650, %v2646
  %v4523 = vpack.c.b16 %v2651, %v2647
  %v4524 = vpack.c.b16 %v2652, %v2648
  %v4525 = vpack.c.b16 %v2657, %v2653
  %v4526 = vpack.c.b16 %v2658, %v2654
  %v4527 = vpack.c.b16 %v2659, %v2655
  %v4528 = vpack.c.b16 %v2660, %v2656
  %v4529 = vpack.c.b16 %v2665, %v2661
  %v4530 = vpack.c.b16 %v2666, %v2662
  %v4531 = vpack.c.b16 %v2667, %v2663
  %v4532 = vpack.c.b16 %v2668, %v2664
  %v4533 = vpack.c.b16 %v2673, %v2669
  %v4534 = vpack.c.b16 %v2674, %v2670
  %v4535 = vpack.c.b16 %v2675, %v2671
  %v4536 = vpack.c.b16 %v2676, %v2672
  %v4537 = vpack.c.b16 %v2681, %v2677
  %v4538 = vpack.c.b16 %v2682, %v2678
  %v4539 = vpack.c.b16 %v2683, %v2679
  %v4540 = vpack.c.b16 %v2684, %v2680
  %v4541 = vpack.c.b16 %v2689, %v2685
  %v4542 = vpack.c.b16 %v2690, %v2686
  %v4543 = vpack.c.b16 %v2691, %v2687
  %v4544 = vpack.c.b16 %v2692, %v2688
  %v4545 = vpack.c.b16 %v2697, %v2693
  %v4546 = vpack.c.b16 %v2698, %v2694
  %v4547 = vpack.c.b16 %v2699, %v2695
  %v4548 = vpack.c.b16 %v2700, %v2696
  %v4549 = vpack.c.b16 %v2705, %v2701
  %v4550 = vpack.c.b16 %v2706, %v2702
  %v4551 = vpack.c.b16 %v2707, %v2703
  %v4552 = vpack.c.b16 %v2708, %v2704
  %v4553 = vpack.c.b16 %v2713, %v2709
  %v4554 = vpack.c.b16 %v2714, %v2710
  %v4555 = vpack.c.b16 %v2715, %v2711
  %v4556 = vpack.c.b16 %v2716, %v2712
  %v4557 = vpack.c.b16 %v2721, %v2717
  %v4558 = vpack.c.b16 %v2722, %v2718
  %v4559 = vpack.c.b16 %v2723, %v2719
  %v4560 = vpack.c.b16 %v2724, %v2720
  %v4561 = vpack.c.b16 %v2729, %v2725
  %v4562 = vpack.c.b16 %v2730, %v2726
  %v4563 = vpack.c.b16 %v2731, %v2727
  %v4564 = vpack.c.b16 %v2732, %v2728
  %v4565 = vpack.c.b16 %v2737, %v2733
  %v4566 = vpack.c.b16 %v2738, %v2734
  %v4567 = vpack.c.b16 %v2739, %v2735
  %v4568 = vpack.c.b16 %v2740, %v2736
  %v4569 = vpack.c.b16 %v2745, %v2741
  %v4570 = vpack.c.b16 %v2746, %v2742
  %v4571 = vpack.c.b16 %v2747, %v2743
  %v4572 = vpack.c.b16 %v2748, %v2744
  %v4573 = vpack.c.b16 %v2753, %v2749
  %v4574 = vpack.c.b16 %v2754, %v2750
  %v4575 = vpack.c.b16 %v2755, %v2751
  %v4576 = vpack.c.b16 %v2756, %v2752
  %v4577 = vpack.c.b16 %v2761, %v2757
  %v4578 = vpack.c.b16 %v2762, %v2758
  %v4579 = vpack.c.b16 %v2763, %v2759
  %v4580 = vpack.c.b16 %v2764, %v2760
  %v4581 = vpack.c.b16 %v2769, %v2765
  %v4582 = vpack.c.b16 %v2770, %v2766
  %v4583 = vpack.c.b16 %v2771, %v2767
  %v4584 = vpack.c.b16 %v2772, %v2768
  %v4585 = vpack.c.b16 %v2777, %v2773
  %v4586 = vpack.c.b16 %v2778, %v2774
  %v4587 = vpack.c.b16 %v2779, %v2775
  %v4588 = vpack.c.b16 %v2780, %v2776
  %v4589 = vpack.c.b16 %v2785, %v2781
  %v4590 = vpack.c.b16 %v2786, %v2782
  %v4591 = vpack.c.b16 %v2787, %v2783
  %v4592 = vpack.c.b16 %v2788, %v2784
  %v4593 = vpack.c.b16 %v2793, %v2789
  %v4594 = vpack.c.b16 %v2794, %v2790
  %v4595 = vpack.c.b16 %v2795, %v2791
  %v4596 = vpack.c.b16 %v2796, %v2792
  %v4597 = vpack.c.b16 %v2801, %v2797
  %v4598 = vpack.c.b16 %v2802, %v2798
  %v4599 = vpack.c.b16 %v2803, %v2799
  %v4600 = vpack.c.b16 %v2804, %v2800
  %v4601 = vpack.c.b16 %v2809, %v2805
  %v4602 = vpack.c.b16 %v2810, %v2806
  %v4603 = vpack.c.b16 %v2811, %v2807
  %v4604 = vpack.c.b16 %v2812, %v2808
  %v4605 = vpack.c.b16 %v2817, %v2813
  %v4606 = vpack.c.b16 %v2818, %v2814
  %v4607 = vpack.c.b16 %v2819, %v2815
  %v4608 = vpack.c.b16 %v2820, %v2816
  %v4609 = vpack.c.b16 %v2825, %v2821
  %v4610 = vpack.c.b16 %v2826, %v2822
  %v4611 = vpack.c.b16 %v2827, %v2823
  %v4612 = vpack.c.b16 %v2828, %v2824
  %v4613 = vpack.c.b16 %v2833, %v2829
  %v4614 = vpack.c.b16 %v2834, %v2830
  %v4615 = vpack.c.b16 %v2835, %v2831
  %v4616 = vpack.c.b16 %v2836, %v2832
  %v4617 = vpack.c.b16 %v2841, %v2837
  %v4618 = vpack.c.b16 %v2842, %v2838
  %v4619 = vpack.c.b16 %v2843, %v2839
  %v4620 = vpack.c.b16 %v2844, %v2840
  %v4621 = vpack.c.b16 %v2849, %v2845
  %v4622 = vpack.c.b16 %v2850, %v2846
  %v4623 = vpack.c.b16 %v2851, %v2847
  %v4624 = vpack.c.b16 %v2852, %v2848
  %v4625 = vpack.c.b16 %v2857, %v2853
  %v4626 = vpack.c.b16 %v2858, %v2854
  %v4627 = vpack.c.b16 %v2859, %v2855
  %v4628 = vpack.c.b16 %v2860, %v2856
  %v4629 = vpack.c.b16 %v2865, %v2861
  %v4630 = vpack.c.b16 %v2866, %v2862
  %v4631 = vpack.c.b16 %v2867, %v2863
  %v4632 = vpack.c.b16 %v2868, %v2864
  %v4633 = vpack.c.b16 %v2873, %v2869
  %v4634 = vpack.c.b16 %v2874, %v2870
  %v4635 = vpack.c.b16 %v2875, %v2871
  %v4636 = vpack.c.b16 %v2876, %v2872
  %v4637 = vpack.c.b16 %v2881, %v2877
  %v4638 = vpack.c.b16 %v2882, %v2878
  %v4639 = vpack.c.b16 %v2883, %v2879
  %v4640 = vpack.c.b16 %v2884, %v2880
  %v4641 = vpack.c.b16 %v2889, %v2885
  %v4642 = vpack.c.b16 %v2890, %v2886
  %v4643 = vpack.c.b16 %v2891, %v2887
  %v4644 = vpack.c.b16 %v2892, %v2888
  %v4645 = vpack.c.b16 %v2897, %v2893
  %v4646 = vpack.c.b16 %v2898, %v2894
  %v4647 = vpack.c.b16 %v2899, %v2895
  %v4648 = vpack.c.b16 %v2900, %v2896
  %v4649 = vpack.c.b16 %v2905, %v2901
  %v4650 = vpack.c.b16 %v2906, %v2902
  %v4651 = vpack.c.b16 %v2907, %v2903
  %v4652 = vpack.c.b16 %v2908, %v2904
  %v4653 = vpack.c.b16 %v2913, %v2909
  %v4654 = vpack.c.b16 %v2914, %v2910
  %v4655 = vpack.c.b16 %v2915, %v2911
  %v4656 = vpack.c.b16 %v2916, %v2912
  %v4657 = vpack.c.b16 %v2921, %v2917
  %v4658 = vpack.c.b16 %v2922, %v2918
  %v4659 = vpack.c.b16 %v2923, %v2919
  %v4660 = vpack.c.b16 %v2924, %v2920
  %v4661 = vpack.c.b16 %v2929, %v2925
  %v4662 = vpack.c.b16 %v2930, %v2926
  %v4663 = vpack.c.b16 %v2931, %v2927
  %v4664 = vpack.c.b16 %v2932, %v2928
  %v4665 = vpack.c.b16 %v2937, %v2933
  %v4666 = vpack.c.b16 %v2938, %v2934
  %v4667 = vpack.c.b16 %v2939, %v2935
  %v4668 = vpack.c.b16 %v2940, %v2936
  %v4669 = vpack.c.b16 %v2945, %v2941
  %v4670 = vpack.c.b16 %v2946, %v2942
  %v4671 = vpack.c.b16 %v2947, %v2943
  %v4672 = vpack.c.b16 %v2948, %v2944
  %v4673 = vpack.c.b16 %v2953, %v2949
  %v4674 = vpack.c.b16 %v2954, %v2950
  %v4675 = vpack.c.b16 %v2955, %v2951
  %v4676 = vpack.c.b16 %v2956, %v2952
  %v4677 = vpack.c.b16 %v2961, %v2957
  %v4678 = vpack.c.b16 %v2962, %v2958
  %v4679 = vpack.c.b16 %v2963, %v2959
  %v4680 = vpack.c.b16 %v2964, %v2960
  %v4681 = vpack.c.b16 %v2969, %v2965
  %v4682 = vpack.c.b16 %v2970, %v2966
  %v4683 = vpack.c.b16 %v2971, %v2967
  %v4684 = vpack.c.b16 %v2972, %v2968
  %v4685 = vpack.c.b16 %v2977, %v2973
  %v4686 = vpack.c.b16 %v2978, %v2974
  %v4687 = vpack.c.b16 %v2979, %v2975
  %v4688 = vpack.c.b16 %v2980, %v2976
  %v4689 = vpack.c.b16 %v2985, %v2981
  %v4690 = vpack.c.b16 %v2986, %v2982
  %v4691 = vpack.c.b16 %v2987, %v2983
  %v4692 = vpack.c.b16 %v2988, %v2984
  %v4693 = vpack.c.b16 %v2993, %v2989
  %v4694 = vpack.c.b16 %v2994, %v2990
  %v4695 = vpack.c.b16 %v2995, %v2991
  %v4696 = vpack.c.b16 %v2996, %v2992
  %v4697 = vpack.c.b16 %v3001, %v2997
  %v4698 = vpack.c.b16 %v3002, %v2998
  %v4699 = vpack.c.b16 %v3003, %v2999
  %v4700 = vpack.c.b16 %v3004, %v3000
  %v4701 = vpack.c.b16 %v3009, %v3005
  %v4702 = vpack.c.b16 %v3010, %v3006
  %v4703 = vpack.c.b16 %v3011, %v3007
  %v4704 = vpack.c.b16 %v3012, %v3008
  %v4705 = vpack.c.b16 %v3017, %v3013
  %v4706 = vpack.c.b16 %v3018, %v3014
  %v4707 = vpack.c.b16 %v3019, %v3015
  %v4708 = vpack.c.b16 %v3020, %v3016
  %v4709 = vpack.c.b16 %v3025, %v3021
  %v4710 = vpack.c.b16 %v3026, %v3022
  %v4711 = vpack.c.b16 %v3027, %v3023
  %v4712 = vpack.c.b16 %v3028, %v3024
  %v4713 = vpack.c.b16 %v3033, %v3029
  %v4714 = vpack.c.b16 %v3034, %v3030
  %v4715 = vpack.c.b16 %v3035, %v3031
  %v4716 = vpack.c.b16 %v3036, %v3032
  %v4717 = vpack.c.b16 %v3041, %v3037
  %v4718 = vpack.c.b16 %v3042, %v3038
  %v4719 = vpack.c.b16 %v3043, %v3039
  %v4720 = vpack.c.b16 %v3044, %v3040
  %v4721 = vpack.c.b16 %v3049, %v3045
  %v4722 = vpack.c.b16 %v3050, %v3046
  %v4723 = vpack.c.b16 %v3051, %v3047
  %v4724 = vpack.c.b16 %v3052, %v3048
  %v4725 = vpack.c.b16 %v3057, %v3053
  %v4726 = vpack.c.b16 %v3058, %v3054
  %v4727 = vpack.c.b16 %v3059, %v3055
  %v4728 = vpack.c.b16 %v3060, %v3056
  %v4729 = vpack.c.b16 %v3065, %v3061
  %v4730 = vpack.c.b16 %v3066, %v3062
  %v4731 = vpack.c.b16 %v3067, %v3063
  %v4732 = vpack.c.b16 %v3068, %v3064
  %v4733 = vpack.c.b16 %v3073, %v3069
  %v4734 = vpack.c.b16 %v3074, %v3070
  %v4735 = vpack.c.b16 %v3075, %v3071
  %v4736 = vpack.c.b16 %v3076, %v3072
  %v4737 = vpack.c.b16 %v3081, %v3077
  %v4738 = vpack.c.b16 %v3082, %v3078
  %v4739 = vpack.c.b16 %v3083, %v3079
  %v4740 = vpack.c.b16 %v3084, %v3080
  %v4741 = vpack.c.b16 %v3089, %v3085
  %v4742 = vpack.c.b16 %v3090, %v3086
  %v4743 = vpack.c.b16 %v3091, %v3087
  %v4744 = vpack.c.b16 %v3092, %v3088
  %v4745 = vpack.c.b16 %v3097, %v3093
  %v4746 = vpack.c.b16 %v3098, %v3094
  %v4747 = vpack.c.b16 %v3099, %v3095
  %v4748 = vpack.c.b16 %v3100, %v3096
  %v4749 = vpack.c.b16 %v3105, %v3101
  %v4750 = vpack.c.b16 %v3106, %v3102
  %v4751 = vpack.c.b16 %v3107, %v3103
  %v4752 = vpack.c.b16 %v3108, %v3104
  %v4753 = vpack.c.b16 %v3113, %v3109
  %v4754 = vpack.c.b16 %v3114, %v3110
  %v4755 = vpack.c.b16 %v3115, %v3111
  %v4756 = vpack.c.b16 %v3116, %v3112
  %v4757 = vpack.c.b16 %v3121, %v3117
  %v4758 = vpack.c.b16 %v3122, %v3118
  %v4759 = vpack.c.b16 %v3123, %v3119
  %v4760 = vpack.c.b16 %v3124, %v3120
  %v4761 = vpack.c.b16 %v3129, %v3125
  %v4762 = vpack.c.b16 %v3130, %v3126
  %v4763 = vpack.c.b16 %v3131, %v3127
  %v4764 = vpack.c.b16 %v3132, %v3128
  %v4765 = vpack.c.b16 %v3137, %v3133
  %v4766 = vpack.c.b16 %v3138, %v3134
  %v4767 = vpack.c.b16 %v3139, %v3135
  %v4768 = vpack.c.b16 %v3140, %v3136
  %v4769 = vpack.c.b16 %v3145, %v3141
  %v4770 = vpack.c.b16 %v3146, %v3142
  %v4771 = vpack.c.b16 %v3147, %v3143
  %v4772 = vpack.c.b16 %v3148, %v3144
  %v4773 = vpack.c.b16 %v3153, %v3149
  %v4774 = vpack.c.b16 %v3154, %v3150
  %v4775 = vpack.c.b16 %v3155, %v3151
  %v4776 = vpack.c.b16 %v3156, %v3152
  %v4777 = vpack.c.b16 %v3161, %v3157
  %v4778 = vpack.c.b16 %v3162, %v3158
  %v4779 = vpack.c.b16 %v3163, %v3159
  %v4780 = vpack.c.b16 %v3164, %v3160
  %v4781 = vpack.c.b16 %v3169, %v3165
  %v4782 = vpack.c.b16 %v3170, %v3166
  %v4783 = vpack.c.b16 %v3171, %v3167
  %v4784 = vpack.c.b16 %v3172, %v3168
  %v4785 = vpack.c.b16 %v3177, %v3173
  %v4786 = vpack.c.b16 %v3178, %v3174
  %v4787 = vpack.c.b16 %v3179, %v3175
  %v4788 = vpack.c.b16 %v3180, %v3176
  %v4789 = vpack.c.b16 %v3185, %v3181
  %v4790 = vpack.c.b16 %v3186, %v3182
  %v4791 = vpack.c.b16 %v3187, %v3183
  %v4792 = vpack.c.b16 %v3188, %v3184
  %v4793 = vpack.c.b16 %v3193, %v3189
  %v4794 = vpack.c.b16 %v3194, %v3190
  %v4795 = vpack.c.b16 %v3195, %v3191
  %v4796 = vpack.c.b16 %v3196, %v3192
  %v4797 = vpack.c.b16 %v3201, %v3197
  %v4798 = vpack.c.b16 %v3202, %v3198
  %v4799 = vpack.c.b16 %v3203, %v3199
  %v4800 = vpack.c.b16 %v3204, %v3200
  %v4801 = vpack.c.b16 %v3209, %v3205
  %v4802 = vpack.c.b16 %v3210, %v3206
  %v4803 = vpack.c.b16 %v3211, %v3207
  %v4804 = vpack.c.b16 %v3212, %v3208
  %v4805 = vpack.c.b16 %v3217, %v3213
  %v4806 = vpack.c.b16 %v3218, %v3214
  %v4807 = vpack.c.b16 %v3219, %v3215
  %v4808 = vpack.c.b16 %v3220, %v3216
  %v4809 = vpack.c.b16 %v3225, %v3221
  %v4810 = vpack.c.b16 %v3226, %v3222
  %v4811 = vpack.c.b16 %v3227, %v3223
  %v4812 = vpack.c.b16 %v3228, %v3224
  %v4813 = vpack.c.b16 %v3233, %v3229
  %v4814 = vpack.c.b16 %v3234, %v3230
  %v4815 = vpack.c.b16 %v3235, %v3231
  %v4816 = vpack.c.b16 %v3236, %v3232
  %v4817 = vpack.c.b16 %v3241, %v3237
  %v4818 = vpack.c.b16 %v3242, %v3238
  %v4819 = vpack.c.b16 %v3243, %v3239
  %v4820 = vpack.c.b16 %v3244, %v3240
  %v4821 = vpack.c.b16 %v3249, %v3245
  %v4822 = vpack.c.b16 %v3250, %v3246
  %v4823 = vpack.c.b16 %v3251, %v3247
  %v4824 = vpack.c.b16 %v3252, %v3248
  %v4825 = vpack.c.b16 %v3257, %v3253
  %v4826 = vpack.c.b16 %v3258, %v3254
  %v4827 = vpack.c.b16 %v3259, %v3255
  %v4828 = vpack.c.b16 %v3260, %v3256
  %v4829 = vpack.c.b16 %v3265, %v3261
  %v4830 = vpack.c.b16 %v3266, %v3262
  %v4831 = vpack.c.b16 %v3267, %v3263
  %v4832 = vpack.c.b16 %v3268, %v3264
  %v4833 = vpack.c.b16 %v3273, %v3269
  %v4834 = vpack.c.b16 %v3274, %v3270
  %v4835 = vpack.c.b16 %v3275, %v3271
  %v4836 = vpack.c.b16 %v3276, %v3272
  %v4837 = vpack.c.b16 %v3281, %v3277
  %v4838 = vpack.c.b16 %v3282, %v3278
  %v4839 = vpack.c.b16 %v3283, %v3279
  %v4840 = vpack.c.b16 %v3284, %v3280
  %v4841 = vpack.c.b16 %v3289, %v3285
  %v4842 = vpack.c.b16 %v3290, %v3286
  %v4843 = vpack.c.b16 %v3291, %v3287
  %v4844 = vpack.c.b16 %v3292, %v3288
  %v4845 = vpack.c.b16 %v3297, %v3293
  %v4846 = vpack.c.b16 %v3298, %v3294
  %v4847 = vpack.c.b16 %v3299, %v3295
  %v4848 = vpack.c.b16 %v3300, %v3296
  %v4849 = vpack.c.b16 %v3305, %v3301
  %v4850 = vpack.c.b16 %v3306, %v3302
  %v4851 = vpack.c.b16 %v3307, %v3303
  %v4852 = vpack.c.b16 %v3308, %v3304
  %v4853 = vpack.c.b16 %v3313, %v3309
  %v4854 = vpack.c.b16 %v3314, %v3310
  %v4855 = vpack.c.b16 %v3315, %v3311
  %v4856 = vpack.c.b16 %v3316, %v3312
  %v4857 = vpack.c.b16 %v3321, %v3317
  %v4858 = vpack.c.b16 %v3322, %v3318
  %v4859 = vpack.c.b16 %v3323, %v3319
  %v4860 = vpack.c.b16 %v3324, %v3320
  %v4861 = vpack.c.b16 %v3329, %v3325
  %v4862 = vpack.c.b16 %v3330, %v3326
  %v4863 = vpack.c.b16 %v3331, %v3327
  %v4864 = vpack.c.b16 %v3332, %v3328
  %v4865 = vpack.c.b16 %v3337, %v3333
  %v4866 = vpack.c.b16 %v3338, %v3334
  %v4867 = vpack.c.b16 %v3339, %v3335
  %v4868 = vpack.c.b16 %v3340, %v3336
  %v4869 = vpack.c.b16 %v3345, %v3341
  %v4870 = vpack.c.b16 %v3346, %v3342
  %v4871 = vpack.c.b16 %v3347, %v3343
  %v4872 = vpack.c.b16 %v3348, %v3344
  %v4873 = vpack.c.b16 %v3353, %v3349
  %v4874 = vpack.c.b16 %v3354, %v3350
  %v4875 = vpack.c.b16 %v3355, %v3351
  %v4876 = vpack.c.b16 %v3356, %v3352
  %v4877 = vpack.c.b16 %v3361, %v3357
  %v4878 = vpack.c.b16 %v3362, %v3358
  %v4879 = vpack.c.b16 %v3363, %v3359
  %v4880 = vpack.c.b16 %v3364, %v3360
  %v4881 = vpack.c.b16 %v3369, %v3365
  %v4882 = vpack.c.b16 %v3370, %v3366
  %v4883 = vpack.c.b16 %v3371, %v3367
  %v4884 = vpack.c.b16 %v3372, %v3368
  %v4885 = vpack.c.b16 %v3377, %v3373
  %v4886 = vpack.c.b16 %v3378, %v3374
  %v4887 = vpack.c.b16 %v3379, %v3375
  %v4888 = vpack.c.b16 %v3380, %v3376
  %v4889 = vpack.c.b16 %v3385, %v3381
  %v4890 = vpack.c.b16 %v3386, %v3382
  %v4891 = vpack.c.b16 %v3387, %v3383
  %v4892 = vpack.c.b16 %v3388, %v3384
  %v4893 = vpack.c.b16 %v3393, %v3389
  %v4894 = vpack.c.b16 %v3394, %v3390
  %v4895 = vpack.c.b16 %v3395, %v3391
  %v4896 = vpack.c.b16 %v3396, %v3392
  %v4897 = vpack.c.b16 %v3401, %v3397
  %v4898 = vpack.c.b16 %v3402, %v3398
  %v4899 = vpack.c.b16 %v3403, %v3399
  %v4900 = vpack.c.b16 %v3404, %v3400
  %v4901 = vpack.c.b16 %v3409, %v3405
  %v4902 = vpack.c.b16 %v3410, %v3406
  %v4903 = vpack.c.b16 %v3411, %v3407
  %v4904 = vpack.c.b16 %v3412, %v3408
  %v4905 = vpack.c.b16 %v3417, %v3413
  %v4906 = vpack.c.b16 %v3418, %v3414
  %v4907 = vpack.c.b16 %v3419, %v3415
  %v4908 = vpack.c.b16 %v3420, %v3416
  %v4909 = vpack.c.b16 %v3425, %v3421
  %v4910 = vpack.c.b16 %v3426, %v3422
  %v4911 = vpack.c.b16 %v3427, %v3423
  %v4912 = vpack.c.b16 %v3428, %v3424
  %v4913 = vpack.c.b16 %v3433, %v3429
  %v4914 = vpack.c.b16 %v3434, %v3430
  %v4915 = vpack.c.b16 %v3435, %v3431
  %v4916 = vpack.c.b16 %v3436, %v3432
  %v4917 = vpack.c.b16 %v3441, %v3437
  %v4918 = vpack.c.b16 %v3442, %v3438
  %v4919 = vpack.c.b16 %v3443, %v3439
  %v4920 = vpack.c.b16 %v3444, %v3440
  %v4921 = vpack.c.b16 %v3449, %v3445
  %v4922 = vpack.c.b16 %v3450, %v3446
  %v4923 = vpack.c.b16 %v3451, %v3447
  %v4924 = vpack.c.b16 %v3452, %v3448
  %v4925 = vpack.c.b16 %v3457, %v3453
  %v4926 = vpack.c.b16 %v3458, %v3454
  %v4927 = vpack.c.b16 %v3459, %v3455
  %v4928 = vpack.c.b16 %v3460, %v3456
  %v4929 = vpack.c.b16 %v3465, %v3461
  %v4930 = vpack.c.b16 %v3466, %v3462
  %v4931 = vpack.c.b16 %v3467, %v3463
  %v4932 = vpack.c.b16 %v3468, %v3464
  %v4933 = vpack.c.b16 %v3473, %v3469
  %v4934 = vpack.c.b16 %v3474, %v3470
  %v4935 = vpack.c.b16 %v3475, %v3471
  %v4936 = vpack.c.b16 %v3476, %v3472
  %v4937 = vpack.c.b16 %v3481, %v3477
  %v4938 = vpack.c.b16 %v3482, %v3478
  %v4939 = vpack.c.b16 %v3483, %v3479
  %v4940 = vpack.c.b16 %v3484, %v3480
  %v4941 = vpack.c.b16 %v3489, %v3485
  %v4942 = vpack.c.b16 %v3490, %v3486
  %v4943 = vpack.c.b16 %v3491, %v3487
  %v4944 = vpack.c.b16 %v3492, %v3488
  %v4945 = vpack.c.b16 %v3497, %v3493
  %v4946 = vpack.c.b16 %v3498, %v3494
  %v4947 = vpack.c.b16 %v3499, %v3495
  %v4948 = vpack.c.b16 %v3500, %v3496
  %v4949 = vpack.c.b16 %v3505, %v3501
  %v4950 = vpack.c.b16 %v3506, %v3502
  %v4951 = vpack.c.b16 %v3507, %v3503
  %v4952 = vpack.c.b16 %v3508, %v3504
  %v4953 = vpack.c.b16 %v3513, %v3509
  %v4954 = vpack.c.b16 %v3514, %v3510
  %v4955 = vpack.c.b16 %v3515, %v3511
  %v4956 = vpack.c.b16 %v3516, %v3512
  %v4957 = vpack.c.b16 %v3521, %v3517
  %v4958 = vpack.c.b16 %v3522, %v3518
  %v4959 = vpack.c.b16 %v3523, %v3519
  %v4960 = vpack.c.b16 %v3524, %v3520
  %v4961 = vpack.c.b16 %v3529, %v3525
  %v4962 = vpack.c.b16 %v3530, %v3526
  %v4963 = vpack.c.b16 %v3531, %v3527
  %v4964 = vpack.c.b16 %v3532, %v3528
  %v4965 = vpack.c.b16 %v3537, %v3533
  %v4966 = vpack.c.b16 %v3538, %v3534
  %v4967 = vpack.c.b16 %v3539, %v3535
  %v4968 = vpack.c.b16 %v3540, %v3536
  %v4969 = vpack.c.b16 %v3545, %v3541
  %v4970 = vpack.c.b16 %v3546, %v3542
  %v4971 = vpack.c.b16 %v3547, %v3543
  %v4972 = vpack.c.b16 %v3548, %v3544
  %v4973 = vpack.c.b16 %v3553, %v3549
  %v4974 = vpack.c.b16 %v3554, %v3550
  %v4975 = vpack.c.b16 %v3555, %v3551
  %v4976 = vpack.c.b16 %v3556, %v3552
  %v4977 = vpack.c.b16 %v3561, %v3557
  %v4978 = vpack.c.b16 %v3562, %v3558
  %v4979 = vpack.c.b16 %v3563, %v3559
  %v4980 = vpack.c.b16 %v3564, %v3560
  %v4981 = vpack.c.b16 %v3569, %v3565
  %v4982 = vpack.c.b16 %v3570, %v3566
  %v4983 = vpack.c.b16 %v3571, %v3567
  %v4984 = vpack.c.b16 %v3572, %v3568
  %v4985 = vpack.c.b16 %v3577, %v3573
  %v4986 = vpack.c.b16 %v3578, %v3574
  %v4987 = vpack.c.b16 %v3579, %v3575
  %v4988 = vpack.c.b16 %v3580, %v3576
  %v4989 = vpack.c.b16 %v3585, %v3581
  %v4990 = vpack.c.b16 %v3586, %v3582
  %v4991 = vpack.c.b16 %v3587, %v3583
  %v4992 = vpack.c.b16 %v3588, %v3584
  %v4993 = vpack.c.b16 %v3593, %v3589
  %v4994 = vpack.c.b16 %v3594, %v3590
  %v4995 = vpack.c.b16 %v3595, %v3591
  %v4996 = vpack.c.b16 %v3596, %v3592
  %v4997 = vpack.c.b16 %v3601, %v3597
  %v4998 = vpack.c.b16 %v3602, %v3598
  %v4999 = vpack.c.b16 %v3603, %v3599
  %v5000 = vpack.c.b16 %v3604, %v3600
  %v5001 = vpack.c.b16 %v3609, %v3605
  %v5002 = vpack.c.b16 %v3610, %v3606
  %v5003 = vpack.c.b16 %v3611, %v3607
  %v5004 = vpack.c.b16 %v3612, %v3608
  %v5005 = vpack.c.b16 %v3617, %v3613
  %v5006 = vpack.c.b16 %v3618, %v3614
  %v5007 = vpack.c.b16 %v3619, %v3615
  %v5008 = vpack.c.b16 %v3620, %v3616
  %v5009 = vpack.c.b16 %v3625, %v3621
  %v5010 = vpack.c.b16 %v3626, %v3622
  %v5011 = vpack.c.b16 %v3627, %v3623
  %v5012 = vpack.c.b16 %v3628, %v3624
  %v5013 = vpack.c.b16 %v3633, %v3629
  %v5014 = vpack.c.b16 %v3634, %v3630
  %v5015 = vpack.c.b16 %v3635, %v3631
  %v5016 = vpack.c.b16 %v3636, %v3632
  %v5017 = vpack.c.b16 %v3641, %v3637
  %v5018 = vpack.c.b16 %v3642, %v3638
  %v5019 = vpack.c.b16 %v3643, %v3639
  %v5020 = vpack.c.b16 %v3644, %v3640
  %v5021 = vpack.c.b16 %v3649, %v3645
  %v5022 = vpack.c.b16 %v3650, %v3646
  %v5023 = vpack.c.b16 %v3651, %v3647
  %v5024 = vpack.c.b16 %v3652, %v3648
  %v5025 = vpack.c.b16 %v3657, %v3653
  %v5026 = vpack.c.b16 %v3658, %v3654
  %v5027 = vpack.c.b16 %v3659, %v3655
  %v5028 = vpack.c.b16 %v3660, %v3656
  %v5029 = vpack.c.b16 %v3665, %v3661
  %v5030 = vpack.c.b16 %v3666, %v3662
  %v5031 = vpack.c.b16 %v3667, %v3663
  %v5032 = vpack.c.b16 %v3668, %v3664
  %v5033 = vpack.c.b16 %v3673, %v3669
  %v5034 = vpack.c.b16 %v3674, %v3670
  %v5035 = vpack.c.b16 %v3675, %v3671
  %v5036 = vpack.c.b16 %v3676, %v3672
  %v5037 = vpack.c.b16 %v3681, %v3677
  %v5038 = vpack.c.b16 %v3682, %v3678
  %v5039 = vpack.c.b16 %v3683, %v3679
  %v5040 = vpack.c.b16 %v3684, %v3680
  %v5041 = vpack.c.b16 %v3689, %v3685
  %v5042 = vpack.c.b16 %v3690, %v3686
  %v5043 = vpack.c.b16 %v3691, %v3687
  %v5044 = vpack.c.b16 %v3692, %v3688
  %v5045 = vpack.c.b16 %v3697, %v3693
  %v5046 = vpack.c.b16 %v3698, %v3694
  %v5047 = vpack.c.b16 %v3699, %v3695
  %v5048 = vpack.c.b16 %v3700, %v3696
  %v5049 = vpack.c.b16 %v3705, %v3701
  %v5050 = vpack.c.b16 %v3706, %v3702
  %v5051 = vpack.c.b16 %v3707, %v3703
  %v5052 = vpack.c.b16 %v3708, %v3704
  %v5053 = vpack.c.b16 %v3713, %v3709
  %v5054 = vpack.c.b16 %v3714, %v3710
  %v5055 = vpack.c.b16 %v3715, %v3711
  %v5056 = vpack.c.b16 %v3716, %v3712
  %v5057 = vpack.c.b16 %v3721, %v3717
  %v5058 = vpack.c.b16 %v3722, %v3718
  %v5059 = vpack.c.b16 %v3723, %v3719
  %v5060 = vpack.c.b16 %v3724, %v3720
  %v5061 = vpack.c.b16 %v3729, %v3725
  %v5062 = vpack.c.b16 %v3730, %v3726
  %v5063 = vpack.c.b16 %v3731, %v3727
  %v5064 = vpack.c.b16 %v3732, %v3728
  %v5065 = vpack.c.b16 %v3737, %v3733
  %v5066 = vpack.c.b16 %v3738, %v3734
  %v5067 = vpack.c.b16 %v3739, %v3735
  %v5068 = vpack.c.b16 %v3740, %v3736
  %v5069 = vpack.c.b16 %v3745, %v3741
  %v5070 = vpack.c.b16 %v3746, %v3742
  %v5071 = vpack.c.b16 %v3747, %v3743
  %v5072 = vpack.c.b16 %v3748, %v3744
  %v5073 = vpack.c.b16 %v3753, %v3749
  %v5074 = vpack.c.b16 %v3754, %v3750
  %v5075 = vpack.c.b16 %v3755, %v3751
  %v5076 = vpack.c.b16 %v3756, %v3752
  %v5077 = vpack.c.b16 %v3761, %v3757
  %v5078 = vpack.c.b16 %v3762, %v3758
  %v5079 = vpack.c.b16 %v3763, %v3759
  %v5080 = vpack.c.b16 %v3764, %v3760
  %v5081 = vpack.c.b16 %v3769, %v3765
  %v5082 = vpack.c.b16 %v3770, %v3766
  %v5083 = vpack.c.b16 %v3771, %v3767
  %v5084 = vpack.c.b16 %v3772, %v3768
  %v5085 = vpack.c.b16 %v3777, %v3773
  %v5086 = vpack.c.b16 %v3778, %v3774
  %v5087 = vpack.c.b16 %v3779, %v3775
  %v5088 = vpack.c.b16 %v3780, %v3776
  %v5089 = vpack.c.b16 %v3785, %v3781
  %v5090 = vpack.c.b16 %v3786, %v3782
  %v5091 = vpack.c.b16 %v3787, %v3783
  %v5092 = vpack.c.b16 %v3788, %v3784
  %v5093 = vpack.c.b16 %v3793, %v3789
  %v5094 = vpack.c.b16 %v3794, %v3790
  %v5095 = vpack.c.b16 %v3795, %v3791
  %v5096 = vpack.c.b16 %v3796, %v3792
  %v5097 = vpack.c.b16 %v3801, %v3797
  %v5098 = vpack.c.b16 %v3802, %v3798
  %v5099 = vpack.c.b16 %v3803, %v3799
  %v5100 = vpack.c.b16 %v3804, %v3800
  %v5101 = vpack.c.b16 %v3809, %v3805
  %v5102 = vpack.c.b16 %v3810, %v3806
  %v5103 = vpack.c.b16 %v3811, %v3807
  %v5104 = vpack.c.b16 %v3812, %v3808
  %v5105 = vpack.c.b16 %v3817, %v3813
  %v5106 = vpack.c.b16 %v3818, %v3814
  %v5107 = vpack.c.b16 %v3819, %v3815
  %v5108 = vpack.c.b16 %v3820, %v3816
  %v5109 = vpack.c.b16 %v3825, %v3821
  %v5110 = vpack.c.b16 %v3826, %v3822
  %v5111 = vpack.c.b16 %v3827, %v3823
  %v5112 = vpack.c.b16 %v3828, %v3824
  %v5113 = vpack.c.b16 %v3833, %v3829
  %v5114 = vpack.c.b16 %v3834, %v3830
  %v5115 = vpack.c.b16 %v3835, %v3831
  %v5116 = vpack.c.b16 %v3836, %v3832
  %v5117 = vpack.c.b16 %v3841, %v3837
  %v5118 = vpack.c.b16 %v3842, %v3838
  %v5119 = vpack.c.b16 %v3843, %v3839
  %v5120 = vpack.c.b16 %v3844, %v3840
  %v5121 = vpack.c.b16 %v3849, %v3845
  %v5122 = vpack.c.b16 %v3850, %v3846
  %v5123 = vpack.c.b16 %v3851, %v3847
  %v5124 = vpack.c.b16 %v3852, %v3848
  %v5125 = vpack.c.b16 %v3857, %v3853
  %v5126 = vpack.c.b16 %v3858, %v3854
  %v5127 = vpack.c.b16 %v3859, %v3855
  %v5128 = vpack.c.b16 %v3860, %v3856
  %v5129 = vpack.c.b16 %v3865, %v3861
  %v5130 = vpack.c.b16 %v3866, %v3862
  %v5131 = vpack.c.b16 %v3867, %v3863
  %v5132 = vpack.c.b16 %v3868, %v3864
  %v5133 = vpack.c.b16 %v3873, %v3869
  %v5134 = vpack.c.b16 %v3874, %v3870
  %v5135 = vpack.c.b16 %v3875, %v3871
  %v5136 = vpack.c.b16 %v3876, %v3872
  %v5137 = vpack.c.b16 %v3881, %v3877
  %v5138 = vpack.c.b16 %v3882, %v3878
  %v5139 = vpack.c.b16 %v3883, %v3879
  %v5140 = vpack.c.b16 %v3884, %v3880
  %v5141 = vpack.c.b16 %v3889, %v3885
  %v5142 = vpack.c.b16 %v3890, %v3886
  %v5143 = vpack.c.b16 %v3891, %v3887
  %v5144 = vpack.c.b16 %v3892, %v3888
  %v5145 = vpack.c.b16 %v3897, %v3893
  %v5146 = vpack.c.b16 %v3898, %v3894
  %v5147 = vpack.c.b16 %v3899, %v3895
  %v5148 = vpack.c.b16 %v3900, %v3896
  %v5149 = vpack.c.b16 %v3905, %v3901
  %v5150 = vpack.c.b16 %v3906, %v3902
  %v5151 = vpack.c.b16 %v3907, %v3903
  %v5152 = vpack.c.b16 %v3908, %v3904
  %v5153 = vpack.c.b16 %v3913, %v3909
  %v5154 = vpack.c.b16 %v3914, %v3910
  %v5155 = vpack.c.b16 %v3915, %v3911
  %v5156 = vpack.c.b16 %v3916, %v3912
  %v5157 = vpack.c.b16 %v3921, %v3917
  %v5158 = vpack.c.b16 %v3922, %v3918
  %v5159 = vpack.c.b16 %v3923, %v3919
  %v5160 = vpack.c.b16 %v3924, %v3920
  %v5161 = vpack.c.b16 %v3929, %v3925
  %v5162 = vpack.c.b16 %v3930, %v3926
  %v5163 = vpack.c.b16 %v3931, %v3927
  %v5164 = vpack.c.b16 %v3932, %v3928
  %v5165 = vpack.c.b16 %v3937, %v3933
  %v5166 = vpack.c.b16 %v3938, %v3934
  %v5167 = vpack.c.b16 %v3939, %v3935
  %v5168 = vpack.c.b16 %v3940, %v3936
  %v5169 = vpack.c.b16 %v3945, %v3941
  %v5170 = vpack.c.b16 %v3946, %v3942
  %v5171 = vpack.c.b16 %v3947, %v3943
  %v5172 = vpack.c.b16 %v3948, %v3944
  %v5173 = vpack.c.b16 %v3953, %v3949
  %v5174 = vpack.c.b16 %v3954, %v3950
  %v5175 = vpack.c.b16 %v3955, %v3951
  %v5176 = vpack.c.b16 %v3956, %v3952
  %v5177 = vpack.c.b16 %v3961, %v3957
  %v5178 = vpack.c.b16 %v3962, %v3958
  %v5179 = vpack.c.b16 %v3963, %v3959
  %v5180 = vpack.c.b16 %v3964, %v3960
  %v5181 = vpack.c.b16 %v3969, %v3965
  %v5182 = vpack.c.b16 %v3970, %v3966
  %v5183 = vpack.c.b16 %v3971, %v3967
  %v5184 = vpack.c.b16 %v3972, %v3968
  %v5185 = vpack.c.b16 %v3977, %v3973
  %v5186 = vpack.c.b16 %v3978, %v3974
  %v5187 = vpack.c.b16 %v3979, %v3975
  %v5188 = vpack.c.b16 %v3980, %v3976
  %v5189 = vpack.c.b16 %v3985, %v3981
  %v5190 = vpack.c.b16 %v3986, %v3982
  %v5191 = vpack.c.b16 %v3987, %v3983
  %v5192 = vpack.c.b16 %v3988, %v3984
  %v5193 = vpack.c.b16 %v3993, %v3989
  %v5194 = vpack.c.b16 %v3994, %v3990
  %v5195 = vpack.c.b16 %v3995, %v3991
  %v5196 = vpack.c.b16 %v3996, %v3992
  %v5197 = vpack.c.b16 %v4001, %v3997
  %v5198 = vpack.c.b16 %v4002, %v3998
  %v5199 = vpack.c.b16 %v4003, %v3999
  %v5200 = vpack.c.b16 %v4004, %v4000
  %v5201 = vpack.c.b16 %v4009, %v4005
  %v5202 = vpack.c.b16 %v4010, %v4006
  %v5203 = vpack.c.b16 %v4011, %v4007
  %v5204 = vpack.c.b16 %v4012, %v4008
  %v5205 = vpack.c.b16 %v4017, %v4013
  %v5206 = vpack.c.b16 %v4018, %v4014
  %v5207 = vpack.c.b16 %v4019, %v4015
  %v5208 = vpack.c.b16 %v4020, %v4016
  %v5209 = vpack.c.b16 %v4025, %v4021
  %v5210 = vpack.c.b16 %v4026, %v4022
  %v5211 = vpack.c.b16 %v4027, %v4023
  %v5212 = vpack.c.b16 %v4028, %v4024
  %v5213 = vpack.c.b16 %v4033, %v4029
  %v5214 = vpack.c.b16 %v4034, %v4030
  %v5215 = vpack.c.b16 %v4035, %v4031
  %v5216 = vpack.c.b16 %v4036, %v4032
  %v5217 = vpack.c.b16 %v4041, %v4037
  %v5218 = vpack.c.b16 %v4042, %v4038
  %v5219 = vpack.c.b16 %v4043, %v4039
  %v5220 = vpack.c.b16 %v4044, %v4040
  %v5221 = vpack.c.b16 %v4049, %v4045
  %v5222 = vpack.c.b16 %v4050, %v4046
  %v5223 = vpack.c.b16 %v4051, %v4047
  %v5224 = vpack.c.b16 %v4052, %v4048
  %v5225 = vpack.c.b16 %v4057, %v4053
  %v5226 = vpack.c.b16 %v4058, %v4054
  %v5227 = vpack.c.b16 %v4059, %v4055
  %v5228 = vpack.c.b16 %v4060, %v4056
  %v5229 = vpack.c.b16 %v4065, %v4061
  %v5230 = vpack.c.b16 %v4066, %v4062
  %v5231 = vpack.c.b16 %v4067, %v4063
  %v5232 = vpack.c.b16 %v4068, %v4064
  %v5233 = vpack.c.b16 %v4073, %v4069
  %v5234 = vpack.c.b16 %v4074, %v4070
  %v5235 = vpack.c.b16 %v4075, %v4071
  %v5236 = vpack.c.b16 %v4076, %v4072
  %v5237 = vpack.c.b16 %v4081, %v4077
  %v5238 = vpack.c.b16 %v4082, %v4078
  %v5239 = vpack.c.b16 %v4083, %v4079
  %v5240 = vpack.c.b16 %v4084, %v4080
  %v5241 = vpack.c.b16 %v4089, %v4085
  %v5242 = vpack.c.b16 %v4090, %v4086
  %v5243 = vpack.c.b16 %v4091, %v4087
  %v5244 = vpack.c.b16 %v4092, %v4088
  %v5245 = vpack.c.b16 %v4097, %v4093
  %v5246 = vpack.c.b16 %v4098, %v4094
  %v5247 = vpack.c.b16 %v4099, %v4095
  %v5248 = vpack.c.b16 %v4100, %v4096
  %v5249 = vpack.c.b16 %v4105, %v4101
  %v5250 = vpack.c.b16 %v4106, %v4102
  %v5251 = vpack.c.b16 %v4107, %v4103
  %v5252 = vpack.c.b16 %v4108, %v4104
  %v5253 = vpack.c.b16 %v4113, %v4109
  %v5254 = vpack.c.b16 %v4114, %v4110
  %v5255 = vpack.c.b16 %v4115, %v4111
  %v5256 = vpack.c.b16 %v4116, %v4112
  %v5257 = vpack.c.b16 %v4121, %v4117
  %v5258 = vpack.c.b16 %v4122, %v4118
  %v5259 = vpack.c.b16 %v4123, %v4119
  %v5260 = vpack.c.b16 %v4124, %v4120
  %v5261 = vpack.c.b16 %v4129, %v4125
  %v5262 = vpack.c.b16 %v4130, %v4126
  %v5263 = vpack.c.b16 %v4131, %v4127
  %v5264 = vpack.c.b16 %v4132, %v4128
  %v5265 = vpack.c.b16 %v4137, %v4133
  %v5266 = vpack.c.b16 %v4138, %v4134
  %v5267 = vpack.c.b16 %v4139, %v4135
  %v5268 = vpack.c.b16 %v4140, %v4136
  %v5269 = vpack.c.b16 %v4145, %v4141
  %v5270 = vpack.c.b16 %v4146, %v4142
  %v5271 = vpack.c.b16 %v4147, %v4143
  %v5272 = vpack.c.b16 %v4148, %v4144
  %v5273 = vpack.c.b16 %v4153, %v4149
  %v5274 = vpack.c.b16 %v4154, %v4150
  %v5275 = vpack.c.b16 %v4155, %v4151
  %v5276 = vpack.c.b16 %v4156, %v4152
  %v5277 = vpack.c.b16 %v4161, %v4157
  %v5278 = vpack.c.b16 %v4162, %v4158
  %v5279 = vpack.c.b16 %v4163, %v4159
  %v5280 = vpack.c.b16 %v4164, %v4160
  %v5281 = vpack.c.b16 %v4169, %v4165
  %v5282 = vpack.c.b16 %v4170, %v4166
  %v5283 = vpack.c.b16 %v4171, %v4167
  %v5284 = vpack.c.b16 %v4172, %v4168
  %v5285 = vpack.c.b16 %v4177, %v4173
  %v5286 = vpack.c.b16 %v4178, %v4174
  %v5287 = vpack.c.b16 %v4179, %v4175
  %v5288 = vpack.c.b16 %v4180, %v4176
  %v5289 = vpack.c.b16 %v4185, %v4181
  %v5290 = vpack.c.b16 %v4186, %v4182
  %v5291 = vpack.c.b16 %v4187, %v4183
  %v5292 = vpack.c.b16 %v4188, %v4184
  %v5293 = vpack.c.b16 %v4193, %v4189
  %v5294 = vpack.c.b16 %v4194, %v4190
  %v5295 = vpack.c.b16 %v4195, %v4191
  %v5296 = vpack.c.b16 %v4196, %v4192
  %v5297 = vpack.c.b16 %v4201, %v4197
  %v5298 = vpack.c.b16 %v4202, %v4198
  %v5299 = vpack.c.b16 %v4203, %v4199
  %v5300 = vpack.c.b16 %v4204, %v4200
  %v5301 = vpack.c.b16 %v4209, %v4205
  %v5302 = vpack.c.b16 %v4210, %v4206
  %v5303 = vpack.c.b16 %v4211, %v4207
  %v5304 = vpack.c.b16 %v4212, %v4208
  %v5305 = vpack.c.b16 %v4217, %v4213
  %v5306 = vpack.c.b16 %v4218, %v4214
  %v5307 = vpack.c.b16 %v4219, %v4215
  %v5308 = vpack.c.b16 %v4220, %v4216
  %v5309 = vpack.c.b16 %v4225, %v4221
  %v5310 = vpack.c.b16 %v4226, %v4222
  %v5311 = vpack.c.b16 %v4227, %v4223
  %v5312 = vpack.c.b16 %v4228, %v4224
  %v5313 = vpack.c.b16 %v4233, %v4229
  %v5314 = vpack.c.b16 %v4234, %v4230
  %v5315 = vpack.c.b16 %v4235, %v4231
  %v5316 = vpack.c.b16 %v4236, %v4232
  %v5317 = vpack.c.b16 %v4241, %v4237
  %v5318 = vpack.c.b16 %v4242, %v4238
  %v5319 = vpack.c.b16 %v4243, %v4239
  %v5320 = vpack.c.b16 %v4244, %v4240
  %v5321 = vpack.c.b16 %v4249, %v4245
  %v5322 = vpack.c.b16 %v4250, %v4246
  %v5323 = vpack.c.b16 %v4251, %v4247
  %v5324 = vpack.c.b16 %v4252, %v4248
  %v5325 = vpack.c.b16 %v4257, %v4253
  %v5326 = vpack.c.b16 %v4258, %v4254
  %v5327 = vpack.c.b16 %v4259, %v4255
  %v5328 = vpack.c.b16 %v4260, %v4256
  %v5329 = vpack.c.b16 %v4265, %v4261
  %v5330 = vpack.c.b16 %v4266, %v4262
  %v5331 = vpack.c.b16 %v4267, %v4263
  %v5332 = vpack.c.b16 %v4268, %v4264
  %v5333 = vpack.c.b16 %v4273, %v4269
  %v5334 = vpack.c.b16 %v4274, %v4270
  %v5335 = vpack.c.b16 %v4275, %v4271
  %v5336 = vpack.c.b16 %v4276, %v4272
  %v5337 = vpack.c.b16 %v4281, %v4277
  %v5338 = vpack.c.b16 %v4282, %v4278
  %v5339 = vpack.c.b16 %v4283, %v4279
  %v5340 = vpack.c.b16 %v4284, %v4280
  %v5341 = vpack.c.b16 %v4289, %v4285
  %v5342 = vpack.c.b16 %v4290, %v4286
  %v5343 = vpack.c.b16 %v4291, %v4287
  %v5344 = vpack.c.b16 %v4292, %v4288
  %v5345 = vpack.c.b16 %v4297, %v4293
  %v5346 = vpack.c.b16 %v4298, %v4294
  %v5347 = vpack.c.b16 %v4299, %v4295
  %v5348 = vpack.c.b16 %v4300, %v4296
  %v5349 = vpack.c.b16 %v4305, %v4301
  %v5350 = vpack.c.b16 %v4306, %v4302
  %v5351 = vpack.c.b16 %v4307, %v4303
  %v5352 = vpack.c.b16 %v4308, %v4304
  %v5353 = vpack.c.b16 %v4313, %v4309
  %v5354 = vpack.c.b16 %v4314, %v4310
  %v5355 = vpack.c.b16 %v4315, %v4311
  %v5356 = vpack.c.b16 %v4316, %v4312
  %v5357 = vpack.c.b16 %v4321, %v4317
  %v5358 = vpack.c.b16 %v4322, %v4318
  %v5359 = vpack.c.b16 %v4323, %v4319
  %v5360 = vpack.c.b16 %v4324, %v4320
  %v5361 = vpack.c.b16 %v4329, %v4325
  %v5362 = vpack.c.b16 %v4330, %v4326
  %v5363 = vpack.c.b16 %v4331, %v4327
  %v5364 = vpack.c.b16 %v4332, %v4328
  %v5365 = vpack.c.b16 %v4337, %v4333
  %v5366 = vpack.c.b16 %v4338, %v4334
  %v5367 = vpack.c.b16 %v4339, %v4335
  %v5368 = vpack.c.b16 %v4340, %v4336
  %v5369 = vpack.c.b16 %v4345, %v4341
  %v5370 = vpack.c.b16 %v4346, %v4342
  %v5371 = vpack.c.b16 %v4347, %v4343
  %v5372 = vpack.c.b16 %v4348, %v4344
  %6397 = vmatprep.subr.bf16.mxu0 %v4350
  %6398 = vmatpush1.bf16.msra.mxu0 %v4349
  %6399 = vmatprep.subr.bf16.mxu0 %v4354
  %6400 = vmatpush1.bf16.msra.mxu0 %v4353
  %6401 = vmatprep.subr.bf16.mxu0 %v4358
  %6402 = vmatpush1.bf16.msra.mxu0 %v4357
  %6403 = vmatprep.subr.bf16.mxu0 %v4362
  %6404 = vmatpush1.bf16.msra.mxu0 %v4361
  %6405 = vmatprep.subr.bf16.mxu0 %v4366
  %6406 = vmatpush1.bf16.msra.mxu0 %v4365
  %6407 = vmatprep.subr.bf16.mxu0 %v4370
  %6408 = vmatpush1.bf16.msra.mxu0 %v4369
  %6409 = vmatprep.subr.bf16.mxu0 %v4374
  %6410 = vmatpush1.bf16.msra.mxu0 %v4373
  %6411 = vmatprep.subr.bf16.mxu0 %v4378
  %6412 = vmatpush1.bf16.msra.mxu0 %v4377
  %6413 = vmatprep.subr.bf16.mxu0 %v4382
  %6414 = vmatpush1.bf16.msra.mxu0 %v4381
  %6415 = vmatprep.subr.bf16.mxu0 %v4386
  %6416 = vmatpush1.bf16.msra.mxu0 %v4385
  %6417 = vmatprep.subr.bf16.mxu0 %v4390
  %6418 = vmatpush1.bf16.msra.mxu0 %v4389
  %6419 = vmatprep.subr.bf16.mxu0 %v4394
  %6420 = vmatpush1.bf16.msra.mxu0 %v4393
  %6421 = vmatprep.subr.bf16.mxu0 %v4398
  %6422 = vmatpush1.bf16.msra.mxu0 %v4397
  %6423 = vmatprep.subr.bf16.mxu0 %v4402
  %6424 = vmatpush1.bf16.msra.mxu0 %v4401
  %6425 = vmatprep.subr.bf16.mxu0 %v4406
  %6426 = vmatpush1.bf16.msra.mxu0 %v4405
  %6427 = vmatprep.subr.bf16.mxu0 %v4410
  %6428 = vmatpush1.bf16.msra.mxu0 %v4409
  %6429 = vmatprep.mubr.bf16.mxu0 %v1086
  %6430 = vmatmul.mubr.bf16.gmra.mrb[0].mxu0 %v1072
  %v6431 = vpop.f32.mrb[0].mxu0
  %v6432 = vadd.f32 0.0, %v6431
  %v6433 = vpop.f32.mrb[0].mxu0
  %v6434 = vadd.f32 0.0, %v6433
  %v6435 = vpop.f32.mrb[0].mxu0
  %v6436 = vpop.f32.mrb[0].mxu0
  %6437 = vdwg.mxu0
  %6438 = vmatprep.subr.bf16.mxu0 %v4414
  %6439 = vmatpush1.bf16.msra.mxu0 %v4413
  %6440 = vmatprep.subr.bf16.mxu0 %v4418
  %6441 = vmatpush1.bf16.msra.mxu0 %v4417
  %6442 = vmatprep.subr.bf16.mxu0 %v4422
  %6443 = vmatpush1.bf16.msra.mxu0 %v4421
  %6444 = vmatprep.subr.bf16.mxu0 %v4426
  %6445 = vmatpush1.bf16.msra.mxu0 %v4425
  %6446 = vmatprep.subr.bf16.mxu0 %v4430
  %6447 = vmatpush1.bf16.msra.mxu0 %v4429
  %6448 = vmatprep.subr.bf16.mxu0 %v4434
  %6449 = vmatpush1.bf16.msra.mxu0 %v4433
  %6450 = vmatprep.subr.bf16.mxu0 %v4438
  %6451 = vmatpush1.bf16.msra.mxu0 %v4437
  %6452 = vmatprep.subr.bf16.mxu0 %v4442
  %6453 = vmatpush1.bf16.msra.mxu0 %v4441
  %6454 = vmatprep.subr.bf16.mxu0 %v4446
  %6455 = vmatpush1.bf16.msra.mxu0 %v4445
  %6456 = vmatprep.subr.bf16.mxu0 %v4450
  %6457 = vmatpush1.bf16.msra.mxu0 %v4449
  %6458 = vmatprep.subr.bf16.mxu0 %v4454
  %6459 = vmatpush1.bf16.msra.mxu0 %v4453
  %6460 = vmatprep.subr.bf16.mxu0 %v4458
  %6461 = vmatpush1.bf16.msra.mxu0 %v4457
  %6462 = vmatprep.subr.bf16.mxu0 %v4462
  %6463 = vmatpush1.bf16.msra.mxu0 %v4461
  %6464 = vmatprep.subr.bf16.mxu0 %v4466
  %6465 = vmatpush1.bf16.msra.mxu0 %v4465
  %6466 = vmatprep.subr.bf16.mxu0 %v4470
  %6467 = vmatpush1.bf16.msra.mxu0 %v4469
  %6468 = vmatprep.subr.bf16.mxu0 %v4474
  %6469 = vmatpush1.bf16.msra.mxu0 %v4473
  %6470 = vmatprep.mubr.bf16.mxu0 %v1096
  %6471 = vmatmul.mubr.bf16.gmra.mrb[0].mxu0 %v1094
  %v6472 = vpop.f32.mrb[0].mxu0
  %v6473 = vadd.f32 %v6432, %v6472
  %v6474 = vpop.f32.mrb[0].mxu0
  %v6475 = vadd.f32 %v6434, %v6474
  %v6476 = vpop.f32.mrb[0].mxu0
  %v6477 = vpop.f32.mrb[0].mxu0
  %6478 = vdwg.mxu0
  %6479 = vmatprep.subr.bf16.mxu0 %v4478
  %6480 = vmatpush1.bf16.msra.mxu0 %v4477
  %6481 = vmatprep.subr.bf16.mxu0 %v4482
  %6482 = vmatpush1.bf16.msra.mxu0 %v4481
  %6483 = vmatprep.subr.bf16.mxu0 %v4486
  %6484 = vmatpush1.bf16.msra.mxu0 %v4485
  %6485 = vmatprep.subr.bf16.mxu0 %v4490
  %6486 = vmatpush1.bf16.msra.mxu0 %v4489
  %6487 = vmatprep.subr.bf16.mxu0 %v4494
  %6488 = vmatpush1.bf16.msra.mxu0 %v4493
  %6489 = vmatprep.subr.bf16.mxu0 %v4498
  %6490 = vmatpush1.bf16.msra.mxu0 %v4497
  %6491 = vmatprep.subr.bf16.mxu0 %v4502
  %6492 = vmatpush1.bf16.msra.mxu0 %v4501
  %6493 = vmatprep.subr.bf16.mxu0 %v4506
  %6494 = vmatpush1.bf16.msra.mxu0 %v4505
  %6495 = vmatprep.subr.bf16.mxu0 %v4510
  %6496 = vmatpush1.bf16.msra.mxu0 %v4509
  %6497 = vmatprep.subr.bf16.mxu0 %v4514
  %6498 = vmatpush1.bf16.msra.mxu0 %v4513
  %6499 = vmatprep.subr.bf16.mxu0 %v4518
  %6500 = vmatpush1.bf16.msra.mxu0 %v4517
  %6501 = vmatprep.subr.bf16.mxu0 %v4522
  %6502 = vmatpush1.bf16.msra.mxu0 %v4521
  %6503 = vmatprep.subr.bf16.mxu0 %v4526
  %6504 = vmatpush1.bf16.msra.mxu0 %v4525
  %6505 = vmatprep.subr.bf16.mxu0 %v4530
  %6506 = vmatpush1.bf16.msra.mxu0 %v4529
  %6507 = vmatprep.subr.bf16.mxu0 %v4534
  %6508 = vmatpush1.bf16.msra.mxu0 %v4533
  %6509 = vmatprep.subr.bf16.mxu0 %v4538
  %6510 = vmatpush1.bf16.msra.mxu0 %v4537
  %6511 = vmatprep.mubr.bf16.mxu0 %v1093
  %6512 = vmatmul.mubr.bf16.gmra.mrb[0].mxu0 %v1079
  %v6513 = vpop.f32.mrb[0].mxu0
  %v6514 = vadd.f32 %v6473, %v6513
  %v6515 = vpop.f32.mrb[0].mxu0
  %v6516 = vadd.f32 %v6475, %v6515
  %v6517 = vpop.f32.mrb[0].mxu0
  %v6518 = vpop.f32.mrb[0].mxu0
  %6519 = vdwg.mxu0
  %6520 = vmatprep.subr.bf16.mxu0 %v4542
  %6521 = vmatpush1.bf16.msra.mxu0 %v4541
  %6522 = vmatprep.subr.bf16.mxu0 %v4546
  %6523 = vmatpush1.bf16.msra.mxu0 %v4545
  %6524 = vmatprep.subr.bf16.mxu0 %v4550
  %6525 = vmatpush1.bf16.msra.mxu0 %v4549
  %6526 = vmatprep.subr.bf16.mxu0 %v4554
  %6527 = vmatpush1.bf16.msra.mxu0 %v4553
  %6528 = vmatprep.subr.bf16.mxu0 %v4558
  %6529 = vmatpush1.bf16.msra.mxu0 %v4557
  %6530 = vmatprep.subr.bf16.mxu0 %v4562
  %6531 = vmatpush1.bf16.msra.mxu0 %v4561
  %6532 = vmatprep.subr.bf16.mxu0 %v4566
  %6533 = vmatpush1.bf16.msra.mxu0 %v4565
  %6534 = vmatprep.subr.bf16.mxu0 %v4570
  %6535 = vmatpush1.bf16.msra.mxu0 %v4569
  %6536 = vmatprep.subr.bf16.mxu0 %v4574
  %6537 = vmatpush1.bf16.msra.mxu0 %v4573
  %6538 = vmatprep.subr.bf16.mxu0 %v4578
  %6539 = vmatpush1.bf16.msra.mxu0 %v4577
  %6540 = vmatprep.subr.bf16.mxu0 %v4582
  %6541 = vmatpush1.bf16.msra.mxu0 %v4581
  %6542 = vmatprep.subr.bf16.mxu0 %v4586
  %6543 = vmatpush1.bf16.msra.mxu0 %v4585
  %6544 = vmatprep.subr.bf16.mxu0 %v4590
  %6545 = vmatpush1.bf16.msra.mxu0 %v4589
  %6546 = vmatprep.subr.bf16.mxu0 %v4594
  %6547 = vmatpush1.bf16.msra.mxu0 %v4593
  %6548 = vmatprep.subr.bf16.mxu0 %v4598
  %6549 = vmatpush1.bf16.msra.mxu0 %v4597
  %6550 = vmatprep.subr.bf16.mxu0 %v4602
  %6551 = vmatpush1.bf16.msra.mxu0 %v4601
  %6552 = vmatprep.mubr.bf16.mxu0 %v1097
  %6553 = vmatmul.mubr.bf16.gmra.mrb[0].mxu0 %v1095
  %v6554 = vpop.f32.mrb[0].mxu0
  %v6555 = vadd.f32 %v6514, %v6554
  %v6556 = vpop.f32.mrb[0].mxu0
  %v6557 = vadd.f32 %v6516, %v6556
  %v6558 = vpop.f32.mrb[0].mxu0
  %v6559 = vpop.f32.mrb[0].mxu0
  %6560 = vdwg.mxu0
  %6561 = vmatprep.subr.bf16.mxu0 %v4606
  %6562 = vmatpush1.bf16.msra.mxu0 %v4605
  %6563 = vmatprep.subr.bf16.mxu0 %v4610
  %6564 = vmatpush1.bf16.msra.mxu0 %v4609
  %6565 = vmatprep.subr.bf16.mxu0 %v4614
  %6566 = vmatpush1.bf16.msra.mxu0 %v4613
  %6567 = vmatprep.subr.bf16.mxu0 %v4618
  %6568 = vmatpush1.bf16.msra.mxu0 %v4617
  %6569 = vmatprep.subr.bf16.mxu0 %v4622
  %6570 = vmatpush1.bf16.msra.mxu0 %v4621
  %6571 = vmatprep.subr.bf16.mxu0 %v4626
  %6572 = vmatpush1.bf16.msra.mxu0 %v4625
  %6573 = vmatprep.subr.bf16.mxu0 %v4630
  %6574 = vmatpush1.bf16.msra.mxu0 %v4629
  %6575 = vmatprep.subr.bf16.mxu0 %v4634
  %6576 = vmatpush1.bf16.msra.mxu0 %v4633
  %6577 = vmatprep.subr.bf16.mxu0 %v4638
  %6578 = vmatpush1.bf16.msra.mxu0 %v4637
  %6579 = vmatprep.subr.bf16.mxu0 %v4642
  %6580 = vmatpush1.bf16.msra.mxu0 %v4641
  %6581 = vmatprep.subr.bf16.mxu0 %v4646
  %6582 = vmatpush1.bf16.msra.mxu0 %v4645
  %6583 = vmatprep.subr.bf16.mxu0 %v4650
  %6584 = vmatpush1.bf16.msra.mxu0 %v4649
  %6585 = vmatprep.subr.bf16.mxu0 %v4654
  %6586 = vmatpush1.bf16.msra.mxu0 %v4653
  %6587 = vmatprep.subr.bf16.mxu0 %v4658
  %6588 = vmatpush1.bf16.msra.mxu0 %v4657
  %6589 = vmatprep.subr.bf16.mxu0 %v4662
  %6590 = vmatpush1.bf16.msra.mxu0 %v4661
  %6591 = vmatprep.subr.bf16.mxu0 %v4666
  %6592 = vmatpush1.bf16.msra.mxu0 %v4665
  %6593 = vmatprep.mubr.bf16.mxu0 %v1135
  %6594 = vmatmul.mubr.bf16.gmra.mrb[0].mxu0 %v1121
  %v6595 = vpop.f32.mrb[0].mxu0
  %v6596 = vadd.f32 %v6555, %v6595
  %v6597 = vpop.f32.mrb[0].mxu0
  %v6598 = vadd.f32 %v6557, %v6597
  %v6599 = vpop.f32.mrb[0].mxu0
  %v6600 = vpop.f32.mrb[0].mxu0
  %6601 = vdwg.mxu0
  %6602 = vmatprep.subr.bf16.mxu0 %v4670
  %6603 = vmatpush1.bf16.msra.mxu0 %v4669
  %6604 = vmatprep.subr.bf16.mxu0 %v4674
  %6605 = vmatpush1.bf16.msra.mxu0 %v4673
  %6606 = vmatprep.subr.bf16.mxu0 %v4678
  %6607 = vmatpush1.bf16.msra.mxu0 %v4677
  %6608 = vmatprep.subr.bf16.mxu0 %v4682
  %6609 = vmatpush1.bf16.msra.mxu0 %v4681
  %6610 = vmatprep.subr.bf16.mxu0 %v4686
  %6611 = vmatpush1.bf16.msra.mxu0 %v4685
  %6612 = vmatprep.subr.bf16.mxu0 %v4690
  %6613 = vmatpush1.bf16.msra.mxu0 %v4689
  %6614 = vmatprep.subr.bf16.mxu0 %v4694
  %6615 = vmatpush1.bf16.msra.mxu0 %v4693
  %6616 = vmatprep.subr.bf16.mxu0 %v4698
  %6617 = vmatpush1.bf16.msra.mxu0 %v4697
  %6618 = vmatprep.subr.bf16.mxu0 %v4702
  %6619 = vmatpush1.bf16.msra.mxu0 %v4701
  %6620 = vmatprep.subr.bf16.mxu0 %v4706
  %6621 = vmatpush1.bf16.msra.mxu0 %v4705
  %6622 = vmatprep.subr.bf16.mxu0 %v4710
  %6623 = vmatpush1.bf16.msra.mxu0 %v4709
  %6624 = vmatprep.subr.bf16.mxu0 %v4714
  %6625 = vmatpush1.bf16.msra.mxu0 %v4713
  %6626 = vmatprep.subr.bf16.mxu0 %v4718
  %6627 = vmatpush1.bf16.msra.mxu0 %v4717
  %6628 = vmatprep.subr.bf16.mxu0 %v4722
  %6629 = vmatpush1.bf16.msra.mxu0 %v4721
  %6630 = vmatprep.subr.bf16.mxu0 %v4726
  %6631 = vmatpush1.bf16.msra.mxu0 %v4725
  %6632 = vmatprep.subr.bf16.mxu0 %v4730
  %6633 = vmatpush1.bf16.msra.mxu0 %v4729
  %6634 = vmatprep.mubr.bf16.mxu0 %v1145
  %6635 = vmatmul.mubr.bf16.gmra.mrb[0].mxu0 %v1143
  %v6636 = vpop.f32.mrb[0].mxu0
  %v6637 = vadd.f32 %v6596, %v6636
  %v6638 = vpop.f32.mrb[0].mxu0
  %v6639 = vadd.f32 %v6598, %v6638
  %v6640 = vpop.f32.mrb[0].mxu0
  %v6641 = vpop.f32.mrb[0].mxu0
  %6642 = vdwg.mxu0
  %6643 = vmatprep.subr.bf16.mxu0 %v4734
  %6644 = vmatpush1.bf16.msra.mxu0 %v4733
  %6645 = vmatprep.subr.bf16.mxu0 %v4738
  %6646 = vmatpush1.bf16.msra.mxu0 %v4737
  %6647 = vmatprep.subr.bf16.mxu0 %v4742
  %6648 = vmatpush1.bf16.msra.mxu0 %v4741
  %6649 = vmatprep.subr.bf16.mxu0 %v4746
  %6650 = vmatpush1.bf16.msra.mxu0 %v4745
  %6651 = vmatprep.subr.bf16.mxu0 %v4750
  %6652 = vmatpush1.bf16.msra.mxu0 %v4749
  %6653 = vmatprep.subr.bf16.mxu0 %v4754
  %6654 = vmatpush1.bf16.msra.mxu0 %v4753
  %6655 = vmatprep.subr.bf16.mxu0 %v4758
  %6656 = vmatpush1.bf16.msra.mxu0 %v4757
  %6657 = vmatprep.subr.bf16.mxu0 %v4762
  %6658 = vmatpush1.bf16.msra.mxu0 %v4761
  %6659 = vmatprep.subr.bf16.mxu0 %v4766
  %6660 = vmatpush1.bf16.msra.mxu0 %v4765
  %6661 = vmatprep.subr.bf16.mxu0 %v4770
  %6662 = vmatpush1.bf16.msra.mxu0 %v4769
  %6663 = vmatprep.subr.bf16.mxu0 %v4774
  %6664 = vmatpush1.bf16.msra.mxu0 %v4773
  %6665 = vmatprep.subr.bf16.mxu0 %v4778
  %6666 = vmatpush1.bf16.msra.mxu0 %v4777
  %6667 = vmatprep.subr.bf16.mxu0 %v4782
  %6668 = vmatpush1.bf16.msra.mxu0 %v4781
  %6669 = vmatprep.subr.bf16.mxu0 %v4786
  %6670 = vmatpush1.bf16.msra.mxu0 %v4785
  %6671 = vmatprep.subr.bf16.mxu0 %v4790
  %6672 = vmatpush1.bf16.msra.mxu0 %v4789
  %6673 = vmatprep.subr.bf16.mxu0 %v4794
  %6674 = vmatpush1.bf16.msra.mxu0 %v4793
  %6675 = vmatprep.mubr.bf16.mxu0 %v1142
  %6676 = vmatmul.mubr.bf16.gmra.mrb[0].mxu0 %v1128
  %v6677 = vpop.f32.mrb[0].mxu0
  %v6678 = vadd.f32 %v6637, %v6677
  %v6679 = vpop.f32.mrb[0].mxu0
  %v6680 = vadd.f32 %v6639, %v6679
  %v6681 = vpop.f32.mrb[0].mxu0
  %v6682 = vpop.f32.mrb[0].mxu0
  %6683 = vdwg.mxu0
  %6684 = vmatprep.subr.bf16.mxu0 %v4798
  %6685 = vmatpush1.bf16.msra.mxu0 %v4797
  %6686 = vmatprep.subr.bf16.mxu0 %v4802
  %6687 = vmatpush1.bf16.msra.mxu0 %v4801
  %6688 = vmatprep.subr.bf16.mxu0 %v4806
  %6689 = vmatpush1.bf16.msra.mxu0 %v4805
  %6690 = vmatprep.subr.bf16.mxu0 %v4810
  %6691 = vmatpush1.bf16.msra.mxu0 %v4809
  %6692 = vmatprep.subr.bf16.mxu0 %v4814
  %6693 = vmatpush1.bf16.msra.mxu0 %v4813
  %6694 = vmatprep.subr.bf16.mxu0 %v4818
  %6695 = vmatpush1.bf16.msra.mxu0 %v4817
  %6696 = vmatprep.subr.bf16.mxu0 %v4822
  %6697 = vmatpush1.bf16.msra.mxu0 %v4821
  %6698 = vmatprep.subr.bf16.mxu0 %v4826
  %6699 = vmatpush1.bf16.msra.mxu0 %v4825
  %6700 = vmatprep.subr.bf16.mxu0 %v4830
  %6701 = vmatpush1.bf16.msra.mxu0 %v4829
  %6702 = vmatprep.subr.bf16.mxu0 %v4834
  %6703 = vmatpush1.bf16.msra.mxu0 %v4833
  %6704 = vmatprep.subr.bf16.mxu0 %v4838
  %6705 = vmatpush1.bf16.msra.mxu0 %v4837
  %6706 = vmatprep.subr.bf16.mxu0 %v4842
  %6707 = vmatpush1.bf16.msra.mxu0 %v4841
  %6708 = vmatprep.subr.bf16.mxu0 %v4846
  %6709 = vmatpush1.bf16.msra.mxu0 %v4845
  %6710 = vmatprep.subr.bf16.mxu0 %v4850
  %6711 = vmatpush1.bf16.msra.mxu0 %v4849
  %6712 = vmatprep.subr.bf16.mxu0 %v4854
  %6713 = vmatpush1.bf16.msra.mxu0 %v4853
  %6714 = vmatprep.subr.bf16.mxu0 %v4858
  %6715 = vmatpush1.bf16.msra.mxu0 %v4857
  %6716 = vmatprep.mubr.bf16.mxu0 %v1146
  %6717 = vmatmul.mubr.bf16.gmra.mrb[0].mxu0 %v1144
  %v6718 = vpop.f32.mrb[0].mxu0
  %v6719 = vadd.f32 %v6678, %v6718
  %v6720 = vpop.f32.mrb[0].mxu0
  %v6721 = vadd.f32 %v6680, %v6720
  %v6722 = vpop.f32.mrb[0].mxu0
  %v6723 = vpop.f32.mrb[0].mxu0
  %6724 = vdwg.mxu0
  %6725 = vmatprep.subr.bf16.mxu0 %v4862
  %6726 = vmatpush1.bf16.msra.mxu0 %v4861
  %6727 = vmatprep.subr.bf16.mxu0 %v4866
  %6728 = vmatpush1.bf16.msra.mxu0 %v4865
  %6729 = vmatprep.subr.bf16.mxu0 %v4870
  %6730 = vmatpush1.bf16.msra.mxu0 %v4869
  %6731 = vmatprep.subr.bf16.mxu0 %v4874
  %6732 = vmatpush1.bf16.msra.mxu0 %v4873
  %6733 = vmatprep.subr.bf16.mxu0 %v4878
  %6734 = vmatpush1.bf16.msra.mxu0 %v4877
  %6735 = vmatprep.subr.bf16.mxu0 %v4882
  %6736 = vmatpush1.bf16.msra.mxu0 %v4881
  %6737 = vmatprep.subr.bf16.mxu0 %v4886
  %6738 = vmatpush1.bf16.msra.mxu0 %v4885
  %6739 = vmatprep.subr.bf16.mxu0 %v4890
  %6740 = vmatpush1.bf16.msra.mxu0 %v4889
  %6741 = vmatprep.subr.bf16.mxu0 %v4894
  %6742 = vmatpush1.bf16.msra.mxu0 %v4893
  %6743 = vmatprep.subr.bf16.mxu0 %v4898
  %6744 = vmatpush1.bf16.msra.mxu0 %v4897
  %6745 = vmatprep.subr.bf16.mxu0 %v4902
  %6746 = vmatpush1.bf16.msra.mxu0 %v4901
  %6747 = vmatprep.subr.bf16.mxu0 %v4906
  %6748 = vmatpush1.bf16.msra.mxu0 %v4905
  %6749 = vmatprep.subr.bf16.mxu0 %v4910
  %6750 = vmatpush1.bf16.msra.mxu0 %v4909
  %6751 = vmatprep.subr.bf16.mxu0 %v4914
  %6752 = vmatpush1.bf16.msra.mxu0 %v4913
  %6753 = vmatprep.subr.bf16.mxu0 %v4918
  %6754 = vmatpush1.bf16.msra.mxu0 %v4917
  %6755 = vmatprep.subr.bf16.mxu0 %v4922
  %6756 = vmatpush1.bf16.msra.mxu0 %v4921
  %6757 = vmatprep.mubr.bf16.mxu0 %v1184
  %6758 = vmatmul.mubr.bf16.gmra.mrb[0].mxu0 %v1170
  %v6759 = vpop.f32.mrb[0].mxu0
  %v6760 = vadd.f32 %v6719, %v6759
  %v6761 = vpop.f32.mrb[0].mxu0
  %v6762 = vadd.f32 %v6721, %v6761
  %v6763 = vpop.f32.mrb[0].mxu0
  %v6764 = vpop.f32.mrb[0].mxu0
  %6765 = vdwg.mxu0
  %6766 = vmatprep.subr.bf16.mxu0 %v4926
  %6767 = vmatpush1.bf16.msra.mxu0 %v4925
  %6768 = vmatprep.subr.bf16.mxu0 %v4930
  %6769 = vmatpush1.bf16.msra.mxu0 %v4929
  %6770 = vmatprep.subr.bf16.mxu0 %v4934
  %6771 = vmatpush1.bf16.msra.mxu0 %v4933
  %6772 = vmatprep.subr.bf16.mxu0 %v4938
  %6773 = vmatpush1.bf16.msra.mxu0 %v4937
  %6774 = vmatprep.subr.bf16.mxu0 %v4942
  %6775 = vmatpush1.bf16.msra.mxu0 %v4941
  %6776 = vmatprep.subr.bf16.mxu0 %v4946
  %6777 = vmatpush1.bf16.msra.mxu0 %v4945
  %6778 = vmatprep.subr.bf16.mxu0 %v4950
  %6779 = vmatpush1.bf16.msra.mxu0 %v4949
  %6780 = vmatprep.subr.bf16.mxu0 %v4954
  %6781 = vmatpush1.bf16.msra.mxu0 %v4953
  %6782 = vmatprep.subr.bf16.mxu0 %v4958
  %6783 = vmatpush1.bf16.msra.mxu0 %v4957
  %6784 = vmatprep.subr.bf16.mxu0 %v4962
  %6785 = vmatpush1.bf16.msra.mxu0 %v4961
  %6786 = vmatprep.subr.bf16.mxu0 %v4966
  %6787 = vmatpush1.bf16.msra.mxu0 %v4965
  %6788 = vmatprep.subr.bf16.mxu0 %v4970
  %6789 = vmatpush1.bf16.msra.mxu0 %v4969
  %6790 = vmatprep.subr.bf16.mxu0 %v4974
  %6791 = vmatpush1.bf16.msra.mxu0 %v4973
  %6792 = vmatprep.subr.bf16.mxu0 %v4978
  %6793 = vmatpush1.bf16.msra.mxu0 %v4977
  %6794 = vmatprep.subr.bf16.mxu0 %v4982
  %6795 = vmatpush1.bf16.msra.mxu0 %v4981
  %6796 = vmatprep.subr.bf16.mxu0 %v4986
  %6797 = vmatpush1.bf16.msra.mxu0 %v4985
  %6798 = vmatprep.mubr.bf16.mxu0 %v1194
  %6799 = vmatmul.mubr.bf16.gmra.mrb[0].mxu0 %v1192
  %v6800 = vpop.f32.mrb[0].mxu0
  %v6801 = vadd.f32 %v6760, %v6800
  %v6802 = vpop.f32.mrb[0].mxu0
  %v6803 = vadd.f32 %v6762, %v6802
  %v6804 = vpop.f32.mrb[0].mxu0
  %v6805 = vpop.f32.mrb[0].mxu0
  %6806 = vdwg.mxu0
  %6807 = vmatprep.subr.bf16.mxu0 %v4990
  %6808 = vmatpush1.bf16.msra.mxu0 %v4989
  %6809 = vmatprep.subr.bf16.mxu0 %v4994
  %6810 = vmatpush1.bf16.msra.mxu0 %v4993
  %6811 = vmatprep.subr.bf16.mxu0 %v4998
  %6812 = vmatpush1.bf16.msra.mxu0 %v4997
  %6813 = vmatprep.subr.bf16.mxu0 %v5002
  %6814 = vmatpush1.bf16.msra.mxu0 %v5001
  %6815 = vmatprep.subr.bf16.mxu0 %v5006
  %6816 = vmatpush1.bf16.msra.mxu0 %v5005
  %6817 = vmatprep.subr.bf16.mxu0 %v5010
  %6818 = vmatpush1.bf16.msra.mxu0 %v5009
  %6819 = vmatprep.subr.bf16.mxu0 %v5014
  %6820 = vmatpush1.bf16.msra.mxu0 %v5013
  %6821 = vmatprep.subr.bf16.mxu0 %v5018
  %6822 = vmatpush1.bf16.msra.mxu0 %v5017
  %6823 = vmatprep.subr.bf16.mxu0 %v5022
  %6824 = vmatpush1.bf16.msra.mxu0 %v5021
  %6825 = vmatprep.subr.bf16.mxu0 %v5026
  %6826 = vmatpush1.bf16.msra.mxu0 %v5025
  %6827 = vmatprep.subr.bf16.mxu0 %v5030
  %6828 = vmatpush1.bf16.msra.mxu0 %v5029
  %6829 = vmatprep.subr.bf16.mxu0 %v5034
  %6830 = vmatpush1.bf16.msra.mxu0 %v5033
  %6831 = vmatprep.subr.bf16.mxu0 %v5038
  %6832 = vmatpush1.bf16.msra.mxu0 %v5037
  %6833 = vmatprep.subr.bf16.mxu0 %v5042
  %6834 = vmatpush1.bf16.msra.mxu0 %v5041
  %6835 = vmatprep.subr.bf16.mxu0 %v5046
  %6836 = vmatpush1.bf16.msra.mxu0 %v5045
  %6837 = vmatprep.subr.bf16.mxu0 %v5050
  %6838 = vmatpush1.bf16.msra.mxu0 %v5049
  %6839 = vmatprep.mubr.bf16.mxu0 %v1191
  %6840 = vmatmul.mubr.bf16.gmra.mrb[0].mxu0 %v1177
  %v6841 = vpop.f32.mrb[0].mxu0
  %v6842 = vadd.f32 %v6801, %v6841
  %v6843 = vpop.f32.mrb[0].mxu0
  %v6844 = vadd.f32 %v6803, %v6843
  %v6845 = vpop.f32.mrb[0].mxu0
  %v6846 = vpop.f32.mrb[0].mxu0
  %6847 = vdwg.mxu0
  %6848 = vmatprep.subr.bf16.mxu0 %v5054
  %6849 = vmatpush1.bf16.msra.mxu0 %v5053
  %6850 = vmatprep.subr.bf16.mxu0 %v5058
  %6851 = vmatpush1.bf16.msra.mxu0 %v5057
  %6852 = vmatprep.subr.bf16.mxu0 %v5062
  %6853 = vmatpush1.bf16.msra.mxu0 %v5061
  %6854 = vmatprep.subr.bf16.mxu0 %v5066
  %6855 = vmatpush1.bf16.msra.mxu0 %v5065
  %6856 = vmatprep.subr.bf16.mxu0 %v5070
  %6857 = vmatpush1.bf16.msra.mxu0 %v5069
  %6858 = vmatprep.subr.bf16.mxu0 %v5074
  %6859 = vmatpush1.bf16.msra.mxu0 %v5073
  %6860 = vmatprep.subr.bf16.mxu0 %v5078
  %6861 = vmatpush1.bf16.msra.mxu0 %v5077
  %6862 = vmatprep.subr.bf16.mxu0 %v5082
  %6863 = vmatpush1.bf16.msra.mxu0 %v5081
  %6864 = vmatprep.subr.bf16.mxu0 %v5086
  %6865 = vmatpush1.bf16.msra.mxu0 %v5085
  %6866 = vmatprep.subr.bf16.mxu0 %v5090
  %6867 = vmatpush1.bf16.msra.mxu0 %v5089
  %6868 = vmatprep.subr.bf16.mxu0 %v5094
  %6869 = vmatpush1.bf16.msra.mxu0 %v5093
  %6870 = vmatprep.subr.bf16.mxu0 %v5098
  %6871 = vmatpush1.bf16.msra.mxu0 %v5097
  %6872 = vmatprep.subr.bf16.mxu0 %v5102
  %6873 = vmatpush1.bf16.msra.mxu0 %v5101
  %6874 = vmatprep.subr.bf16.mxu0 %v5106
  %6875 = vmatpush1.bf16.msra.mxu0 %v5105
  %6876 = vmatprep.subr.bf16.mxu0 %v5110
  %6877 = vmatpush1.bf16.msra.mxu0 %v5109
  %6878 = vmatprep.subr.bf16.mxu0 %v5114
  %6879 = vmatpush1.bf16.msra.mxu0 %v5113
  %6880 = vmatprep.mubr.bf16.mxu0 %v1195
  %6881 = vmatmul.mubr.bf16.gmra.mrb[0].mxu0 %v1193
  %v6882 = vpop.f32.mrb[0].mxu0
  %v6883 = vadd.f32 %v6842, %v6882
  %v6884 = vpop.f32.mrb[0].mxu0
  %v6885 = vadd.f32 %v6844, %v6884
  %v6886 = vpop.f32.mrb[0].mxu0
  %v6887 = vpop.f32.mrb[0].mxu0
  %6888 = vdwg.mxu0
  %6889 = vmatprep.subr.bf16.mxu0 %v5118
  %6890 = vmatpush1.bf16.msra.mxu0 %v5117
  %6891 = vmatprep.subr.bf16.mxu0 %v5122
  %6892 = vmatpush1.bf16.msra.mxu0 %v5121
  %6893 = vmatprep.subr.bf16.mxu0 %v5126
  %6894 = vmatpush1.bf16.msra.mxu0 %v5125
  %6895 = vmatprep.subr.bf16.mxu0 %v5130
  %6896 = vmatpush1.bf16.msra.mxu0 %v5129
  %6897 = vmatprep.subr.bf16.mxu0 %v5134
  %6898 = vmatpush1.bf16.msra.mxu0 %v5133
  %6899 = vmatprep.subr.bf16.mxu0 %v5138
  %6900 = vmatpush1.bf16.msra.mxu0 %v5137
  %6901 = vmatprep.subr.bf16.mxu0 %v5142
  %6902 = vmatpush1.bf16.msra.mxu0 %v5141
  %6903 = vmatprep.subr.bf16.mxu0 %v5146
  %6904 = vmatpush1.bf16.msra.mxu0 %v5145
  %6905 = vmatprep.subr.bf16.mxu0 %v5150
  %6906 = vmatpush1.bf16.msra.mxu0 %v5149
  %6907 = vmatprep.subr.bf16.mxu0 %v5154
  %6908 = vmatpush1.bf16.msra.mxu0 %v5153
  %6909 = vmatprep.subr.bf16.mxu0 %v5158
  %6910 = vmatpush1.bf16.msra.mxu0 %v5157
  %6911 = vmatprep.subr.bf16.mxu0 %v5162
  %6912 = vmatpush1.bf16.msra.mxu0 %v5161
  %6913 = vmatprep.subr.bf16.mxu0 %v5166
  %6914 = vmatpush1.bf16.msra.mxu0 %v5165
  %6915 = vmatprep.subr.bf16.mxu0 %v5170
  %6916 = vmatpush1.bf16.msra.mxu0 %v5169
  %6917 = vmatprep.subr.bf16.mxu0 %v5174
  %6918 = vmatpush1.bf16.msra.mxu0 %v5173
  %6919 = vmatprep.subr.bf16.mxu0 %v5178
  %6920 = vmatpush1.bf16.msra.mxu0 %v5177
  %6921 = vmatprep.mubr.bf16.mxu0 %v1233
  %6922 = vmatmul.mubr.bf16.gmra.mrb[0].mxu0 %v1219
  %v6923 = vpop.f32.mrb[0].mxu0
  %v6924 = vadd.f32 %v6883, %v6923
  %v6925 = vpop.f32.mrb[0].mxu0
  %v6926 = vadd.f32 %v6885, %v6925
  %v6927 = vpop.f32.mrb[0].mxu0
  %v6928 = vpop.f32.mrb[0].mxu0
  %6929 = vdwg.mxu0
  %6930 = vmatprep.subr.bf16.mxu0 %v5182
  %6931 = vmatpush1.bf16.msra.mxu0 %v5181
  %6932 = vmatprep.subr.bf16.mxu0 %v5186
  %6933 = vmatpush1.bf16.msra.mxu0 %v5185
  %6934 = vmatprep.subr.bf16.mxu0 %v5190
  %6935 = vmatpush1.bf16.msra.mxu0 %v5189
  %6936 = vmatprep.subr.bf16.mxu0 %v5194
  %6937 = vmatpush1.bf16.msra.mxu0 %v5193
  %6938 = vmatprep.subr.bf16.mxu0 %v5198
  %6939 = vmatpush1.bf16.msra.mxu0 %v5197
  %6940 = vmatprep.subr.bf16.mxu0 %v5202
  %6941 = vmatpush1.bf16.msra.mxu0 %v5201
  %6942 = vmatprep.subr.bf16.mxu0 %v5206
  %6943 = vmatpush1.bf16.msra.mxu0 %v5205
  %6944 = vmatprep.subr.bf16.mxu0 %v5210
  %6945 = vmatpush1.bf16.msra.mxu0 %v5209
  %6946 = vmatprep.subr.bf16.mxu0 %v5214
  %6947 = vmatpush1.bf16.msra.mxu0 %v5213
  %6948 = vmatprep.subr.bf16.mxu0 %v5218
  %6949 = vmatpush1.bf16.msra.mxu0 %v5217
  %6950 = vmatprep.subr.bf16.mxu0 %v5222
  %6951 = vmatpush1.bf16.msra.mxu0 %v5221
  %6952 = vmatprep.subr.bf16.mxu0 %v5226
  %6953 = vmatpush1.bf16.msra.mxu0 %v5225
  %6954 = vmatprep.subr.bf16.mxu0 %v5230
  %6955 = vmatpush1.bf16.msra.mxu0 %v5229
  %6956 = vmatprep.subr.bf16.mxu0 %v5234
  %6957 = vmatpush1.bf16.msra.mxu0 %v5233
  %6958 = vmatprep.subr.bf16.mxu0 %v5238
  %6959 = vmatpush1.bf16.msra.mxu0 %v5237
  %6960 = vmatprep.subr.bf16.mxu0 %v5242
  %6961 = vmatpush1.bf16.msra.mxu0 %v5241
  %6962 = vmatprep.mubr.bf16.mxu0 %v1243
  %6963 = vmatmul.mubr.bf16.gmra.mrb[0].mxu0 %v1241
  %v6964 = vpop.f32.mrb[0].mxu0
  %v6965 = vadd.f32 %v6924, %v6964
  %v6966 = vpop.f32.mrb[0].mxu0
  %v6967 = vadd.f32 %v6926, %v6966
  %v6968 = vpop.f32.mrb[0].mxu0
  %v6969 = vpop.f32.mrb[0].mxu0
  %6970 = vdwg.mxu0
  %6971 = vmatprep.subr.bf16.mxu0 %v5246
  %6972 = vmatpush1.bf16.msra.mxu0 %v5245
  %6973 = vmatprep.subr.bf16.mxu0 %v5250
  %6974 = vmatpush1.bf16.msra.mxu0 %v5249
  %6975 = vmatprep.subr.bf16.mxu0 %v5254
  %6976 = vmatpush1.bf16.msra.mxu0 %v5253
  %6977 = vmatprep.subr.bf16.mxu0 %v5258
  %6978 = vmatpush1.bf16.msra.mxu0 %v5257
  %6979 = vmatprep.subr.bf16.mxu0 %v5262
  %6980 = vmatpush1.bf16.msra.mxu0 %v5261
  %6981 = vmatprep.subr.bf16.mxu0 %v5266
  %6982 = vmatpush1.bf16.msra.mxu0 %v5265
  %6983 = vmatprep.subr.bf16.mxu0 %v5270
  %6984 = vmatpush1.bf16.msra.mxu0 %v5269
  %6985 = vmatprep.subr.bf16.mxu0 %v5274
  %6986 = vmatpush1.bf16.msra.mxu0 %v5273
  %6987 = vmatprep.subr.bf16.mxu0 %v5278
  %6988 = vmatpush1.bf16.msra.mxu0 %v5277
  %6989 = vmatprep.subr.bf16.mxu0 %v5282
  %6990 = vmatpush1.bf16.msra.mxu0 %v5281
  %6991 = vmatprep.subr.bf16.mxu0 %v5286
  %6992 = vmatpush1.bf16.msra.mxu0 %v5285
  %6993 = vmatprep.subr.bf16.mxu0 %v5290
  %6994 = vmatpush1.bf16.msra.mxu0 %v5289
  %6995 = vmatprep.subr.bf16.mxu0 %v5294
  %6996 = vmatpush1.bf16.msra.mxu0 %v5293
  %6997 = vmatprep.subr.bf16.mxu0 %v5298
  %6998 = vmatpush1.bf16.msra.mxu0 %v5297
  %6999 = vmatprep.subr.bf16.mxu0 %v5302
  %7000 = vmatpush1.bf16.msra.mxu0 %v5301
  %7001 = vmatprep.subr.bf16.mxu0 %v5306
  %7002 = vmatpush1.bf16.msra.mxu0 %v5305
  %7003 = vmatprep.mubr.bf16.mxu0 %v1240
  %7004 = vmatmul.mubr.bf16.gmra.mrb[0].mxu0 %v1226
  %v7005 = vpop.f32.mrb[0].mxu0
  %v7006 = vadd.f32 %v6965, %v7005
  %v7007 = vpop.f32.mrb[0].mxu0
  %v7008 = vadd.f32 %v6967, %v7007
  %v7009 = vpop.f32.mrb[0].mxu0
  %v7010 = vpop.f32.mrb[0].mxu0
  %7011 = vdwg.mxu0
  %7012 = vmatprep.subr.bf16.mxu0 %v5310
  %7013 = vmatpush1.bf16.msra.mxu0 %v5309
  %7014 = vmatprep.subr.bf16.mxu0 %v5314
  %7015 = vmatpush1.bf16.msra.mxu0 %v5313
  %7016 = vmatprep.subr.bf16.mxu0 %v5318
  %7017 = vmatpush1.bf16.msra.mxu0 %v5317
  %7018 = vmatprep.subr.bf16.mxu0 %v5322
  %7019 = vmatpush1.bf16.msra.mxu0 %v5321
  %7020 = vmatprep.subr.bf16.mxu0 %v5326
  %7021 = vmatpush1.bf16.msra.mxu0 %v5325
  %7022 = vmatprep.subr.bf16.mxu0 %v5330
  %7023 = vmatpush1.bf16.msra.mxu0 %v5329
  %7024 = vmatprep.subr.bf16.mxu0 %v5334
  %7025 = vmatpush1.bf16.msra.mxu0 %v5333
  %7026 = vmatprep.subr.bf16.mxu0 %v5338
  %7027 = vmatpush1.bf16.msra.mxu0 %v5337
  %7028 = vmatprep.subr.bf16.mxu0 %v5342
  %7029 = vmatpush1.bf16.msra.mxu0 %v5341
  %7030 = vmatprep.subr.bf16.mxu0 %v5346
  %7031 = vmatpush1.bf16.msra.mxu0 %v5345
  %7032 = vmatprep.subr.bf16.mxu0 %v5350
  %7033 = vmatpush1.bf16.msra.mxu0 %v5349
  %7034 = vmatprep.subr.bf16.mxu0 %v5354
  %7035 = vmatpush1.bf16.msra.mxu0 %v5353
  %7036 = vmatprep.subr.bf16.mxu0 %v5358
  %7037 = vmatpush1.bf16.msra.mxu0 %v5357
  %7038 = vmatprep.subr.bf16.mxu0 %v5362
  %7039 = vmatpush1.bf16.msra.mxu0 %v5361
  %7040 = vmatprep.subr.bf16.mxu0 %v5366
  %7041 = vmatpush1.bf16.msra.mxu0 %v5365
  %7042 = vmatprep.subr.bf16.mxu0 %v5370
  %7043 = vmatpush1.bf16.msra.mxu0 %v5369
  %7044 = vmatprep.mubr.bf16.mxu0 %v1244
  %7045 = vmatmul.mubr.bf16.gmra.mrb[0].mxu0 %v1242
  %v7046 = vpop.f32.mrb[0].mxu0
  %v7047 = vadd.f32 %v7006, %v7046
  %v7048 = vpop.f32.mrb[0].mxu0
  %v7049 = vadd.f32 %v7008, %v7048
  %v7050 = vpop.f32.mrb[0].mxu0
  %v7051 = vpop.f32.mrb[0].mxu0
  %7052 = vdwg.mxu0
  %7053 = vmatprep.subr.bf16.mxu0 %v4352
  %7054 = vmatpush1.bf16.msra.mxu0 %v4351
  %7055 = vmatprep.subr.bf16.mxu0 %v4356
  %7056 = vmatpush1.bf16.msra.mxu0 %v4355
  %7057 = vmatprep.subr.bf16.mxu0 %v4360
  %7058 = vmatpush1.bf16.msra.mxu0 %v4359
  %7059 = vmatprep.subr.bf16.mxu0 %v4364
  %7060 = vmatpush1.bf16.msra.mxu0 %v4363
  %7061 = vmatprep.subr.bf16.mxu0 %v4368
  %7062 = vmatpush1.bf16.msra.mxu0 %v4367
  %7063 = vmatprep.subr.bf16.mxu0 %v4372
  %7064 = vmatpush1.bf16.msra.mxu0 %v4371
  %7065 = vmatprep.subr.bf16.mxu0 %v4376
  %7066 = vmatpush1.bf16.msra.mxu0 %v4375
  %7067 = vmatprep.subr.bf16.mxu0 %v4380
  %7068 = vmatpush1.bf16.msra.mxu0 %v4379
  %7069 = vmatprep.subr.bf16.mxu0 %v4384
  %7070 = vmatpush1.bf16.msra.mxu0 %v4383
  %7071 = vmatprep.subr.bf16.mxu0 %v4388
  %7072 = vmatpush1.bf16.msra.mxu0 %v4387
  %7073 = vmatprep.subr.bf16.mxu0 %v4392
  %7074 = vmatpush1.bf16.msra.mxu0 %v4391
  %7075 = vmatprep.subr.bf16.mxu0 %v4396
  %7076 = vmatpush1.bf16.msra.mxu0 %v4395
  %7077 = vmatprep.subr.bf16.mxu0 %v4400
  %7078 = vmatpush1.bf16.msra.mxu0 %v4399
  %7079 = vmatprep.subr.bf16.mxu0 %v4404
  %7080 = vmatpush1.bf16.msra.mxu0 %v4403
  %7081 = vmatprep.subr.bf16.mxu0 %v4408
  %7082 = vmatpush1.bf16.msra.mxu0 %v4407
  %7083 = vmatprep.subr.bf16.mxu0 %v4412
  %7084 = vmatpush1.bf16.msra.mxu0 %v4411
  %7085 = vmatprep.mubr.bf16.mxu0 %v1086
  %7086 = vmatmul.mubr.bf16.gmra.mrb[0].mxu0 %v1072
  %v7087 = vpop.f32.mrb[0].mxu0
  %v7088 = vadd.f32 0.0, %v7087
  %v7089 = vpop.f32.mrb[0].mxu0
  %v7090 = vadd.f32 0.0, %v7089
  %v7091 = vpop.f32.mrb[0].mxu0
  %v7092 = vpop.f32.mrb[0].mxu0
  %7093 = vdwg.mxu0
  %7094 = vmatprep.subr.bf16.mxu0 %v4416
  %7095 = vmatpush1.bf16.msra.mxu0 %v4415
  %7096 = vmatprep.subr.bf16.mxu0 %v4420
  %7097 = vmatpush1.bf16.msra.mxu0 %v4419
  %7098 = vmatprep.subr.bf16.mxu0 %v4424
  %7099 = vmatpush1.bf16.msra.mxu0 %v4423
  %7100 = vmatprep.subr.bf16.mxu0 %v4428
  %7101 = vmatpush1.bf16.msra.mxu0 %v4427
  %7102 = vmatprep.subr.bf16.mxu0 %v4432
  %7103 = vmatpush1.bf16.msra.mxu0 %v4431
  %7104 = vmatprep.subr.bf16.mxu0 %v4436
  %7105 = vmatpush1.bf16.msra.mxu0 %v4435
  %7106 = vmatprep.subr.bf16.mxu0 %v4440
  %7107 = vmatpush1.bf16.msra.mxu0 %v4439
  %7108 = vmatprep.subr.bf16.mxu0 %v4444
  %7109 = vmatpush1.bf16.msra.mxu0 %v4443
  %7110 = vmatprep.subr.bf16.mxu0 %v4448
  %7111 = vmatpush1.bf16.msra.mxu0 %v4447
  %7112 = vmatprep.subr.bf16.mxu0 %v4452
  %7113 = vmatpush1.bf16.msra.mxu0 %v4451
  %7114 = vmatprep.subr.bf16.mxu0 %v4456
  %7115 = vmatpush1.bf16.msra.mxu0 %v4455
  %7116 = vmatprep.subr.bf16.mxu0 %v4460
  %7117 = vmatpush1.bf16.msra.mxu0 %v4459
  %7118 = vmatprep.subr.bf16.mxu0 %v4464
  %7119 = vmatpush1.bf16.msra.mxu0 %v4463
  %7120 = vmatprep.subr.bf16.mxu0 %v4468
  %7121 = vmatpush1.bf16.msra.mxu0 %v4467
  %7122 = vmatprep.subr.bf16.mxu0 %v4472
  %7123 = vmatpush1.bf16.msra.mxu0 %v4471
  %7124 = vmatprep.subr.bf16.mxu0 %v4476
  %7125 = vmatpush1.bf16.msra.mxu0 %v4475
  %7126 = vmatprep.mubr.bf16.mxu0 %v1096
  %7127 = vmatmul.mubr.bf16.gmra.mrb[0].mxu0 %v1094
  %v7128 = vpop.f32.mrb[0].mxu0
  %v7129 = vadd.f32 %v7088, %v7128
  %v7130 = vpop.f32.mrb[0].mxu0
  %v7131 = vadd.f32 %v7090, %v7130
  %v7132 = vpop.f32.mrb[0].mxu0
  %v7133 = vpop.f32.mrb[0].mxu0
  %7134 = vdwg.mxu0
  %7135 = vmatprep.subr.bf16.mxu0 %v4480
  %7136 = vmatpush1.bf16.msra.mxu0 %v4479
  %7137 = vmatprep.subr.bf16.mxu0 %v4484
  %7138 = vmatpush1.bf16.msra.mxu0 %v4483
  %7139 = vmatprep.subr.bf16.mxu0 %v4488
  %7140 = vmatpush1.bf16.msra.mxu0 %v4487
  %7141 = vmatprep.subr.bf16.mxu0 %v4492
  %7142 = vmatpush1.bf16.msra.mxu0 %v4491
  %7143 = vmatprep.subr.bf16.mxu0 %v4496
  %7144 = vmatpush1.bf16.msra.mxu0 %v4495
  %7145 = vmatprep.subr.bf16.mxu0 %v4500
  %7146 = vmatpush1.bf16.msra.mxu0 %v4499
  %7147 = vmatprep.subr.bf16.mxu0 %v4504
  %7148 = vmatpush1.bf16.msra.mxu0 %v4503
  %7149 = vmatprep.subr.bf16.mxu0 %v4508
  %7150 = vmatpush1.bf16.msra.mxu0 %v4507
  %7151 = vmatprep.subr.bf16.mxu0 %v4512
  %7152 = vmatpush1.bf16.msra.mxu0 %v4511
  %7153 = vmatprep.subr.bf16.mxu0 %v4516
  %7154 = vmatpush1.bf16.msra.mxu0 %v4515
  %7155 = vmatprep.subr.bf16.mxu0 %v4520
  %7156 = vmatpush1.bf16.msra.mxu0 %v4519
  %7157 = vmatprep.subr.bf16.mxu0 %v4524
  %7158 = vmatpush1.bf16.msra.mxu0 %v4523
  %7159 = vmatprep.subr.bf16.mxu0 %v4528
  %7160 = vmatpush1.bf16.msra.mxu0 %v4527
  %7161 = vmatprep.subr.bf16.mxu0 %v4532
  %7162 = vmatpush1.bf16.msra.mxu0 %v4531
  %7163 = vmatprep.subr.bf16.mxu0 %v4536
  %7164 = vmatpush1.bf16.msra.mxu0 %v4535
  %7165 = vmatprep.subr.bf16.mxu0 %v4540
  %7166 = vmatpush1.bf16.msra.mxu0 %v4539
  %7167 = vmatprep.mubr.bf16.mxu0 %v1093
  %7168 = vmatmul.mubr.bf16.gmra.mrb[0].mxu0 %v1079
  %v7169 = vpop.f32.mrb[0].mxu0
  %v7170 = vadd.f32 %v7129, %v7169
  %v7171 = vpop.f32.mrb[0].mxu0
  %v7172 = vadd.f32 %v7131, %v7171
  %v7173 = vpop.f32.mrb[0].mxu0
  %v7174 = vpop.f32.mrb[0].mxu0
  %7175 = vdwg.mxu0
  %7176 = vmatprep.subr.bf16.mxu0 %v4544
  %7177 = vmatpush1.bf16.msra.mxu0 %v4543
  %7178 = vmatprep.subr.bf16.mxu0 %v4548
  %7179 = vmatpush1.bf16.msra.mxu0 %v4547
  %7180 = vmatprep.subr.bf16.mxu0 %v4552
  %7181 = vmatpush1.bf16.msra.mxu0 %v4551
  %7182 = vmatprep.subr.bf16.mxu0 %v4556
  %7183 = vmatpush1.bf16.msra.mxu0 %v4555
  %7184 = vmatprep.subr.bf16.mxu0 %v4560
  %7185 = vmatpush1.bf16.msra.mxu0 %v4559
  %7186 = vmatprep.subr.bf16.mxu0 %v4564
  %7187 = vmatpush1.bf16.msra.mxu0 %v4563
  %7188 = vmatprep.subr.bf16.mxu0 %v4568
  %7189 = vmatpush1.bf16.msra.mxu0 %v4567
  %7190 = vmatprep.subr.bf16.mxu0 %v4572
  %7191 = vmatpush1.bf16.msra.mxu0 %v4571
  %7192 = vmatprep.subr.bf16.mxu0 %v4576
  %7193 = vmatpush1.bf16.msra.mxu0 %v4575
  %7194 = vmatprep.subr.bf16.mxu0 %v4580
  %7195 = vmatpush1.bf16.msra.mxu0 %v4579
  %7196 = vmatprep.subr.bf16.mxu0 %v4584
  %7197 = vmatpush1.bf16.msra.mxu0 %v4583
  %7198 = vmatprep.subr.bf16.mxu0 %v4588
  %7199 = vmatpush1.bf16.msra.mxu0 %v4587
  %7200 = vmatprep.subr.bf16.mxu0 %v4592
  %7201 = vmatpush1.bf16.msra.mxu0 %v4591
  %7202 = vmatprep.subr.bf16.mxu0 %v4596
  %7203 = vmatpush1.bf16.msra.mxu0 %v4595
  %7204 = vmatprep.subr.bf16.mxu0 %v4600
  %7205 = vmatpush1.bf16.msra.mxu0 %v4599
  %7206 = vmatprep.subr.bf16.mxu0 %v4604
  %7207 = vmatpush1.bf16.msra.mxu0 %v4603
  %7208 = vmatprep.mubr.bf16.mxu0 %v1097
  %7209 = vmatmul.mubr.bf16.gmra.mrb[0].mxu0 %v1095
  %v7210 = vpop.f32.mrb[0].mxu0
  %v7211 = vadd.f32 %v7170, %v7210
  %v7212 = vpop.f32.mrb[0].mxu0
  %v7213 = vadd.f32 %v7172, %v7212
  %v7214 = vpop.f32.mrb[0].mxu0
  %v7215 = vpop.f32.mrb[0].mxu0
  %7216 = vdwg.mxu0
  %7217 = vmatprep.subr.bf16.mxu0 %v4608
  %7218 = vmatpush1.bf16.msra.mxu0 %v4607
  %7219 = vmatprep.subr.bf16.mxu0 %v4612
  %7220 = vmatpush1.bf16.msra.mxu0 %v4611
  %7221 = vmatprep.subr.bf16.mxu0 %v4616
  %7222 = vmatpush1.bf16.msra.mxu0 %v4615
  %7223 = vmatprep.subr.bf16.mxu0 %v4620
  %7224 = vmatpush1.bf16.msra.mxu0 %v4619
  %7225 = vmatprep.subr.bf16.mxu0 %v4624
  %7226 = vmatpush1.bf16.msra.mxu0 %v4623
  %7227 = vmatprep.subr.bf16.mxu0 %v4628
  %7228 = vmatpush1.bf16.msra.mxu0 %v4627
  %7229 = vmatprep.subr.bf16.mxu0 %v4632
  %7230 = vmatpush1.bf16.msra.mxu0 %v4631
  %7231 = vmatprep.subr.bf16.mxu0 %v4636
  %7232 = vmatpush1.bf16.msra.mxu0 %v4635
  %7233 = vmatprep.subr.bf16.mxu0 %v4640
  %7234 = vmatpush1.bf16.msra.mxu0 %v4639
  %7235 = vmatprep.subr.bf16.mxu0 %v4644
  %7236 = vmatpush1.bf16.msra.mxu0 %v4643
  %7237 = vmatprep.subr.bf16.mxu0 %v4648
  %7238 = vmatpush1.bf16.msra.mxu0 %v4647
  %7239 = vmatprep.subr.bf16.mxu0 %v4652
  %7240 = vmatpush1.bf16.msra.mxu0 %v4651
  %7241 = vmatprep.subr.bf16.mxu0 %v4656
  %7242 = vmatpush1.bf16.msra.mxu0 %v4655
  %7243 = vmatprep.subr.bf16.mxu0 %v4660
  %7244 = vmatpush1.bf16.msra.mxu0 %v4659
  %7245 = vmatprep.subr.bf16.mxu0 %v4664
  %7246 = vmatpush1.bf16.msra.mxu0 %v4663
  %7247 = vmatprep.subr.bf16.mxu0 %v4668
  %7248 = vmatpush1.bf16.msra.mxu0 %v4667
  %7249 = vmatprep.mubr.bf16.mxu0 %v1135
  %7250 = vmatmul.mubr.bf16.gmra.mrb[0].mxu0 %v1121
  %v7251 = vpop.f32.mrb[0].mxu0
  %v7252 = vadd.f32 %v7211, %v7251
  %v7253 = vpop.f32.mrb[0].mxu0
  %v7254 = vadd.f32 %v7213, %v7253
  %v7255 = vpop.f32.mrb[0].mxu0
  %v7256 = vpop.f32.mrb[0].mxu0
  %7257 = vdwg.mxu0
  %7258 = vmatprep.subr.bf16.mxu0 %v4672
  %7259 = vmatpush1.bf16.msra.mxu0 %v4671
  %7260 = vmatprep.subr.bf16.mxu0 %v4676
  %7261 = vmatpush1.bf16.msra.mxu0 %v4675
  %7262 = vmatprep.subr.bf16.mxu0 %v4680
  %7263 = vmatpush1.bf16.msra.mxu0 %v4679
  %7264 = vmatprep.subr.bf16.mxu0 %v4684
  %7265 = vmatpush1.bf16.msra.mxu0 %v4683
  %7266 = vmatprep.subr.bf16.mxu0 %v4688
  %7267 = vmatpush1.bf16.msra.mxu0 %v4687
  %7268 = vmatprep.subr.bf16.mxu0 %v4692
  %7269 = vmatpush1.bf16.msra.mxu0 %v4691
  %7270 = vmatprep.subr.bf16.mxu0 %v4696
  %7271 = vmatpush1.bf16.msra.mxu0 %v4695
  %7272 = vmatprep.subr.bf16.mxu0 %v4700
  %7273 = vmatpush1.bf16.msra.mxu0 %v4699
  %7274 = vmatprep.subr.bf16.mxu0 %v4704
  %7275 = vmatpush1.bf16.msra.mxu0 %v4703
  %7276 = vmatprep.subr.bf16.mxu0 %v4708
  %7277 = vmatpush1.bf16.msra.mxu0 %v4707
  %7278 = vmatprep.subr.bf16.mxu0 %v4712
  %7279 = vmatpush1.bf16.msra.mxu0 %v4711
  %7280 = vmatprep.subr.bf16.mxu0 %v4716
  %7281 = vmatpush1.bf16.msra.mxu0 %v4715
  %7282 = vmatprep.subr.bf16.mxu0 %v4720
  %7283 = vmatpush1.bf16.msra.mxu0 %v4719
  %7284 = vmatprep.subr.bf16.mxu0 %v4724
  %7285 = vmatpush1.bf16.msra.mxu0 %v4723
  %7286 = vmatprep.subr.bf16.mxu0 %v4728
  %7287 = vmatpush1.bf16.msra.mxu0 %v4727
  %7288 = vmatprep.subr.bf16.mxu0 %v4732
  %7289 = vmatpush1.bf16.msra.mxu0 %v4731
  %7290 = vmatprep.mubr.bf16.mxu0 %v1145
  %7291 = vmatmul.mubr.bf16.gmra.mrb[0].mxu0 %v1143
  %v7292 = vpop.f32.mrb[0].mxu0
  %v7293 = vadd.f32 %v7252, %v7292
  %v7294 = vpop.f32.mrb[0].mxu0
  %v7295 = vadd.f32 %v7254, %v7294
  %v7296 = vpop.f32.mrb[0].mxu0
  %v7297 = vpop.f32.mrb[0].mxu0
  %7298 = vdwg.mxu0
  %7299 = vmatprep.subr.bf16.mxu0 %v4736
  %7300 = vmatpush1.bf16.msra.mxu0 %v4735
  %7301 = vmatprep.subr.bf16.mxu0 %v4740
  %7302 = vmatpush1.bf16.msra.mxu0 %v4739
  %7303 = vmatprep.subr.bf16.mxu0 %v4744
  %7304 = vmatpush1.bf16.msra.mxu0 %v4743
  %7305 = vmatprep.subr.bf16.mxu0 %v4748
  %7306 = vmatpush1.bf16.msra.mxu0 %v4747
  %7307 = vmatprep.subr.bf16.mxu0 %v4752
  %7308 = vmatpush1.bf16.msra.mxu0 %v4751
  %7309 = vmatprep.subr.bf16.mxu0 %v4756
  %7310 = vmatpush1.bf16.msra.mxu0 %v4755
  %7311 = vmatprep.subr.bf16.mxu0 %v4760
  %7312 = vmatpush1.bf16.msra.mxu0 %v4759
  %7313 = vmatprep.subr.bf16.mxu0 %v4764
  %7314 = vmatpush1.bf16.msra.mxu0 %v4763
  %7315 = vmatprep.subr.bf16.mxu0 %v4768
  %7316 = vmatpush1.bf16.msra.mxu0 %v4767
  %7317 = vmatprep.subr.bf16.mxu0 %v4772
  %7318 = vmatpush1.bf16.msra.mxu0 %v4771
  %7319 = vmatprep.subr.bf16.mxu0 %v4776
  %7320 = vmatpush1.bf16.msra.mxu0 %v4775
  %7321 = vmatprep.subr.bf16.mxu0 %v4780
  %7322 = vmatpush1.bf16.msra.mxu0 %v4779
  %7323 = vmatprep.subr.bf16.mxu0 %v4784
  %7324 = vmatpush1.bf16.msra.mxu0 %v4783
  %7325 = vmatprep.subr.bf16.mxu0 %v4788
  %7326 = vmatpush1.bf16.msra.mxu0 %v4787
  %7327 = vmatprep.subr.bf16.mxu0 %v4792
  %7328 = vmatpush1.bf16.msra.mxu0 %v4791
  %7329 = vmatprep.subr.bf16.mxu0 %v4796
  %7330 = vmatpush1.bf16.msra.mxu0 %v4795
  %7331 = vmatprep.mubr.bf16.mxu0 %v1142
  %7332 = vmatmul.mubr.bf16.gmra.mrb[0].mxu0 %v1128
  %v7333 = vpop.f32.mrb[0].mxu0
  %v7334 = vadd.f32 %v7293, %v7333
  %v7335 = vpop.f32.mrb[0].mxu0
  %v7336 = vadd.f32 %v7295, %v7335
  %v7337 = vpop.f32.mrb[0].mxu0
  %v7338 = vpop.f32.mrb[0].mxu0
  %7339 = vdwg.mxu0
  %7340 = vmatprep.subr.bf16.mxu0 %v4800
  %7341 = vmatpush1.bf16.msra.mxu0 %v4799
  %7342 = vmatprep.subr.bf16.mxu0 %v4804
  %7343 = vmatpush1.bf16.msra.mxu0 %v4803
  %7344 = vmatprep.subr.bf16.mxu0 %v4808
  %7345 = vmatpush1.bf16.msra.mxu0 %v4807
  %7346 = vmatprep.subr.bf16.mxu0 %v4812
  %7347 = vmatpush1.bf16.msra.mxu0 %v4811
  %7348 = vmatprep.subr.bf16.mxu0 %v4816
  %7349 = vmatpush1.bf16.msra.mxu0 %v4815
  %7350 = vmatprep.subr.bf16.mxu0 %v4820
  %7351 = vmatpush1.bf16.msra.mxu0 %v4819
  %7352 = vmatprep.subr.bf16.mxu0 %v4824
  %7353 = vmatpush1.bf16.msra.mxu0 %v4823
  %7354 = vmatprep.subr.bf16.mxu0 %v4828
  %7355 = vmatpush1.bf16.msra.mxu0 %v4827
  %7356 = vmatprep.subr.bf16.mxu0 %v4832
  %7357 = vmatpush1.bf16.msra.mxu0 %v4831
  %7358 = vmatprep.subr.bf16.mxu0 %v4836
  %7359 = vmatpush1.bf16.msra.mxu0 %v4835
  %7360 = vmatprep.subr.bf16.mxu0 %v4840
  %7361 = vmatpush1.bf16.msra.mxu0 %v4839
  %7362 = vmatprep.subr.bf16.mxu0 %v4844
  %7363 = vmatpush1.bf16.msra.mxu0 %v4843
  %7364 = vmatprep.subr.bf16.mxu0 %v4848
  %7365 = vmatpush1.bf16.msra.mxu0 %v4847
  %7366 = vmatprep.subr.bf16.mxu0 %v4852
  %7367 = vmatpush1.bf16.msra.mxu0 %v4851
  %7368 = vmatprep.subr.bf16.mxu0 %v4856
  %7369 = vmatpush1.bf16.msra.mxu0 %v4855
  %7370 = vmatprep.subr.bf16.mxu0 %v4860
  %7371 = vmatpush1.bf16.msra.mxu0 %v4859
  %7372 = vmatprep.mubr.bf16.mxu0 %v1146
  %7373 = vmatmul.mubr.bf16.gmra.mrb[0].mxu0 %v1144
  %v7374 = vpop.f32.mrb[0].mxu0
  %v7375 = vadd.f32 %v7334, %v7374
  %v7376 = vpop.f32.mrb[0].mxu0
  %v7377 = vadd.f32 %v7336, %v7376
  %v7378 = vpop.f32.mrb[0].mxu0
  %v7379 = vpop.f32.mrb[0].mxu0
  %7380 = vdwg.mxu0
  %7381 = vmatprep.subr.bf16.mxu0 %v4864
  %7382 = vmatpush1.bf16.msra.mxu0 %v4863
  %7383 = vmatprep.subr.bf16.mxu0 %v4868
  %7384 = vmatpush1.bf16.msra.mxu0 %v4867
  %7385 = vmatprep.subr.bf16.mxu0 %v4872
  %7386 = vmatpush1.bf16.msra.mxu0 %v4871
  %7387 = vmatprep.subr.bf16.mxu0 %v4876
  %7388 = vmatpush1.bf16.msra.mxu0 %v4875
  %7389 = vmatprep.subr.bf16.mxu0 %v4880
  %7390 = vmatpush1.bf16.msra.mxu0 %v4879
  %7391 = vmatprep.subr.bf16.mxu0 %v4884
  %7392 = vmatpush1.bf16.msra.mxu0 %v4883
  %7393 = vmatprep.subr.bf16.mxu0 %v4888
  %7394 = vmatpush1.bf16.msra.mxu0 %v4887
  %7395 = vmatprep.subr.bf16.mxu0 %v4892
  %7396 = vmatpush1.bf16.msra.mxu0 %v4891
  %7397 = vmatprep.subr.bf16.mxu0 %v4896
  %7398 = vmatpush1.bf16.msra.mxu0 %v4895
  %7399 = vmatprep.subr.bf16.mxu0 %v4900
  %7400 = vmatpush1.bf16.msra.mxu0 %v4899
  %7401 = vmatprep.subr.bf16.mxu0 %v4904
  %7402 = vmatpush1.bf16.msra.mxu0 %v4903
  %7403 = vmatprep.subr.bf16.mxu0 %v4908
  %7404 = vmatpush1.bf16.msra.mxu0 %v4907
  %7405 = vmatprep.subr.bf16.mxu0 %v4912
  %7406 = vmatpush1.bf16.msra.mxu0 %v4911
  %7407 = vmatprep.subr.bf16.mxu0 %v4916
  %7408 = vmatpush1.bf16.msra.mxu0 %v4915
  %7409 = vmatprep.subr.bf16.mxu0 %v4920
  %7410 = vmatpush1.bf16.msra.mxu0 %v4919
  %7411 = vmatprep.subr.bf16.mxu0 %v4924
  %7412 = vmatpush1.bf16.msra.mxu0 %v4923
  %7413 = vmatprep.mubr.bf16.mxu0 %v1184
  %7414 = vmatmul.mubr.bf16.gmra.mrb[0].mxu0 %v1170
  %v7415 = vpop.f32.mrb[0].mxu0
  %v7416 = vadd.f32 %v7375, %v7415
  %v7417 = vpop.f32.mrb[0].mxu0
  %v7418 = vadd.f32 %v7377, %v7417
  %v7419 = vpop.f32.mrb[0].mxu0
  %v7420 = vpop.f32.mrb[0].mxu0
  %7421 = vdwg.mxu0
  %7422 = vmatprep.subr.bf16.mxu0 %v4928
  %7423 = vmatpush1.bf16.msra.mxu0 %v4927
  %7424 = vmatprep.subr.bf16.mxu0 %v4932
  %7425 = vmatpush1.bf16.msra.mxu0 %v4931
  %7426 = vmatprep.subr.bf16.mxu0 %v4936
  %7427 = vmatpush1.bf16.msra.mxu0 %v4935
  %7428 = vmatprep.subr.bf16.mxu0 %v4940
  %7429 = vmatpush1.bf16.msra.mxu0 %v4939
  %7430 = vmatprep.subr.bf16.mxu0 %v4944
  %7431 = vmatpush1.bf16.msra.mxu0 %v4943
  %7432 = vmatprep.subr.bf16.mxu0 %v4948
  %7433 = vmatpush1.bf16.msra.mxu0 %v4947
  %7434 = vmatprep.subr.bf16.mxu0 %v4952
  %7435 = vmatpush1.bf16.msra.mxu0 %v4951
  %7436 = vmatprep.subr.bf16.mxu0 %v4956
  %7437 = vmatpush1.bf16.msra.mxu0 %v4955
  %7438 = vmatprep.subr.bf16.mxu0 %v4960
  %7439 = vmatpush1.bf16.msra.mxu0 %v4959
  %7440 = vmatprep.subr.bf16.mxu0 %v4964
  %7441 = vmatpush1.bf16.msra.mxu0 %v4963
  %7442 = vmatprep.subr.bf16.mxu0 %v4968
  %7443 = vmatpush1.bf16.msra.mxu0 %v4967
  %7444 = vmatprep.subr.bf16.mxu0 %v4972
  %7445 = vmatpush1.bf16.msra.mxu0 %v4971
  %7446 = vmatprep.subr.bf16.mxu0 %v4976
  %7447 = vmatpush1.bf16.msra.mxu0 %v4975
  %7448 = vmatprep.subr.bf16.mxu0 %v4980
  %7449 = vmatpush1.bf16.msra.mxu0 %v4979
  %7450 = vmatprep.subr.bf16.mxu0 %v4984
  %7451 = vmatpush1.bf16.msra.mxu0 %v4983
  %7452 = vmatprep.subr.bf16.mxu0 %v4988
  %7453 = vmatpush1.bf16.msra.mxu0 %v4987
  %7454 = vmatprep.mubr.bf16.mxu0 %v1194
  %7455 = vmatmul.mubr.bf16.gmra.mrb[0].mxu0 %v1192
  %v7456 = vpop.f32.mrb[0].mxu0
  %v7457 = vadd.f32 %v7416, %v7456
  %v7458 = vpop.f32.mrb[0].mxu0
  %v7459 = vadd.f32 %v7418, %v7458
  %v7460 = vpop.f32.mrb[0].mxu0
  %v7461 = vpop.f32.mrb[0].mxu0
  %7462 = vdwg.mxu0
  %7463 = vmatprep.subr.bf16.mxu0 %v4992
  %7464 = vmatpush1.bf16.msra.mxu0 %v4991
  %7465 = vmatprep.subr.bf16.mxu0 %v4996
  %7466 = vmatpush1.bf16.msra.mxu0 %v4995
  %7467 = vmatprep.subr.bf16.mxu0 %v5000
  %7468 = vmatpush1.bf16.msra.mxu0 %v4999
  %7469 = vmatprep.subr.bf16.mxu0 %v5004
  %7470 = vmatpush1.bf16.msra.mxu0 %v5003
  %7471 = vmatprep.subr.bf16.mxu0 %v5008
  %7472 = vmatpush1.bf16.msra.mxu0 %v5007
  %7473 = vmatprep.subr.bf16.mxu0 %v5012
  %7474 = vmatpush1.bf16.msra.mxu0 %v5011
  %7475 = vmatprep.subr.bf16.mxu0 %v5016
  %7476 = vmatpush1.bf16.msra.mxu0 %v5015
  %7477 = vmatprep.subr.bf16.mxu0 %v5020
  %7478 = vmatpush1.bf16.msra.mxu0 %v5019
  %7479 = vmatprep.subr.bf16.mxu0 %v5024
  %7480 = vmatpush1.bf16.msra.mxu0 %v5023
  %7481 = vmatprep.subr.bf16.mxu0 %v5028
  %7482 = vmatpush1.bf16.msra.mxu0 %v5027
  %7483 = vmatprep.subr.bf16.mxu0 %v5032
  %7484 = vmatpush1.bf16.msra.mxu0 %v5031
  %7485 = vmatprep.subr.bf16.mxu0 %v5036
  %7486 = vmatpush1.bf16.msra.mxu0 %v5035
  %7487 = vmatprep.subr.bf16.mxu0 %v5040
  %7488 = vmatpush1.bf16.msra.mxu0 %v5039
  %7489 = vmatprep.subr.bf16.mxu0 %v5044
  %7490 = vmatpush1.bf16.msra.mxu0 %v5043
  %7491 = vmatprep.subr.bf16.mxu0 %v5048
  %7492 = vmatpush1.bf16.msra.mxu0 %v5047
  %7493 = vmatprep.subr.bf16.mxu0 %v5052
  %7494 = vmatpush1.bf16.msra.mxu0 %v5051
  %7495 = vmatprep.mubr.bf16.mxu0 %v1191
  %7496 = vmatmul.mubr.bf16.gmra.mrb[0].mxu0 %v1177
  %v7497 = vpop.f32.mrb[0].mxu0
  %v7498 = vadd.f32 %v7457, %v7497
  %v7499 = vpop.f32.mrb[0].mxu0
  %v7500 = vadd.f32 %v7459, %v7499
  %v7501 = vpop.f32.mrb[0].mxu0
  %v7502 = vpop.f32.mrb[0].mxu0
  %7503 = vdwg.mxu0
  %7504 = vmatprep.subr.bf16.mxu0 %v5056
  %7505 = vmatpush1.bf16.msra.mxu0 %v5055
  %7506 = vmatprep.subr.bf16.mxu0 %v5060
  %7507 = vmatpush1.bf16.msra.mxu0 %v5059
  %7508 = vmatprep.subr.bf16.mxu0 %v5064
  %7509 = vmatpush1.bf16.msra.mxu0 %v5063
  %7510 = vmatprep.subr.bf16.mxu0 %v5068
  %7511 = vmatpush1.bf16.msra.mxu0 %v5067
  %7512 = vmatprep.subr.bf16.mxu0 %v5072
  %7513 = vmatpush1.bf16.msra.mxu0 %v5071
  %7514 = vmatprep.subr.bf16.mxu0 %v5076
  %7515 = vmatpush1.bf16.msra.mxu0 %v5075
  %7516 = vmatprep.subr.bf16.mxu0 %v5080
  %7517 = vmatpush1.bf16.msra.mxu0 %v5079
  %7518 = vmatprep.subr.bf16.mxu0 %v5084
  %7519 = vmatpush1.bf16.msra.mxu0 %v5083
  %7520 = vmatprep.subr.bf16.mxu0 %v5088
  %7521 = vmatpush1.bf16.msra.mxu0 %v5087
  %7522 = vmatprep.subr.bf16.mxu0 %v5092
  %7523 = vmatpush1.bf16.msra.mxu0 %v5091
  %7524 = vmatprep.subr.bf16.mxu0 %v5096
  %7525 = vmatpush1.bf16.msra.mxu0 %v5095
  %7526 = vmatprep.subr.bf16.mxu0 %v5100
  %7527 = vmatpush1.bf16.msra.mxu0 %v5099
  %7528 = vmatprep.subr.bf16.mxu0 %v5104
  %7529 = vmatpush1.bf16.msra.mxu0 %v5103
  %7530 = vmatprep.subr.bf16.mxu0 %v5108
  %7531 = vmatpush1.bf16.msra.mxu0 %v5107
  %7532 = vmatprep.subr.bf16.mxu0 %v5112
  %7533 = vmatpush1.bf16.msra.mxu0 %v5111
  %7534 = vmatprep.subr.bf16.mxu0 %v5116
  %7535 = vmatpush1.bf16.msra.mxu0 %v5115
  %7536 = vmatprep.mubr.bf16.mxu0 %v1195
  %7537 = vmatmul.mubr.bf16.gmra.mrb[0].mxu0 %v1193
  %v7538 = vpop.f32.mrb[0].mxu0
  %v7539 = vadd.f32 %v7498, %v7538
  %v7540 = vpop.f32.mrb[0].mxu0
  %v7541 = vadd.f32 %v7500, %v7540
  %v7542 = vpop.f32.mrb[0].mxu0
  %v7543 = vpop.f32.mrb[0].mxu0
  %7544 = vdwg.mxu0
  %7545 = vmatprep.subr.bf16.mxu0 %v5120
  %7546 = vmatpush1.bf16.msra.mxu0 %v5119
  %7547 = vmatprep.subr.bf16.mxu0 %v5124
  %7548 = vmatpush1.bf16.msra.mxu0 %v5123
  %7549 = vmatprep.subr.bf16.mxu0 %v5128
  %7550 = vmatpush1.bf16.msra.mxu0 %v5127
  %7551 = vmatprep.subr.bf16.mxu0 %v5132
  %7552 = vmatpush1.bf16.msra.mxu0 %v5131
  %7553 = vmatprep.subr.bf16.mxu0 %v5136
  %7554 = vmatpush1.bf16.msra.mxu0 %v5135
  %7555 = vmatprep.subr.bf16.mxu0 %v5140
  %7556 = vmatpush1.bf16.msra.mxu0 %v5139
  %7557 = vmatprep.subr.bf16.mxu0 %v5144
  %7558 = vmatpush1.bf16.msra.mxu0 %v5143
  %7559 = vmatprep.subr.bf16.mxu0 %v5148
  %7560 = vmatpush1.bf16.msra.mxu0 %v5147
  %7561 = vmatprep.subr.bf16.mxu0 %v5152
  %7562 = vmatpush1.bf16.msra.mxu0 %v5151
  %7563 = vmatprep.subr.bf16.mxu0 %v5156
  %7564 = vmatpush1.bf16.msra.mxu0 %v5155
  %7565 = vmatprep.subr.bf16.mxu0 %v5160
  %7566 = vmatpush1.bf16.msra.mxu0 %v5159
  %7567 = vmatprep.subr.bf16.mxu0 %v5164
  %7568 = vmatpush1.bf16.msra.mxu0 %v5163
  %7569 = vmatprep.subr.bf16.mxu0 %v5168
  %7570 = vmatpush1.bf16.msra.mxu0 %v5167
  %7571 = vmatprep.subr.bf16.mxu0 %v5172
  %7572 = vmatpush1.bf16.msra.mxu0 %v5171
  %7573 = vmatprep.subr.bf16.mxu0 %v5176
  %7574 = vmatpush1.bf16.msra.mxu0 %v5175
  %7575 = vmatprep.subr.bf16.mxu0 %v5180
  %7576 = vmatpush1.bf16.msra.mxu0 %v5179
  %7577 = vmatprep.mubr.bf16.mxu0 %v1233
  %7578 = vmatmul.mubr.bf16.gmra.mrb[0].mxu0 %v1219
  %v7579 = vpop.f32.mrb[0].mxu0
  %v7580 = vadd.f32 %v7539, %v7579
  %v7581 = vpop.f32.mrb[0].mxu0
  %v7582 = vadd.f32 %v7541, %v7581
  %v7583 = vpop.f32.mrb[0].mxu0
  %v7584 = vpop.f32.mrb[0].mxu0
  %7585 = vdwg.mxu0
  %7586 = vmatprep.subr.bf16.mxu0 %v5184
  %7587 = vmatpush1.bf16.msra.mxu0 %v5183
  %7588 = vmatprep.subr.bf16.mxu0 %v5188
  %7589 = vmatpush1.bf16.msra.mxu0 %v5187
  %7590 = vmatprep.subr.bf16.mxu0 %v5192
  %7591 = vmatpush1.bf16.msra.mxu0 %v5191
  %7592 = vmatprep.subr.bf16.mxu0 %v5196
  %7593 = vmatpush1.bf16.msra.mxu0 %v5195
  %7594 = vmatprep.subr.bf16.mxu0 %v5200
  %7595 = vmatpush1.bf16.msra.mxu0 %v5199
  %7596 = vmatprep.subr.bf16.mxu0 %v5204
  %7597 = vmatpush1.bf16.msra.mxu0 %v5203
  %7598 = vmatprep.subr.bf16.mxu0 %v5208
  %7599 = vmatpush1.bf16.msra.mxu0 %v5207
  %7600 = vmatprep.subr.bf16.mxu0 %v5212
  %7601 = vmatpush1.bf16.msra.mxu0 %v5211
  %7602 = vmatprep.subr.bf16.mxu0 %v5216
  %7603 = vmatpush1.bf16.msra.mxu0 %v5215
  %7604 = vmatprep.subr.bf16.mxu0 %v5220
  %7605 = vmatpush1.bf16.msra.mxu0 %v5219
  %7606 = vmatprep.subr.bf16.mxu0 %v5224
  %7607 = vmatpush1.bf16.msra.mxu0 %v5223
  %7608 = vmatprep.subr.bf16.mxu0 %v5228
  %7609 = vmatpush1.bf16.msra.mxu0 %v5227
  %7610 = vmatprep.subr.bf16.mxu0 %v5232
  %7611 = vmatpush1.bf16.msra.mxu0 %v5231
  %7612 = vmatprep.subr.bf16.mxu0 %v5236
  %7613 = vmatpush1.bf16.msra.mxu0 %v5235
  %7614 = vmatprep.subr.bf16.mxu0 %v5240
  %7615 = vmatpush1.bf16.msra.mxu0 %v5239
  %7616 = vmatprep.subr.bf16.mxu0 %v5244
  %7617 = vmatpush1.bf16.msra.mxu0 %v5243
  %7618 = vmatprep.mubr.bf16.mxu0 %v1243
  %7619 = vmatmul.mubr.bf16.gmra.mrb[0].mxu0 %v1241
  %v7620 = vpop.f32.mrb[0].mxu0
  %v7621 = vadd.f32 %v7580, %v7620
  %v7622 = vpop.f32.mrb[0].mxu0
  %v7623 = vadd.f32 %v7582, %v7622
  %v7624 = vpop.f32.mrb[0].mxu0
  %v7625 = vpop.f32.mrb[0].mxu0
  %7626 = vdwg.mxu0
  %7627 = vmatprep.subr.bf16.mxu0 %v5248
  %7628 = vmatpush1.bf16.msra.mxu0 %v5247
  %7629 = vmatprep.subr.bf16.mxu0 %v5252
  %7630 = vmatpush1.bf16.msra.mxu0 %v5251
  %7631 = vmatprep.subr.bf16.mxu0 %v5256
  %7632 = vmatpush1.bf16.msra.mxu0 %v5255
  %7633 = vmatprep.subr.bf16.mxu0 %v5260
  %7634 = vmatpush1.bf16.msra.mxu0 %v5259
  %7635 = vmatprep.subr.bf16.mxu0 %v5264
  %7636 = vmatpush1.bf16.msra.mxu0 %v5263
  %7637 = vmatprep.subr.bf16.mxu0 %v5268
  %7638 = vmatpush1.bf16.msra.mxu0 %v5267
  %7639 = vmatprep.subr.bf16.mxu0 %v5272
  %7640 = vmatpush1.bf16.msra.mxu0 %v5271
  %7641 = vmatprep.subr.bf16.mxu0 %v5276
  %7642 = vmatpush1.bf16.msra.mxu0 %v5275
  %7643 = vmatprep.subr.bf16.mxu0 %v5280
  %7644 = vmatpush1.bf16.msra.mxu0 %v5279
  %7645 = vmatprep.subr.bf16.mxu0 %v5284
  %7646 = vmatpush1.bf16.msra.mxu0 %v5283
  %7647 = vmatprep.subr.bf16.mxu0 %v5288
  %7648 = vmatpush1.bf16.msra.mxu0 %v5287
  %7649 = vmatprep.subr.bf16.mxu0 %v5292
  %7650 = vmatpush1.bf16.msra.mxu0 %v5291
  %7651 = vmatprep.subr.bf16.mxu0 %v5296
  %7652 = vmatpush1.bf16.msra.mxu0 %v5295
  %7653 = vmatprep.subr.bf16.mxu0 %v5300
  %7654 = vmatpush1.bf16.msra.mxu0 %v5299
  %7655 = vmatprep.subr.bf16.mxu0 %v5304
  %7656 = vmatpush1.bf16.msra.mxu0 %v5303
  %7657 = vmatprep.subr.bf16.mxu0 %v5308
  %7658 = vmatpush1.bf16.msra.mxu0 %v5307
  %7659 = vmatprep.mubr.bf16.mxu0 %v1240
  %7660 = vmatmul.mubr.bf16.gmra.mrb[0].mxu0 %v1226
  %v7661 = vpop.f32.mrb[0].mxu0
  %v7662 = vadd.f32 %v7621, %v7661
  %v7663 = vpop.f32.mrb[0].mxu0
  %v7664 = vadd.f32 %v7623, %v7663
  %v7665 = vpop.f32.mrb[0].mxu0
  %v7666 = vpop.f32.mrb[0].mxu0
  %7667 = vdwg.mxu0
  %7668 = vmatprep.subr.bf16.mxu0 %v5312
  %7669 = vmatpush1.bf16.msra.mxu0 %v5311
  %7670 = vmatprep.subr.bf16.mxu0 %v5316
  %7671 = vmatpush1.bf16.msra.mxu0 %v5315
  %7672 = vmatprep.subr.bf16.mxu0 %v5320
  %7673 = vmatpush1.bf16.msra.mxu0 %v5319
  %7674 = vmatprep.subr.bf16.mxu0 %v5324
  %7675 = vmatpush1.bf16.msra.mxu0 %v5323
  %7676 = vmatprep.subr.bf16.mxu0 %v5328
  %7677 = vmatpush1.bf16.msra.mxu0 %v5327
  %7678 = vmatprep.subr.bf16.mxu0 %v5332
  %7679 = vmatpush1.bf16.msra.mxu0 %v5331
  %7680 = vmatprep.subr.bf16.mxu0 %v5336
  %7681 = vmatpush1.bf16.msra.mxu0 %v5335
  %7682 = vmatprep.subr.bf16.mxu0 %v5340
  %7683 = vmatpush1.bf16.msra.mxu0 %v5339
  %7684 = vmatprep.subr.bf16.mxu0 %v5344
  %7685 = vmatpush1.bf16.msra.mxu0 %v5343
  %7686 = vmatprep.subr.bf16.mxu0 %v5348
  %7687 = vmatpush1.bf16.msra.mxu0 %v5347
  %7688 = vmatprep.subr.bf16.mxu0 %v5352
  %7689 = vmatpush1.bf16.msra.mxu0 %v5351
  %7690 = vmatprep.subr.bf16.mxu0 %v5356
  %7691 = vmatpush1.bf16.msra.mxu0 %v5355
  %7692 = vmatprep.subr.bf16.mxu0 %v5360
  %7693 = vmatpush1.bf16.msra.mxu0 %v5359
  %7694 = vmatprep.subr.bf16.mxu0 %v5364
  %7695 = vmatpush1.bf16.msra.mxu0 %v5363
  %7696 = vmatprep.subr.bf16.mxu0 %v5368
  %7697 = vmatpush1.bf16.msra.mxu0 %v5367
  %7698 = vmatprep.subr.bf16.mxu0 %v5372
  %7699 = vmatpush1.bf16.msra.mxu0 %v5371
  %7700 = vmatprep.mubr.bf16.mxu0 %v1244
  %7701 = vmatmul.mubr.bf16.gmra.mrb[0].mxu0 %v1242
  %v7702 = vpop.f32.mrb[0].mxu0
  %v7703 = vadd.f32 %v7662, %v7702
  %v7704 = vpop.f32.mrb[0].mxu0
  %v7705 = vadd.f32 %v7664, %v7704
  %v7706 = vpop.f32.mrb[0].mxu0
  %v7707 = vpop.f32.mrb[0].mxu0
  %7708 = vdwg.mxu0
  %vm7709 = vcmask 1041408
  %v7710 = vsel %vm7709, %v7047, 0.0
  %v7711 = vrot.slane %v7710, 4
  %v7712 = vadd.f32 %v7710, %v7711
  %v7713 = vrot.slane %v7712, 2
  %v7714 = vadd.f32 %v7712, %v7713
  %v7715 = vrot.slane %v7714, 1
  %v7716 = vadd.f32 %v7714, %v7715
  %v7717 = vsel %vm7709, %v7049, 0.0
  %v7718 = vrot.slane %v7717, 4
  %v7719 = vadd.f32 %v7717, %v7718
  %v7720 = vrot.slane %v7719, 2
  %v7721 = vadd.f32 %v7719, %v7720
  %v7722 = vrot.slane %v7721, 1
  %v7723 = vadd.f32 %v7721, %v7722
  %v7724 = vsel %vm7709, %v7703, 0.0
  %v7725 = vrot.slane %v7724, 4
  %v7726 = vadd.f32 %v7724, %v7725
  %v7727 = vrot.slane %v7726, 2
  %v7728 = vadd.f32 %v7726, %v7727
  %v7729 = vrot.slane %v7728, 1
  %v7730 = vadd.f32 %v7728, %v7729
  %v7731 = vsel %vm7709, %v7705, 0.0
  %v7732 = vrot.slane %v7731, 4
  %v7733 = vadd.f32 %v7731, %v7732
  %v7734 = vrot.slane %v7733, 2
  %v7735 = vadd.f32 %v7733, %v7734
  %v7736 = vrot.slane %v7735, 1
  %v7737 = vadd.f32 %v7735, %v7736
  %v7738 = vrcp.pop 2.0
  %v7739 = vmul.f32 %v7716, %v7738
  %v7740 = vmul.f32 %v7723, %v7738
  %v7741 = vmul.f32 %v7730, %v7738
  %v7742 = vmul.f32 %v7737, %v7738
  %v7743 = vsub.f32 %v7047, %v7739
  %v7744 = vsub.f32 %v7049, %v7740
  %v7745 = vsub.f32 %v7703, %v7741
  %v7746 = vsub.f32 %v7705, %v7742
  %v7747 = vmul.f32 %v7743, %v7743
  %v7748 = vmul.f32 %v7744, %v7744
  %v7749 = vmul.f32 %v7745, %v7745
  %v7750 = vmul.f32 %v7746, %v7746
  %v7751 = vsel %vm7709, %v7747, 0.0
  %v7752 = vrot.slane %v7751, 4
  %v7753 = vadd.f32 %v7751, %v7752
  %v7754 = vrot.slane %v7753, 2
  %v7755 = vadd.f32 %v7753, %v7754
  %v7756 = vrot.slane %v7755, 1
  %v7757 = vadd.f32 %v7755, %v7756
  %v7758 = vsel %vm7709, %v7748, 0.0
  %v7759 = vrot.slane %v7758, 4
  %v7760 = vadd.f32 %v7758, %v7759
  %v7761 = vrot.slane %v7760, 2
  %v7762 = vadd.f32 %v7760, %v7761
  %v7763 = vrot.slane %v7762, 1
  %v7764 = vadd.f32 %v7762, %v7763
  %v7765 = vsel %vm7709, %v7749, 0.0
  %v7766 = vrot.slane %v7765, 4
  %v7767 = vadd.f32 %v7765, %v7766
  %v7768 = vrot.slane %v7767, 2
  %v7769 = vadd.f32 %v7767, %v7768
  %v7770 = vrot.slane %v7769, 1
  %v7771 = vadd.f32 %v7769, %v7770
  %v7772 = vsel %vm7709, %v7750, 0.0
  %v7773 = vrot.slane %v7772, 4
  %v7774 = vadd.f32 %v7772, %v7773
  %v7775 = vrot.slane %v7774, 2
  %v7776 = vadd.f32 %v7774, %v7775
  %v7777 = vrot.slane %v7776, 1
  %v7778 = vadd.f32 %v7776, %v7777
  %v7779 = vmul.f32 %v7757, %v7738
  %v7780 = vmul.f32 %v7764, %v7738
  %v7781 = vmul.f32 %v7771, %v7738
  %v7782 = vmul.f32 %v7778, %v7738
  %v7783 = vadd.f32 %v7779, 0.8
  %v7784 = vadd.f32 %v7780, 0.8
  %v7785 = vadd.f32 %v7781, 0.8
  %v7786 = vadd.f32 %v7782, 0.8
  %v7787 = vrsqrt.pop %v7783
  %v7788 = vrsqrt.pop %v7784
  %v7789 = vrsqrt.pop %v7785
  %v7790 = vrsqrt.pop %v7786
  %v7791 = vmul.f32 %v7743, %v7787
  %v7792 = vmul.f32 %v7744, %v7788
  %v7793 = vmul.f32 %v7745, %v7789
  %v7794 = vmul.f32 %v7746, %v7790
  %v7795 = vld [vmem:[%s2] sm:$0xf]
  %v7797 = vlaneseq
  %v7798 = vshrl.u32 %v7797, 7
  %v7799 = vsub.s32 0, %v7798
  %v7800 = vrot.slane %v7795, %v7799
  %v7801 = vlaneseq
  %v7802 = vshrl.u32 %v7801, 7
  %v7803 = vsub.s32 1, %v7802
  %v7804 = vrot.slane %v7795, %v7803
  %v7805 = vlaneseq
  %v7806 = vshrl.u32 %v7805, 7
  %v7807 = vsub.s32 2, %v7806
  %v7808 = vrot.slane %v7795, %v7807
  %v7809 = vlaneseq
  %v7810 = vshrl.u32 %v7809, 7
  %v7811 = vsub.s32 3, %v7810
  %v7812 = vrot.slane %v7795, %v7811
  %v7817 = vmul.f32 %v7791, %v7800
  %v7818 = vmul.f32 %v7792, %v7804
  %v7819 = vmul.f32 %v7793, %v7808
  %v7820 = vmul.f32 %v7794, %v7812
  %v7821 = vld [vmem:[%s3] sm:$0xf]
  %v7823 = vlaneseq
  %v7824 = vshrl.u32 %v7823, 7
  %v7825 = vsub.s32 0, %v7824
  %v7826 = vrot.slane %v7821, %v7825
  %v7827 = vlaneseq
  %v7828 = vshrl.u32 %v7827, 7
  %v7829 = vsub.s32 1, %v7828
  %v7830 = vrot.slane %v7821, %v7829
  %v7831 = vlaneseq
  %v7832 = vshrl.u32 %v7831, 7
  %v7833 = vsub.s32 2, %v7832
  %v7834 = vrot.slane %v7821, %v7833
  %v7835 = vlaneseq
  %v7836 = vshrl.u32 %v7835, 7
  %v7837 = vsub.s32 3, %v7836
  %v7838 = vrot.slane %v7821, %v7837
  %v7843 = vadd.f32 %v7817, %v7826
  %v7844 = vadd.f32 %v7818, %v7830
  %v7845 = vadd.f32 %v7819, %v7834
  %v7846 = vadd.f32 %v7820, %v7838
  %vm7847 = vcmp.ge.f32.partialorder %v7843, 0.0
  %vm7848 = vcmp.ge.f32.partialorder %v7844, 0.0
  %vm7849 = vcmp.ge.f32.partialorder %v7845, 0.0
  %vm7850 = vcmp.ge.f32.partialorder %v7846, 0.0
  %v7851 = vmul.f32 %v7843, 0.2
  %v7852 = vmul.f32 %v7844, 0.2
  %v7853 = vmul.f32 %v7845, 0.2
  %v7854 = vmul.f32 %v7846, 0.2
  %v7855 = vsel %vm7847, %v7843, %v7851
  %v7856 = vsel %vm7848, %v7844, %v7852
  %v7857 = vsel %vm7849, %v7845, %v7853
  %v7858 = vsel %vm7850, %v7846, %v7854
  %v7859 = vpack.c.bf16 %v7855, %v7855
  %v7860 = vpack.c.bf16 %v7856, %v7856
  %v7861 = vpack.c.bf16 %v7857, %v7857
  %v7862 = vpack.c.bf16 %v7858, %v7858
  %v7867 = vcombine.low %v7859, %v7860
  %v7868 = vcombine.low %v7861, %v7862
  %v7870 = vunpack.c.l.s4 1966171168
  %v7871 = vunpack.c.0.s8 %v7870
  %v7872 = vlaneseq
  %v7873 = vshrl.u32 %v7872, 7
  %v7874 = vsub.s32 %v7871, %v7873
  %v7875 = vrot.slane %v7867, %v7874
  %v7877 = vunpack.c.l.s4 1966171168
  %v7878 = vunpack.c.0.s8 %v7877
  %v7879 = vlaneseq
  %v7880 = vshrl.u32 %v7879, 7
  %v7881 = vsub.s32 %v7878, %v7880
  %v7882 = vrot.slane %v7868, %v7881
  %v7883 = vcombine.low %v7875, %v7882
  %v7885 = vunpack.c.l.s4 1966171168
  %v7886 = vunpack.c.0.s8 %v7885
  %v7887 = vlaneseq
  %v7888 = vshrl.u32 %v7887, 7
  %v7889 = vsub.s32 %v7886, %v7888
  %v7890 = vrot.slane %v7883, %v7889
  %7892 = vst [vmem:[%s4] sm:$0xf] %v7890
  // Predicated region
  $region18: #{encoder_forward.8} parent=0 // pred_check
    _
  $region19: #{encoder_forward.8} parent=0 // pred_check_branch
    %7894 = sbr.rel (0) target = $region21
  $region20: #{encoder_forward.8} parent=0 // pred_region
    _
  $region21: #{encoder_forward.8} parent=0 // pred_fallthru
    _
  // Predicated region
  $region22: #{encoder_forward.8} parent=0 // pred_check
    _
  $region23: #{encoder_forward.8} parent=0 // pred_check_branch
    %7896 = sbr.rel (0) target = $region25
  $region24: #{encoder_forward.8} parent=0 // pred_region
    _
  $region25: #{encoder_forward.8} parent=0 // pred_fallthru
    _

</llo_original>
